<compile_context>
chip_gen: v7x
topology: tpu7x:2x2x1
jax: 0.10.0
libtpu: 0.0.40
codegen_flags: <defaults>
</compile_context>

<pallas_src>
import functools

import jax
import jax.numpy as jnp
from jax.experimental import pallas as pl
from jax.experimental.pallas import tpu as pltpu

C_ENC = 512        # enc_6 output channels
C_CAT = 2 * C_ENC  # 1024 after concat([gap, gmp])
C_MID = 512        # conv1x1_5 output channels
C_PROJ = 1024      # projector5 hidden / output dim
_EPS = 1e-8


def sct_head_kernel(inv_s,
                    f1_ref, f2_ref,
                    wcg_hbm, wcm_hbm, w1_hbm, w2_hbm, w3_hbm,
                    bc_ref, b1_ref, b2_ref, b3_ref,
                    feat_ref, sim_ref,
                    sum_ref, max_ref,
                    wcg_v, wcm_v, w1_v, w2_v, w3_v, sems):
    s = pl.program_id(0)
    kb = f1_ref.shape[0]
    ts = f1_ref.shape[-1]

    def weight_copies():
        # same descriptors used for .start() (step 0) and .wait() (finalize)
        return (pltpu.make_async_copy(wcg_hbm, wcg_v, sems.at[0]),
                pltpu.make_async_copy(wcm_hbm, wcm_v, sems.at[1]),
                pltpu.make_async_copy(w1_hbm, w1_v, sems.at[2]),
                pltpu.make_async_copy(w2_hbm, w2_v, sems.at[3]),
                pltpu.make_async_copy(w3_hbm, w3_v, sems.at[4]))

    @pl.when(s == 0)
    def _init():
        # Kick off the ~6 MB weight DMA so it hides behind the feature streaming.
        for cp in weight_copies():
            cp.start()
        sum_ref[...] = jnp.zeros_like(sum_ref)
        max_ref[...] = jnp.full_like(max_ref, -jnp.inf)

    # ---- streaming pooled reduction over this S-tile (VPU-only hot loop) -----
    n_full = ts // 128
    rem = ts - n_full * 128

    def accumulate(f_ref, row0):
        rows = slice(row0, row0 + kb)
        if n_full:
            psum = f_ref[:, :, 0:128].astype(jnp.float32)       # [K, 512, 128]
            pmax = psum
            for m in range(1, n_full):                          # static unroll
                c = f_ref[:, :, m * 128:(m + 1) * 128].astype(jnp.float32)
                psum = psum + c
                pmax = jnp.maximum(pmax, c)
            sum_ref[rows] += psum
            max_ref[rows] = jnp.maximum(max_ref[rows], pmax)
        if rem:  # only possible when ts == full S (single-block grid)
            c = f_ref[:, :, n_full * 128:ts].astype(jnp.float32)
            sum_ref[rows, :, 0:rem] += c
            max_ref[rows, :, 0:rem] = jnp.maximum(max_ref[rows, :, 0:rem], c)

    accumulate(f1_ref, 0)    # image 1 -> rows [0:K]
    accumulate(f2_ref, kb)   # image 2 -> rows [K:2K]

    @pl.when(s == pl.num_programs(0) - 1)
    def _finalize():
        for cp in weight_copies():
            cp.wait()

        # single lane reduce of the 128-wide accumulators (once, not per tile)
        gap = jnp.sum(sum_ref[...], axis=-1) * inv_s            # [2K, 512] f32
        gmp = jnp.max(max_ref[...], axis=-1)                    # [2K, 512] f32

        wdt = wcg_v.dtype  # bf16 weights; cast tiny activations at the dot only

        # conv1x1_5 on the 1x1 pooled map == dense layer; weight split avoids the
        # lane-axis concat([gap, gmp]) relayout (same contraction, no extra FLOPs).
        x = (jnp.dot(gap.astype(wdt), wcg_v[...], preferred_element_type=jnp.float32)
             + jnp.dot(gmp.astype(wdt), wcm_v[...], preferred_element_type=jnp.float32)
             + bc_ref[...])
        x = jnp.maximum(x, 0.0)                                 # [2K, 512]

        # projector5: Linear(512,1024) -> ReLU -> Linear(1024,1024) -> ReLU -> Linear(1024,1024)
        x = jnp.dot(x.astype(wdt), w1_v[...], preferred_element_type=jnp.float32) + b1_ref[...]
        x = jnp.maximum(x, 0.0)
        x = jnp.dot(x.astype(wdt), w2_v[...], preferred_element_type=jnp.float32) + b2_ref[...]
        x = jnp.maximum(x, 0.0)
        x = jnp.dot(x.astype(wdt), w3_v[...], preferred_element_type=jnp.float32) + b3_ref[...]
        feat_ref[...] = x                                       # [2K, 1024] f32

        # F.cosine_similarity(x1, x2, dim=1, eps=1e-8): dot / max(||x1||*||x2||, eps)
        x1 = x[:kb, :]
        x2 = x[kb:, :]
        dotp = jnp.sum(x1 * x2, axis=-1, keepdims=True)
        n1sq = jnp.sum(x1 * x1, axis=-1, keepdims=True)
        n2sq = jnp.sum(x2 * x2, axis=-1, keepdims=True)
        # rsqrt on the EUP; clamping the inverse at 1/eps == clamping the norm product at eps
        inv_norm = jnp.minimum(jax.lax.rsqrt(n1sq * n2sq), 1.0 / _EPS)
        sim_ref[...] = dotp * inv_norm                          # [K, 1]


def _pick_s_tile(s_total, kb, feat_itemsize, vmem_limit_bytes, fixed_bytes):
    """Largest S-tile whose streamed-feature footprint fits the VMEM budget."""
    budget = int(vmem_limit_bytes * 0.75) - fixed_bytes
    for ts in (2048, 1024, 512, 256, 128):
        if s_total % ts:
            continue
        # 2 feature inputs x 2 pipeline buffers + live f32 chunk temporaries
        need = 2 * 2 * kb * C_ENC * ts * feat_itemsize + 2 * kb * C_ENC * 128 * 4
        if need <= budget:
            return ts
    return s_total  # single full-extent block (always a legal BlockSpec)


def sct_forward(f1_nchw, f2_nchw, params, *, s_tile=None, vmem_limit_bytes=48 << 20):
    """f1_nchw, f2_nchw: enc_6 features in native NCHW layout, [K, 512, H, W] each
    (K image pairs per call; the original module is K=1).  bf16 preferred (halves
    the dominant feature DMA); any float dtype works."""
    # TODO(synk): the VGG-style encoder (enc_1..enc_6) is an external module passed
    # to __init__ and the PIL/cv2 preprocessing is host code; both stay outside.
    kb, c, h, w = f1_nchw.shape
    assert f2_nchw.shape == (kb, c, h, w) and c == C_ENC
    s_total = h * w
    f1 = f1_nchw.reshape(kb, c, s_total)   # free reshape: no transpose / cast pass over HBM
    f2 = f2_nchw.reshape(kb, c, s_total)

    wdtype = params["w1"].dtype
    w_bytes = (2 * C_ENC * C_MID + C_MID * C_PROJ + 2 * C_PROJ * C_PROJ) * jnp.dtype(wdtype).itemsize
    acc_bytes = 2 * (2 * kb) * C_ENC * 128 * 4
    feat_itemsize = jnp.dtype(f1.dtype).itemsize

    ts = s_tile if s_tile is not None else _pick_s_tile(
        s_total, kb, feat_itemsize, vmem_limit_bytes, w_bytes + acc_bytes)
    assert s_total % ts == 0 and (ts % 128 == 0 or ts == s_total)
    grid = (s_total // ts,)

    def const2d(rows, cols):
        return pl.BlockSpec((rows, cols), lambda i: (0, 0))

    any_spec = pl.BlockSpec(memory_space=pl.ANY)   # raw HBM ref, manual DMA in-kernel

    in_specs = [
        pl.BlockSpec((kb, C_ENC, ts), lambda i: (0, 0, i)),   # f1 tile
        pl.BlockSpec((kb, C_ENC, ts), lambda i: (0, 0, i)),   # f2 tile
        any_spec,                 # wc_gap  (bf16, manual DMA overlapped with streaming)
        any_spec,                 # wc_gmp
        any_spec,                 # w1
        any_spec,                 # w2
        any_spec,                 # w3
        const2d(1, C_MID),        # bc   (tiny, auto-DMA)
        const2d(1, C_PROJ),       # b1
        const2d(1, C_PROJ),       # b2
        const2d(1, C_PROJ),       # b3
    ]
    out_specs = (const2d(2 * kb, C_PROJ), const2d(kb, 1))

    scratch_shapes = [
        pltpu.VMEM((2 * kb, C_ENC, 128), jnp.float32),   # sum accumulator (f1|f2)
        pltpu.VMEM((2 * kb, C_ENC, 128), jnp.float32),   # max accumulator (f1|f2)
        pltpu.VMEM((C_ENC, C_MID), wdtype),              # wc_gap  (VMEM copy)
        pltpu.VMEM((C_ENC, C_MID), wdtype),              # wc_gmp
        pltpu.VMEM((C_MID, C_PROJ), wdtype),             # w1
        pltpu.VMEM((C_PROJ, C_PROJ), wdtype),            # w2
        pltpu.VMEM((C_PROJ, C_PROJ), wdtype),            # w3
        pltpu.SemaphoreType.DMA((5,)),                   # one sem per weight DMA
    ]

    kernel = functools.partial(sct_head_kernel, float(1.0 / s_total))

    # TODO(synk): on v7x (2 TensorCores) a leading "parallel" grid axis over K
    # pairs would use the second core for K>=2; the S axis must stay "arbitrary"
    # (sequential) because of the accumulator init/finalize pattern.
    feat, sim = pl.pallas_call(
        kernel,
        out_shape=(jax.ShapeDtypeStruct((2 * kb, C_PROJ), jnp.float32),
                   jax.ShapeDtypeStruct((kb, 1), jnp.float32)),
        grid_spec=pltpu.PrefetchScalarGridSpec(
            num_scalar_prefetch=0,
            grid=grid,
            in_specs=in_specs,
            out_specs=out_specs,
            scratch_shapes=scratch_shapes),
        compiler_params=pltpu.CompilerParams(
            dimension_semantics=("arbitrary",),
            vmem_limit_bytes=vmem_limit_bytes),   # <= 48 MiB: safe on v5e/v6e/v7x
    )(f1, f2,
      params["wc_gap"], params["wc_gmp"],
      params["w1"], params["w2"], params["w3"],
      params["bc"], params["b1"], params["b2"], params["b3"])
    return feat, sim[:, 0]   # sim matches F.cosine_similarity output shape [K]


def init_params(key):
    ks = jax.random.split(key, 8)
    scale = 0.03

    def w(k, shape, dtype=jnp.bfloat16):
        return (scale * jax.random.normal(k, shape, dtype=jnp.float32)).astype(dtype)

    # conv1x1_5: Conv2d(1024, 512, 1) weight stored transposed [in=1024, out=512],
    # then split into the gap (first 512 in-channels) and gmp (last 512) halves.
    wc = w(ks[0], (C_CAT, C_MID))
    return {
        "wc_gap": wc[:C_ENC, :],
        "wc_gmp": wc[C_ENC:, :],
        "bc": w(ks[1], (1, C_MID), jnp.float32),
        "w1": w(ks[2], (C_MID, C_PROJ)),
        "b1": w(ks[3], (1, C_PROJ), jnp.float32),
        "w2": w(ks[4], (C_PROJ, C_PROJ)),
        "b2": w(ks[5], (1, C_PROJ), jnp.float32),
        "w3": w(ks[6], (C_PROJ, C_PROJ)),
        "b3": w(ks[7], (1, C_PROJ), jnp.float32),
    }


def sct_reference(f1_nchw, f2_nchw, params):
    """Plain-JAX reference with identical (bf16-weight) numerics."""
    def pooled(f):
        kb, c, h, w = f.shape
        x = f.reshape(kb, c, h * w).astype(jnp.float32)
        return jnp.mean(x, axis=-1), jnp.max(x, axis=-1)

    gap1, gmp1 = pooled(f1_nchw)
    gap2, gmp2 = pooled(f2_nchw)
    gap = jnp.concatenate([gap1, gap2], axis=0)
    gmp = jnp.concatenate([gmp1, gmp2], axis=0)
    wdt = params["wc_gap"].dtype

    def dotf(a, ww):
        return jnp.dot(a.astype(wdt), ww, preferred_element_type=jnp.float32)

    x = jnp.maximum(dotf(gap, params["wc_gap"]) + dotf(gmp, params["wc_gmp"]) + params["bc"], 0.0)
    x = jnp.maximum(dotf(x, params["w1"]) + params["b1"], 0.0)
    x = jnp.maximum(dotf(x, params["w2"]) + params["b2"], 0.0)
    x = dotf(x, params["w3"]) + params["b3"]
    kb = f1_nchw.shape[0]
    x1, x2 = x[:kb], x[kb:]
    dotp = jnp.sum(x1 * x2, axis=-1)
    denom = jnp.maximum(jnp.sqrt(jnp.sum(x1 * x1, -1)) * jnp.sqrt(jnp.sum(x2 * x2, -1)), _EPS)
    return x, dotp / denom


if __name__ == "__main__":
    key = jax.random.PRNGKey(0)
    k1, k2, kp = jax.random.split(key, 3)

    K, H, W = 1, 16, 16   # small enc_6-like feature map; S = 256
    # Encoder (VGG) features are post-ReLU (non-negative); stream them as bf16.
    # TODO(synk): in production the encoder should emit bf16 directly (no extra cast pass).
    f1 = jnp.abs(jax.random.normal(k1, (K, C_ENC, H, W), dtype=jnp.float32)).astype(jnp.bfloat16)
    f2 = jnp.abs(jax.random.normal(k2, (K, C_ENC, H, W), dtype=jnp.float32)).astype(jnp.bfloat16)
    params = init_params(kp)

    # s_tile=128 -> grid of 2 S-tiles, exercising the pipelined reduction path and
    # the cross-step weight-DMA start (step 0) / wait (finalize).
    feat, sim = sct_forward(f1, f2, params, s_tile=128)
    jax.block_until_ready((feat, sim))

    feat_ref, sim_ref = sct_reference(f1, f2, params)

    assert feat.shape == (2 * K, C_PROJ)
    assert sim.shape == (K,)
    assert bool(jnp.all(jnp.isfinite(feat))) and bool(jnp.all(jnp.isfinite(sim)))
    assert bool(jnp.allclose(sim, sim_ref, atol=5e-3, rtol=5e-3))
    assert bool(jnp.allclose(feat, feat_ref, atol=5e-2, rtol=5e-2))
    print("KERNEL_OK")
</pallas_src>

<mosaic_0001>
module attributes {stable_mosaic.version = 11 : i64} {
  func.func @sct_head_kernel(%arg0: i32, %arg1: memref<1x512x128xbf16, #tpu.memory_space<vmem>>, %arg2: memref<1x512x128xbf16, #tpu.memory_space<vmem>>, %arg3: memref<512x512xbf16, #tpu.memory_space<any>>, %arg4: memref<512x512xbf16, #tpu.memory_space<any>>, %arg5: memref<512x1024xbf16, #tpu.memory_space<any>>, %arg6: memref<1024x1024xbf16, #tpu.memory_space<any>>, %arg7: memref<1024x1024xbf16, #tpu.memory_space<any>>, %arg8: memref<1x512xf32, #tpu.memory_space<vmem>>, %arg9: memref<1x1024xf32, #tpu.memory_space<vmem>>, %arg10: memref<1x1024xf32, #tpu.memory_space<vmem>>, %arg11: memref<1x1024xf32, #tpu.memory_space<vmem>>, %arg12: memref<2x1024xf32, #tpu.memory_space<vmem>>, %arg13: memref<1x1xf32, #tpu.memory_space<vmem>>, %arg14: memref<2x512x128xf32, #tpu.memory_space<vmem>>, %arg15: memref<2x512x128xf32, #tpu.memory_space<vmem>>, %arg16: memref<512x512xbf16, #tpu.memory_space<vmem>>, %arg17: memref<512x512xbf16, #tpu.memory_space<vmem>>, %arg18: memref<512x1024xbf16, #tpu.memory_space<vmem>>, %arg19: memref<1024x1024xbf16, #tpu.memory_space<vmem>>, %arg20: memref<1024x1024xbf16, #tpu.memory_space<vmem>>, %arg21: memref<5x!tpu.dma_semaphore, #tpu.memory_space<semaphore_mem>>) attributes {dimension_semantics = [#tpu.dimension_semantics<arbitrary>], iteration_bounds = array<i64: 2>, scalar_prefetch = 0 : i64, scratch_operands = 8 : i64, tpu.core_type = #tpu.core_type<tc>, window_params = [{transform_indices = @transform_0, window_bounds = array<i64: 1, 512, 128>}, {transform_indices = @transform_1, window_bounds = array<i64: 1, 512, 128>}, {}, {}, {}, {}, {}, {pipeline_mode = #tpu.pipeline_mode<synchronous>, transform_indices = @transform_7, window_bounds = array<i64: 1, 512>}, {pipeline_mode = #tpu.pipeline_mode<synchronous>, transform_indices = @transform_8, window_bounds = array<i64: 1, 1024>}, {pipeline_mode = #tpu.pipeline_mode<synchronous>, transform_indices = @transform_9, window_bounds = array<i64: 1, 1024>}, {pipeline_mode = #tpu.pipeline_mode<synchronous>, transform_indices = @transform_10, window_bounds = array<i64: 1, 1024>}, {pipeline_mode = #tpu.pipeline_mode<synchronous>, transform_indices = @transform_11, window_bounds = array<i64: 2, 1024>}, {pipeline_mode = #tpu.pipeline_mode<synchronous>, transform_indices = @transform_12, window_bounds = array<i64: 1, 1>}]} {
    %c0_i32 = arith.constant 0 : i32
    %0 = arith.cmpi eq, %arg0, %c0_i32 : i32
    %1 = arith.extui %0 : i1 to i32
    %c0_i32_0 = arith.constant 0 : i32
    %2 = arith.cmpi ne, %1, %c0_i32_0 : i32
    scf.if %2 {
      %c0_i32_30 = arith.constant 0 : i32
      %22 = tpu.memref_slice %arg21[%c0_i32_30] : memref<5x!tpu.dma_semaphore, #tpu.memory_space<semaphore_mem>> -> memref<1x!tpu.dma_semaphore, #tpu.memory_space<semaphore_mem>>
      %23 = tpu.memref_squeeze %22 : memref<1x!tpu.dma_semaphore, #tpu.memory_space<semaphore_mem>> -> memref<!tpu.dma_semaphore, #tpu.memory_space<semaphore_mem>>
      tpu.enqueue_dma source(%arg3 : memref<512x512xbf16, #tpu.memory_space<any>>) target(%arg16 : memref<512x512xbf16, #tpu.memory_space<vmem>>) target_semaphore(%23 : memref<!tpu.dma_semaphore, #tpu.memory_space<semaphore_mem>>)
      %c1_i32_31 = arith.constant 1 : i32
      %24 = tpu.memref_slice %arg21[%c1_i32_31] : memref<5x!tpu.dma_semaphore, #tpu.memory_space<semaphore_mem>> -> memref<1x!tpu.dma_semaphore, #tpu.memory_space<semaphore_mem>>
      %25 = tpu.memref_squeeze %24 : memref<1x!tpu.dma_semaphore, #tpu.memory_space<semaphore_mem>> -> memref<!tpu.dma_semaphore, #tpu.memory_space<semaphore_mem>>
      tpu.enqueue_dma source(%arg4 : memref<512x512xbf16, #tpu.memory_space<any>>) target(%arg17 : memref<512x512xbf16, #tpu.memory_space<vmem>>) target_semaphore(%25 : memref<!tpu.dma_semaphore, #tpu.memory_space<semaphore_mem>>)
      %c2_i32 = arith.constant 2 : i32
      %26 = tpu.memref_slice %arg21[%c2_i32] : memref<5x!tpu.dma_semaphore, #tpu.memory_space<semaphore_mem>> -> memref<1x!tpu.dma_semaphore, #tpu.memory_space<semaphore_mem>>
      %27 = tpu.memref_squeeze %26 : memref<1x!tpu.dma_semaphore, #tpu.memory_space<semaphore_mem>> -> memref<!tpu.dma_semaphore, #tpu.memory_space<semaphore_mem>>
      tpu.enqueue_dma source(%arg5 : memref<512x1024xbf16, #tpu.memory_space<any>>) target(%arg18 : memref<512x1024xbf16, #tpu.memory_space<vmem>>) target_semaphore(%27 : memref<!tpu.dma_semaphore, #tpu.memory_space<semaphore_mem>>)
      %c3_i32 = arith.constant 3 : i32
      %28 = tpu.memref_slice %arg21[%c3_i32] : memref<5x!tpu.dma_semaphore, #tpu.memory_space<semaphore_mem>> -> memref<1x!tpu.dma_semaphore, #tpu.memory_space<semaphore_mem>>
      %29 = tpu.memref_squeeze %28 : memref<1x!tpu.dma_semaphore, #tpu.memory_space<semaphore_mem>> -> memref<!tpu.dma_semaphore, #tpu.memory_space<semaphore_mem>>
      tpu.enqueue_dma source(%arg6 : memref<1024x1024xbf16, #tpu.memory_space<any>>) target(%arg19 : memref<1024x1024xbf16, #tpu.memory_space<vmem>>) target_semaphore(%29 : memref<!tpu.dma_semaphore, #tpu.memory_space<semaphore_mem>>)
      %c4_i32 = arith.constant 4 : i32
      %30 = tpu.memref_slice %arg21[%c4_i32] : memref<5x!tpu.dma_semaphore, #tpu.memory_space<semaphore_mem>> -> memref<1x!tpu.dma_semaphore, #tpu.memory_space<semaphore_mem>>
      %31 = tpu.memref_squeeze %30 : memref<1x!tpu.dma_semaphore, #tpu.memory_space<semaphore_mem>> -> memref<!tpu.dma_semaphore, #tpu.memory_space<semaphore_mem>>
      tpu.enqueue_dma source(%arg7 : memref<1024x1024xbf16, #tpu.memory_space<any>>) target(%arg20 : memref<1024x1024xbf16, #tpu.memory_space<vmem>>) target_semaphore(%31 : memref<!tpu.dma_semaphore, #tpu.memory_space<semaphore_mem>>)
      %cst = arith.constant 0.000000e+00 : f32
      %32 = vector.broadcast %cst : f32 to vector<2x512x128xf32>
      %c0_32 = arith.constant 0 : index
      %c0_33 = arith.constant 0 : index
      %c0_34 = arith.constant 0 : index
      %33 = vector.load %arg14[%c0_32, %c0_33, %c0_34] : memref<2x512x128xf32, #tpu.memory_space<vmem>>, vector<2x512x128xf32>
      tpu.vector_store %arg14[%c0_32, %c0_33, %c0_34], %32 {strides = array<i32>} : memref<2x512x128xf32, #tpu.memory_space<vmem>>, vector<2x512x128xf32>,
      %cst_35 = arith.constant 0xFF800000 : f32
      %34 = vector.broadcast %cst_35 : f32 to vector<2x512x128xf32>
      %c0_36 = arith.constant 0 : index
      %c0_37 = arith.constant 0 : index
      %c0_38 = arith.constant 0 : index
      %35 = vector.load %arg15[%c0_36, %c0_37, %c0_38] : memref<2x512x128xf32, #tpu.memory_space<vmem>>, vector<2x512x128xf32>
      tpu.vector_store %arg15[%c0_36, %c0_37, %c0_38], %34 {strides = array<i32>} : memref<2x512x128xf32, #tpu.memory_space<vmem>>, vector<2x512x128xf32>,
    } else {
    }
    %c0 = arith.constant 0 : index
    %c0_1 = arith.constant 0 : index
    %c0_2 = arith.constant 0 : index
    %3 = vector.load %arg1[%c0, %c0_1, %c0_2] : memref<1x512x128xbf16, #tpu.memory_space<vmem>>, vector<1x512x128xbf16>
    %4 = arith.extf %3 : vector<1x512x128xbf16> to vector<1x512x128xf32>
    %c0_3 = arith.constant 0 : index
    %c0_4 = arith.constant 0 : index
    %c0_5 = arith.constant 0 : index
    %5 = vector.load %arg14[%c0_3, %c0_4, %c0_5] : memref<2x512x128xf32, #tpu.memory_space<vmem>>, vector<1x512x128xf32>
    %6 = arith.addf %5, %4 : vector<1x512x128xf32>
    %c0_6 = arith.constant 0 : index
    %c0_7 = arith.constant 0 : index
    %c0_8 = arith.constant 0 : index
    %7 = vector.load %arg14[%c0_6, %c0_7, %c0_8] : memref<2x512x128xf32, #tpu.memory_space<vmem>>, vector<1x512x128xf32>
    tpu.vector_store %arg14[%c0_6, %c0_7, %c0_8], %6 {strides = array<i32>} : memref<2x512x128xf32, #tpu.memory_space<vmem>>, vector<1x512x128xf32>,
    %c0_9 = arith.constant 0 : index
    %c0_10 = arith.constant 0 : index
    %c0_11 = arith.constant 0 : index
    %8 = vector.load %arg15[%c0_9, %c0_10, %c0_11] : memref<2x512x128xf32, #tpu.memory_space<vmem>>, vector<1x512x128xf32>
    %9 = arith.maximumf %8, %4 : vector<1x512x128xf32>
    %c0_12 = arith.constant 0 : index
    %c0_13 = arith.constant 0 : index
    %c0_14 = arith.constant 0 : index
    %10 = vector.load %arg15[%c0_12, %c0_13, %c0_14] : memref<2x512x128xf32, #tpu.memory_space<vmem>>, vector<1x512x128xf32>
    tpu.vector_store %arg15[%c0_12, %c0_13, %c0_14], %9 {strides = array<i32>} : memref<2x512x128xf32, #tpu.memory_space<vmem>>, vector<1x512x128xf32>,
    %c0_15 = arith.constant 0 : index
    %c0_16 = arith.constant 0 : index
    %c0_17 = arith.constant 0 : index
    %11 = vector.load %arg2[%c0_15, %c0_16, %c0_17] : memref<1x512x128xbf16, #tpu.memory_space<vmem>>, vector<1x512x128xbf16>
    %12 = arith.extf %11 : vector<1x512x128xbf16> to vector<1x512x128xf32>
    %c1 = arith.constant 1 : index
    %c0_18 = arith.constant 0 : index
    %c0_19 = arith.constant 0 : index
    %13 = vector.load %arg14[%c1, %c0_18, %c0_19] : memref<2x512x128xf32, #tpu.memory_space<vmem>>, vector<1x512x128xf32>
    %14 = arith.addf %13, %12 : vector<1x512x128xf32>
    %c1_20 = arith.constant 1 : index
    %c0_21 = arith.constant 0 : index
    %c0_22 = arith.constant 0 : index
    %15 = vector.load %arg14[%c1_20, %c0_21, %c0_22] : memref<2x512x128xf32, #tpu.memory_space<vmem>>, vector<1x512x128xf32>
    tpu.vector_store %arg14[%c1_20, %c0_21, %c0_22], %14 {strides = array<i32>} : memref<2x512x128xf32, #tpu.memory_space<vmem>>, vector<1x512x128xf32>,
    %c1_23 = arith.constant 1 : index
    %c0_24 = arith.constant 0 : index
    %c0_25 = arith.constant 0 : index
    %16 = vector.load %arg15[%c1_23, %c0_24, %c0_25] : memref<2x512x128xf32, #tpu.memory_space<vmem>>, vector<1x512x128xf32>
    %17 = arith.maximumf %16, %12 : vector<1x512x128xf32>
    %c1_26 = arith.constant 1 : index
    %c0_27 = arith.constant 0 : index
    %c0_28 = arith.constant 0 : index
    %18 = vector.load %arg15[%c1_26, %c0_27, %c0_28] : memref<2x512x128xf32, #tpu.memory_space<vmem>>, vector<1x512x128xf32>
    tpu.vector_store %arg15[%c1_26, %c0_27, %c0_28], %17 {strides = array<i32>} : memref<2x512x128xf32, #tpu.memory_space<vmem>>, vector<1x512x128xf32>,
    %c1_i32 = arith.constant 1 : i32
    %19 = arith.cmpi eq, %arg0, %c1_i32 : i32
    %20 = arith.extui %19 : i1 to i32
    %c0_i32_29 = arith.constant 0 : i32
    %21 = arith.cmpi ne, %20, %c0_i32_29 : i32
    scf.if %21 {
      %c0_i32_30 = arith.constant 0 : i32
      %22 = tpu.memref_slice %arg21[%c0_i32_30] : memref<5x!tpu.dma_semaphore, #tpu.memory_space<semaphore_mem>> -> memref<1x!tpu.dma_semaphore, #tpu.memory_space<semaphore_mem>>
      %23 = tpu.memref_squeeze %22 : memref<1x!tpu.dma_semaphore, #tpu.memory_space<semaphore_mem>> -> memref<!tpu.dma_semaphore, #tpu.memory_space<semaphore_mem>>
      tpu.wait_dma2 semaphore(%23 : memref<!tpu.dma_semaphore, #tpu.memory_space<semaphore_mem>>) src(%arg3 : memref<512x512xbf16, #tpu.memory_space<any>>) dst(%arg16 : memref<512x512xbf16, #tpu.memory_space<vmem>>)
      %c1_i32_31 = arith.constant 1 : i32
      %24 = tpu.memref_slice %arg21[%c1_i32_31] : memref<5x!tpu.dma_semaphore, #tpu.memory_space<semaphore_mem>> -> memref<1x!tpu.dma_semaphore, #tpu.memory_space<semaphore_mem>>
      %25 = tpu.memref_squeeze %24 : memref<1x!tpu.dma_semaphore, #tpu.memory_space<semaphore_mem>> -> memref<!tpu.dma_semaphore, #tpu.memory_space<semaphore_mem>>
      tpu.wait_dma2 semaphore(%25 : memref<!tpu.dma_semaphore, #tpu.memory_space<semaphore_mem>>) src(%arg4 : memref<512x512xbf16, #tpu.memory_space<any>>) dst(%arg17 : memref<512x512xbf16, #tpu.memory_space<vmem>>)
      %c2_i32 = arith.constant 2 : i32
      %26 = tpu.memref_slice %arg21[%c2_i32] : memref<5x!tpu.dma_semaphore, #tpu.memory_space<semaphore_mem>> -> memref<1x!tpu.dma_semaphore, #tpu.memory_space<semaphore_mem>>
      %27 = tpu.memref_squeeze %26 : memref<1x!tpu.dma_semaphore, #tpu.memory_space<semaphore_mem>> -> memref<!tpu.dma_semaphore, #tpu.memory_space<semaphore_mem>>
      tpu.wait_dma2 semaphore(%27 : memref<!tpu.dma_semaphore, #tpu.memory_space<semaphore_mem>>) src(%arg5 : memref<512x1024xbf16, #tpu.memory_space<any>>) dst(%arg18 : memref<512x1024xbf16, #tpu.memory_space<vmem>>)
      %c3_i32 = arith.constant 3 : i32
      %28 = tpu.memref_slice %arg21[%c3_i32] : memref<5x!tpu.dma_semaphore, #tpu.memory_space<semaphore_mem>> -> memref<1x!tpu.dma_semaphore, #tpu.memory_space<semaphore_mem>>
      %29 = tpu.memref_squeeze %28 : memref<1x!tpu.dma_semaphore, #tpu.memory_space<semaphore_mem>> -> memref<!tpu.dma_semaphore, #tpu.memory_space<semaphore_mem>>
      tpu.wait_dma2 semaphore(%29 : memref<!tpu.dma_semaphore, #tpu.memory_space<semaphore_mem>>) src(%arg6 : memref<1024x1024xbf16, #tpu.memory_space<any>>) dst(%arg19 : memref<1024x1024xbf16, #tpu.memory_space<vmem>>)
      %c4_i32 = arith.constant 4 : i32
      %30 = tpu.memref_slice %arg21[%c4_i32] : memref<5x!tpu.dma_semaphore, #tpu.memory_space<semaphore_mem>> -> memref<1x!tpu.dma_semaphore, #tpu.memory_space<semaphore_mem>>
      %31 = tpu.memref_squeeze %30 : memref<1x!tpu.dma_semaphore, #tpu.memory_space<semaphore_mem>> -> memref<!tpu.dma_semaphore, #tpu.memory_space<semaphore_mem>>
      tpu.wait_dma2 semaphore(%31 : memref<!tpu.dma_semaphore, #tpu.memory_space<semaphore_mem>>) src(%arg7 : memref<1024x1024xbf16, #tpu.memory_space<any>>) dst(%arg20 : memref<1024x1024xbf16, #tpu.memory_space<vmem>>)
      %c0_32 = arith.constant 0 : index
      %c0_33 = arith.constant 0 : index
      %c0_34 = arith.constant 0 : index
      %32 = vector.load %arg14[%c0_32, %c0_33, %c0_34] : memref<2x512x128xf32, #tpu.memory_space<vmem>>, vector<2x512x128xf32>
      %cst = arith.constant dense<0.000000e+00> : vector<2x512xf32>
      %33 = vector.multi_reduction <add>, %32, %cst [2] : vector<2x512x128xf32> to vector<2x512xf32>
      %cst_35 = arith.constant 3.906250e-03 : f32
      %34 = vector.broadcast %cst_35 : f32 to vector<2x512xf32>
      %35 = arith.mulf %33, %34 : vector<2x512xf32>
      %c0_36 = arith.constant 0 : index
      %c0_37 = arith.constant 0 : index
      %c0_38 = arith.constant 0 : index
      %36 = vector.load %arg15[%c0_36, %c0_37, %c0_38] : memref<2x512x128xf32, #tpu.memory_space<vmem>>, vector<2x512x128xf32>
      %cst_39 = arith.constant dense<0xFF800000> : vector<2x512xf32>
      %37 = vector.multi_reduction <maximumf>, %36, %cst_39 [2] : vector<2x512x128xf32> to vector<2x512xf32>
      %38 = arith.truncf %35 : vector<2x512xf32> to vector<2x512xbf16>
      %c0_40 = arith.constant 0 : index
      %c0_41 = arith.constant 0 : index
      %39 = vector.load %arg16[%c0_40, %c0_41] : memref<512x512xbf16, #tpu.memory_space<vmem>>, vector<512x512xbf16>
      %cst_42 = arith.constant dense<0.000000e+00> : vector<2x512xf32>
      %40 = tpu.matmul %38, %39, %cst_42 {dimension_numbers = #tpu.dot_dimension_numbers<[1], [0], [0], [1], [0, 0, 1, 1], [], []>} : vector<2x512xbf16>, vector<512x512xbf16>, vector<2x512xf32> -> vector<2x512xf32>
      %41 = arith.truncf %37 : vector<2x512xf32> to vector<2x512xbf16>
      %c0_43 = arith.constant 0 : index
      %c0_44 = arith.constant 0 : index
      %42 = vector.load %arg17[%c0_43, %c0_44] : memref<512x512xbf16, #tpu.memory_space<vmem>>, vector<512x512xbf16>
      %cst_45 = arith.constant dense<0.000000e+00> : vector<2x512xf32>
      %43 = tpu.matmul %41, %42, %cst_45 {dimension_numbers = #tpu.dot_dimension_numbers<[1], [0], [0], [1], [0, 0, 1, 1], [], []>} : vector<2x512xbf16>, vector<512x512xbf16>, vector<2x512xf32> -> vector<2x512xf32>
      %44 = arith.addf %40, %43 : vector<2x512xf32>
      %c0_46 = arith.constant 0 : index
      %c0_47 = arith.constant 0 : index
      %45 = vector.load %arg8[%c0_46, %c0_47] : memref<1x512xf32, #tpu.memory_space<vmem>>, vector<1x512xf32>
      %46 = vector.broadcast %45 : vector<1x512xf32> to vector<2x512xf32>
      %47 = arith.addf %44, %46 : vector<2x512xf32>
      %cst_48 = arith.constant 0.000000e+00 : f32
      %48 = vector.broadcast %cst_48 : f32 to vector<2x512xf32>
      %49 = arith.maximumf %47, %48 : vector<2x512xf32>
      %50 = arith.truncf %49 : vector<2x512xf32> to vector<2x512xbf16>
      %c0_49 = arith.constant 0 : index
      %c0_50 = arith.constant 0 : index
      %51 = vector.load %arg18[%c0_49, %c0_50] : memref<512x1024xbf16, #tpu.memory_space<vmem>>, vector<512x1024xbf16>
      %cst_51 = arith.constant dense<0.000000e+00> : vector<2x1024xf32>
      %52 = tpu.matmul %50, %51, %cst_51 {dimension_numbers = #tpu.dot_dimension_numbers<[1], [0], [0], [1], [0, 0, 1, 1], [], []>} : vector<2x512xbf16>, vector<512x1024xbf16>, vector<2x1024xf32> -> vector<2x1024xf32>
      %c0_52 = arith.constant 0 : index
      %c0_53 = arith.constant 0 : index
      %53 = vector.load %arg9[%c0_52, %c0_53] : memref<1x1024xf32, #tpu.memory_space<vmem>>, vector<1x1024xf32>
      %54 = vector.broadcast %53 : vector<1x1024xf32> to vector<2x1024xf32>
      %55 = arith.addf %52, %54 : vector<2x1024xf32>
      %cst_54 = arith.constant 0.000000e+00 : f32
      %56 = vector.broadcast %cst_54 : f32 to vector<2x1024xf32>
      %57 = arith.maximumf %55, %56 : vector<2x1024xf32>
      %58 = arith.truncf %57 : vector<2x1024xf32> to vector<2x1024xbf16>
      %c0_55 = arith.constant 0 : index
      %c0_56 = arith.constant 0 : index
      %59 = vector.load %arg19[%c0_55, %c0_56] : memref<1024x1024xbf16, #tpu.memory_space<vmem>>, vector<1024x1024xbf16>
      %cst_57 = arith.constant dense<0.000000e+00> : vector<2x1024xf32>
      %60 = tpu.matmul %58, %59, %cst_57 {dimension_numbers = #tpu.dot_dimension_numbers<[1], [0], [0], [1], [0, 0, 1, 1], [], []>} : vector<2x1024xbf16>, vector<1024x1024xbf16>, vector<2x1024xf32> -> vector<2x1024xf32>
      %c0_58 = arith.constant 0 : index
      %c0_59 = arith.constant 0 : index
      %61 = vector.load %arg10[%c0_58, %c0_59] : memref<1x1024xf32, #tpu.memory_space<vmem>>, vector<1x1024xf32>
      %62 = vector.broadcast %61 : vector<1x1024xf32> to vector<2x1024xf32>
      %63 = arith.addf %60, %62 : vector<2x1024xf32>
      %cst_60 = arith.constant 0.000000e+00 : f32
      %64 = vector.broadcast %cst_60 : f32 to vector<2x1024xf32>
      %65 = arith.maximumf %63, %64 : vector<2x1024xf32>
      %66 = arith.truncf %65 : vector<2x1024xf32> to vector<2x1024xbf16>
      %c0_61 = arith.constant 0 : index
      %c0_62 = arith.constant 0 : index
      %67 = vector.load %arg20[%c0_61, %c0_62] : memref<1024x1024xbf16, #tpu.memory_space<vmem>>, vector<1024x1024xbf16>
      %cst_63 = arith.constant dense<0.000000e+00> : vector<2x1024xf32>
      %68 = tpu.matmul %66, %67, %cst_63 {dimension_numbers = #tpu.dot_dimension_numbers<[1], [0], [0], [1], [0, 0, 1, 1], [], []>} : vector<2x1024xbf16>, vector<1024x1024xbf16>, vector<2x1024xf32> -> vector<2x1024xf32>
      %c0_64 = arith.constant 0 : index
      %c0_65 = arith.constant 0 : index
      %69 = vector.load %arg11[%c0_64, %c0_65] : memref<1x1024xf32, #tpu.memory_space<vmem>>, vector<1x1024xf32>
      %70 = vector.broadcast %69 : vector<1x1024xf32> to vector<2x1024xf32>
      %71 = arith.addf %68, %70 : vector<2x1024xf32>
      %c0_66 = arith.constant 0 : index
      %c0_67 = arith.constant 0 : index
      %72 = vector.load %arg12[%c0_66, %c0_67] : memref<2x1024xf32, #tpu.memory_space<vmem>>, vector<2x1024xf32>
      tpu.vector_store %arg12[%c0_66, %c0_67], %71 {strides = array<i32>} : memref<2x1024xf32, #tpu.memory_space<vmem>>, vector<2x1024xf32>,
      %73 = vector.extract_strided_slice %71 {offsets = [0, 0], sizes = [1, 1024], strides = [1, 1]} : vector<2x1024xf32> to vector<1x1024xf32>
      %74 = vector.extract_strided_slice %71 {offsets = [1, 0], sizes = [1, 1024], strides = [1, 1]} : vector<2x1024xf32> to vector<1x1024xf32>
      %75 = arith.mulf %73, %74 : vector<1x1024xf32>
      %cst_68 = arith.constant dense<0.000000e+00> : vector<1xf32>
      %76 = vector.multi_reduction <add>, %75, %cst_68 [1] : vector<1x1024xf32> to vector<1xf32>
      %77 = vector.shape_cast %76 : vector<1xf32> to vector<1x1xf32>
      %78 = arith.mulf %73, %73 : vector<1x1024xf32>
      %cst_69 = arith.constant dense<0.000000e+00> : vector<1xf32>
      %79 = vector.multi_reduction <add>, %78, %cst_69 [1] : vector<1x1024xf32> to vector<1xf32>
      %80 = vector.shape_cast %79 : vector<1xf32> to vector<1x1xf32>
      %81 = arith.mulf %74, %74 : vector<1x1024xf32>
      %cst_70 = arith.constant dense<0.000000e+00> : vector<1xf32>
      %82 = vector.multi_reduction <add>, %81, %cst_70 [1] : vector<1x1024xf32> to vector<1xf32>
      %83 = vector.shape_cast %82 : vector<1xf32> to vector<1x1xf32>
      %84 = arith.mulf %80, %83 : vector<1x1xf32>
      %85 = math.rsqrt %84 : vector<1x1xf32>
      %cst_71 = arith.constant 1.000000e+08 : f32
      %86 = vector.broadcast %cst_71 : f32 to vector<1x1xf32>
      %87 = arith.minimumf %85, %86 : vector<1x1xf32>
      %88 = arith.mulf %77, %87 : vector<1x1xf32>
      %c0_72 = arith.constant 0 : index
      %c0_73 = arith.constant 0 : index
      %89 = vector.load %arg13[%c0_72, %c0_73] : memref<1x1xf32, #tpu.memory_space<vmem>>, vector<1x1xf32>
      tpu.vector_store %arg13[%c0_72, %c0_73], %88 {strides = array<i32>} : memref<1x1xf32, #tpu.memory_space<vmem>>, vector<1x1xf32>,
    } else {
    }
    return
  }
  func.func @transform_0(%arg0: i32) -> (i32, i32, i32) {
    %c0_i32 = arith.constant 0 : i32
    %c0_i32_0 = arith.constant 0 : i32
    %c0_i32_1 = arith.constant 0 : i32
    return %c0_i32, %c0_i32_0, %arg0 : i32, i32, i32
  }
  func.func @transform_1(%arg0: i32) -> (i32, i32, i32) {
    %c0_i32 = arith.constant 0 : i32
    %c0_i32_0 = arith.constant 0 : i32
    %c0_i32_1 = arith.constant 0 : i32
    return %c0_i32, %c0_i32_0, %arg0 : i32, i32, i32
  }
  func.func @transform_7(%arg0: i32) -> (i32, i32) {
    %c0_i32 = arith.constant 0 : i32
    %c0_i32_0 = arith.constant 0 : i32
    %c0_i32_1 = arith.constant 0 : i32
    return %c0_i32, %c0_i32_0 : i32, i32
  }
  func.func @transform_8(%arg0: i32) -> (i32, i32) {
    %c0_i32 = arith.constant 0 : i32
    %c0_i32_0 = arith.constant 0 : i32
    %c0_i32_1 = arith.constant 0 : i32
    return %c0_i32, %c0_i32_0 : i32, i32
  }
  func.func @transform_9(%arg0: i32) -> (i32, i32) {
    %c0_i32 = arith.constant 0 : i32
    %c0_i32_0 = arith.constant 0 : i32
    %c0_i32_1 = arith.constant 0 : i32
    return %c0_i32, %c0_i32_0 : i32, i32
  }
  func.func @transform_10(%arg0: i32) -> (i32, i32) {
    %c0_i32 = arith.constant 0 : i32
    %c0_i32_0 = arith.constant 0 : i32
    %c0_i32_1 = arith.constant 0 : i32
    return %c0_i32, %c0_i32_0 : i32, i32
  }
  func.func @transform_11(%arg0: i32) -> (i32, i32) {
    %c0_i32 = arith.constant 0 : i32
    %c0_i32_0 = arith.constant 0 : i32
    %c0_i32_1 = arith.constant 0 : i32
    return %c0_i32, %c0_i32_0 : i32, i32
  }
  func.func @transform_12(%arg0: i32) -> (i32, i32) {
    %c0_i32 = arith.constant 0 : i32
    %c0_i32_0 = arith.constant 0 : i32
    %c0_i32_1 = arith.constant 0 : i32
    return %c0_i32, %c0_i32_0 : i32, i32
  }
}

</mosaic_0001>

<llo_original>
// kernel: tpu_custom_call.1
$region0: #{tpu_custom_call.1}
  #allocation0 [shape = 'u32[]', space=smem, size = 0x4, offset = 0x4, fixed_abs, tag = 'smem constant byte address 0x4 - core index']
  #allocation1 [shape = 'u32[144,128]{1,0:T(1,128)}', space=vmem, size = 0x12000, scoped, tag = 'internal scratch']
  #allocation2 [shape = 'f32[2,512,128]{2,1,0:T(8,128)}', space=vmem, size = 0x80000, scoped, tag = 'scratch operand']
  #allocation3 [shape = 'f32[2,512,128]{2,1,0:T(8,128)}', space=vmem, size = 0x80000, scoped, tag = 'scratch operand']
  #allocation4 [shape = 'bf16[512,512]{1,0:T(16,128)(2,1)}', space=vmem, size = 0x80000, scoped, tag = 'scratch operand']
  #allocation5 [shape = 'bf16[512,512]{1,0:T(16,128)(2,1)}', space=vmem, size = 0x80000, scoped, tag = 'scratch operand']
  #allocation6 [shape = 'bf16[512,1024]{1,0:T(16,128)(2,1)}', space=vmem, size = 0x100000, scoped, tag = 'scratch operand']
  #allocation7 [shape = 'bf16[1024,1024]{1,0:T(16,128)(2,1)}', space=vmem, size = 0x200000, scoped, tag = 'scratch operand']
  #allocation8 [shape = 'bf16[1024,1024]{1,0:T(16,128)(2,1)}', space=vmem, size = 0x200000, scoped, tag = 'scratch operand']
  #allocation9 [shape = 's32[5]{0}', space=sflag, size = 0x14, scoped, tag = 'scratch operand']
  #allocation24 [shape = 's32[]', space=sflag, size = 0x4, offset = 0, fixed_abs, tag = 'sflag constant byte address 0x0 - dummy sync flag']
  #allocation26 [shape = 's32[]', space=sflag, size = 0x4, offset = 0, fixed_abs, tag = 'sflag constant byte address 0x0 - dummy sync flag']
  #allocation28 [shape = 's32[]', space=sflag, size = 0x4, offset = 0, fixed_abs, tag = 'sflag constant byte address 0x0 - dummy sync flag']
  #allocation30 [shape = 's32[]', space=sflag, size = 0x4, offset = 0, fixed_abs, tag = 'sflag constant byte address 0x0 - dummy sync flag']
  #allocation32 [shape = 's32[]', space=sflag, size = 0x4, offset = 0, fixed_abs, tag = 'sflag constant byte address 0x0 - dummy sync flag']
  %s0 = inlined_call_operand.hbm [shape: bf16[1,512,256], index: 0, kind: input, shape index: {}]
  %s1 = inlined_call_operand.hbm [shape: bf16[1,512,256], index: 1, kind: input, shape index: {}]
  %s2 = inlined_call_operand.hbm [shape: bf16[512,512], index: 2, kind: input, shape index: {}]
  %s3 = inlined_call_operand.hbm [shape: bf16[512,512], index: 3, kind: input, shape index: {}]
  %s4 = inlined_call_operand.hbm [shape: bf16[512,1024], index: 4, kind: input, shape index: {}]
  %s5 = inlined_call_operand.hbm [shape: bf16[1024,1024], index: 5, kind: input, shape index: {}]
  %s6 = inlined_call_operand.hbm [shape: bf16[1024,1024], index: 6, kind: input, shape index: {}]
  %s7 = inlined_call_operand.hbm [shape: f32[1,512], index: 7, kind: input, shape index: {}]
  %s8 = inlined_call_operand.hbm [shape: f32[1,1024], index: 8, kind: input, shape index: {}]
  %s9 = inlined_call_operand.hbm [shape: f32[1,1024], index: 9, kind: input, shape index: {}]
  %s10 = inlined_call_operand.hbm [shape: f32[1,1024], index: 10, kind: input, shape index: {}]
  %s11 = inlined_call_operand.hbm [shape: f32[2,1024], index: 11, kind: output, shape index: {0}]
  %s12 = inlined_call_operand.hbm [shape: f32[1,1], index: 12, kind: output, shape index: {1}]
  %13 = xla_tuple %s11, %s12
  %s14 = sld [smem:[#allocation0]]
  $region97: #{tpu_custom_call.1} parent=0
    _
  %s16 = ssub.s32 1, %s14
  %s17 = scalar_select 0, %s16, %s14
  $region1: #{tpu_custom_call.1} parent=0
    #allocation10 [shape = 'u8[262144]{0}', space=vmem, size = 0x40000, scoped, tag = 'input window, operand 0']
    #allocation11 [shape = 's32[2]{0}', space=sflag, size = 0x8, scoped, tag = 'scoped memory for tpu_custom_call.1']
    #allocation12 [shape = 's32[2]{0}', space=sflag, size = 0x8, scoped, tag = 'scoped memory for tpu_custom_call.1']
    #allocation13 [shape = 'u8[262144]{0}', space=vmem, size = 0x40000, scoped, tag = 'input window, operand 1']
    #allocation14 [shape = 's32[2]{0}', space=sflag, size = 0x8, scoped, tag = 'scoped memory for tpu_custom_call.1']
    #allocation15 [shape = 'u8[2048]{0}', space=vmem, size = 0x800, scoped, tag = 'input window, operand 7, single buffered']
    #allocation16 [shape = 'u8[4096]{0}', space=vmem, size = 0x1000, scoped, tag = 'input window, operand 8, single buffered']
    #allocation17 [shape = 's32[1]{0}', space=sflag, size = 0x4, scoped, tag = 'scoped memory for tpu_custom_call.1']
    #allocation18 [shape = 'u8[4096]{0}', space=vmem, size = 0x1000, scoped, tag = 'input window, operand 9, single buffered']
    #allocation19 [shape = 'u8[4096]{0}', space=vmem, size = 0x1000, scoped, tag = 'input window, operand 10, single buffered']
    #allocation20 [shape = 's32[1]{0}', space=sflag, size = 0x4, scoped, tag = 'scoped memory for tpu_custom_call.1']
    #allocation21 [shape = 'u8[8192]{0}', space=vmem, size = 0x2000, scoped, tag = 'output window, operand 0, single buffered']
    #allocation22 [shape = 'u8[512]{0}', space=vmem, size = 0x400, scoped, tag = 'output window, operand 1, single buffered']
    #allocation23 [shape = 's32[1]{0}', space=sflag, size = 0x4, scoped, tag = 'scoped memory for tpu_custom_call.1']
    %18 = vsyncpa [#allocation11], 0
    %s19 = scalar_lea.sflag [#allocation11], 1
    %20 = vsyncpa %s19, 0
    %21 = vsyncpa [#allocation14], 0
    %s22 = scalar_lea.sflag [#allocation14], 1
    %23 = vsyncpa %s22, 0
    %24 = vsyncpa [#allocation17], 0
    %25 = vsyncpa [#allocation20], 0
    %26 = vsyncpa [#allocation12], 0
    %27 = vsyncpa [#allocation23], 0
    loop: start=0, step=1, limit=4
    $region2: #{tpu_custom_call.1} parent=1 // loop_pre_header
      _
    $region3: #{tpu_custom_call.1} parent=1 // loop_header
      %s29 = sphi 0, %s33
      %p30 = scmp.ge.s32.totalorder %s29, 4
      %s39 = sphi 0, %s41
      %s42 = sphi 0, %s39
      %s43 = sphi 0, %s42
      %s59 = sphi 0, %s43
      %s65 = sphi 0, %s67
      %s68 = sphi 0, %s65
      %s69 = sphi 0, %s68
      %s85 = sphi 0, %s69
      %s89 = sphi 0, %s89
      %s91 = sphi 0, %s89
      %s92 = sphi 0, %s91
      %s106 = sphi 0, %s92
      %s110 = sphi 0, %s110
      %s112 = sphi 0, %s110
      %s113 = sphi 0, %s112
      %s127 = sphi 0, %s113
      %s131 = sphi 0, %s131
      %s133 = sphi 0, %s131
      %s134 = sphi 0, %s133
      %s148 = sphi 0, %s134
      %s152 = sphi 0, %s152
      %s154 = sphi 0, %s152
      %s155 = sphi 0, %s154
      %s169 = sphi 0, %s155
      %s173 = sphi 0, %s173
      %s175 = sphi 0, %s173
      %s176 = sphi 0, %s175
      %s190 = sphi 0, %s176
      %s194 = sphi 0, %s194
      %s196 = sphi 0, %s194
      %s197 = sphi 0, %s196
      %s211 = sphi 0, %s197
    $region4: #{tpu_custom_call.1} parent=1 // loop_header_branch
      %32 = sbr.rel (%p30) target = $region8
    $region5: #{tpu_custom_call.1} parent=1 // loop_body
      %s34 = ssub.s32 %s29, 1
      %s35 = ssub.s32 %s29, 2
      %s36 = sadd.s32 %s29, 1
      %s37 = ssub.s32 %s29, %s36
      %p38 = scmp.eq.s32.totalorder %s37, 0
      %s40 = sadd.s32 %s39, 1
      %s41 = scalar_select %p38, %s39, %s40
      %p44 = pneg %p38
      %p45 = scmp.eq.s32.totalorder %s29, 1
      %p46 = por %p44, %p45
      %p47 = scmp.ne.s32.totalorder %s39, %s42
      %p48 = scmp.eq.s32.totalorder %s29, 0
      %p49 = por %p47, %p48
      %p50 = scmp.ne.s32.totalorder %s39, %s42
      %p51 = scmp.eq.s32.totalorder %s34, 1
      %p52 = por %p50, %p51
      %p53 = scmp.ne.s32.totalorder %s42, %s43
      %p54 = scmp.eq.s32.totalorder %s34, 0
      %p55 = por %p53, %p54
      %p56 = scmp.ne.s32.totalorder %s42, %s43
      %p57 = scmp.eq.s32.totalorder %s35, 1
      %p58 = por %p56, %p57
      %p60 = scmp.ne.s32.totalorder %s43, %s59
      %p61 = scmp.eq.s32.totalorder %s35, 0
      %p62 = por %p60, %p61
      %s63 = ssub.s32 %s29, %s36
      %p64 = scmp.eq.s32.totalorder %s63, 0
      %s66 = sadd.s32 %s65, 1
      %s67 = scalar_select %p64, %s65, %s66
      %p70 = pneg %p64
      %p71 = scmp.eq.s32.totalorder %s29, 1
      %p72 = por %p70, %p71
      %p73 = scmp.ne.s32.totalorder %s65, %s68
      %p74 = scmp.eq.s32.totalorder %s29, 0
      %p75 = por %p73, %p74
      %p76 = scmp.ne.s32.totalorder %s65, %s68
      %p77 = scmp.eq.s32.totalorder %s34, 1
      %p78 = por %p76, %p77
      %p79 = scmp.ne.s32.totalorder %s68, %s69
      %p80 = scmp.eq.s32.totalorder %s34, 0
      %p81 = por %p79, %p80
      %p82 = scmp.ne.s32.totalorder %s68, %s69
      %p83 = scmp.eq.s32.totalorder %s35, 1
      %p84 = por %p82, %p83
      %p86 = scmp.ne.s32.totalorder %s69, %s85
      %p87 = scmp.eq.s32.totalorder %s35, 0
      %p88 = por %p86, %p87
      %s90 = sadd.s32 %s89, 1
      %p93 = scmp.eq.s32.totalorder %s29, 1
      %p94 = scmp.ne.s32.totalorder %s89, %s91
      %p95 = scmp.eq.s32.totalorder %s29, 0
      %p96 = por %p94, %p95
      %p97 = scmp.ne.s32.totalorder %s89, %s91
      %p98 = scmp.eq.s32.totalorder %s34, 1
      %p99 = por %p97, %p98
      %p100 = scmp.ne.s32.totalorder %s91, %s92
      %p101 = scmp.eq.s32.totalorder %s34, 0
      %p102 = por %p100, %p101
      %p103 = scmp.ne.s32.totalorder %s91, %s92
      %p104 = scmp.eq.s32.totalorder %s35, 1
      %p105 = por %p103, %p104
      %p107 = scmp.ne.s32.totalorder %s92, %s106
      %p108 = scmp.eq.s32.totalorder %s35, 0
      %p109 = por %p107, %p108
      %s111 = sadd.s32 %s110, 1
      %p114 = scmp.eq.s32.totalorder %s29, 1
      %p115 = scmp.ne.s32.totalorder %s110, %s112
      %p116 = scmp.eq.s32.totalorder %s29, 0
      %p117 = por %p115, %p116
      %p118 = scmp.ne.s32.totalorder %s110, %s112
      %p119 = scmp.eq.s32.totalorder %s34, 1
      %p120 = por %p118, %p119
      %p121 = scmp.ne.s32.totalorder %s112, %s113
      %p122 = scmp.eq.s32.totalorder %s34, 0
      %p123 = por %p121, %p122
      %p124 = scmp.ne.s32.totalorder %s112, %s113
      %p125 = scmp.eq.s32.totalorder %s35, 1
      %p126 = por %p124, %p125
      %p128 = scmp.ne.s32.totalorder %s113, %s127
      %p129 = scmp.eq.s32.totalorder %s35, 0
      %p130 = por %p128, %p129
      %s132 = sadd.s32 %s131, 1
      %p135 = scmp.eq.s32.totalorder %s29, 1
      %p136 = scmp.ne.s32.totalorder %s131, %s133
      %p137 = scmp.eq.s32.totalorder %s29, 0
      %p138 = por %p136, %p137
      %p139 = scmp.ne.s32.totalorder %s131, %s133
      %p140 = scmp.eq.s32.totalorder %s34, 1
      %p141 = por %p139, %p140
      %p142 = scmp.ne.s32.totalorder %s133, %s134
      %p143 = scmp.eq.s32.totalorder %s34, 0
      %p144 = por %p142, %p143
      %p145 = scmp.ne.s32.totalorder %s133, %s134
      %p146 = scmp.eq.s32.totalorder %s35, 1
      %p147 = por %p145, %p146
      %p149 = scmp.ne.s32.totalorder %s134, %s148
      %p150 = scmp.eq.s32.totalorder %s35, 0
      %p151 = por %p149, %p150
      %s153 = sadd.s32 %s152, 1
      %p156 = scmp.eq.s32.totalorder %s29, 1
      %p157 = scmp.ne.s32.totalorder %s152, %s154
      %p158 = scmp.eq.s32.totalorder %s29, 0
      %p159 = por %p157, %p158
      %p160 = scmp.ne.s32.totalorder %s152, %s154
      %p161 = scmp.eq.s32.totalorder %s34, 1
      %p162 = por %p160, %p161
      %p163 = scmp.ne.s32.totalorder %s154, %s155
      %p164 = scmp.eq.s32.totalorder %s34, 0
      %p165 = por %p163, %p164
      %p166 = scmp.ne.s32.totalorder %s154, %s155
      %p167 = scmp.eq.s32.totalorder %s35, 1
      %p168 = por %p166, %p167
      %p170 = scmp.ne.s32.totalorder %s155, %s169
      %p171 = scmp.eq.s32.totalorder %s35, 0
      %p172 = por %p170, %p171
      %s174 = sadd.s32 %s173, 1
      %p177 = scmp.eq.s32.totalorder %s29, 1
      %p178 = scmp.ne.s32.totalorder %s173, %s175
      %p179 = scmp.eq.s32.totalorder %s29, 0
      %p180 = por %p178, %p179
      %p181 = scmp.ne.s32.totalorder %s173, %s175
      %p182 = scmp.eq.s32.totalorder %s34, 1
      %p183 = por %p181, %p182
      %p184 = scmp.ne.s32.totalorder %s175, %s176
      %p185 = scmp.eq.s32.totalorder %s34, 0
      %p186 = por %p184, %p185
      %p187 = scmp.ne.s32.totalorder %s175, %s176
      %p188 = scmp.eq.s32.totalorder %s35, 1
      %p189 = por %p187, %p188
      %p191 = scmp.ne.s32.totalorder %s176, %s190
      %p192 = scmp.eq.s32.totalorder %s35, 0
      %p193 = por %p191, %p192
      %s195 = sadd.s32 %s194, 1
      %p198 = scmp.eq.s32.totalorder %s29, 1
      %p199 = scmp.ne.s32.totalorder %s194, %s196
      %p200 = scmp.eq.s32.totalorder %s29, 0
      %p201 = por %p199, %p200
      %p202 = scmp.ne.s32.totalorder %s194, %s196
      %p203 = scmp.eq.s32.totalorder %s34, 1
      %p204 = por %p202, %p203
      %p205 = scmp.ne.s32.totalorder %s196, %s197
      %p206 = scmp.eq.s32.totalorder %s34, 0
      %p207 = por %p205, %p206
      %p208 = scmp.ne.s32.totalorder %s196, %s197
      %p209 = scmp.eq.s32.totalorder %s35, 1
      %p210 = por %p208, %p209
      %p212 = scmp.ne.s32.totalorder %s197, %s211
      %p213 = scmp.eq.s32.totalorder %s35, 0
      %p214 = por %p212, %p213
      %p215 = scmp.le.s32.totalorder 1, %s29
      %p216 = scmp.lt.s32.totalorder %s29, 3
      %p217 = pnand %p215, %p216
      %p218 = pneg %p217
      // Predicated region
      $region9: #{tpu_custom_call.1} parent=5 // pred_check
        _
      $region10: #{tpu_custom_call.1} parent=5 // pred_check_branch
        %220 = sbr.rel (%p217) target = $region12
      $region11: #{tpu_custom_call.1} parent=5 // pred_region
        %s221 = ssub.s32 %s29, 1
        // Predicated region
        $region13: #{tpu_custom_call.1} parent=11 // pred_check
          %p222 = pneg %p102
        $region14: #{tpu_custom_call.1} parent=11 // pred_check_branch
          %224 = sbr.rel (%p222) target = $region16
        $region15: #{tpu_custom_call.1} parent=11 // pred_region
          %s226 = ssub.s32 64, 64
          %227 = vsyncadd [#allocation14], %s226
          %s229 = sshll.u32 [#allocation15], 4
          %s230 = int_to_ptr.vmem [resolvable:$true] %s229
          %232 = dma.hbm_to_vmem [thread:$0]  %s7, 64, %s230, [#allocation14]
        $region16: #{tpu_custom_call.1} parent=11 // pred_fallthru
          _
        // Predicated region
        $region17: #{tpu_custom_call.1} parent=11 // pred_check
          %p233 = pneg %p123
        $region18: #{tpu_custom_call.1} parent=11 // pred_check_branch
          %235 = sbr.rel (%p233) target = $region20
        $region19: #{tpu_custom_call.1} parent=11 // pred_region
          %s237 = ssub.s32 128, 128
          %238 = vsyncadd [#allocation17], %s237
          %s240 = sshll.u32 [#allocation16], 4
          %s241 = int_to_ptr.vmem [resolvable:$true] %s240
          %243 = dma.hbm_to_vmem [thread:$0]  %s8, 128, %s241, [#allocation17]
        $region20: #{tpu_custom_call.1} parent=11 // pred_fallthru
          _
        // Predicated region
        $region21: #{tpu_custom_call.1} parent=11 // pred_check
          %p244 = pneg %p144
        $region22: #{tpu_custom_call.1} parent=11 // pred_check_branch
          %246 = sbr.rel (%p244) target = $region24
        $region23: #{tpu_custom_call.1} parent=11 // pred_region
          %s248 = ssub.s32 128, 128
          %249 = vsyncadd [#allocation17], %s248
          %s251 = sshll.u32 [#allocation18], 4
          %s252 = int_to_ptr.vmem [resolvable:$true] %s251
          %254 = dma.hbm_to_vmem [thread:$0]  %s9, 128, %s252, [#allocation17]
        $region24: #{tpu_custom_call.1} parent=11 // pred_fallthru
          _
        // Predicated region
        $region25: #{tpu_custom_call.1} parent=11 // pred_check
          %p255 = pneg %p165
        $region26: #{tpu_custom_call.1} parent=11 // pred_check_branch
          %257 = sbr.rel (%p255) target = $region28
        $region27: #{tpu_custom_call.1} parent=11 // pred_region
          %s259 = ssub.s32 128, 128
          %260 = vsyncadd [#allocation20], %s259
          %s262 = sshll.u32 [#allocation19], 4
          %s263 = int_to_ptr.vmem [resolvable:$true] %s262
          %265 = dma.hbm_to_vmem [thread:$0]  %s10, 128, %s263, [#allocation20]
        $region28: #{tpu_custom_call.1} parent=11 // pred_fallthru
          _
      $region12: #{tpu_custom_call.1} parent=5 // pred_fallthru
        _
      %p266 = scmp.lt.s32.totalorder %s29, 2
      // Predicated region
      $region29: #{tpu_custom_call.1} parent=5 // pred_check
        %p267 = pneg %p266
      $region30: #{tpu_custom_call.1} parent=5 // pred_check_branch
        %269 = sbr.rel (%p267) target = $region32
      $region31: #{tpu_custom_call.1} parent=5 // pred_region
        // Predicated region
        $region33: #{tpu_custom_call.1} parent=31 // pred_check
          %p270 = pneg %p49
        $region34: #{tpu_custom_call.1} parent=31 // pred_check_branch
          %272 = sbr.rel (%p270) target = $region36
        $region35: #{tpu_custom_call.1} parent=31 // pred_region
          %s273 = sand.u32 %s39, 1
          %s274 = scalar_lea.sflag [#allocation11], %s273
          %s275 = sand.u32 %s39, 1
          %s276 = smul.addr %s275, 256
          %s277 = scalar_lea.vmem [#allocation10], %s276
          %s279 = ssub.s32 4096, 4096
          %280 = vsyncadd %s274, %s279
          %s281 = smul.addr %s29, 64
          %s282 = scalar_lea.hbm %s0, %s281
          %s283 = sshll.u32 %s277, 4
          %s284 = int_to_ptr.vmem [resolvable:$true] %s283
          %289 = dma.hbm_to_vmem [thread:$0]  %s282, 4096, %s284, %s274, 128, 64, 4
        $region36: #{tpu_custom_call.1} parent=31 // pred_fallthru
          _
        // Predicated region
        $region37: #{tpu_custom_call.1} parent=31 // pred_check
          %p290 = pneg %p75
        $region38: #{tpu_custom_call.1} parent=31 // pred_check_branch
          %292 = sbr.rel (%p290) target = $region40
        $region39: #{tpu_custom_call.1} parent=31 // pred_region
          %s293 = sand.u32 %s29, 1
          %s294 = scalar_lea.sflag [#allocation14], %s293
          %s295 = sand.u32 %s65, 1
          %s296 = smul.addr %s295, 256
          %s297 = scalar_lea.vmem [#allocation13], %s296
          %s299 = ssub.s32 4096, 4096
          %300 = vsyncadd %s294, %s299
          %s301 = smul.addr %s29, 64
          %s302 = scalar_lea.hbm %s1, %s301
          %s303 = sshll.u32 %s297, 4
          %s304 = int_to_ptr.vmem [resolvable:$true] %s303
          %309 = dma.hbm_to_vmem [thread:$0]  %s302, 4096, %s304, %s294, 128, 64, 4
        $region40: #{tpu_custom_call.1} parent=31 // pred_fallthru
          _
      $region32: #{tpu_custom_call.1} parent=5 // pred_fallthru
        _
      %p310 = scmp.le.s32.totalorder 1, %s29
      %p311 = scmp.lt.s32.totalorder %s29, 3
      %p312 = pnand %p310, %p311
      %p313 = pneg %p312
      // Predicated region
      $region41: #{tpu_custom_call.1} parent=5 // pred_check
        _
      $region42: #{tpu_custom_call.1} parent=5 // pred_check_branch
        %315 = sbr.rel (%p312) target = $region44
      $region43: #{tpu_custom_call.1} parent=5 // pred_region
        %s316 = ssub.s32 %s29, 1
        %s317 = sand.u32 %s42, 1
        %s318 = scalar_lea.sflag [#allocation11], %s317
        %s319 = sand.u32 %s42, 1
        %s320 = smul.addr %s319, 256
        %s321 = scalar_lea.vmem [#allocation10], %s320
        // Predicated region
        $region45: #{tpu_custom_call.1} parent=43 // pred_check
          %p322 = pneg %p55
        $region46: #{tpu_custom_call.1} parent=43 // pred_check_branch
          %324 = sbr.rel (%p322) target = $region48
        $region47: #{tpu_custom_call.1} parent=43 // pred_region
          %325 = dma.done %s318, 4096
        $region48: #{tpu_custom_call.1} parent=43 // pred_fallthru
          _
        %s326 = sand.u32 %s34, 1
        %s327 = scalar_lea.sflag [#allocation14], %s326
        %s328 = sand.u32 %s68, 1
        %s329 = smul.addr %s328, 256
        %s330 = scalar_lea.vmem [#allocation13], %s329
        // Predicated region
        $region49: #{tpu_custom_call.1} parent=43 // pred_check
          %p331 = pneg %p81
        $region50: #{tpu_custom_call.1} parent=43 // pred_check_branch
          %333 = sbr.rel (%p331) target = $region52
        $region51: #{tpu_custom_call.1} parent=43 // pred_region
          %334 = dma.done %s327, 4096
        $region52: #{tpu_custom_call.1} parent=43 // pred_fallthru
          _
        // Predicated region
        $region53: #{tpu_custom_call.1} parent=43 // pred_check
          %p335 = pneg %p102
        $region54: #{tpu_custom_call.1} parent=43 // pred_check_branch
          %337 = sbr.rel (%p335) target = $region56
        $region55: #{tpu_custom_call.1} parent=43 // pred_region
          %338 = dma.done [#allocation14], 64
        $region56: #{tpu_custom_call.1} parent=43 // pred_fallthru
          _
        // Predicated region
        $region57: #{tpu_custom_call.1} parent=43 // pred_check
          %p339 = pneg %p123
        $region58: #{tpu_custom_call.1} parent=43 // pred_check_branch
          %341 = sbr.rel (%p339) target = $region60
        $region59: #{tpu_custom_call.1} parent=43 // pred_region
          %342 = dma.done [#allocation17], 128
        $region60: #{tpu_custom_call.1} parent=43 // pred_fallthru
          _
        // Predicated region
        $region61: #{tpu_custom_call.1} parent=43 // pred_check
          %p343 = pneg %p144
        $region62: #{tpu_custom_call.1} parent=43 // pred_check_branch
          %345 = sbr.rel (%p343) target = $region64
        $region63: #{tpu_custom_call.1} parent=43 // pred_region
          %346 = dma.done [#allocation17], 128
        $region64: #{tpu_custom_call.1} parent=43 // pred_fallthru
          _
        // Predicated region
        $region65: #{tpu_custom_call.1} parent=43 // pred_check
          %p347 = pneg %p165
        $region66: #{tpu_custom_call.1} parent=43 // pred_check_branch
          %349 = sbr.rel (%p347) target = $region68
        $region67: #{tpu_custom_call.1} parent=43 // pred_region
          %350 = dma.done [#allocation20], 128
        $region68: #{tpu_custom_call.1} parent=43 // pred_fallthru
          _
        %s351 = sand.u32 %s42, 1
        %s352 = scalar_lea.sflag [#allocation11], %s351
        %s353 = sand.u32 %s42, 1
        %s354 = smul.addr %s353, 256
        %s355 = scalar_lea.vmem [#allocation10], %s354
        %p356 = pneg %p55
        %p357 = pneg %p52
        %s358 = sand.u32 %s34, 1
        %s359 = scalar_lea.sflag [#allocation14], %s358
        %s360 = sand.u32 %s68, 1
        %s361 = smul.addr %s360, 256
        %s362 = scalar_lea.vmem [#allocation13], %s361
        %p363 = pneg %p81
        %p364 = pneg %p78
        %p365 = pneg %p102
        %p366 = pneg %p99
        %p367 = pneg %p123
        %p368 = pneg %p120
        %p369 = pneg %p144
        %p370 = pneg %p141
        %p371 = pneg %p165
        %p372 = pneg %p162
        %p373 = pneg %p186
        %p374 = pneg %p183
        %p375 = pneg %p207
        %p376 = pneg %p204
        %p377 = scmp.eq.s32.totalorder %s34, 0
        // Predicated region
        $region69: #{tpu_custom_call.1} parent=43 // pred_check
          %p378 = pneg %p377
        $region70: #{tpu_custom_call.1} parent=43 // pred_check_branch
          %380 = sbr.rel (%p378) target = $region72
        $region71: #{tpu_custom_call.1} parent=43 // pred_region
          #allocation25 [shape = 'u32[9]{0}', space=smem, size = 0x24, scoped, tag = 'DMA stride descriptor']
          #allocation27 [shape = 'u32[9]{0}', space=smem, size = 0x24, scoped, tag = 'DMA stride descriptor']
          #allocation29 [shape = 'u32[9]{0}', space=smem, size = 0x24, scoped, tag = 'DMA stride descriptor']
          #allocation31 [shape = 'u32[9]{0}', space=smem, size = 0x24, scoped, tag = 'DMA stride descriptor']
          #allocation33 [shape = 'u32[9]{0}', space=smem, size = 0x24, scoped, tag = 'DMA stride descriptor']
          %s382 = sshll.u32 1, 14
          %s383 = sxor.u32 4294967295, %s382
          %s385 = sld [smem:[#allocation0]]
          %s386 = sadd.s32 2, %s385
          %s388 = sshll.u32 7, 26
          %s389 = sxor.u32 4294967295, %s388
          %s390 = sand.u32 0, %s389
          %s391 = sshll.u32 %s386, 26
          %s392 = sor.u32 %s390, %s391
          %s393 = sshll.u32 [#allocation4], 4
          %s394 = int_to_ptr.vmem [resolvable:$true] %s393
          %397 = sst [smem:[#allocation25]] 512
          %s398 = scalar_lea.smem [#allocation25], 1
          %399 = sst [smem:[%s398]] 512
          %s400 = scalar_lea.smem [#allocation25], 2
          %401 = sst [smem:[%s400]] 4
          %s402 = scalar_lea.smem [#allocation25], 3
          %403 = sst [smem:[%s402]] 64
          %s404 = scalar_lea.smem [#allocation25], 4
          %405 = sst [smem:[%s404]] 128
          %s406 = scalar_lea.smem [#allocation25], 5
          %407 = sst [smem:[%s406]] 2
          %s408 = scalar_lea.smem [#allocation25], 6
          %409 = sst [smem:[%s408]] 256
          %s410 = scalar_lea.smem [#allocation25], 7
          %411 = sst [smem:[%s410]] 64
          %s412 = scalar_lea.smem [#allocation25], 8
          %413 = sst [smem:[%s412]] 4
          %415 = dma.general %s2, 16384, %s394, [#allocation9], [#allocation24], [#allocation25], %s392, 0
          %s416 = scalar_lea.sflag [#allocation9], 1
          %s418 = sshll.u32 1, 14
          %s419 = sxor.u32 4294967295, %s418
          %s421 = sadd.s32 2, %s385
          %s423 = sshll.u32 7, 26
          %s424 = sxor.u32 4294967295, %s423
          %s425 = sand.u32 0, %s424
          %s426 = sshll.u32 %s421, 26
          %s427 = sor.u32 %s425, %s426
          %s428 = sshll.u32 [#allocation5], 4
          %s429 = int_to_ptr.vmem [resolvable:$true] %s428
          %432 = sst [smem:[#allocation27]] 512
          %s433 = scalar_lea.smem [#allocation27], 1
          %434 = sst [smem:[%s433]] 512
          %s435 = scalar_lea.smem [#allocation27], 2
          %436 = sst [smem:[%s435]] 4
          %s437 = scalar_lea.smem [#allocation27], 3
          %438 = sst [smem:[%s437]] 64
          %s439 = scalar_lea.smem [#allocation27], 4
          %440 = sst [smem:[%s439]] 128
          %s441 = scalar_lea.smem [#allocation27], 5
          %442 = sst [smem:[%s441]] 2
          %s443 = scalar_lea.smem [#allocation27], 6
          %444 = sst [smem:[%s443]] 256
          %s445 = scalar_lea.smem [#allocation27], 7
          %446 = sst [smem:[%s445]] 64
          %s447 = scalar_lea.smem [#allocation27], 8
          %448 = sst [smem:[%s447]] 4
          %450 = dma.general %s3, 16384, %s429, %s416, [#allocation26], [#allocation27], %s427, 0
          %s451 = scalar_lea.sflag [#allocation9], 2
          %s453 = sshll.u32 1, 14
          %s454 = sxor.u32 4294967295, %s453
          %s456 = sadd.s32 2, %s385
          %s458 = sshll.u32 7, 26
          %s459 = sxor.u32 4294967295, %s458
          %s460 = sand.u32 0, %s459
          %s461 = sshll.u32 %s456, 26
          %s462 = sor.u32 %s460, %s461
          %s463 = sshll.u32 [#allocation6], 4
          %s464 = int_to_ptr.vmem [resolvable:$true] %s463
          %467 = sst [smem:[#allocation29]] 1024
          %s468 = scalar_lea.smem [#allocation29], 1
          %469 = sst [smem:[%s468]] 1024
          %s470 = scalar_lea.smem [#allocation29], 2
          %471 = sst [smem:[%s470]] 8
          %s472 = scalar_lea.smem [#allocation29], 3
          %473 = sst [smem:[%s472]] 64
          %s474 = scalar_lea.smem [#allocation29], 4
          %475 = sst [smem:[%s474]] 128
          %s476 = scalar_lea.smem [#allocation29], 5
          %477 = sst [smem:[%s476]] 2
          %s478 = scalar_lea.smem [#allocation29], 6
          %479 = sst [smem:[%s478]] 512
          %s480 = scalar_lea.smem [#allocation29], 7
          %481 = sst [smem:[%s480]] 64
          %s482 = scalar_lea.smem [#allocation29], 8
          %483 = sst [smem:[%s482]] 4
          %485 = dma.general %s4, 32768, %s464, %s451, [#allocation28], [#allocation29], %s462, 0
          %s486 = scalar_lea.sflag [#allocation9], 3
          %s488 = sshll.u32 1, 14
          %s489 = sxor.u32 4294967295, %s488
          %s491 = sadd.s32 2, %s385
          %s493 = sshll.u32 7, 26
          %s494 = sxor.u32 4294967295, %s493
          %s495 = sand.u32 0, %s494
          %s496 = sshll.u32 %s491, 26
          %s497 = sor.u32 %s495, %s496
          %s498 = sshll.u32 [#allocation7], 4
          %s499 = int_to_ptr.vmem [resolvable:$true] %s498
          %502 = sst [smem:[#allocation31]] 1024
          %s503 = scalar_lea.smem [#allocation31], 1
          %504 = sst [smem:[%s503]] 1024
          %s505 = scalar_lea.smem [#allocation31], 2
          %506 = sst [smem:[%s505]] 8
          %s507 = scalar_lea.smem [#allocation31], 3
          %508 = sst [smem:[%s507]] 64
          %s509 = scalar_lea.smem [#allocation31], 4
          %510 = sst [smem:[%s509]] 128
          %s511 = scalar_lea.smem [#allocation31], 5
          %512 = sst [smem:[%s511]] 2
          %s513 = scalar_lea.smem [#allocation31], 6
          %514 = sst [smem:[%s513]] 512
          %s515 = scalar_lea.smem [#allocation31], 7
          %516 = sst [smem:[%s515]] 64
          %s517 = scalar_lea.smem [#allocation31], 8
          %518 = sst [smem:[%s517]] 4
          %520 = dma.general %s5, 65536, %s499, %s486, [#allocation30], [#allocation31], %s497, 0
          %s521 = scalar_lea.sflag [#allocation9], 4
          %s523 = sshll.u32 1, 14
          %s524 = sxor.u32 4294967295, %s523
          %s526 = sadd.s32 2, %s385
          %s528 = sshll.u32 7, 26
          %s529 = sxor.u32 4294967295, %s528
          %s530 = sand.u32 0, %s529
          %s531 = sshll.u32 %s526, 26
          %s532 = sor.u32 %s530, %s531
          %s533 = sshll.u32 [#allocation8], 4
          %s534 = int_to_ptr.vmem [resolvable:$true] %s533
          %537 = sst [smem:[#allocation33]] 1024
          %s538 = scalar_lea.smem [#allocation33], 1
          %539 = sst [smem:[%s538]] 1024
          %s540 = scalar_lea.smem [#allocation33], 2
          %541 = sst [smem:[%s540]] 8
          %s542 = scalar_lea.smem [#allocation33], 3
          %543 = sst [smem:[%s542]] 64
          %s544 = scalar_lea.smem [#allocation33], 4
          %545 = sst [smem:[%s544]] 128
          %s546 = scalar_lea.smem [#allocation33], 5
          %547 = sst [smem:[%s546]] 2
          %s548 = scalar_lea.smem [#allocation33], 6
          %549 = sst [smem:[%s548]] 512
          %s550 = scalar_lea.smem [#allocation33], 7
          %551 = sst [smem:[%s550]] 64
          %s552 = scalar_lea.smem [#allocation33], 8
          %553 = sst [smem:[%s552]] 4
          %555 = dma.general %s6, 65536, %s534, %s521, [#allocation32], [#allocation33], %s532, 0
          %556 = vst [vmem:[#allocation2] sm:$0xff] 0.0
          %557 = vst [vmem:[#allocation2 + $0x8] sm:$0xff] 0.0
          %558 = vst [vmem:[#allocation2 + $0x10] sm:$0xff] 0.0
          %559 = vst [vmem:[#allocation2 + $0x18] sm:$0xff] 0.0
          %560 = vst [vmem:[#allocation2 + $0x20] sm:$0xff] 0.0
          %561 = vst [vmem:[#allocation2 + $0x28] sm:$0xff] 0.0
          %562 = vst [vmem:[#allocation2 + $0x30] sm:$0xff] 0.0
          %563 = vst [vmem:[#allocation2 + $0x38] sm:$0xff] 0.0
          %564 = vst [vmem:[#allocation2 + $0x40] sm:$0xff] 0.0
          %565 = vst [vmem:[#allocation2 + $0x48] sm:$0xff] 0.0
          %566 = vst [vmem:[#allocation2 + $0x50] sm:$0xff] 0.0
          %567 = vst [vmem:[#allocation2 + $0x58] sm:$0xff] 0.0
          %568 = vst [vmem:[#allocation2 + $0x60] sm:$0xff] 0.0
          %569 = vst [vmem:[#allocation2 + $0x68] sm:$0xff] 0.0
          %570 = vst [vmem:[#allocation2 + $0x70] sm:$0xff] 0.0
          %571 = vst [vmem:[#allocation2 + $0x78] sm:$0xff] 0.0
          %572 = vst [vmem:[#allocation2 + $0x80] sm:$0xff] 0.0
          %573 = vst [vmem:[#allocation2 + $0x88] sm:$0xff] 0.0
          %574 = vst [vmem:[#allocation2 + $0x90] sm:$0xff] 0.0
          %575 = vst [vmem:[#allocation2 + $0x98] sm:$0xff] 0.0
          %576 = vst [vmem:[#allocation2 + $0xa0] sm:$0xff] 0.0
          %577 = vst [vmem:[#allocation2 + $0xa8] sm:$0xff] 0.0
          %578 = vst [vmem:[#allocation2 + $0xb0] sm:$0xff] 0.0
          %579 = vst [vmem:[#allocation2 + $0xb8] sm:$0xff] 0.0
          %580 = vst [vmem:[#allocation2 + $0xc0] sm:$0xff] 0.0
          %581 = vst [vmem:[#allocation2 + $0xc8] sm:$0xff] 0.0
          %582 = vst [vmem:[#allocation2 + $0xd0] sm:$0xff] 0.0
          %583 = vst [vmem:[#allocation2 + $0xd8] sm:$0xff] 0.0
          %584 = vst [vmem:[#allocation2 + $0xe0] sm:$0xff] 0.0
          %585 = vst [vmem:[#allocation2 + $0xe8] sm:$0xff] 0.0
          %586 = vst [vmem:[#allocation2 + $0xf0] sm:$0xff] 0.0
          %587 = vst [vmem:[#allocation2 + $0xf8] sm:$0xff] 0.0
          %588 = vst [vmem:[#allocation2 + $0x100] sm:$0xff] 0.0
          %589 = vst [vmem:[#allocation2 + $0x108] sm:$0xff] 0.0
          %590 = vst [vmem:[#allocation2 + $0x110] sm:$0xff] 0.0
          %591 = vst [vmem:[#allocation2 + $0x118] sm:$0xff] 0.0
          %592 = vst [vmem:[#allocation2 + $0x120] sm:$0xff] 0.0
          %593 = vst [vmem:[#allocation2 + $0x128] sm:$0xff] 0.0
          %594 = vst [vmem:[#allocation2 + $0x130] sm:$0xff] 0.0
          %595 = vst [vmem:[#allocation2 + $0x138] sm:$0xff] 0.0
          %596 = vst [vmem:[#allocation2 + $0x140] sm:$0xff] 0.0
          %597 = vst [vmem:[#allocation2 + $0x148] sm:$0xff] 0.0
          %598 = vst [vmem:[#allocation2 + $0x150] sm:$0xff] 0.0
          %599 = vst [vmem:[#allocation2 + $0x158] sm:$0xff] 0.0
          %600 = vst [vmem:[#allocation2 + $0x160] sm:$0xff] 0.0
          %601 = vst [vmem:[#allocation2 + $0x168] sm:$0xff] 0.0
          %602 = vst [vmem:[#allocation2 + $0x170] sm:$0xff] 0.0
          %603 = vst [vmem:[#allocation2 + $0x178] sm:$0xff] 0.0
          %604 = vst [vmem:[#allocation2 + $0x180] sm:$0xff] 0.0
          %605 = vst [vmem:[#allocation2 + $0x188] sm:$0xff] 0.0
          %606 = vst [vmem:[#allocation2 + $0x190] sm:$0xff] 0.0
          %607 = vst [vmem:[#allocation2 + $0x198] sm:$0xff] 0.0
          %608 = vst [vmem:[#allocation2 + $0x1a0] sm:$0xff] 0.0
          %609 = vst [vmem:[#allocation2 + $0x1a8] sm:$0xff] 0.0
          %610 = vst [vmem:[#allocation2 + $0x1b0] sm:$0xff] 0.0
          %611 = vst [vmem:[#allocation2 + $0x1b8] sm:$0xff] 0.0
          %612 = vst [vmem:[#allocation2 + $0x1c0] sm:$0xff] 0.0
          %613 = vst [vmem:[#allocation2 + $0x1c8] sm:$0xff] 0.0
          %614 = vst [vmem:[#allocation2 + $0x1d0] sm:$0xff] 0.0
          %615 = vst [vmem:[#allocation2 + $0x1d8] sm:$0xff] 0.0
          %616 = vst [vmem:[#allocation2 + $0x1e0] sm:$0xff] 0.0
          %617 = vst [vmem:[#allocation2 + $0x1e8] sm:$0xff] 0.0
          %618 = vst [vmem:[#allocation2 + $0x1f0] sm:$0xff] 0.0
          %619 = vst [vmem:[#allocation2 + $0x1f8] sm:$0xff] 0.0
          %620 = vst [vmem:[#allocation2 + $0x200] sm:$0xff] 0.0
          %621 = vst [vmem:[#allocation2 + $0x208] sm:$0xff] 0.0
          %622 = vst [vmem:[#allocation2 + $0x210] sm:$0xff] 0.0
          %623 = vst [vmem:[#allocation2 + $0x218] sm:$0xff] 0.0
          %624 = vst [vmem:[#allocation2 + $0x220] sm:$0xff] 0.0
          %625 = vst [vmem:[#allocation2 + $0x228] sm:$0xff] 0.0
          %626 = vst [vmem:[#allocation2 + $0x230] sm:$0xff] 0.0
          %627 = vst [vmem:[#allocation2 + $0x238] sm:$0xff] 0.0
          %628 = vst [vmem:[#allocation2 + $0x240] sm:$0xff] 0.0
          %629 = vst [vmem:[#allocation2 + $0x248] sm:$0xff] 0.0
          %630 = vst [vmem:[#allocation2 + $0x250] sm:$0xff] 0.0
          %631 = vst [vmem:[#allocation2 + $0x258] sm:$0xff] 0.0
          %632 = vst [vmem:[#allocation2 + $0x260] sm:$0xff] 0.0
          %633 = vst [vmem:[#allocation2 + $0x268] sm:$0xff] 0.0
          %634 = vst [vmem:[#allocation2 + $0x270] sm:$0xff] 0.0
          %635 = vst [vmem:[#allocation2 + $0x278] sm:$0xff] 0.0
          %636 = vst [vmem:[#allocation2 + $0x280] sm:$0xff] 0.0
          %637 = vst [vmem:[#allocation2 + $0x288] sm:$0xff] 0.0
          %638 = vst [vmem:[#allocation2 + $0x290] sm:$0xff] 0.0
          %639 = vst [vmem:[#allocation2 + $0x298] sm:$0xff] 0.0
          %640 = vst [vmem:[#allocation2 + $0x2a0] sm:$0xff] 0.0
          %641 = vst [vmem:[#allocation2 + $0x2a8] sm:$0xff] 0.0
          %642 = vst [vmem:[#allocation2 + $0x2b0] sm:$0xff] 0.0
          %643 = vst [vmem:[#allocation2 + $0x2b8] sm:$0xff] 0.0
          %644 = vst [vmem:[#allocation2 + $0x2c0] sm:$0xff] 0.0
          %645 = vst [vmem:[#allocation2 + $0x2c8] sm:$0xff] 0.0
          %646 = vst [vmem:[#allocation2 + $0x2d0] sm:$0xff] 0.0
          %647 = vst [vmem:[#allocation2 + $0x2d8] sm:$0xff] 0.0
          %648 = vst [vmem:[#allocation2 + $0x2e0] sm:$0xff] 0.0
          %649 = vst [vmem:[#allocation2 + $0x2e8] sm:$0xff] 0.0
          %650 = vst [vmem:[#allocation2 + $0x2f0] sm:$0xff] 0.0
          %651 = vst [vmem:[#allocation2 + $0x2f8] sm:$0xff] 0.0
          %652 = vst [vmem:[#allocation2 + $0x300] sm:$0xff] 0.0
          %653 = vst [vmem:[#allocation2 + $0x308] sm:$0xff] 0.0
          %654 = vst [vmem:[#allocation2 + $0x310] sm:$0xff] 0.0
          %655 = vst [vmem:[#allocation2 + $0x318] sm:$0xff] 0.0
          %656 = vst [vmem:[#allocation2 + $0x320] sm:$0xff] 0.0
          %657 = vst [vmem:[#allocation2 + $0x328] sm:$0xff] 0.0
          %658 = vst [vmem:[#allocation2 + $0x330] sm:$0xff] 0.0
          %659 = vst [vmem:[#allocation2 + $0x338] sm:$0xff] 0.0
          %660 = vst [vmem:[#allocation2 + $0x340] sm:$0xff] 0.0
          %661 = vst [vmem:[#allocation2 + $0x348] sm:$0xff] 0.0
          %662 = vst [vmem:[#allocation2 + $0x350] sm:$0xff] 0.0
          %663 = vst [vmem:[#allocation2 + $0x358] sm:$0xff] 0.0
          %664 = vst [vmem:[#allocation2 + $0x360] sm:$0xff] 0.0
          %665 = vst [vmem:[#allocation2 + $0x368] sm:$0xff] 0.0
          %666 = vst [vmem:[#allocation2 + $0x370] sm:$0xff] 0.0
          %667 = vst [vmem:[#allocation2 + $0x378] sm:$0xff] 0.0
          %668 = vst [vmem:[#allocation2 + $0x380] sm:$0xff] 0.0
          %669 = vst [vmem:[#allocation2 + $0x388] sm:$0xff] 0.0
          %670 = vst [vmem:[#allocation2 + $0x390] sm:$0xff] 0.0
          %671 = vst [vmem:[#allocation2 + $0x398] sm:$0xff] 0.0
          %672 = vst [vmem:[#allocation2 + $0x3a0] sm:$0xff] 0.0
          %673 = vst [vmem:[#allocation2 + $0x3a8] sm:$0xff] 0.0
          %674 = vst [vmem:[#allocation2 + $0x3b0] sm:$0xff] 0.0
          %675 = vst [vmem:[#allocation2 + $0x3b8] sm:$0xff] 0.0
          %676 = vst [vmem:[#allocation2 + $0x3c0] sm:$0xff] 0.0
          %677 = vst [vmem:[#allocation2 + $0x3c8] sm:$0xff] 0.0
          %678 = vst [vmem:[#allocation2 + $0x3d0] sm:$0xff] 0.0
          %679 = vst [vmem:[#allocation2 + $0x3d8] sm:$0xff] 0.0
          %680 = vst [vmem:[#allocation2 + $0x3e0] sm:$0xff] 0.0
          %681 = vst [vmem:[#allocation2 + $0x3e8] sm:$0xff] 0.0
          %682 = vst [vmem:[#allocation2 + $0x3f0] sm:$0xff] 0.0
          %683 = vst [vmem:[#allocation2 + $0x3f8] sm:$0xff] 0.0
          %684 = vst [vmem:[#allocation3] sm:$0xff] -inf
          %685 = vst [vmem:[#allocation3 + $0x8] sm:$0xff] -inf
          %686 = vst [vmem:[#allocation3 + $0x10] sm:$0xff] -inf
          %687 = vst [vmem:[#allocation3 + $0x18] sm:$0xff] -inf
          %688 = vst [vmem:[#allocation3 + $0x20] sm:$0xff] -inf
          %689 = vst [vmem:[#allocation3 + $0x28] sm:$0xff] -inf
          %690 = vst [vmem:[#allocation3 + $0x30] sm:$0xff] -inf
          %691 = vst [vmem:[#allocation3 + $0x38] sm:$0xff] -inf
          %692 = vst [vmem:[#allocation3 + $0x40] sm:$0xff] -inf
          %693 = vst [vmem:[#allocation3 + $0x48] sm:$0xff] -inf
          %694 = vst [vmem:[#allocation3 + $0x50] sm:$0xff] -inf
          %695 = vst [vmem:[#allocation3 + $0x58] sm:$0xff] -inf
          %696 = vst [vmem:[#allocation3 + $0x60] sm:$0xff] -inf
          %697 = vst [vmem:[#allocation3 + $0x68] sm:$0xff] -inf
          %698 = vst [vmem:[#allocation3 + $0x70] sm:$0xff] -inf
          %699 = vst [vmem:[#allocation3 + $0x78] sm:$0xff] -inf
          %700 = vst [vmem:[#allocation3 + $0x80] sm:$0xff] -inf
          %701 = vst [vmem:[#allocation3 + $0x88] sm:$0xff] -inf
          %702 = vst [vmem:[#allocation3 + $0x90] sm:$0xff] -inf
          %703 = vst [vmem:[#allocation3 + $0x98] sm:$0xff] -inf
          %704 = vst [vmem:[#allocation3 + $0xa0] sm:$0xff] -inf
          %705 = vst [vmem:[#allocation3 + $0xa8] sm:$0xff] -inf
          %706 = vst [vmem:[#allocation3 + $0xb0] sm:$0xff] -inf
          %707 = vst [vmem:[#allocation3 + $0xb8] sm:$0xff] -inf
          %708 = vst [vmem:[#allocation3 + $0xc0] sm:$0xff] -inf
          %709 = vst [vmem:[#allocation3 + $0xc8] sm:$0xff] -inf
          %710 = vst [vmem:[#allocation3 + $0xd0] sm:$0xff] -inf
          %711 = vst [vmem:[#allocation3 + $0xd8] sm:$0xff] -inf
          %712 = vst [vmem:[#allocation3 + $0xe0] sm:$0xff] -inf
          %713 = vst [vmem:[#allocation3 + $0xe8] sm:$0xff] -inf
          %714 = vst [vmem:[#allocation3 + $0xf0] sm:$0xff] -inf
          %715 = vst [vmem:[#allocation3 + $0xf8] sm:$0xff] -inf
          %716 = vst [vmem:[#allocation3 + $0x100] sm:$0xff] -inf
          %717 = vst [vmem:[#allocation3 + $0x108] sm:$0xff] -inf
          %718 = vst [vmem:[#allocation3 + $0x110] sm:$0xff] -inf
          %719 = vst [vmem:[#allocation3 + $0x118] sm:$0xff] -inf
          %720 = vst [vmem:[#allocation3 + $0x120] sm:$0xff] -inf
          %721 = vst [vmem:[#allocation3 + $0x128] sm:$0xff] -inf
          %722 = vst [vmem:[#allocation3 + $0x130] sm:$0xff] -inf
          %723 = vst [vmem:[#allocation3 + $0x138] sm:$0xff] -inf
          %724 = vst [vmem:[#allocation3 + $0x140] sm:$0xff] -inf
          %725 = vst [vmem:[#allocation3 + $0x148] sm:$0xff] -inf
          %726 = vst [vmem:[#allocation3 + $0x150] sm:$0xff] -inf
          %727 = vst [vmem:[#allocation3 + $0x158] sm:$0xff] -inf
          %728 = vst [vmem:[#allocation3 + $0x160] sm:$0xff] -inf
          %729 = vst [vmem:[#allocation3 + $0x168] sm:$0xff] -inf
          %730 = vst [vmem:[#allocation3 + $0x170] sm:$0xff] -inf
          %731 = vst [vmem:[#allocation3 + $0x178] sm:$0xff] -inf
          %732 = vst [vmem:[#allocation3 + $0x180] sm:$0xff] -inf
          %733 = vst [vmem:[#allocation3 + $0x188] sm:$0xff] -inf
          %734 = vst [vmem:[#allocation3 + $0x190] sm:$0xff] -inf
          %735 = vst [vmem:[#allocation3 + $0x198] sm:$0xff] -inf
          %736 = vst [vmem:[#allocation3 + $0x1a0] sm:$0xff] -inf
          %737 = vst [vmem:[#allocation3 + $0x1a8] sm:$0xff] -inf
          %738 = vst [vmem:[#allocation3 + $0x1b0] sm:$0xff] -inf
          %739 = vst [vmem:[#allocation3 + $0x1b8] sm:$0xff] -inf
          %740 = vst [vmem:[#allocation3 + $0x1c0] sm:$0xff] -inf
          %741 = vst [vmem:[#allocation3 + $0x1c8] sm:$0xff] -inf
          %742 = vst [vmem:[#allocation3 + $0x1d0] sm:$0xff] -inf
          %743 = vst [vmem:[#allocation3 + $0x1d8] sm:$0xff] -inf
          %744 = vst [vmem:[#allocation3 + $0x1e0] sm:$0xff] -inf
          %745 = vst [vmem:[#allocation3 + $0x1e8] sm:$0xff] -inf
          %746 = vst [vmem:[#allocation3 + $0x1f0] sm:$0xff] -inf
          %747 = vst [vmem:[#allocation3 + $0x1f8] sm:$0xff] -inf
          %748 = vst [vmem:[#allocation3 + $0x200] sm:$0xff] -inf
          %749 = vst [vmem:[#allocation3 + $0x208] sm:$0xff] -inf
          %750 = vst [vmem:[#allocation3 + $0x210] sm:$0xff] -inf
          %751 = vst [vmem:[#allocation3 + $0x218] sm:$0xff] -inf
          %752 = vst [vmem:[#allocation3 + $0x220] sm:$0xff] -inf
          %753 = vst [vmem:[#allocation3 + $0x228] sm:$0xff] -inf
          %754 = vst [vmem:[#allocation3 + $0x230] sm:$0xff] -inf
          %755 = vst [vmem:[#allocation3 + $0x238] sm:$0xff] -inf
          %756 = vst [vmem:[#allocation3 + $0x240] sm:$0xff] -inf
          %757 = vst [vmem:[#allocation3 + $0x248] sm:$0xff] -inf
          %758 = vst [vmem:[#allocation3 + $0x250] sm:$0xff] -inf
          %759 = vst [vmem:[#allocation3 + $0x258] sm:$0xff] -inf
          %760 = vst [vmem:[#allocation3 + $0x260] sm:$0xff] -inf
          %761 = vst [vmem:[#allocation3 + $0x268] sm:$0xff] -inf
          %762 = vst [vmem:[#allocation3 + $0x270] sm:$0xff] -inf
          %763 = vst [vmem:[#allocation3 + $0x278] sm:$0xff] -inf
          %764 = vst [vmem:[#allocation3 + $0x280] sm:$0xff] -inf
          %765 = vst [vmem:[#allocation3 + $0x288] sm:$0xff] -inf
          %766 = vst [vmem:[#allocation3 + $0x290] sm:$0xff] -inf
          %767 = vst [vmem:[#allocation3 + $0x298] sm:$0xff] -inf
          %768 = vst [vmem:[#allocation3 + $0x2a0] sm:$0xff] -inf
          %769 = vst [vmem:[#allocation3 + $0x2a8] sm:$0xff] -inf
          %770 = vst [vmem:[#allocation3 + $0x2b0] sm:$0xff] -inf
          %771 = vst [vmem:[#allocation3 + $0x2b8] sm:$0xff] -inf
          %772 = vst [vmem:[#allocation3 + $0x2c0] sm:$0xff] -inf
          %773 = vst [vmem:[#allocation3 + $0x2c8] sm:$0xff] -inf
          %774 = vst [vmem:[#allocation3 + $0x2d0] sm:$0xff] -inf
          %775 = vst [vmem:[#allocation3 + $0x2d8] sm:$0xff] -inf
          %776 = vst [vmem:[#allocation3 + $0x2e0] sm:$0xff] -inf
          %777 = vst [vmem:[#allocation3 + $0x2e8] sm:$0xff] -inf
          %778 = vst [vmem:[#allocation3 + $0x2f0] sm:$0xff] -inf
          %779 = vst [vmem:[#allocation3 + $0x2f8] sm:$0xff] -inf
          %780 = vst [vmem:[#allocation3 + $0x300] sm:$0xff] -inf
          %781 = vst [vmem:[#allocation3 + $0x308] sm:$0xff] -inf
          %782 = vst [vmem:[#allocation3 + $0x310] sm:$0xff] -inf
          %783 = vst [vmem:[#allocation3 + $0x318] sm:$0xff] -inf
          %784 = vst [vmem:[#allocation3 + $0x320] sm:$0xff] -inf
          %785 = vst [vmem:[#allocation3 + $0x328] sm:$0xff] -inf
          %786 = vst [vmem:[#allocation3 + $0x330] sm:$0xff] -inf
          %787 = vst [vmem:[#allocation3 + $0x338] sm:$0xff] -inf
          %788 = vst [vmem:[#allocation3 + $0x340] sm:$0xff] -inf
          %789 = vst [vmem:[#allocation3 + $0x348] sm:$0xff] -inf
          %790 = vst [vmem:[#allocation3 + $0x350] sm:$0xff] -inf
          %791 = vst [vmem:[#allocation3 + $0x358] sm:$0xff] -inf
          %792 = vst [vmem:[#allocation3 + $0x360] sm:$0xff] -inf
          %793 = vst [vmem:[#allocation3 + $0x368] sm:$0xff] -inf
          %794 = vst [vmem:[#allocation3 + $0x370] sm:$0xff] -inf
          %795 = vst [vmem:[#allocation3 + $0x378] sm:$0xff] -inf
          %796 = vst [vmem:[#allocation3 + $0x380] sm:$0xff] -inf
          %797 = vst [vmem:[#allocation3 + $0x388] sm:$0xff] -inf
          %798 = vst [vmem:[#allocation3 + $0x390] sm:$0xff] -inf
          %799 = vst [vmem:[#allocation3 + $0x398] sm:$0xff] -inf
          %800 = vst [vmem:[#allocation3 + $0x3a0] sm:$0xff] -inf
          %801 = vst [vmem:[#allocation3 + $0x3a8] sm:$0xff] -inf
          %802 = vst [vmem:[#allocation3 + $0x3b0] sm:$0xff] -inf
          %803 = vst [vmem:[#allocation3 + $0x3b8] sm:$0xff] -inf
          %804 = vst [vmem:[#allocation3 + $0x3c0] sm:$0xff] -inf
          %805 = vst [vmem:[#allocation3 + $0x3c8] sm:$0xff] -inf
          %806 = vst [vmem:[#allocation3 + $0x3d0] sm:$0xff] -inf
          %807 = vst [vmem:[#allocation3 + $0x3d8] sm:$0xff] -inf
          %808 = vst [vmem:[#allocation3 + $0x3e0] sm:$0xff] -inf
          %809 = vst [vmem:[#allocation3 + $0x3e8] sm:$0xff] -inf
          %810 = vst [vmem:[#allocation3 + $0x3f0] sm:$0xff] -inf
          %811 = vst [vmem:[#allocation3 + $0x3f8] sm:$0xff] -inf
        $region72: #{tpu_custom_call.1} parent=43 // pred_fallthru
          _
        %v812 = vld [vmem:[%s321] sm:$0xf]
        %v813 = vld [vmem:[%s321 + $0x4] sm:$0xf]
        %v814 = vld [vmem:[%s321 + $0x8] sm:$0xf]
        %v815 = vld [vmem:[%s321 + $0xc] sm:$0xf]
        %v816 = vld [vmem:[%s321 + $0x10] sm:$0xf]
        %v817 = vld [vmem:[%s321 + $0x14] sm:$0xf]
        %v818 = vld [vmem:[%s321 + $0x18] sm:$0xf]
        %v819 = vld [vmem:[%s321 + $0x1c] sm:$0xf]
        %v820 = vld [vmem:[%s321 + $0x20] sm:$0xf]
        %v821 = vld [vmem:[%s321 + $0x24] sm:$0xf]
        %v822 = vld [vmem:[%s321 + $0x28] sm:$0xf]
        %v823 = vld [vmem:[%s321 + $0x2c] sm:$0xf]
        %v824 = vld [vmem:[%s321 + $0x30] sm:$0xf]
        %v825 = vld [vmem:[%s321 + $0x34] sm:$0xf]
        %v826 = vld [vmem:[%s321 + $0x38] sm:$0xf]
        %v827 = vld [vmem:[%s321 + $0x3c] sm:$0xf]
        %v828 = vld [vmem:[%s321 + $0x40] sm:$0xf]
        %v829 = vld [vmem:[%s321 + $0x44] sm:$0xf]
        %v830 = vld [vmem:[%s321 + $0x48] sm:$0xf]
        %v831 = vld [vmem:[%s321 + $0x4c] sm:$0xf]
        %v832 = vld [vmem:[%s321 + $0x50] sm:$0xf]
        %v833 = vld [vmem:[%s321 + $0x54] sm:$0xf]
        %v834 = vld [vmem:[%s321 + $0x58] sm:$0xf]
        %v835 = vld [vmem:[%s321 + $0x5c] sm:$0xf]
        %v836 = vld [vmem:[%s321 + $0x60] sm:$0xf]
        %v837 = vld [vmem:[%s321 + $0x64] sm:$0xf]
        %v838 = vld [vmem:[%s321 + $0x68] sm:$0xf]
        %v839 = vld [vmem:[%s321 + $0x6c] sm:$0xf]
        %v840 = vld [vmem:[%s321 + $0x70] sm:$0xf]
        %v841 = vld [vmem:[%s321 + $0x74] sm:$0xf]
        %v842 = vld [vmem:[%s321 + $0x78] sm:$0xf]
        %v843 = vld [vmem:[%s321 + $0x7c] sm:$0xf]
        %v844 = vld [vmem:[%s321 + $0x80] sm:$0xf]
        %v845 = vld [vmem:[%s321 + $0x84] sm:$0xf]
        %v846 = vld [vmem:[%s321 + $0x88] sm:$0xf]
        %v847 = vld [vmem:[%s321 + $0x8c] sm:$0xf]
        %v848 = vld [vmem:[%s321 + $0x90] sm:$0xf]
        %v849 = vld [vmem:[%s321 + $0x94] sm:$0xf]
        %v850 = vld [vmem:[%s321 + $0x98] sm:$0xf]
        %v851 = vld [vmem:[%s321 + $0x9c] sm:$0xf]
        %v852 = vld [vmem:[%s321 + $0xa0] sm:$0xf]
        %v853 = vld [vmem:[%s321 + $0xa4] sm:$0xf]
        %v854 = vld [vmem:[%s321 + $0xa8] sm:$0xf]
        %v855 = vld [vmem:[%s321 + $0xac] sm:$0xf]
        %v856 = vld [vmem:[%s321 + $0xb0] sm:$0xf]
        %v857 = vld [vmem:[%s321 + $0xb4] sm:$0xf]
        %v858 = vld [vmem:[%s321 + $0xb8] sm:$0xf]
        %v859 = vld [vmem:[%s321 + $0xbc] sm:$0xf]
        %v860 = vld [vmem:[%s321 + $0xc0] sm:$0xf]
        %v861 = vld [vmem:[%s321 + $0xc4] sm:$0xf]
        %v862 = vld [vmem:[%s321 + $0xc8] sm:$0xf]
        %v863 = vld [vmem:[%s321 + $0xcc] sm:$0xf]
        %v864 = vld [vmem:[%s321 + $0xd0] sm:$0xf]
        %v865 = vld [vmem:[%s321 + $0xd4] sm:$0xf]
        %v866 = vld [vmem:[%s321 + $0xd8] sm:$0xf]
        %v867 = vld [vmem:[%s321 + $0xdc] sm:$0xf]
        %v868 = vld [vmem:[%s321 + $0xe0] sm:$0xf]
        %v869 = vld [vmem:[%s321 + $0xe4] sm:$0xf]
        %v870 = vld [vmem:[%s321 + $0xe8] sm:$0xf]
        %v871 = vld [vmem:[%s321 + $0xec] sm:$0xf]
        %v872 = vld [vmem:[%s321 + $0xf0] sm:$0xf]
        %v873 = vld [vmem:[%s321 + $0xf4] sm:$0xf]
        %v874 = vld [vmem:[%s321 + $0xf8] sm:$0xf]
        %v875 = vld [vmem:[%s321 + $0xfc] sm:$0xf]
        %v876 = vunpack.c.l.bf16 %v812
        %v877 = vunpack.c.l.bf16 %v813
        %v878 = vunpack.c.l.bf16 %v814
        %v879 = vunpack.c.l.bf16 %v815
        %v880 = vunpack.c.l.bf16 %v816
        %v881 = vunpack.c.l.bf16 %v817
        %v882 = vunpack.c.l.bf16 %v818
        %v883 = vunpack.c.l.bf16 %v819
        %v884 = vunpack.c.l.bf16 %v820
        %v885 = vunpack.c.l.bf16 %v821
        %v886 = vunpack.c.l.bf16 %v822
        %v887 = vunpack.c.l.bf16 %v823
        %v888 = vunpack.c.l.bf16 %v824
        %v889 = vunpack.c.l.bf16 %v825
        %v890 = vunpack.c.l.bf16 %v826
        %v891 = vunpack.c.l.bf16 %v827
        %v892 = vunpack.c.l.bf16 %v828
        %v893 = vunpack.c.l.bf16 %v829
        %v894 = vunpack.c.l.bf16 %v830
        %v895 = vunpack.c.l.bf16 %v831
        %v896 = vunpack.c.l.bf16 %v832
        %v897 = vunpack.c.l.bf16 %v833
        %v898 = vunpack.c.l.bf16 %v834
        %v899 = vunpack.c.l.bf16 %v835
        %v900 = vunpack.c.l.bf16 %v836
        %v901 = vunpack.c.l.bf16 %v837
        %v902 = vunpack.c.l.bf16 %v838
        %v903 = vunpack.c.l.bf16 %v839
        %v904 = vunpack.c.l.bf16 %v840
        %v905 = vunpack.c.l.bf16 %v841
        %v906 = vunpack.c.l.bf16 %v842
        %v907 = vunpack.c.l.bf16 %v843
        %v908 = vunpack.c.l.bf16 %v844
        %v909 = vunpack.c.l.bf16 %v845
        %v910 = vunpack.c.l.bf16 %v846
        %v911 = vunpack.c.l.bf16 %v847
        %v912 = vunpack.c.l.bf16 %v848
        %v913 = vunpack.c.l.bf16 %v849
        %v914 = vunpack.c.l.bf16 %v850
        %v915 = vunpack.c.l.bf16 %v851
        %v916 = vunpack.c.l.bf16 %v852
        %v917 = vunpack.c.l.bf16 %v853
        %v918 = vunpack.c.l.bf16 %v854
        %v919 = vunpack.c.l.bf16 %v855
        %v920 = vunpack.c.l.bf16 %v856
        %v921 = vunpack.c.l.bf16 %v857
        %v922 = vunpack.c.l.bf16 %v858
        %v923 = vunpack.c.l.bf16 %v859
        %v924 = vunpack.c.l.bf16 %v860
        %v925 = vunpack.c.l.bf16 %v861
        %v926 = vunpack.c.l.bf16 %v862
        %v927 = vunpack.c.l.bf16 %v863
        %v928 = vunpack.c.l.bf16 %v864
        %v929 = vunpack.c.l.bf16 %v865
        %v930 = vunpack.c.l.bf16 %v866
        %v931 = vunpack.c.l.bf16 %v867
        %v932 = vunpack.c.l.bf16 %v868
        %v933 = vunpack.c.l.bf16 %v869
        %v934 = vunpack.c.l.bf16 %v870
        %v935 = vunpack.c.l.bf16 %v871
        %v936 = vunpack.c.l.bf16 %v872
        %v937 = vunpack.c.l.bf16 %v873
        %v938 = vunpack.c.l.bf16 %v874
        %v939 = vunpack.c.l.bf16 %v875
        %v940 = vld [vmem:[#allocation2] sm:$0xff]
        %v941 = vld [vmem:[#allocation2 + $0x8] sm:$0xff]
        %v942 = vld [vmem:[#allocation2 + $0x10] sm:$0xff]
        %v943 = vld [vmem:[#allocation2 + $0x18] sm:$0xff]
        %v944 = vld [vmem:[#allocation2 + $0x20] sm:$0xff]
        %v945 = vld [vmem:[#allocation2 + $0x28] sm:$0xff]
        %v946 = vld [vmem:[#allocation2 + $0x30] sm:$0xff]
        %v947 = vld [vmem:[#allocation2 + $0x38] sm:$0xff]
        %v948 = vld [vmem:[#allocation2 + $0x40] sm:$0xff]
        %v949 = vld [vmem:[#allocation2 + $0x48] sm:$0xff]
        %v950 = vld [vmem:[#allocation2 + $0x50] sm:$0xff]
        %v951 = vld [vmem:[#allocation2 + $0x58] sm:$0xff]
        %v952 = vld [vmem:[#allocation2 + $0x60] sm:$0xff]
        %v953 = vld [vmem:[#allocation2 + $0x68] sm:$0xff]
        %v954 = vld [vmem:[#allocation2 + $0x70] sm:$0xff]
        %v955 = vld [vmem:[#allocation2 + $0x78] sm:$0xff]
        %v956 = vld [vmem:[#allocation2 + $0x80] sm:$0xff]
        %v957 = vld [vmem:[#allocation2 + $0x88] sm:$0xff]
        %v958 = vld [vmem:[#allocation2 + $0x90] sm:$0xff]
        %v959 = vld [vmem:[#allocation2 + $0x98] sm:$0xff]
        %v960 = vld [vmem:[#allocation2 + $0xa0] sm:$0xff]
        %v961 = vld [vmem:[#allocation2 + $0xa8] sm:$0xff]
        %v962 = vld [vmem:[#allocation2 + $0xb0] sm:$0xff]
        %v963 = vld [vmem:[#allocation2 + $0xb8] sm:$0xff]
        %v964 = vld [vmem:[#allocation2 + $0xc0] sm:$0xff]
        %v965 = vld [vmem:[#allocation2 + $0xc8] sm:$0xff]
        %v966 = vld [vmem:[#allocation2 + $0xd0] sm:$0xff]
        %v967 = vld [vmem:[#allocation2 + $0xd8] sm:$0xff]
        %v968 = vld [vmem:[#allocation2 + $0xe0] sm:$0xff]
        %v969 = vld [vmem:[#allocation2 + $0xe8] sm:$0xff]
        %v970 = vld [vmem:[#allocation2 + $0xf0] sm:$0xff]
        %v971 = vld [vmem:[#allocation2 + $0xf8] sm:$0xff]
        %v972 = vld [vmem:[#allocation2 + $0x100] sm:$0xff]
        %v973 = vld [vmem:[#allocation2 + $0x108] sm:$0xff]
        %v974 = vld [vmem:[#allocation2 + $0x110] sm:$0xff]
        %v975 = vld [vmem:[#allocation2 + $0x118] sm:$0xff]
        %v976 = vld [vmem:[#allocation2 + $0x120] sm:$0xff]
        %v977 = vld [vmem:[#allocation2 + $0x128] sm:$0xff]
        %v978 = vld [vmem:[#allocation2 + $0x130] sm:$0xff]
        %v979 = vld [vmem:[#allocation2 + $0x138] sm:$0xff]
        %v980 = vld [vmem:[#allocation2 + $0x140] sm:$0xff]
        %v981 = vld [vmem:[#allocation2 + $0x148] sm:$0xff]
        %v982 = vld [vmem:[#allocation2 + $0x150] sm:$0xff]
        %v983 = vld [vmem:[#allocation2 + $0x158] sm:$0xff]
        %v984 = vld [vmem:[#allocation2 + $0x160] sm:$0xff]
        %v985 = vld [vmem:[#allocation2 + $0x168] sm:$0xff]
        %v986 = vld [vmem:[#allocation2 + $0x170] sm:$0xff]
        %v987 = vld [vmem:[#allocation2 + $0x178] sm:$0xff]
        %v988 = vld [vmem:[#allocation2 + $0x180] sm:$0xff]
        %v989 = vld [vmem:[#allocation2 + $0x188] sm:$0xff]
        %v990 = vld [vmem:[#allocation2 + $0x190] sm:$0xff]
        %v991 = vld [vmem:[#allocation2 + $0x198] sm:$0xff]
        %v992 = vld [vmem:[#allocation2 + $0x1a0] sm:$0xff]
        %v993 = vld [vmem:[#allocation2 + $0x1a8] sm:$0xff]
        %v994 = vld [vmem:[#allocation2 + $0x1b0] sm:$0xff]
        %v995 = vld [vmem:[#allocation2 + $0x1b8] sm:$0xff]
        %v996 = vld [vmem:[#allocation2 + $0x1c0] sm:$0xff]
        %v997 = vld [vmem:[#allocation2 + $0x1c8] sm:$0xff]
        %v998 = vld [vmem:[#allocation2 + $0x1d0] sm:$0xff]
        %v999 = vld [vmem:[#allocation2 + $0x1d8] sm:$0xff]
        %v1000 = vld [vmem:[#allocation2 + $0x1e0] sm:$0xff]
        %v1001 = vld [vmem:[#allocation2 + $0x1e8] sm:$0xff]
        %v1002 = vld [vmem:[#allocation2 + $0x1f0] sm:$0xff]
        %v1003 = vld [vmem:[#allocation2 + $0x1f8] sm:$0xff]
        %v1004 = vadd.f32 %v940, %v876
        %v1005 = vadd.f32 %v941, %v877
        %v1006 = vadd.f32 %v942, %v878
        %v1007 = vadd.f32 %v943, %v879
        %v1008 = vadd.f32 %v944, %v880
        %v1009 = vadd.f32 %v945, %v881
        %v1010 = vadd.f32 %v946, %v882
        %v1011 = vadd.f32 %v947, %v883
        %v1012 = vadd.f32 %v948, %v884
        %v1013 = vadd.f32 %v949, %v885
        %v1014 = vadd.f32 %v950, %v886
        %v1015 = vadd.f32 %v951, %v887
        %v1016 = vadd.f32 %v952, %v888
        %v1017 = vadd.f32 %v953, %v889
        %v1018 = vadd.f32 %v954, %v890
        %v1019 = vadd.f32 %v955, %v891
        %v1020 = vadd.f32 %v956, %v892
        %v1021 = vadd.f32 %v957, %v893
        %v1022 = vadd.f32 %v958, %v894
        %v1023 = vadd.f32 %v959, %v895
        %v1024 = vadd.f32 %v960, %v896
        %v1025 = vadd.f32 %v961, %v897
        %v1026 = vadd.f32 %v962, %v898
        %v1027 = vadd.f32 %v963, %v899
        %v1028 = vadd.f32 %v964, %v900
        %v1029 = vadd.f32 %v965, %v901
        %v1030 = vadd.f32 %v966, %v902
        %v1031 = vadd.f32 %v967, %v903
        %v1032 = vadd.f32 %v968, %v904
        %v1033 = vadd.f32 %v969, %v905
        %v1034 = vadd.f32 %v970, %v906
        %v1035 = vadd.f32 %v971, %v907
        %v1036 = vadd.f32 %v972, %v908
        %v1037 = vadd.f32 %v973, %v909
        %v1038 = vadd.f32 %v974, %v910
        %v1039 = vadd.f32 %v975, %v911
        %v1040 = vadd.f32 %v976, %v912
        %v1041 = vadd.f32 %v977, %v913
        %v1042 = vadd.f32 %v978, %v914
        %v1043 = vadd.f32 %v979, %v915
        %v1044 = vadd.f32 %v980, %v916
        %v1045 = vadd.f32 %v981, %v917
        %v1046 = vadd.f32 %v982, %v918
        %v1047 = vadd.f32 %v983, %v919
        %v1048 = vadd.f32 %v984, %v920
        %v1049 = vadd.f32 %v985, %v921
        %v1050 = vadd.f32 %v986, %v922
        %v1051 = vadd.f32 %v987, %v923
        %v1052 = vadd.f32 %v988, %v924
        %v1053 = vadd.f32 %v989, %v925
        %v1054 = vadd.f32 %v990, %v926
        %v1055 = vadd.f32 %v991, %v927
        %v1056 = vadd.f32 %v992, %v928
        %v1057 = vadd.f32 %v993, %v929
        %v1058 = vadd.f32 %v994, %v930
        %v1059 = vadd.f32 %v995, %v931
        %v1060 = vadd.f32 %v996, %v932
        %v1061 = vadd.f32 %v997, %v933
        %v1062 = vadd.f32 %v998, %v934
        %v1063 = vadd.f32 %v999, %v935
        %v1064 = vadd.f32 %v1000, %v936
        %v1065 = vadd.f32 %v1001, %v937
        %v1066 = vadd.f32 %v1002, %v938
        %v1067 = vadd.f32 %v1003, %v939
        %1068 = vst [vmem:[#allocation2] sm:$0xff] %v1004
        %1069 = vst [vmem:[#allocation2 + $0x8] sm:$0xff] %v1005
        %1070 = vst [vmem:[#allocation2 + $0x10] sm:$0xff] %v1006
        %1071 = vst [vmem:[#allocation2 + $0x18] sm:$0xff] %v1007
        %1072 = vst [vmem:[#allocation2 + $0x20] sm:$0xff] %v1008
        %1073 = vst [vmem:[#allocation2 + $0x28] sm:$0xff] %v1009
        %1074 = vst [vmem:[#allocation2 + $0x30] sm:$0xff] %v1010
        %1075 = vst [vmem:[#allocation2 + $0x38] sm:$0xff] %v1011
        %1076 = vst [vmem:[#allocation2 + $0x40] sm:$0xff] %v1012
        %1077 = vst [vmem:[#allocation2 + $0x48] sm:$0xff] %v1013
        %1078 = vst [vmem:[#allocation2 + $0x50] sm:$0xff] %v1014
        %1079 = vst [vmem:[#allocation2 + $0x58] sm:$0xff] %v1015
        %1080 = vst [vmem:[#allocation2 + $0x60] sm:$0xff] %v1016
        %1081 = vst [vmem:[#allocation2 + $0x68] sm:$0xff] %v1017
        %1082 = vst [vmem:[#allocation2 + $0x70] sm:$0xff] %v1018
        %1083 = vst [vmem:[#allocation2 + $0x78] sm:$0xff] %v1019
        %1084 = vst [vmem:[#allocation2 + $0x80] sm:$0xff] %v1020
        %1085 = vst [vmem:[#allocation2 + $0x88] sm:$0xff] %v1021
        %1086 = vst [vmem:[#allocation2 + $0x90] sm:$0xff] %v1022
        %1087 = vst [vmem:[#allocation2 + $0x98] sm:$0xff] %v1023
        %1088 = vst [vmem:[#allocation2 + $0xa0] sm:$0xff] %v1024
        %1089 = vst [vmem:[#allocation2 + $0xa8] sm:$0xff] %v1025
        %1090 = vst [vmem:[#allocation2 + $0xb0] sm:$0xff] %v1026
        %1091 = vst [vmem:[#allocation2 + $0xb8] sm:$0xff] %v1027
        %1092 = vst [vmem:[#allocation2 + $0xc0] sm:$0xff] %v1028
        %1093 = vst [vmem:[#allocation2 + $0xc8] sm:$0xff] %v1029
        %1094 = vst [vmem:[#allocation2 + $0xd0] sm:$0xff] %v1030
        %1095 = vst [vmem:[#allocation2 + $0xd8] sm:$0xff] %v1031
        %1096 = vst [vmem:[#allocation2 + $0xe0] sm:$0xff] %v1032
        %1097 = vst [vmem:[#allocation2 + $0xe8] sm:$0xff] %v1033
        %1098 = vst [vmem:[#allocation2 + $0xf0] sm:$0xff] %v1034
        %1099 = vst [vmem:[#allocation2 + $0xf8] sm:$0xff] %v1035
        %1100 = vst [vmem:[#allocation2 + $0x100] sm:$0xff] %v1036
        %1101 = vst [vmem:[#allocation2 + $0x108] sm:$0xff] %v1037
        %1102 = vst [vmem:[#allocation2 + $0x110] sm:$0xff] %v1038
        %1103 = vst [vmem:[#allocation2 + $0x118] sm:$0xff] %v1039
        %1104 = vst [vmem:[#allocation2 + $0x120] sm:$0xff] %v1040
        %1105 = vst [vmem:[#allocation2 + $0x128] sm:$0xff] %v1041
        %1106 = vst [vmem:[#allocation2 + $0x130] sm:$0xff] %v1042
        %1107 = vst [vmem:[#allocation2 + $0x138] sm:$0xff] %v1043
        %1108 = vst [vmem:[#allocation2 + $0x140] sm:$0xff] %v1044
        %1109 = vst [vmem:[#allocation2 + $0x148] sm:$0xff] %v1045
        %1110 = vst [vmem:[#allocation2 + $0x150] sm:$0xff] %v1046
        %1111 = vst [vmem:[#allocation2 + $0x158] sm:$0xff] %v1047
        %1112 = vst [vmem:[#allocation2 + $0x160] sm:$0xff] %v1048
        %1113 = vst [vmem:[#allocation2 + $0x168] sm:$0xff] %v1049
        %1114 = vst [vmem:[#allocation2 + $0x170] sm:$0xff] %v1050
        %1115 = vst [vmem:[#allocation2 + $0x178] sm:$0xff] %v1051
        %1116 = vst [vmem:[#allocation2 + $0x180] sm:$0xff] %v1052
        %1117 = vst [vmem:[#allocation2 + $0x188] sm:$0xff] %v1053
        %1118 = vst [vmem:[#allocation2 + $0x190] sm:$0xff] %v1054
        %1119 = vst [vmem:[#allocation2 + $0x198] sm:$0xff] %v1055
        %1120 = vst [vmem:[#allocation2 + $0x1a0] sm:$0xff] %v1056
        %1121 = vst [vmem:[#allocation2 + $0x1a8] sm:$0xff] %v1057
        %1122 = vst [vmem:[#allocation2 + $0x1b0] sm:$0xff] %v1058
        %1123 = vst [vmem:[#allocation2 + $0x1b8] sm:$0xff] %v1059
        %1124 = vst [vmem:[#allocation2 + $0x1c0] sm:$0xff] %v1060
        %1125 = vst [vmem:[#allocation2 + $0x1c8] sm:$0xff] %v1061
        %1126 = vst [vmem:[#allocation2 + $0x1d0] sm:$0xff] %v1062
        %1127 = vst [vmem:[#allocation2 + $0x1d8] sm:$0xff] %v1063
        %1128 = vst [vmem:[#allocation2 + $0x1e0] sm:$0xff] %v1064
        %1129 = vst [vmem:[#allocation2 + $0x1e8] sm:$0xff] %v1065
        %1130 = vst [vmem:[#allocation2 + $0x1f0] sm:$0xff] %v1066
        %1131 = vst [vmem:[#allocation2 + $0x1f8] sm:$0xff] %v1067
        %v1132 = vld [vmem:[#allocation3] sm:$0xff]
        %v1133 = vld [vmem:[#allocation3 + $0x8] sm:$0xff]
        %v1134 = vld [vmem:[#allocation3 + $0x10] sm:$0xff]
        %v1135 = vld [vmem:[#allocation3 + $0x18] sm:$0xff]
        %v1136 = vld [vmem:[#allocation3 + $0x20] sm:$0xff]
        %v1137 = vld [vmem:[#allocation3 + $0x28] sm:$0xff]
        %v1138 = vld [vmem:[#allocation3 + $0x30] sm:$0xff]
        %v1139 = vld [vmem:[#allocation3 + $0x38] sm:$0xff]
        %v1140 = vld [vmem:[#allocation3 + $0x40] sm:$0xff]
        %v1141 = vld [vmem:[#allocation3 + $0x48] sm:$0xff]
        %v1142 = vld [vmem:[#allocation3 + $0x50] sm:$0xff]
        %v1143 = vld [vmem:[#allocation3 + $0x58] sm:$0xff]
        %v1144 = vld [vmem:[#allocation3 + $0x60] sm:$0xff]
        %v1145 = vld [vmem:[#allocation3 + $0x68] sm:$0xff]
        %v1146 = vld [vmem:[#allocation3 + $0x70] sm:$0xff]
        %v1147 = vld [vmem:[#allocation3 + $0x78] sm:$0xff]
        %v1148 = vld [vmem:[#allocation3 + $0x80] sm:$0xff]
        %v1149 = vld [vmem:[#allocation3 + $0x88] sm:$0xff]
        %v1150 = vld [vmem:[#allocation3 + $0x90] sm:$0xff]
        %v1151 = vld [vmem:[#allocation3 + $0x98] sm:$0xff]
        %v1152 = vld [vmem:[#allocation3 + $0xa0] sm:$0xff]
        %v1153 = vld [vmem:[#allocation3 + $0xa8] sm:$0xff]
        %v1154 = vld [vmem:[#allocation3 + $0xb0] sm:$0xff]
        %v1155 = vld [vmem:[#allocation3 + $0xb8] sm:$0xff]
        %v1156 = vld [vmem:[#allocation3 + $0xc0] sm:$0xff]
        %v1157 = vld [vmem:[#allocation3 + $0xc8] sm:$0xff]
        %v1158 = vld [vmem:[#allocation3 + $0xd0] sm:$0xff]
        %v1159 = vld [vmem:[#allocation3 + $0xd8] sm:$0xff]
        %v1160 = vld [vmem:[#allocation3 + $0xe0] sm:$0xff]
        %v1161 = vld [vmem:[#allocation3 + $0xe8] sm:$0xff]
        %v1162 = vld [vmem:[#allocation3 + $0xf0] sm:$0xff]
        %v1163 = vld [vmem:[#allocation3 + $0xf8] sm:$0xff]
        %v1164 = vld [vmem:[#allocation3 + $0x100] sm:$0xff]
        %v1165 = vld [vmem:[#allocation3 + $0x108] sm:$0xff]
        %v1166 = vld [vmem:[#allocation3 + $0x110] sm:$0xff]
        %v1167 = vld [vmem:[#allocation3 + $0x118] sm:$0xff]
        %v1168 = vld [vmem:[#allocation3 + $0x120] sm:$0xff]
        %v1169 = vld [vmem:[#allocation3 + $0x128] sm:$0xff]
        %v1170 = vld [vmem:[#allocation3 + $0x130] sm:$0xff]
        %v1171 = vld [vmem:[#allocation3 + $0x138] sm:$0xff]
        %v1172 = vld [vmem:[#allocation3 + $0x140] sm:$0xff]
        %v1173 = vld [vmem:[#allocation3 + $0x148] sm:$0xff]
        %v1174 = vld [vmem:[#allocation3 + $0x150] sm:$0xff]
        %v1175 = vld [vmem:[#allocation3 + $0x158] sm:$0xff]
        %v1176 = vld [vmem:[#allocation3 + $0x160] sm:$0xff]
        %v1177 = vld [vmem:[#allocation3 + $0x168] sm:$0xff]
        %v1178 = vld [vmem:[#allocation3 + $0x170] sm:$0xff]
        %v1179 = vld [vmem:[#allocation3 + $0x178] sm:$0xff]
        %v1180 = vld [vmem:[#allocation3 + $0x180] sm:$0xff]
        %v1181 = vld [vmem:[#allocation3 + $0x188] sm:$0xff]
        %v1182 = vld [vmem:[#allocation3 + $0x190] sm:$0xff]
        %v1183 = vld [vmem:[#allocation3 + $0x198] sm:$0xff]
        %v1184 = vld [vmem:[#allocation3 + $0x1a0] sm:$0xff]
        %v1185 = vld [vmem:[#allocation3 + $0x1a8] sm:$0xff]
        %v1186 = vld [vmem:[#allocation3 + $0x1b0] sm:$0xff]
        %v1187 = vld [vmem:[#allocation3 + $0x1b8] sm:$0xff]
        %v1188 = vld [vmem:[#allocation3 + $0x1c0] sm:$0xff]
        %v1189 = vld [vmem:[#allocation3 + $0x1c8] sm:$0xff]
        %v1190 = vld [vmem:[#allocation3 + $0x1d0] sm:$0xff]
        %v1191 = vld [vmem:[#allocation3 + $0x1d8] sm:$0xff]
        %v1192 = vld [vmem:[#allocation3 + $0x1e0] sm:$0xff]
        %v1193 = vld [vmem:[#allocation3 + $0x1e8] sm:$0xff]
        %v1194 = vld [vmem:[#allocation3 + $0x1f0] sm:$0xff]
        %v1195 = vld [vmem:[#allocation3 + $0x1f8] sm:$0xff]
        %v1196 = vmax.f32 %v1132, %v876
        %v1197 = vmax.f32 %v1133, %v877
        %v1198 = vmax.f32 %v1134, %v878
        %v1199 = vmax.f32 %v1135, %v879
        %v1200 = vmax.f32 %v1136, %v880
        %v1201 = vmax.f32 %v1137, %v881
        %v1202 = vmax.f32 %v1138, %v882
        %v1203 = vmax.f32 %v1139, %v883
        %v1204 = vmax.f32 %v1140, %v884
        %v1205 = vmax.f32 %v1141, %v885
        %v1206 = vmax.f32 %v1142, %v886
        %v1207 = vmax.f32 %v1143, %v887
        %v1208 = vmax.f32 %v1144, %v888
        %v1209 = vmax.f32 %v1145, %v889
        %v1210 = vmax.f32 %v1146, %v890
        %v1211 = vmax.f32 %v1147, %v891
        %v1212 = vmax.f32 %v1148, %v892
        %v1213 = vmax.f32 %v1149, %v893
        %v1214 = vmax.f32 %v1150, %v894
        %v1215 = vmax.f32 %v1151, %v895
        %v1216 = vmax.f32 %v1152, %v896
        %v1217 = vmax.f32 %v1153, %v897
        %v1218 = vmax.f32 %v1154, %v898
        %v1219 = vmax.f32 %v1155, %v899
        %v1220 = vmax.f32 %v1156, %v900
        %v1221 = vmax.f32 %v1157, %v901
        %v1222 = vmax.f32 %v1158, %v902
        %v1223 = vmax.f32 %v1159, %v903
        %v1224 = vmax.f32 %v1160, %v904
        %v1225 = vmax.f32 %v1161, %v905
        %v1226 = vmax.f32 %v1162, %v906
        %v1227 = vmax.f32 %v1163, %v907
        %v1228 = vmax.f32 %v1164, %v908
        %v1229 = vmax.f32 %v1165, %v909
        %v1230 = vmax.f32 %v1166, %v910
        %v1231 = vmax.f32 %v1167, %v911
        %v1232 = vmax.f32 %v1168, %v912
        %v1233 = vmax.f32 %v1169, %v913
        %v1234 = vmax.f32 %v1170, %v914
        %v1235 = vmax.f32 %v1171, %v915
        %v1236 = vmax.f32 %v1172, %v916
        %v1237 = vmax.f32 %v1173, %v917
        %v1238 = vmax.f32 %v1174, %v918
        %v1239 = vmax.f32 %v1175, %v919
        %v1240 = vmax.f32 %v1176, %v920
        %v1241 = vmax.f32 %v1177, %v921
        %v1242 = vmax.f32 %v1178, %v922
        %v1243 = vmax.f32 %v1179, %v923
        %v1244 = vmax.f32 %v1180, %v924
        %v1245 = vmax.f32 %v1181, %v925
        %v1246 = vmax.f32 %v1182, %v926
        %v1247 = vmax.f32 %v1183, %v927
        %v1248 = vmax.f32 %v1184, %v928
        %v1249 = vmax.f32 %v1185, %v929
        %v1250 = vmax.f32 %v1186, %v930
        %v1251 = vmax.f32 %v1187, %v931
        %v1252 = vmax.f32 %v1188, %v932
        %v1253 = vmax.f32 %v1189, %v933
        %v1254 = vmax.f32 %v1190, %v934
        %v1255 = vmax.f32 %v1191, %v935
        %v1256 = vmax.f32 %v1192, %v936
        %v1257 = vmax.f32 %v1193, %v937
        %v1258 = vmax.f32 %v1194, %v938
        %v1259 = vmax.f32 %v1195, %v939
        %1260 = vst [vmem:[#allocation3] sm:$0xff] %v1196
        %1261 = vst [vmem:[#allocation3 + $0x8] sm:$0xff] %v1197
        %1262 = vst [vmem:[#allocation3 + $0x10] sm:$0xff] %v1198
        %1263 = vst [vmem:[#allocation3 + $0x18] sm:$0xff] %v1199
        %1264 = vst [vmem:[#allocation3 + $0x20] sm:$0xff] %v1200
        %1265 = vst [vmem:[#allocation3 + $0x28] sm:$0xff] %v1201
        %1266 = vst [vmem:[#allocation3 + $0x30] sm:$0xff] %v1202
        %1267 = vst [vmem:[#allocation3 + $0x38] sm:$0xff] %v1203
        %1268 = vst [vmem:[#allocation3 + $0x40] sm:$0xff] %v1204
        %1269 = vst [vmem:[#allocation3 + $0x48] sm:$0xff] %v1205
        %1270 = vst [vmem:[#allocation3 + $0x50] sm:$0xff] %v1206
        %1271 = vst [vmem:[#allocation3 + $0x58] sm:$0xff] %v1207
        %1272 = vst [vmem:[#allocation3 + $0x60] sm:$0xff] %v1208
        %1273 = vst [vmem:[#allocation3 + $0x68] sm:$0xff] %v1209
        %1274 = vst [vmem:[#allocation3 + $0x70] sm:$0xff] %v1210
        %1275 = vst [vmem:[#allocation3 + $0x78] sm:$0xff] %v1211
        %1276 = vst [vmem:[#allocation3 + $0x80] sm:$0xff] %v1212
        %1277 = vst [vmem:[#allocation3 + $0x88] sm:$0xff] %v1213
        %1278 = vst [vmem:[#allocation3 + $0x90] sm:$0xff] %v1214
        %1279 = vst [vmem:[#allocation3 + $0x98] sm:$0xff] %v1215
        %1280 = vst [vmem:[#allocation3 + $0xa0] sm:$0xff] %v1216
        %1281 = vst [vmem:[#allocation3 + $0xa8] sm:$0xff] %v1217
        %1282 = vst [vmem:[#allocation3 + $0xb0] sm:$0xff] %v1218
        %1283 = vst [vmem:[#allocation3 + $0xb8] sm:$0xff] %v1219
        %1284 = vst [vmem:[#allocation3 + $0xc0] sm:$0xff] %v1220
        %1285 = vst [vmem:[#allocation3 + $0xc8] sm:$0xff] %v1221
        %1286 = vst [vmem:[#allocation3 + $0xd0] sm:$0xff] %v1222
        %1287 = vst [vmem:[#allocation3 + $0xd8] sm:$0xff] %v1223
        %1288 = vst [vmem:[#allocation3 + $0xe0] sm:$0xff] %v1224
        %1289 = vst [vmem:[#allocation3 + $0xe8] sm:$0xff] %v1225
        %1290 = vst [vmem:[#allocation3 + $0xf0] sm:$0xff] %v1226
        %1291 = vst [vmem:[#allocation3 + $0xf8] sm:$0xff] %v1227
        %1292 = vst [vmem:[#allocation3 + $0x100] sm:$0xff] %v1228
        %1293 = vst [vmem:[#allocation3 + $0x108] sm:$0xff] %v1229
        %1294 = vst [vmem:[#allocation3 + $0x110] sm:$0xff] %v1230
        %1295 = vst [vmem:[#allocation3 + $0x118] sm:$0xff] %v1231
        %1296 = vst [vmem:[#allocation3 + $0x120] sm:$0xff] %v1232
        %1297 = vst [vmem:[#allocation3 + $0x128] sm:$0xff] %v1233
        %1298 = vst [vmem:[#allocation3 + $0x130] sm:$0xff] %v1234
        %1299 = vst [vmem:[#allocation3 + $0x138] sm:$0xff] %v1235
        %1300 = vst [vmem:[#allocation3 + $0x140] sm:$0xff] %v1236
        %1301 = vst [vmem:[#allocation3 + $0x148] sm:$0xff] %v1237
        %1302 = vst [vmem:[#allocation3 + $0x150] sm:$0xff] %v1238
        %1303 = vst [vmem:[#allocation3 + $0x158] sm:$0xff] %v1239
        %1304 = vst [vmem:[#allocation3 + $0x160] sm:$0xff] %v1240
        %1305 = vst [vmem:[#allocation3 + $0x168] sm:$0xff] %v1241
        %1306 = vst [vmem:[#allocation3 + $0x170] sm:$0xff] %v1242
        %1307 = vst [vmem:[#allocation3 + $0x178] sm:$0xff] %v1243
        %1308 = vst [vmem:[#allocation3 + $0x180] sm:$0xff] %v1244
        %1309 = vst [vmem:[#allocation3 + $0x188] sm:$0xff] %v1245
        %1310 = vst [vmem:[#allocation3 + $0x190] sm:$0xff] %v1246
        %1311 = vst [vmem:[#allocation3 + $0x198] sm:$0xff] %v1247
        %1312 = vst [vmem:[#allocation3 + $0x1a0] sm:$0xff] %v1248
        %1313 = vst [vmem:[#allocation3 + $0x1a8] sm:$0xff] %v1249
        %1314 = vst [vmem:[#allocation3 + $0x1b0] sm:$0xff] %v1250
        %1315 = vst [vmem:[#allocation3 + $0x1b8] sm:$0xff] %v1251
        %1316 = vst [vmem:[#allocation3 + $0x1c0] sm:$0xff] %v1252
        %1317 = vst [vmem:[#allocation3 + $0x1c8] sm:$0xff] %v1253
        %1318 = vst [vmem:[#allocation3 + $0x1d0] sm:$0xff] %v1254
        %1319 = vst [vmem:[#allocation3 + $0x1d8] sm:$0xff] %v1255
        %1320 = vst [vmem:[#allocation3 + $0x1e0] sm:$0xff] %v1256
        %1321 = vst [vmem:[#allocation3 + $0x1e8] sm:$0xff] %v1257
        %1322 = vst [vmem:[#allocation3 + $0x1f0] sm:$0xff] %v1258
        %1323 = vst [vmem:[#allocation3 + $0x1f8] sm:$0xff] %v1259
        %v1324 = vld [vmem:[%s330] sm:$0xf]
        %v1325 = vld [vmem:[%s330 + $0x4] sm:$0xf]
        %v1326 = vld [vmem:[%s330 + $0x8] sm:$0xf]
        %v1327 = vld [vmem:[%s330 + $0xc] sm:$0xf]
        %v1328 = vld [vmem:[%s330 + $0x10] sm:$0xf]
        %v1329 = vld [vmem:[%s330 + $0x14] sm:$0xf]
        %v1330 = vld [vmem:[%s330 + $0x18] sm:$0xf]
        %v1331 = vld [vmem:[%s330 + $0x1c] sm:$0xf]
        %v1332 = vld [vmem:[%s330 + $0x20] sm:$0xf]
        %v1333 = vld [vmem:[%s330 + $0x24] sm:$0xf]
        %v1334 = vld [vmem:[%s330 + $0x28] sm:$0xf]
        %v1335 = vld [vmem:[%s330 + $0x2c] sm:$0xf]
        %v1336 = vld [vmem:[%s330 + $0x30] sm:$0xf]
        %v1337 = vld [vmem:[%s330 + $0x34] sm:$0xf]
        %v1338 = vld [vmem:[%s330 + $0x38] sm:$0xf]
        %v1339 = vld [vmem:[%s330 + $0x3c] sm:$0xf]
        %v1340 = vld [vmem:[%s330 + $0x40] sm:$0xf]
        %v1341 = vld [vmem:[%s330 + $0x44] sm:$0xf]
        %v1342 = vld [vmem:[%s330 + $0x48] sm:$0xf]
        %v1343 = vld [vmem:[%s330 + $0x4c] sm:$0xf]
        %v1344 = vld [vmem:[%s330 + $0x50] sm:$0xf]
        %v1345 = vld [vmem:[%s330 + $0x54] sm:$0xf]
        %v1346 = vld [vmem:[%s330 + $0x58] sm:$0xf]
        %v1347 = vld [vmem:[%s330 + $0x5c] sm:$0xf]
        %v1348 = vld [vmem:[%s330 + $0x60] sm:$0xf]
        %v1349 = vld [vmem:[%s330 + $0x64] sm:$0xf]
        %v1350 = vld [vmem:[%s330 + $0x68] sm:$0xf]
        %v1351 = vld [vmem:[%s330 + $0x6c] sm:$0xf]
        %v1352 = vld [vmem:[%s330 + $0x70] sm:$0xf]
        %v1353 = vld [vmem:[%s330 + $0x74] sm:$0xf]
        %v1354 = vld [vmem:[%s330 + $0x78] sm:$0xf]
        %v1355 = vld [vmem:[%s330 + $0x7c] sm:$0xf]
        %v1356 = vld [vmem:[%s330 + $0x80] sm:$0xf]
        %v1357 = vld [vmem:[%s330 + $0x84] sm:$0xf]
        %v1358 = vld [vmem:[%s330 + $0x88] sm:$0xf]
        %v1359 = vld [vmem:[%s330 + $0x8c] sm:$0xf]
        %v1360 = vld [vmem:[%s330 + $0x90] sm:$0xf]
        %v1361 = vld [vmem:[%s330 + $0x94] sm:$0xf]
        %v1362 = vld [vmem:[%s330 + $0x98] sm:$0xf]
        %v1363 = vld [vmem:[%s330 + $0x9c] sm:$0xf]
        %v1364 = vld [vmem:[%s330 + $0xa0] sm:$0xf]
        %v1365 = vld [vmem:[%s330 + $0xa4] sm:$0xf]
        %v1366 = vld [vmem:[%s330 + $0xa8] sm:$0xf]
        %v1367 = vld [vmem:[%s330 + $0xac] sm:$0xf]
        %v1368 = vld [vmem:[%s330 + $0xb0] sm:$0xf]
        %v1369 = vld [vmem:[%s330 + $0xb4] sm:$0xf]
        %v1370 = vld [vmem:[%s330 + $0xb8] sm:$0xf]
        %v1371 = vld [vmem:[%s330 + $0xbc] sm:$0xf]
        %v1372 = vld [vmem:[%s330 + $0xc0] sm:$0xf]
        %v1373 = vld [vmem:[%s330 + $0xc4] sm:$0xf]
        %v1374 = vld [vmem:[%s330 + $0xc8] sm:$0xf]
        %v1375 = vld [vmem:[%s330 + $0xcc] sm:$0xf]
        %v1376 = vld [vmem:[%s330 + $0xd0] sm:$0xf]
        %v1377 = vld [vmem:[%s330 + $0xd4] sm:$0xf]
        %v1378 = vld [vmem:[%s330 + $0xd8] sm:$0xf]
        %v1379 = vld [vmem:[%s330 + $0xdc] sm:$0xf]
        %v1380 = vld [vmem:[%s330 + $0xe0] sm:$0xf]
        %v1381 = vld [vmem:[%s330 + $0xe4] sm:$0xf]
        %v1382 = vld [vmem:[%s330 + $0xe8] sm:$0xf]
        %v1383 = vld [vmem:[%s330 + $0xec] sm:$0xf]
        %v1384 = vld [vmem:[%s330 + $0xf0] sm:$0xf]
        %v1385 = vld [vmem:[%s330 + $0xf4] sm:$0xf]
        %v1386 = vld [vmem:[%s330 + $0xf8] sm:$0xf]
        %v1387 = vld [vmem:[%s330 + $0xfc] sm:$0xf]
        %v1388 = vunpack.c.l.bf16 %v1324
        %v1389 = vunpack.c.l.bf16 %v1325
        %v1390 = vunpack.c.l.bf16 %v1326
        %v1391 = vunpack.c.l.bf16 %v1327
        %v1392 = vunpack.c.l.bf16 %v1328
        %v1393 = vunpack.c.l.bf16 %v1329
        %v1394 = vunpack.c.l.bf16 %v1330
        %v1395 = vunpack.c.l.bf16 %v1331
        %v1396 = vunpack.c.l.bf16 %v1332
        %v1397 = vunpack.c.l.bf16 %v1333
        %v1398 = vunpack.c.l.bf16 %v1334
        %v1399 = vunpack.c.l.bf16 %v1335
        %v1400 = vunpack.c.l.bf16 %v1336
        %v1401 = vunpack.c.l.bf16 %v1337
        %v1402 = vunpack.c.l.bf16 %v1338
        %v1403 = vunpack.c.l.bf16 %v1339
        %v1404 = vunpack.c.l.bf16 %v1340
        %v1405 = vunpack.c.l.bf16 %v1341
        %v1406 = vunpack.c.l.bf16 %v1342
        %v1407 = vunpack.c.l.bf16 %v1343
        %v1408 = vunpack.c.l.bf16 %v1344
        %v1409 = vunpack.c.l.bf16 %v1345
        %v1410 = vunpack.c.l.bf16 %v1346
        %v1411 = vunpack.c.l.bf16 %v1347
        %v1412 = vunpack.c.l.bf16 %v1348
        %v1413 = vunpack.c.l.bf16 %v1349
        %v1414 = vunpack.c.l.bf16 %v1350
        %v1415 = vunpack.c.l.bf16 %v1351
        %v1416 = vunpack.c.l.bf16 %v1352
        %v1417 = vunpack.c.l.bf16 %v1353
        %v1418 = vunpack.c.l.bf16 %v1354
        %v1419 = vunpack.c.l.bf16 %v1355
        %v1420 = vunpack.c.l.bf16 %v1356
        %v1421 = vunpack.c.l.bf16 %v1357
        %v1422 = vunpack.c.l.bf16 %v1358
        %v1423 = vunpack.c.l.bf16 %v1359
        %v1424 = vunpack.c.l.bf16 %v1360
        %v1425 = vunpack.c.l.bf16 %v1361
        %v1426 = vunpack.c.l.bf16 %v1362
        %v1427 = vunpack.c.l.bf16 %v1363
        %v1428 = vunpack.c.l.bf16 %v1364
        %v1429 = vunpack.c.l.bf16 %v1365
        %v1430 = vunpack.c.l.bf16 %v1366
        %v1431 = vunpack.c.l.bf16 %v1367
        %v1432 = vunpack.c.l.bf16 %v1368
        %v1433 = vunpack.c.l.bf16 %v1369
        %v1434 = vunpack.c.l.bf16 %v1370
        %v1435 = vunpack.c.l.bf16 %v1371
        %v1436 = vunpack.c.l.bf16 %v1372
        %v1437 = vunpack.c.l.bf16 %v1373
        %v1438 = vunpack.c.l.bf16 %v1374
        %v1439 = vunpack.c.l.bf16 %v1375
        %v1440 = vunpack.c.l.bf16 %v1376
        %v1441 = vunpack.c.l.bf16 %v1377
        %v1442 = vunpack.c.l.bf16 %v1378
        %v1443 = vunpack.c.l.bf16 %v1379
        %v1444 = vunpack.c.l.bf16 %v1380
        %v1445 = vunpack.c.l.bf16 %v1381
        %v1446 = vunpack.c.l.bf16 %v1382
        %v1447 = vunpack.c.l.bf16 %v1383
        %v1448 = vunpack.c.l.bf16 %v1384
        %v1449 = vunpack.c.l.bf16 %v1385
        %v1450 = vunpack.c.l.bf16 %v1386
        %v1451 = vunpack.c.l.bf16 %v1387
        %s1452 = scalar_lea.vmem [#allocation2], 512
        %v1453 = vld [vmem:[%s1452] sm:$0xff]
        %v1454 = vld [vmem:[%s1452 + $0x8] sm:$0xff]
        %v1455 = vld [vmem:[%s1452 + $0x10] sm:$0xff]
        %v1456 = vld [vmem:[%s1452 + $0x18] sm:$0xff]
        %v1457 = vld [vmem:[%s1452 + $0x20] sm:$0xff]
        %v1458 = vld [vmem:[%s1452 + $0x28] sm:$0xff]
        %v1459 = vld [vmem:[%s1452 + $0x30] sm:$0xff]
        %v1460 = vld [vmem:[%s1452 + $0x38] sm:$0xff]
        %v1461 = vld [vmem:[%s1452 + $0x40] sm:$0xff]
        %v1462 = vld [vmem:[%s1452 + $0x48] sm:$0xff]
        %v1463 = vld [vmem:[%s1452 + $0x50] sm:$0xff]
        %v1464 = vld [vmem:[%s1452 + $0x58] sm:$0xff]
        %v1465 = vld [vmem:[%s1452 + $0x60] sm:$0xff]
        %v1466 = vld [vmem:[%s1452 + $0x68] sm:$0xff]
        %v1467 = vld [vmem:[%s1452 + $0x70] sm:$0xff]
        %v1468 = vld [vmem:[%s1452 + $0x78] sm:$0xff]
        %v1469 = vld [vmem:[%s1452 + $0x80] sm:$0xff]
        %v1470 = vld [vmem:[%s1452 + $0x88] sm:$0xff]
        %v1471 = vld [vmem:[%s1452 + $0x90] sm:$0xff]
        %v1472 = vld [vmem:[%s1452 + $0x98] sm:$0xff]
        %v1473 = vld [vmem:[%s1452 + $0xa0] sm:$0xff]
        %v1474 = vld [vmem:[%s1452 + $0xa8] sm:$0xff]
        %v1475 = vld [vmem:[%s1452 + $0xb0] sm:$0xff]
        %v1476 = vld [vmem:[%s1452 + $0xb8] sm:$0xff]
        %v1477 = vld [vmem:[%s1452 + $0xc0] sm:$0xff]
        %v1478 = vld [vmem:[%s1452 + $0xc8] sm:$0xff]
        %v1479 = vld [vmem:[%s1452 + $0xd0] sm:$0xff]
        %v1480 = vld [vmem:[%s1452 + $0xd8] sm:$0xff]
        %v1481 = vld [vmem:[%s1452 + $0xe0] sm:$0xff]
        %v1482 = vld [vmem:[%s1452 + $0xe8] sm:$0xff]
        %v1483 = vld [vmem:[%s1452 + $0xf0] sm:$0xff]
        %v1484 = vld [vmem:[%s1452 + $0xf8] sm:$0xff]
        %v1485 = vld [vmem:[%s1452 + $0x100] sm:$0xff]
        %v1486 = vld [vmem:[%s1452 + $0x108] sm:$0xff]
        %v1487 = vld [vmem:[%s1452 + $0x110] sm:$0xff]
        %v1488 = vld [vmem:[%s1452 + $0x118] sm:$0xff]
        %v1489 = vld [vmem:[%s1452 + $0x120] sm:$0xff]
        %v1490 = vld [vmem:[%s1452 + $0x128] sm:$0xff]
        %v1491 = vld [vmem:[%s1452 + $0x130] sm:$0xff]
        %v1492 = vld [vmem:[%s1452 + $0x138] sm:$0xff]
        %v1493 = vld [vmem:[%s1452 + $0x140] sm:$0xff]
        %v1494 = vld [vmem:[%s1452 + $0x148] sm:$0xff]
        %v1495 = vld [vmem:[%s1452 + $0x150] sm:$0xff]
        %v1496 = vld [vmem:[%s1452 + $0x158] sm:$0xff]
        %v1497 = vld [vmem:[%s1452 + $0x160] sm:$0xff]
        %v1498 = vld [vmem:[%s1452 + $0x168] sm:$0xff]
        %v1499 = vld [vmem:[%s1452 + $0x170] sm:$0xff]
        %v1500 = vld [vmem:[%s1452 + $0x178] sm:$0xff]
        %v1501 = vld [vmem:[%s1452 + $0x180] sm:$0xff]
        %v1502 = vld [vmem:[%s1452 + $0x188] sm:$0xff]
        %v1503 = vld [vmem:[%s1452 + $0x190] sm:$0xff]
        %v1504 = vld [vmem:[%s1452 + $0x198] sm:$0xff]
        %v1505 = vld [vmem:[%s1452 + $0x1a0] sm:$0xff]
        %v1506 = vld [vmem:[%s1452 + $0x1a8] sm:$0xff]
        %v1507 = vld [vmem:[%s1452 + $0x1b0] sm:$0xff]
        %v1508 = vld [vmem:[%s1452 + $0x1b8] sm:$0xff]
        %v1509 = vld [vmem:[%s1452 + $0x1c0] sm:$0xff]
        %v1510 = vld [vmem:[%s1452 + $0x1c8] sm:$0xff]
        %v1511 = vld [vmem:[%s1452 + $0x1d0] sm:$0xff]
        %v1512 = vld [vmem:[%s1452 + $0x1d8] sm:$0xff]
        %v1513 = vld [vmem:[%s1452 + $0x1e0] sm:$0xff]
        %v1514 = vld [vmem:[%s1452 + $0x1e8] sm:$0xff]
        %v1515 = vld [vmem:[%s1452 + $0x1f0] sm:$0xff]
        %v1516 = vld [vmem:[%s1452 + $0x1f8] sm:$0xff]
        %v1517 = vadd.f32 %v1453, %v1388
        %v1518 = vadd.f32 %v1454, %v1389
        %v1519 = vadd.f32 %v1455, %v1390
        %v1520 = vadd.f32 %v1456, %v1391
        %v1521 = vadd.f32 %v1457, %v1392
        %v1522 = vadd.f32 %v1458, %v1393
        %v1523 = vadd.f32 %v1459, %v1394
        %v1524 = vadd.f32 %v1460, %v1395
        %v1525 = vadd.f32 %v1461, %v1396
        %v1526 = vadd.f32 %v1462, %v1397
        %v1527 = vadd.f32 %v1463, %v1398
        %v1528 = vadd.f32 %v1464, %v1399
        %v1529 = vadd.f32 %v1465, %v1400
        %v1530 = vadd.f32 %v1466, %v1401
        %v1531 = vadd.f32 %v1467, %v1402
        %v1532 = vadd.f32 %v1468, %v1403
        %v1533 = vadd.f32 %v1469, %v1404
        %v1534 = vadd.f32 %v1470, %v1405
        %v1535 = vadd.f32 %v1471, %v1406
        %v1536 = vadd.f32 %v1472, %v1407
        %v1537 = vadd.f32 %v1473, %v1408
        %v1538 = vadd.f32 %v1474, %v1409
        %v1539 = vadd.f32 %v1475, %v1410
        %v1540 = vadd.f32 %v1476, %v1411
        %v1541 = vadd.f32 %v1477, %v1412
        %v1542 = vadd.f32 %v1478, %v1413
        %v1543 = vadd.f32 %v1479, %v1414
        %v1544 = vadd.f32 %v1480, %v1415
        %v1545 = vadd.f32 %v1481, %v1416
        %v1546 = vadd.f32 %v1482, %v1417
        %v1547 = vadd.f32 %v1483, %v1418
        %v1548 = vadd.f32 %v1484, %v1419
        %v1549 = vadd.f32 %v1485, %v1420
        %v1550 = vadd.f32 %v1486, %v1421
        %v1551 = vadd.f32 %v1487, %v1422
        %v1552 = vadd.f32 %v1488, %v1423
        %v1553 = vadd.f32 %v1489, %v1424
        %v1554 = vadd.f32 %v1490, %v1425
        %v1555 = vadd.f32 %v1491, %v1426
        %v1556 = vadd.f32 %v1492, %v1427
        %v1557 = vadd.f32 %v1493, %v1428
        %v1558 = vadd.f32 %v1494, %v1429
        %v1559 = vadd.f32 %v1495, %v1430
        %v1560 = vadd.f32 %v1496, %v1431
        %v1561 = vadd.f32 %v1497, %v1432
        %v1562 = vadd.f32 %v1498, %v1433
        %v1563 = vadd.f32 %v1499, %v1434
        %v1564 = vadd.f32 %v1500, %v1435
        %v1565 = vadd.f32 %v1501, %v1436
        %v1566 = vadd.f32 %v1502, %v1437
        %v1567 = vadd.f32 %v1503, %v1438
        %v1568 = vadd.f32 %v1504, %v1439
        %v1569 = vadd.f32 %v1505, %v1440
        %v1570 = vadd.f32 %v1506, %v1441
        %v1571 = vadd.f32 %v1507, %v1442
        %v1572 = vadd.f32 %v1508, %v1443
        %v1573 = vadd.f32 %v1509, %v1444
        %v1574 = vadd.f32 %v1510, %v1445
        %v1575 = vadd.f32 %v1511, %v1446
        %v1576 = vadd.f32 %v1512, %v1447
        %v1577 = vadd.f32 %v1513, %v1448
        %v1578 = vadd.f32 %v1514, %v1449
        %v1579 = vadd.f32 %v1515, %v1450
        %v1580 = vadd.f32 %v1516, %v1451
        %1581 = vst [vmem:[%s1452] sm:$0xff] %v1517
        %1582 = vst [vmem:[%s1452 + $0x8] sm:$0xff] %v1518
        %1583 = vst [vmem:[%s1452 + $0x10] sm:$0xff] %v1519
        %1584 = vst [vmem:[%s1452 + $0x18] sm:$0xff] %v1520
        %1585 = vst [vmem:[%s1452 + $0x20] sm:$0xff] %v1521
        %1586 = vst [vmem:[%s1452 + $0x28] sm:$0xff] %v1522
        %1587 = vst [vmem:[%s1452 + $0x30] sm:$0xff] %v1523
        %1588 = vst [vmem:[%s1452 + $0x38] sm:$0xff] %v1524
        %1589 = vst [vmem:[%s1452 + $0x40] sm:$0xff] %v1525
        %1590 = vst [vmem:[%s1452 + $0x48] sm:$0xff] %v1526
        %1591 = vst [vmem:[%s1452 + $0x50] sm:$0xff] %v1527
        %1592 = vst [vmem:[%s1452 + $0x58] sm:$0xff] %v1528
        %1593 = vst [vmem:[%s1452 + $0x60] sm:$0xff] %v1529
        %1594 = vst [vmem:[%s1452 + $0x68] sm:$0xff] %v1530
        %1595 = vst [vmem:[%s1452 + $0x70] sm:$0xff] %v1531
        %1596 = vst [vmem:[%s1452 + $0x78] sm:$0xff] %v1532
        %1597 = vst [vmem:[%s1452 + $0x80] sm:$0xff] %v1533
        %1598 = vst [vmem:[%s1452 + $0x88] sm:$0xff] %v1534
        %1599 = vst [vmem:[%s1452 + $0x90] sm:$0xff] %v1535
        %1600 = vst [vmem:[%s1452 + $0x98] sm:$0xff] %v1536
        %1601 = vst [vmem:[%s1452 + $0xa0] sm:$0xff] %v1537
        %1602 = vst [vmem:[%s1452 + $0xa8] sm:$0xff] %v1538
        %1603 = vst [vmem:[%s1452 + $0xb0] sm:$0xff] %v1539
        %1604 = vst [vmem:[%s1452 + $0xb8] sm:$0xff] %v1540
        %1605 = vst [vmem:[%s1452 + $0xc0] sm:$0xff] %v1541
        %1606 = vst [vmem:[%s1452 + $0xc8] sm:$0xff] %v1542
        %1607 = vst [vmem:[%s1452 + $0xd0] sm:$0xff] %v1543
        %1608 = vst [vmem:[%s1452 + $0xd8] sm:$0xff] %v1544
        %1609 = vst [vmem:[%s1452 + $0xe0] sm:$0xff] %v1545
        %1610 = vst [vmem:[%s1452 + $0xe8] sm:$0xff] %v1546
        %1611 = vst [vmem:[%s1452 + $0xf0] sm:$0xff] %v1547
        %1612 = vst [vmem:[%s1452 + $0xf8] sm:$0xff] %v1548
        %1613 = vst [vmem:[%s1452 + $0x100] sm:$0xff] %v1549
        %1614 = vst [vmem:[%s1452 + $0x108] sm:$0xff] %v1550
        %1615 = vst [vmem:[%s1452 + $0x110] sm:$0xff] %v1551
        %1616 = vst [vmem:[%s1452 + $0x118] sm:$0xff] %v1552
        %1617 = vst [vmem:[%s1452 + $0x120] sm:$0xff] %v1553
        %1618 = vst [vmem:[%s1452 + $0x128] sm:$0xff] %v1554
        %1619 = vst [vmem:[%s1452 + $0x130] sm:$0xff] %v1555
        %1620 = vst [vmem:[%s1452 + $0x138] sm:$0xff] %v1556
        %1621 = vst [vmem:[%s1452 + $0x140] sm:$0xff] %v1557
        %1622 = vst [vmem:[%s1452 + $0x148] sm:$0xff] %v1558
        %1623 = vst [vmem:[%s1452 + $0x150] sm:$0xff] %v1559
        %1624 = vst [vmem:[%s1452 + $0x158] sm:$0xff] %v1560
        %1625 = vst [vmem:[%s1452 + $0x160] sm:$0xff] %v1561
        %1626 = vst [vmem:[%s1452 + $0x168] sm:$0xff] %v1562
        %1627 = vst [vmem:[%s1452 + $0x170] sm:$0xff] %v1563
        %1628 = vst [vmem:[%s1452 + $0x178] sm:$0xff] %v1564
        %1629 = vst [vmem:[%s1452 + $0x180] sm:$0xff] %v1565
        %1630 = vst [vmem:[%s1452 + $0x188] sm:$0xff] %v1566
        %1631 = vst [vmem:[%s1452 + $0x190] sm:$0xff] %v1567
        %1632 = vst [vmem:[%s1452 + $0x198] sm:$0xff] %v1568
        %1633 = vst [vmem:[%s1452 + $0x1a0] sm:$0xff] %v1569
        %1634 = vst [vmem:[%s1452 + $0x1a8] sm:$0xff] %v1570
        %1635 = vst [vmem:[%s1452 + $0x1b0] sm:$0xff] %v1571
        %1636 = vst [vmem:[%s1452 + $0x1b8] sm:$0xff] %v1572
        %1637 = vst [vmem:[%s1452 + $0x1c0] sm:$0xff] %v1573
        %1638 = vst [vmem:[%s1452 + $0x1c8] sm:$0xff] %v1574
        %1639 = vst [vmem:[%s1452 + $0x1d0] sm:$0xff] %v1575
        %1640 = vst [vmem:[%s1452 + $0x1d8] sm:$0xff] %v1576
        %1641 = vst [vmem:[%s1452 + $0x1e0] sm:$0xff] %v1577
        %1642 = vst [vmem:[%s1452 + $0x1e8] sm:$0xff] %v1578
        %1643 = vst [vmem:[%s1452 + $0x1f0] sm:$0xff] %v1579
        %1644 = vst [vmem:[%s1452 + $0x1f8] sm:$0xff] %v1580
        %s1645 = scalar_lea.vmem [#allocation3], 512
        %v1646 = vld [vmem:[%s1645] sm:$0xff]
        %v1647 = vld [vmem:[%s1645 + $0x8] sm:$0xff]
        %v1648 = vld [vmem:[%s1645 + $0x10] sm:$0xff]
        %v1649 = vld [vmem:[%s1645 + $0x18] sm:$0xff]
        %v1650 = vld [vmem:[%s1645 + $0x20] sm:$0xff]
        %v1651 = vld [vmem:[%s1645 + $0x28] sm:$0xff]
        %v1652 = vld [vmem:[%s1645 + $0x30] sm:$0xff]
        %v1653 = vld [vmem:[%s1645 + $0x38] sm:$0xff]
        %v1654 = vld [vmem:[%s1645 + $0x40] sm:$0xff]
        %v1655 = vld [vmem:[%s1645 + $0x48] sm:$0xff]
        %v1656 = vld [vmem:[%s1645 + $0x50] sm:$0xff]
        %v1657 = vld [vmem:[%s1645 + $0x58] sm:$0xff]
        %v1658 = vld [vmem:[%s1645 + $0x60] sm:$0xff]
        %v1659 = vld [vmem:[%s1645 + $0x68] sm:$0xff]
        %v1660 = vld [vmem:[%s1645 + $0x70] sm:$0xff]
        %v1661 = vld [vmem:[%s1645 + $0x78] sm:$0xff]
        %v1662 = vld [vmem:[%s1645 + $0x80] sm:$0xff]
        %v1663 = vld [vmem:[%s1645 + $0x88] sm:$0xff]
        %v1664 = vld [vmem:[%s1645 + $0x90] sm:$0xff]
        %v1665 = vld [vmem:[%s1645 + $0x98] sm:$0xff]
        %v1666 = vld [vmem:[%s1645 + $0xa0] sm:$0xff]
        %v1667 = vld [vmem:[%s1645 + $0xa8] sm:$0xff]
        %v1668 = vld [vmem:[%s1645 + $0xb0] sm:$0xff]
        %v1669 = vld [vmem:[%s1645 + $0xb8] sm:$0xff]
        %v1670 = vld [vmem:[%s1645 + $0xc0] sm:$0xff]
        %v1671 = vld [vmem:[%s1645 + $0xc8] sm:$0xff]
        %v1672 = vld [vmem:[%s1645 + $0xd0] sm:$0xff]
        %v1673 = vld [vmem:[%s1645 + $0xd8] sm:$0xff]
        %v1674 = vld [vmem:[%s1645 + $0xe0] sm:$0xff]
        %v1675 = vld [vmem:[%s1645 + $0xe8] sm:$0xff]
        %v1676 = vld [vmem:[%s1645 + $0xf0] sm:$0xff]
        %v1677 = vld [vmem:[%s1645 + $0xf8] sm:$0xff]
        %v1678 = vld [vmem:[%s1645 + $0x100] sm:$0xff]
        %v1679 = vld [vmem:[%s1645 + $0x108] sm:$0xff]
        %v1680 = vld [vmem:[%s1645 + $0x110] sm:$0xff]
        %v1681 = vld [vmem:[%s1645 + $0x118] sm:$0xff]
        %v1682 = vld [vmem:[%s1645 + $0x120] sm:$0xff]
        %v1683 = vld [vmem:[%s1645 + $0x128] sm:$0xff]
        %v1684 = vld [vmem:[%s1645 + $0x130] sm:$0xff]
        %v1685 = vld [vmem:[%s1645 + $0x138] sm:$0xff]
        %v1686 = vld [vmem:[%s1645 + $0x140] sm:$0xff]
        %v1687 = vld [vmem:[%s1645 + $0x148] sm:$0xff]
        %v1688 = vld [vmem:[%s1645 + $0x150] sm:$0xff]
        %v1689 = vld [vmem:[%s1645 + $0x158] sm:$0xff]
        %v1690 = vld [vmem:[%s1645 + $0x160] sm:$0xff]
        %v1691 = vld [vmem:[%s1645 + $0x168] sm:$0xff]
        %v1692 = vld [vmem:[%s1645 + $0x170] sm:$0xff]
        %v1693 = vld [vmem:[%s1645 + $0x178] sm:$0xff]
        %v1694 = vld [vmem:[%s1645 + $0x180] sm:$0xff]
        %v1695 = vld [vmem:[%s1645 + $0x188] sm:$0xff]
        %v1696 = vld [vmem:[%s1645 + $0x190] sm:$0xff]
        %v1697 = vld [vmem:[%s1645 + $0x198] sm:$0xff]
        %v1698 = vld [vmem:[%s1645 + $0x1a0] sm:$0xff]
        %v1699 = vld [vmem:[%s1645 + $0x1a8] sm:$0xff]
        %v1700 = vld [vmem:[%s1645 + $0x1b0] sm:$0xff]
        %v1701 = vld [vmem:[%s1645 + $0x1b8] sm:$0xff]
        %v1702 = vld [vmem:[%s1645 + $0x1c0] sm:$0xff]
        %v1703 = vld [vmem:[%s1645 + $0x1c8] sm:$0xff]
        %v1704 = vld [vmem:[%s1645 + $0x1d0] sm:$0xff]
        %v1705 = vld [vmem:[%s1645 + $0x1d8] sm:$0xff]
        %v1706 = vld [vmem:[%s1645 + $0x1e0] sm:$0xff]
        %v1707 = vld [vmem:[%s1645 + $0x1e8] sm:$0xff]
        %v1708 = vld [vmem:[%s1645 + $0x1f0] sm:$0xff]
        %v1709 = vld [vmem:[%s1645 + $0x1f8] sm:$0xff]
        %v1710 = vmax.f32 %v1646, %v1388
        %v1711 = vmax.f32 %v1647, %v1389
        %v1712 = vmax.f32 %v1648, %v1390
        %v1713 = vmax.f32 %v1649, %v1391
        %v1714 = vmax.f32 %v1650, %v1392
        %v1715 = vmax.f32 %v1651, %v1393
        %v1716 = vmax.f32 %v1652, %v1394
        %v1717 = vmax.f32 %v1653, %v1395
        %v1718 = vmax.f32 %v1654, %v1396
        %v1719 = vmax.f32 %v1655, %v1397
        %v1720 = vmax.f32 %v1656, %v1398
        %v1721 = vmax.f32 %v1657, %v1399
        %v1722 = vmax.f32 %v1658, %v1400
        %v1723 = vmax.f32 %v1659, %v1401
        %v1724 = vmax.f32 %v1660, %v1402
        %v1725 = vmax.f32 %v1661, %v1403
        %v1726 = vmax.f32 %v1662, %v1404
        %v1727 = vmax.f32 %v1663, %v1405
        %v1728 = vmax.f32 %v1664, %v1406
        %v1729 = vmax.f32 %v1665, %v1407
        %v1730 = vmax.f32 %v1666, %v1408
        %v1731 = vmax.f32 %v1667, %v1409
        %v1732 = vmax.f32 %v1668, %v1410
        %v1733 = vmax.f32 %v1669, %v1411
        %v1734 = vmax.f32 %v1670, %v1412
        %v1735 = vmax.f32 %v1671, %v1413
        %v1736 = vmax.f32 %v1672, %v1414
        %v1737 = vmax.f32 %v1673, %v1415
        %v1738 = vmax.f32 %v1674, %v1416
        %v1739 = vmax.f32 %v1675, %v1417
        %v1740 = vmax.f32 %v1676, %v1418
        %v1741 = vmax.f32 %v1677, %v1419
        %v1742 = vmax.f32 %v1678, %v1420
        %v1743 = vmax.f32 %v1679, %v1421
        %v1744 = vmax.f32 %v1680, %v1422
        %v1745 = vmax.f32 %v1681, %v1423
        %v1746 = vmax.f32 %v1682, %v1424
        %v1747 = vmax.f32 %v1683, %v1425
        %v1748 = vmax.f32 %v1684, %v1426
        %v1749 = vmax.f32 %v1685, %v1427
        %v1750 = vmax.f32 %v1686, %v1428
        %v1751 = vmax.f32 %v1687, %v1429
        %v1752 = vmax.f32 %v1688, %v1430
        %v1753 = vmax.f32 %v1689, %v1431
        %v1754 = vmax.f32 %v1690, %v1432
        %v1755 = vmax.f32 %v1691, %v1433
        %v1756 = vmax.f32 %v1692, %v1434
        %v1757 = vmax.f32 %v1693, %v1435
        %v1758 = vmax.f32 %v1694, %v1436
        %v1759 = vmax.f32 %v1695, %v1437
        %v1760 = vmax.f32 %v1696, %v1438
        %v1761 = vmax.f32 %v1697, %v1439
        %v1762 = vmax.f32 %v1698, %v1440
        %v1763 = vmax.f32 %v1699, %v1441
        %v1764 = vmax.f32 %v1700, %v1442
        %v1765 = vmax.f32 %v1701, %v1443
        %v1766 = vmax.f32 %v1702, %v1444
        %v1767 = vmax.f32 %v1703, %v1445
        %v1768 = vmax.f32 %v1704, %v1446
        %v1769 = vmax.f32 %v1705, %v1447
        %v1770 = vmax.f32 %v1706, %v1448
        %v1771 = vmax.f32 %v1707, %v1449
        %v1772 = vmax.f32 %v1708, %v1450
        %v1773 = vmax.f32 %v1709, %v1451
        %1774 = vst [vmem:[%s1645] sm:$0xff] %v1710
        %1775 = vst [vmem:[%s1645 + $0x8] sm:$0xff] %v1711
        %1776 = vst [vmem:[%s1645 + $0x10] sm:$0xff] %v1712
        %1777 = vst [vmem:[%s1645 + $0x18] sm:$0xff] %v1713
        %1778 = vst [vmem:[%s1645 + $0x20] sm:$0xff] %v1714
        %1779 = vst [vmem:[%s1645 + $0x28] sm:$0xff] %v1715
        %1780 = vst [vmem:[%s1645 + $0x30] sm:$0xff] %v1716
        %1781 = vst [vmem:[%s1645 + $0x38] sm:$0xff] %v1717
        %1782 = vst [vmem:[%s1645 + $0x40] sm:$0xff] %v1718
        %1783 = vst [vmem:[%s1645 + $0x48] sm:$0xff] %v1719
        %1784 = vst [vmem:[%s1645 + $0x50] sm:$0xff] %v1720
        %1785 = vst [vmem:[%s1645 + $0x58] sm:$0xff] %v1721
        %1786 = vst [vmem:[%s1645 + $0x60] sm:$0xff] %v1722
        %1787 = vst [vmem:[%s1645 + $0x68] sm:$0xff] %v1723
        %1788 = vst [vmem:[%s1645 + $0x70] sm:$0xff] %v1724
        %1789 = vst [vmem:[%s1645 + $0x78] sm:$0xff] %v1725
        %1790 = vst [vmem:[%s1645 + $0x80] sm:$0xff] %v1726
        %1791 = vst [vmem:[%s1645 + $0x88] sm:$0xff] %v1727
        %1792 = vst [vmem:[%s1645 + $0x90] sm:$0xff] %v1728
        %1793 = vst [vmem:[%s1645 + $0x98] sm:$0xff] %v1729
        %1794 = vst [vmem:[%s1645 + $0xa0] sm:$0xff] %v1730
        %1795 = vst [vmem:[%s1645 + $0xa8] sm:$0xff] %v1731
        %1796 = vst [vmem:[%s1645 + $0xb0] sm:$0xff] %v1732
        %1797 = vst [vmem:[%s1645 + $0xb8] sm:$0xff] %v1733
        %1798 = vst [vmem:[%s1645 + $0xc0] sm:$0xff] %v1734
        %1799 = vst [vmem:[%s1645 + $0xc8] sm:$0xff] %v1735
        %1800 = vst [vmem:[%s1645 + $0xd0] sm:$0xff] %v1736
        %1801 = vst [vmem:[%s1645 + $0xd8] sm:$0xff] %v1737
        %1802 = vst [vmem:[%s1645 + $0xe0] sm:$0xff] %v1738
        %1803 = vst [vmem:[%s1645 + $0xe8] sm:$0xff] %v1739
        %1804 = vst [vmem:[%s1645 + $0xf0] sm:$0xff] %v1740
        %1805 = vst [vmem:[%s1645 + $0xf8] sm:$0xff] %v1741
        %1806 = vst [vmem:[%s1645 + $0x100] sm:$0xff] %v1742
        %1807 = vst [vmem:[%s1645 + $0x108] sm:$0xff] %v1743
        %1808 = vst [vmem:[%s1645 + $0x110] sm:$0xff] %v1744
        %1809 = vst [vmem:[%s1645 + $0x118] sm:$0xff] %v1745
        %1810 = vst [vmem:[%s1645 + $0x120] sm:$0xff] %v1746
        %1811 = vst [vmem:[%s1645 + $0x128] sm:$0xff] %v1747
        %1812 = vst [vmem:[%s1645 + $0x130] sm:$0xff] %v1748
        %1813 = vst [vmem:[%s1645 + $0x138] sm:$0xff] %v1749
        %1814 = vst [vmem:[%s1645 + $0x140] sm:$0xff] %v1750
        %1815 = vst [vmem:[%s1645 + $0x148] sm:$0xff] %v1751
        %1816 = vst [vmem:[%s1645 + $0x150] sm:$0xff] %v1752
        %1817 = vst [vmem:[%s1645 + $0x158] sm:$0xff] %v1753
        %1818 = vst [vmem:[%s1645 + $0x160] sm:$0xff] %v1754
        %1819 = vst [vmem:[%s1645 + $0x168] sm:$0xff] %v1755
        %1820 = vst [vmem:[%s1645 + $0x170] sm:$0xff] %v1756
        %1821 = vst [vmem:[%s1645 + $0x178] sm:$0xff] %v1757
        %1822 = vst [vmem:[%s1645 + $0x180] sm:$0xff] %v1758
        %1823 = vst [vmem:[%s1645 + $0x188] sm:$0xff] %v1759
        %1824 = vst [vmem:[%s1645 + $0x190] sm:$0xff] %v1760
        %1825 = vst [vmem:[%s1645 + $0x198] sm:$0xff] %v1761
        %1826 = vst [vmem:[%s1645 + $0x1a0] sm:$0xff] %v1762
        %1827 = vst [vmem:[%s1645 + $0x1a8] sm:$0xff] %v1763
        %1828 = vst [vmem:[%s1645 + $0x1b0] sm:$0xff] %v1764
        %1829 = vst [vmem:[%s1645 + $0x1b8] sm:$0xff] %v1765
        %1830 = vst [vmem:[%s1645 + $0x1c0] sm:$0xff] %v1766
        %1831 = vst [vmem:[%s1645 + $0x1c8] sm:$0xff] %v1767
        %1832 = vst [vmem:[%s1645 + $0x1d0] sm:$0xff] %v1768
        %1833 = vst [vmem:[%s1645 + $0x1d8] sm:$0xff] %v1769
        %1834 = vst [vmem:[%s1645 + $0x1e0] sm:$0xff] %v1770
        %1835 = vst [vmem:[%s1645 + $0x1e8] sm:$0xff] %v1771
        %1836 = vst [vmem:[%s1645 + $0x1f0] sm:$0xff] %v1772
        %1837 = vst [vmem:[%s1645 + $0x1f8] sm:$0xff] %v1773
        %p1838 = scmp.eq.s32.totalorder %s34, 1
        // Predicated region
        $region73: #{tpu_custom_call.1} parent=43 // pred_check
          %p1839 = pneg %p1838
        $region74: #{tpu_custom_call.1} parent=43 // pred_check_branch
          %1841 = sbr.rel (%p1839) target = $region76
        $region75: #{tpu_custom_call.1} parent=43 // pred_region
          %s1842 = smul.u32 4, 64
          %s1843 = smul.u32 %s1842, 4
          %s1844 = sshll.u32 %s1843, 4
          %1845 = dma.done [#allocation9], %s1844
          %s1846 = scalar_lea.sflag [#allocation9], 1
          %s1847 = sshll.u32 %s1843, 4
          %1848 = dma.done %s1846, %s1847
          %s1849 = scalar_lea.sflag [#allocation9], 2
          %s1850 = smul.u32 %s1842, 8
          %s1851 = sshll.u32 %s1850, 4
          %1852 = dma.done %s1849, %s1851
          %s1853 = scalar_lea.sflag [#allocation9], 3
          %s1854 = smul.u32 4, 128
          %s1855 = smul.u32 %s1854, 8
          %s1856 = sshll.u32 %s1855, 4
          %1857 = dma.done %s1853, %s1856
          %s1858 = scalar_lea.sflag [#allocation9], 4
          %s1859 = sshll.u32 %s1855, 4
          %1860 = dma.done %s1858, %s1859
          %v1861 = vld [vmem:[#allocation2] sm:$0xff]
          %v1862 = vld [vmem:[#allocation2 + $0x8] sm:$0xff]
          %v1863 = vld [vmem:[#allocation2 + $0x10] sm:$0xff]
          %v1864 = vld [vmem:[#allocation2 + $0x18] sm:$0xff]
          %v1865 = vld [vmem:[#allocation2 + $0x20] sm:$0xff]
          %v1866 = vld [vmem:[#allocation2 + $0x28] sm:$0xff]
          %v1867 = vld [vmem:[#allocation2 + $0x30] sm:$0xff]
          %v1868 = vld [vmem:[#allocation2 + $0x38] sm:$0xff]
          %v1869 = vld [vmem:[#allocation2 + $0x40] sm:$0xff]
          %v1870 = vld [vmem:[#allocation2 + $0x48] sm:$0xff]
          %v1871 = vld [vmem:[#allocation2 + $0x50] sm:$0xff]
          %v1872 = vld [vmem:[#allocation2 + $0x58] sm:$0xff]
          %v1873 = vld [vmem:[#allocation2 + $0x60] sm:$0xff]
          %v1874 = vld [vmem:[#allocation2 + $0x68] sm:$0xff]
          %v1875 = vld [vmem:[#allocation2 + $0x70] sm:$0xff]
          %v1876 = vld [vmem:[#allocation2 + $0x78] sm:$0xff]
          %v1877 = vld [vmem:[#allocation2 + $0x80] sm:$0xff]
          %v1878 = vld [vmem:[#allocation2 + $0x88] sm:$0xff]
          %v1879 = vld [vmem:[#allocation2 + $0x90] sm:$0xff]
          %v1880 = vld [vmem:[#allocation2 + $0x98] sm:$0xff]
          %v1881 = vld [vmem:[#allocation2 + $0xa0] sm:$0xff]
          %v1882 = vld [vmem:[#allocation2 + $0xa8] sm:$0xff]
          %v1883 = vld [vmem:[#allocation2 + $0xb0] sm:$0xff]
          %v1884 = vld [vmem:[#allocation2 + $0xb8] sm:$0xff]
          %v1885 = vld [vmem:[#allocation2 + $0xc0] sm:$0xff]
          %v1886 = vld [vmem:[#allocation2 + $0xc8] sm:$0xff]
          %v1887 = vld [vmem:[#allocation2 + $0xd0] sm:$0xff]
          %v1888 = vld [vmem:[#allocation2 + $0xd8] sm:$0xff]
          %v1889 = vld [vmem:[#allocation2 + $0xe0] sm:$0xff]
          %v1890 = vld [vmem:[#allocation2 + $0xe8] sm:$0xff]
          %v1891 = vld [vmem:[#allocation2 + $0xf0] sm:$0xff]
          %v1892 = vld [vmem:[#allocation2 + $0xf8] sm:$0xff]
          %v1893 = vld [vmem:[#allocation2 + $0x100] sm:$0xff]
          %v1894 = vld [vmem:[#allocation2 + $0x108] sm:$0xff]
          %v1895 = vld [vmem:[#allocation2 + $0x110] sm:$0xff]
          %v1896 = vld [vmem:[#allocation2 + $0x118] sm:$0xff]
          %v1897 = vld [vmem:[#allocation2 + $0x120] sm:$0xff]
          %v1898 = vld [vmem:[#allocation2 + $0x128] sm:$0xff]
          %v1899 = vld [vmem:[#allocation2 + $0x130] sm:$0xff]
          %v1900 = vld [vmem:[#allocation2 + $0x138] sm:$0xff]
          %v1901 = vld [vmem:[#allocation2 + $0x140] sm:$0xff]
          %v1902 = vld [vmem:[#allocation2 + $0x148] sm:$0xff]
          %v1903 = vld [vmem:[#allocation2 + $0x150] sm:$0xff]
          %v1904 = vld [vmem:[#allocation2 + $0x158] sm:$0xff]
          %v1905 = vld [vmem:[#allocation2 + $0x160] sm:$0xff]
          %v1906 = vld [vmem:[#allocation2 + $0x168] sm:$0xff]
          %v1907 = vld [vmem:[#allocation2 + $0x170] sm:$0xff]
          %v1908 = vld [vmem:[#allocation2 + $0x178] sm:$0xff]
          %v1909 = vld [vmem:[#allocation2 + $0x180] sm:$0xff]
          %v1910 = vld [vmem:[#allocation2 + $0x188] sm:$0xff]
          %v1911 = vld [vmem:[#allocation2 + $0x190] sm:$0xff]
          %v1912 = vld [vmem:[#allocation2 + $0x198] sm:$0xff]
          %v1913 = vld [vmem:[#allocation2 + $0x1a0] sm:$0xff]
          %v1914 = vld [vmem:[#allocation2 + $0x1a8] sm:$0xff]
          %v1915 = vld [vmem:[#allocation2 + $0x1b0] sm:$0xff]
          %v1916 = vld [vmem:[#allocation2 + $0x1b8] sm:$0xff]
          %v1917 = vld [vmem:[#allocation2 + $0x1c0] sm:$0xff]
          %v1918 = vld [vmem:[#allocation2 + $0x1c8] sm:$0xff]
          %v1919 = vld [vmem:[#allocation2 + $0x1d0] sm:$0xff]
          %v1920 = vld [vmem:[#allocation2 + $0x1d8] sm:$0xff]
          %v1921 = vld [vmem:[#allocation2 + $0x1e0] sm:$0xff]
          %v1922 = vld [vmem:[#allocation2 + $0x1e8] sm:$0xff]
          %v1923 = vld [vmem:[#allocation2 + $0x1f0] sm:$0xff]
          %v1924 = vld [vmem:[#allocation2 + $0x1f8] sm:$0xff]
          %v1925 = vld [vmem:[#allocation2 + $0x200] sm:$0xff]
          %v1926 = vld [vmem:[#allocation2 + $0x208] sm:$0xff]
          %v1927 = vld [vmem:[#allocation2 + $0x210] sm:$0xff]
          %v1928 = vld [vmem:[#allocation2 + $0x218] sm:$0xff]
          %v1929 = vld [vmem:[#allocation2 + $0x220] sm:$0xff]
          %v1930 = vld [vmem:[#allocation2 + $0x228] sm:$0xff]
          %v1931 = vld [vmem:[#allocation2 + $0x230] sm:$0xff]
          %v1932 = vld [vmem:[#allocation2 + $0x238] sm:$0xff]
          %v1933 = vld [vmem:[#allocation2 + $0x240] sm:$0xff]
          %v1934 = vld [vmem:[#allocation2 + $0x248] sm:$0xff]
          %v1935 = vld [vmem:[#allocation2 + $0x250] sm:$0xff]
          %v1936 = vld [vmem:[#allocation2 + $0x258] sm:$0xff]
          %v1937 = vld [vmem:[#allocation2 + $0x260] sm:$0xff]
          %v1938 = vld [vmem:[#allocation2 + $0x268] sm:$0xff]
          %v1939 = vld [vmem:[#allocation2 + $0x270] sm:$0xff]
          %v1940 = vld [vmem:[#allocation2 + $0x278] sm:$0xff]
          %v1941 = vld [vmem:[#allocation2 + $0x280] sm:$0xff]
          %v1942 = vld [vmem:[#allocation2 + $0x288] sm:$0xff]
          %v1943 = vld [vmem:[#allocation2 + $0x290] sm:$0xff]
          %v1944 = vld [vmem:[#allocation2 + $0x298] sm:$0xff]
          %v1945 = vld [vmem:[#allocation2 + $0x2a0] sm:$0xff]
          %v1946 = vld [vmem:[#allocation2 + $0x2a8] sm:$0xff]
          %v1947 = vld [vmem:[#allocation2 + $0x2b0] sm:$0xff]
          %v1948 = vld [vmem:[#allocation2 + $0x2b8] sm:$0xff]
          %v1949 = vld [vmem:[#allocation2 + $0x2c0] sm:$0xff]
          %v1950 = vld [vmem:[#allocation2 + $0x2c8] sm:$0xff]
          %v1951 = vld [vmem:[#allocation2 + $0x2d0] sm:$0xff]
          %v1952 = vld [vmem:[#allocation2 + $0x2d8] sm:$0xff]
          %v1953 = vld [vmem:[#allocation2 + $0x2e0] sm:$0xff]
          %v1954 = vld [vmem:[#allocation2 + $0x2e8] sm:$0xff]
          %v1955 = vld [vmem:[#allocation2 + $0x2f0] sm:$0xff]
          %v1956 = vld [vmem:[#allocation2 + $0x2f8] sm:$0xff]
          %v1957 = vld [vmem:[#allocation2 + $0x300] sm:$0xff]
          %v1958 = vld [vmem:[#allocation2 + $0x308] sm:$0xff]
          %v1959 = vld [vmem:[#allocation2 + $0x310] sm:$0xff]
          %v1960 = vld [vmem:[#allocation2 + $0x318] sm:$0xff]
          %v1961 = vld [vmem:[#allocation2 + $0x320] sm:$0xff]
          %v1962 = vld [vmem:[#allocation2 + $0x328] sm:$0xff]
          %v1963 = vld [vmem:[#allocation2 + $0x330] sm:$0xff]
          %v1964 = vld [vmem:[#allocation2 + $0x338] sm:$0xff]
          %v1965 = vld [vmem:[#allocation2 + $0x340] sm:$0xff]
          %v1966 = vld [vmem:[#allocation2 + $0x348] sm:$0xff]
          %v1967 = vld [vmem:[#allocation2 + $0x350] sm:$0xff]
          %v1968 = vld [vmem:[#allocation2 + $0x358] sm:$0xff]
          %v1969 = vld [vmem:[#allocation2 + $0x360] sm:$0xff]
          %v1970 = vld [vmem:[#allocation2 + $0x368] sm:$0xff]
          %v1971 = vld [vmem:[#allocation2 + $0x370] sm:$0xff]
          %v1972 = vld [vmem:[#allocation2 + $0x378] sm:$0xff]
          %v1973 = vld [vmem:[#allocation2 + $0x380] sm:$0xff]
          %v1974 = vld [vmem:[#allocation2 + $0x388] sm:$0xff]
          %v1975 = vld [vmem:[#allocation2 + $0x390] sm:$0xff]
          %v1976 = vld [vmem:[#allocation2 + $0x398] sm:$0xff]
          %v1977 = vld [vmem:[#allocation2 + $0x3a0] sm:$0xff]
          %v1978 = vld [vmem:[#allocation2 + $0x3a8] sm:$0xff]
          %v1979 = vld [vmem:[#allocation2 + $0x3b0] sm:$0xff]
          %v1980 = vld [vmem:[#allocation2 + $0x3b8] sm:$0xff]
          %v1981 = vld [vmem:[#allocation2 + $0x3c0] sm:$0xff]
          %v1982 = vld [vmem:[#allocation2 + $0x3c8] sm:$0xff]
          %v1983 = vld [vmem:[#allocation2 + $0x3d0] sm:$0xff]
          %v1984 = vld [vmem:[#allocation2 + $0x3d8] sm:$0xff]
          %v1985 = vld [vmem:[#allocation2 + $0x3e0] sm:$0xff]
          %v1986 = vld [vmem:[#allocation2 + $0x3e8] sm:$0xff]
          %v1987 = vld [vmem:[#allocation2 + $0x3f0] sm:$0xff]
          %v1988 = vld [vmem:[#allocation2 + $0x3f8] sm:$0xff]
          %1989 = vadd.xlane.f32.xlu0 %v1861
          %v1990 = vpop.xlane.xlu0 %1989
          %1991 = vadd.xlane.f32.xlu0 %v1862
          %v1992 = vpop.xlane.xlu0 %1991
          %1993 = vadd.xlane.f32.xlu0 %v1863
          %v1994 = vpop.xlane.xlu0 %1993
          %1995 = vadd.xlane.f32.xlu0 %v1864
          %v1996 = vpop.xlane.xlu0 %1995
          %1997 = vadd.xlane.f32.xlu0 %v1865
          %v1998 = vpop.xlane.xlu0 %1997
          %1999 = vadd.xlane.f32.xlu0 %v1866
          %v2000 = vpop.xlane.xlu0 %1999
          %2001 = vadd.xlane.f32.xlu0 %v1867
          %v2002 = vpop.xlane.xlu0 %2001
          %2003 = vadd.xlane.f32.xlu0 %v1868
          %v2004 = vpop.xlane.xlu0 %2003
          %2005 = vadd.xlane.f32.xlu0 %v1869
          %v2006 = vpop.xlane.xlu0 %2005
          %2007 = vadd.xlane.f32.xlu0 %v1870
          %v2008 = vpop.xlane.xlu0 %2007
          %2009 = vadd.xlane.f32.xlu0 %v1871
          %v2010 = vpop.xlane.xlu0 %2009
          %2011 = vadd.xlane.f32.xlu0 %v1872
          %v2012 = vpop.xlane.xlu0 %2011
          %2013 = vadd.xlane.f32.xlu0 %v1873
          %v2014 = vpop.xlane.xlu0 %2013
          %2015 = vadd.xlane.f32.xlu0 %v1874
          %v2016 = vpop.xlane.xlu0 %2015
          %2017 = vadd.xlane.f32.xlu0 %v1875
          %v2018 = vpop.xlane.xlu0 %2017
          %2019 = vadd.xlane.f32.xlu0 %v1876
          %v2020 = vpop.xlane.xlu0 %2019
          %2021 = vadd.xlane.f32.xlu0 %v1877
          %v2022 = vpop.xlane.xlu0 %2021
          %2023 = vadd.xlane.f32.xlu0 %v1878
          %v2024 = vpop.xlane.xlu0 %2023
          %2025 = vadd.xlane.f32.xlu0 %v1879
          %v2026 = vpop.xlane.xlu0 %2025
          %2027 = vadd.xlane.f32.xlu0 %v1880
          %v2028 = vpop.xlane.xlu0 %2027
          %2029 = vadd.xlane.f32.xlu0 %v1881
          %v2030 = vpop.xlane.xlu0 %2029
          %2031 = vadd.xlane.f32.xlu0 %v1882
          %v2032 = vpop.xlane.xlu0 %2031
          %2033 = vadd.xlane.f32.xlu0 %v1883
          %v2034 = vpop.xlane.xlu0 %2033
          %2035 = vadd.xlane.f32.xlu0 %v1884
          %v2036 = vpop.xlane.xlu0 %2035
          %2037 = vadd.xlane.f32.xlu0 %v1885
          %v2038 = vpop.xlane.xlu0 %2037
          %2039 = vadd.xlane.f32.xlu0 %v1886
          %v2040 = vpop.xlane.xlu0 %2039
          %2041 = vadd.xlane.f32.xlu0 %v1887
          %v2042 = vpop.xlane.xlu0 %2041
          %2043 = vadd.xlane.f32.xlu0 %v1888
          %v2044 = vpop.xlane.xlu0 %2043
          %2045 = vadd.xlane.f32.xlu0 %v1889
          %v2046 = vpop.xlane.xlu0 %2045
          %2047 = vadd.xlane.f32.xlu0 %v1890
          %v2048 = vpop.xlane.xlu0 %2047
          %2049 = vadd.xlane.f32.xlu0 %v1891
          %v2050 = vpop.xlane.xlu0 %2049
          %2051 = vadd.xlane.f32.xlu0 %v1892
          %v2052 = vpop.xlane.xlu0 %2051
          %2053 = vadd.xlane.f32.xlu0 %v1893
          %v2054 = vpop.xlane.xlu0 %2053
          %2055 = vadd.xlane.f32.xlu0 %v1894
          %v2056 = vpop.xlane.xlu0 %2055
          %2057 = vadd.xlane.f32.xlu0 %v1895
          %v2058 = vpop.xlane.xlu0 %2057
          %2059 = vadd.xlane.f32.xlu0 %v1896
          %v2060 = vpop.xlane.xlu0 %2059
          %2061 = vadd.xlane.f32.xlu0 %v1897
          %v2062 = vpop.xlane.xlu0 %2061
          %2063 = vadd.xlane.f32.xlu0 %v1898
          %v2064 = vpop.xlane.xlu0 %2063
          %2065 = vadd.xlane.f32.xlu0 %v1899
          %v2066 = vpop.xlane.xlu0 %2065
          %2067 = vadd.xlane.f32.xlu0 %v1900
          %v2068 = vpop.xlane.xlu0 %2067
          %2069 = vadd.xlane.f32.xlu0 %v1901
          %v2070 = vpop.xlane.xlu0 %2069
          %2071 = vadd.xlane.f32.xlu0 %v1902
          %v2072 = vpop.xlane.xlu0 %2071
          %2073 = vadd.xlane.f32.xlu0 %v1903
          %v2074 = vpop.xlane.xlu0 %2073
          %2075 = vadd.xlane.f32.xlu0 %v1904
          %v2076 = vpop.xlane.xlu0 %2075
          %2077 = vadd.xlane.f32.xlu0 %v1905
          %v2078 = vpop.xlane.xlu0 %2077
          %2079 = vadd.xlane.f32.xlu0 %v1906
          %v2080 = vpop.xlane.xlu0 %2079
          %2081 = vadd.xlane.f32.xlu0 %v1907
          %v2082 = vpop.xlane.xlu0 %2081
          %2083 = vadd.xlane.f32.xlu0 %v1908
          %v2084 = vpop.xlane.xlu0 %2083
          %2085 = vadd.xlane.f32.xlu0 %v1909
          %v2086 = vpop.xlane.xlu0 %2085
          %2087 = vadd.xlane.f32.xlu0 %v1910
          %v2088 = vpop.xlane.xlu0 %2087
          %2089 = vadd.xlane.f32.xlu0 %v1911
          %v2090 = vpop.xlane.xlu0 %2089
          %2091 = vadd.xlane.f32.xlu0 %v1912
          %v2092 = vpop.xlane.xlu0 %2091
          %2093 = vadd.xlane.f32.xlu0 %v1913
          %v2094 = vpop.xlane.xlu0 %2093
          %2095 = vadd.xlane.f32.xlu0 %v1914
          %v2096 = vpop.xlane.xlu0 %2095
          %2097 = vadd.xlane.f32.xlu0 %v1915
          %v2098 = vpop.xlane.xlu0 %2097
          %2099 = vadd.xlane.f32.xlu0 %v1916
          %v2100 = vpop.xlane.xlu0 %2099
          %2101 = vadd.xlane.f32.xlu0 %v1917
          %v2102 = vpop.xlane.xlu0 %2101
          %2103 = vadd.xlane.f32.xlu0 %v1918
          %v2104 = vpop.xlane.xlu0 %2103
          %2105 = vadd.xlane.f32.xlu0 %v1919
          %v2106 = vpop.xlane.xlu0 %2105
          %2107 = vadd.xlane.f32.xlu0 %v1920
          %v2108 = vpop.xlane.xlu0 %2107
          %2109 = vadd.xlane.f32.xlu0 %v1921
          %v2110 = vpop.xlane.xlu0 %2109
          %2111 = vadd.xlane.f32.xlu0 %v1922
          %v2112 = vpop.xlane.xlu0 %2111
          %2113 = vadd.xlane.f32.xlu0 %v1923
          %v2114 = vpop.xlane.xlu0 %2113
          %2115 = vadd.xlane.f32.xlu0 %v1924
          %v2116 = vpop.xlane.xlu0 %2115
          %2117 = vadd.xlane.f32.xlu0 %v1925
          %v2118 = vpop.xlane.xlu0 %2117
          %2119 = vadd.xlane.f32.xlu0 %v1926
          %v2120 = vpop.xlane.xlu0 %2119
          %2121 = vadd.xlane.f32.xlu0 %v1927
          %v2122 = vpop.xlane.xlu0 %2121
          %2123 = vadd.xlane.f32.xlu0 %v1928
          %v2124 = vpop.xlane.xlu0 %2123
          %2125 = vadd.xlane.f32.xlu0 %v1929
          %v2126 = vpop.xlane.xlu0 %2125
          %2127 = vadd.xlane.f32.xlu0 %v1930
          %v2128 = vpop.xlane.xlu0 %2127
          %2129 = vadd.xlane.f32.xlu0 %v1931
          %v2130 = vpop.xlane.xlu0 %2129
          %2131 = vadd.xlane.f32.xlu0 %v1932
          %v2132 = vpop.xlane.xlu0 %2131
          %2133 = vadd.xlane.f32.xlu0 %v1933
          %v2134 = vpop.xlane.xlu0 %2133
          %2135 = vadd.xlane.f32.xlu0 %v1934
          %v2136 = vpop.xlane.xlu0 %2135
          %2137 = vadd.xlane.f32.xlu0 %v1935
          %v2138 = vpop.xlane.xlu0 %2137
          %2139 = vadd.xlane.f32.xlu0 %v1936
          %v2140 = vpop.xlane.xlu0 %2139
          %2141 = vadd.xlane.f32.xlu0 %v1937
          %v2142 = vpop.xlane.xlu0 %2141
          %2143 = vadd.xlane.f32.xlu0 %v1938
          %v2144 = vpop.xlane.xlu0 %2143
          %2145 = vadd.xlane.f32.xlu0 %v1939
          %v2146 = vpop.xlane.xlu0 %2145
          %2147 = vadd.xlane.f32.xlu0 %v1940
          %v2148 = vpop.xlane.xlu0 %2147
          %2149 = vadd.xlane.f32.xlu0 %v1941
          %v2150 = vpop.xlane.xlu0 %2149
          %2151 = vadd.xlane.f32.xlu0 %v1942
          %v2152 = vpop.xlane.xlu0 %2151
          %2153 = vadd.xlane.f32.xlu0 %v1943
          %v2154 = vpop.xlane.xlu0 %2153
          %2155 = vadd.xlane.f32.xlu0 %v1944
          %v2156 = vpop.xlane.xlu0 %2155
          %2157 = vadd.xlane.f32.xlu0 %v1945
          %v2158 = vpop.xlane.xlu0 %2157
          %2159 = vadd.xlane.f32.xlu0 %v1946
          %v2160 = vpop.xlane.xlu0 %2159
          %2161 = vadd.xlane.f32.xlu0 %v1947
          %v2162 = vpop.xlane.xlu0 %2161
          %2163 = vadd.xlane.f32.xlu0 %v1948
          %v2164 = vpop.xlane.xlu0 %2163
          %2165 = vadd.xlane.f32.xlu0 %v1949
          %v2166 = vpop.xlane.xlu0 %2165
          %2167 = vadd.xlane.f32.xlu0 %v1950
          %v2168 = vpop.xlane.xlu0 %2167
          %2169 = vadd.xlane.f32.xlu0 %v1951
          %v2170 = vpop.xlane.xlu0 %2169
          %2171 = vadd.xlane.f32.xlu0 %v1952
          %v2172 = vpop.xlane.xlu0 %2171
          %2173 = vadd.xlane.f32.xlu0 %v1953
          %v2174 = vpop.xlane.xlu0 %2173
          %2175 = vadd.xlane.f32.xlu0 %v1954
          %v2176 = vpop.xlane.xlu0 %2175
          %2177 = vadd.xlane.f32.xlu0 %v1955
          %v2178 = vpop.xlane.xlu0 %2177
          %2179 = vadd.xlane.f32.xlu0 %v1956
          %v2180 = vpop.xlane.xlu0 %2179
          %2181 = vadd.xlane.f32.xlu0 %v1957
          %v2182 = vpop.xlane.xlu0 %2181
          %2183 = vadd.xlane.f32.xlu0 %v1958
          %v2184 = vpop.xlane.xlu0 %2183
          %2185 = vadd.xlane.f32.xlu0 %v1959
          %v2186 = vpop.xlane.xlu0 %2185
          %2187 = vadd.xlane.f32.xlu0 %v1960
          %v2188 = vpop.xlane.xlu0 %2187
          %2189 = vadd.xlane.f32.xlu0 %v1961
          %v2190 = vpop.xlane.xlu0 %2189
          %2191 = vadd.xlane.f32.xlu0 %v1962
          %v2192 = vpop.xlane.xlu0 %2191
          %2193 = vadd.xlane.f32.xlu0 %v1963
          %v2194 = vpop.xlane.xlu0 %2193
          %2195 = vadd.xlane.f32.xlu0 %v1964
          %v2196 = vpop.xlane.xlu0 %2195
          %2197 = vadd.xlane.f32.xlu0 %v1965
          %v2198 = vpop.xlane.xlu0 %2197
          %2199 = vadd.xlane.f32.xlu0 %v1966
          %v2200 = vpop.xlane.xlu0 %2199
          %2201 = vadd.xlane.f32.xlu0 %v1967
          %v2202 = vpop.xlane.xlu0 %2201
          %2203 = vadd.xlane.f32.xlu0 %v1968
          %v2204 = vpop.xlane.xlu0 %2203
          %2205 = vadd.xlane.f32.xlu0 %v1969
          %v2206 = vpop.xlane.xlu0 %2205
          %2207 = vadd.xlane.f32.xlu0 %v1970
          %v2208 = vpop.xlane.xlu0 %2207
          %2209 = vadd.xlane.f32.xlu0 %v1971
          %v2210 = vpop.xlane.xlu0 %2209
          %2211 = vadd.xlane.f32.xlu0 %v1972
          %v2212 = vpop.xlane.xlu0 %2211
          %2213 = vadd.xlane.f32.xlu0 %v1973
          %v2214 = vpop.xlane.xlu0 %2213
          %2215 = vadd.xlane.f32.xlu0 %v1974
          %v2216 = vpop.xlane.xlu0 %2215
          %2217 = vadd.xlane.f32.xlu0 %v1975
          %v2218 = vpop.xlane.xlu0 %2217
          %2219 = vadd.xlane.f32.xlu0 %v1976
          %v2220 = vpop.xlane.xlu0 %2219
          %2221 = vadd.xlane.f32.xlu0 %v1977
          %v2222 = vpop.xlane.xlu0 %2221
          %2223 = vadd.xlane.f32.xlu0 %v1978
          %v2224 = vpop.xlane.xlu0 %2223
          %2225 = vadd.xlane.f32.xlu0 %v1979
          %v2226 = vpop.xlane.xlu0 %2225
          %2227 = vadd.xlane.f32.xlu0 %v1980
          %v2228 = vpop.xlane.xlu0 %2227
          %2229 = vadd.xlane.f32.xlu0 %v1981
          %v2230 = vpop.xlane.xlu0 %2229
          %2231 = vadd.xlane.f32.xlu0 %v1982
          %v2232 = vpop.xlane.xlu0 %2231
          %2233 = vadd.xlane.f32.xlu0 %v1983
          %v2234 = vpop.xlane.xlu0 %2233
          %2235 = vadd.xlane.f32.xlu0 %v1984
          %v2236 = vpop.xlane.xlu0 %2235
          %2237 = vadd.xlane.f32.xlu0 %v1985
          %v2238 = vpop.xlane.xlu0 %2237
          %2239 = vadd.xlane.f32.xlu0 %v1986
          %v2240 = vpop.xlane.xlu0 %2239
          %2241 = vadd.xlane.f32.xlu0 %v1987
          %v2242 = vpop.xlane.xlu0 %2241
          %2243 = vadd.xlane.f32.xlu0 %v1988
          %v2244 = vpop.xlane.xlu0 %2243
          %v2245 = vmul.f32 %v1990, 0.00390625
          %v2246 = vmul.f32 %v1992, 0.00390625
          %v2247 = vmul.f32 %v1994, 0.00390625
          %v2248 = vmul.f32 %v1996, 0.00390625
          %v2249 = vmul.f32 %v1998, 0.00390625
          %v2250 = vmul.f32 %v2000, 0.00390625
          %v2251 = vmul.f32 %v2002, 0.00390625
          %v2252 = vmul.f32 %v2004, 0.00390625
          %v2253 = vmul.f32 %v2006, 0.00390625
          %v2254 = vmul.f32 %v2008, 0.00390625
          %v2255 = vmul.f32 %v2010, 0.00390625
          %v2256 = vmul.f32 %v2012, 0.00390625
          %v2257 = vmul.f32 %v2014, 0.00390625
          %v2258 = vmul.f32 %v2016, 0.00390625
          %v2259 = vmul.f32 %v2018, 0.00390625
          %v2260 = vmul.f32 %v2020, 0.00390625
          %v2261 = vmul.f32 %v2022, 0.00390625
          %v2262 = vmul.f32 %v2024, 0.00390625
          %v2263 = vmul.f32 %v2026, 0.00390625
          %v2264 = vmul.f32 %v2028, 0.00390625
          %v2265 = vmul.f32 %v2030, 0.00390625
          %v2266 = vmul.f32 %v2032, 0.00390625
          %v2267 = vmul.f32 %v2034, 0.00390625
          %v2268 = vmul.f32 %v2036, 0.00390625
          %v2269 = vmul.f32 %v2038, 0.00390625
          %v2270 = vmul.f32 %v2040, 0.00390625
          %v2271 = vmul.f32 %v2042, 0.00390625
          %v2272 = vmul.f32 %v2044, 0.00390625
          %v2273 = vmul.f32 %v2046, 0.00390625
          %v2274 = vmul.f32 %v2048, 0.00390625
          %v2275 = vmul.f32 %v2050, 0.00390625
          %v2276 = vmul.f32 %v2052, 0.00390625
          %v2277 = vmul.f32 %v2054, 0.00390625
          %v2278 = vmul.f32 %v2056, 0.00390625
          %v2279 = vmul.f32 %v2058, 0.00390625
          %v2280 = vmul.f32 %v2060, 0.00390625
          %v2281 = vmul.f32 %v2062, 0.00390625
          %v2282 = vmul.f32 %v2064, 0.00390625
          %v2283 = vmul.f32 %v2066, 0.00390625
          %v2284 = vmul.f32 %v2068, 0.00390625
          %v2285 = vmul.f32 %v2070, 0.00390625
          %v2286 = vmul.f32 %v2072, 0.00390625
          %v2287 = vmul.f32 %v2074, 0.00390625
          %v2288 = vmul.f32 %v2076, 0.00390625
          %v2289 = vmul.f32 %v2078, 0.00390625
          %v2290 = vmul.f32 %v2080, 0.00390625
          %v2291 = vmul.f32 %v2082, 0.00390625
          %v2292 = vmul.f32 %v2084, 0.00390625
          %v2293 = vmul.f32 %v2086, 0.00390625
          %v2294 = vmul.f32 %v2088, 0.00390625
          %v2295 = vmul.f32 %v2090, 0.00390625
          %v2296 = vmul.f32 %v2092, 0.00390625
          %v2297 = vmul.f32 %v2094, 0.00390625
          %v2298 = vmul.f32 %v2096, 0.00390625
          %v2299 = vmul.f32 %v2098, 0.00390625
          %v2300 = vmul.f32 %v2100, 0.00390625
          %v2301 = vmul.f32 %v2102, 0.00390625
          %v2302 = vmul.f32 %v2104, 0.00390625
          %v2303 = vmul.f32 %v2106, 0.00390625
          %v2304 = vmul.f32 %v2108, 0.00390625
          %v2305 = vmul.f32 %v2110, 0.00390625
          %v2306 = vmul.f32 %v2112, 0.00390625
          %v2307 = vmul.f32 %v2114, 0.00390625
          %v2308 = vmul.f32 %v2116, 0.00390625
          %v2309 = vmul.f32 %v2118, 0.00390625
          %v2310 = vmul.f32 %v2120, 0.00390625
          %v2311 = vmul.f32 %v2122, 0.00390625
          %v2312 = vmul.f32 %v2124, 0.00390625
          %v2313 = vmul.f32 %v2126, 0.00390625
          %v2314 = vmul.f32 %v2128, 0.00390625
          %v2315 = vmul.f32 %v2130, 0.00390625
          %v2316 = vmul.f32 %v2132, 0.00390625
          %v2317 = vmul.f32 %v2134, 0.00390625
          %v2318 = vmul.f32 %v2136, 0.00390625
          %v2319 = vmul.f32 %v2138, 0.00390625
          %v2320 = vmul.f32 %v2140, 0.00390625
          %v2321 = vmul.f32 %v2142, 0.00390625
          %v2322 = vmul.f32 %v2144, 0.00390625
          %v2323 = vmul.f32 %v2146, 0.00390625
          %v2324 = vmul.f32 %v2148, 0.00390625
          %v2325 = vmul.f32 %v2150, 0.00390625
          %v2326 = vmul.f32 %v2152, 0.00390625
          %v2327 = vmul.f32 %v2154, 0.00390625
          %v2328 = vmul.f32 %v2156, 0.00390625
          %v2329 = vmul.f32 %v2158, 0.00390625
          %v2330 = vmul.f32 %v2160, 0.00390625
          %v2331 = vmul.f32 %v2162, 0.00390625
          %v2332 = vmul.f32 %v2164, 0.00390625
          %v2333 = vmul.f32 %v2166, 0.00390625
          %v2334 = vmul.f32 %v2168, 0.00390625
          %v2335 = vmul.f32 %v2170, 0.00390625
          %v2336 = vmul.f32 %v2172, 0.00390625
          %v2337 = vmul.f32 %v2174, 0.00390625
          %v2338 = vmul.f32 %v2176, 0.00390625
          %v2339 = vmul.f32 %v2178, 0.00390625
          %v2340 = vmul.f32 %v2180, 0.00390625
          %v2341 = vmul.f32 %v2182, 0.00390625
          %v2342 = vmul.f32 %v2184, 0.00390625
          %v2343 = vmul.f32 %v2186, 0.00390625
          %v2344 = vmul.f32 %v2188, 0.00390625
          %v2345 = vmul.f32 %v2190, 0.00390625
          %v2346 = vmul.f32 %v2192, 0.00390625
          %v2347 = vmul.f32 %v2194, 0.00390625
          %v2348 = vmul.f32 %v2196, 0.00390625
          %v2349 = vmul.f32 %v2198, 0.00390625
          %v2350 = vmul.f32 %v2200, 0.00390625
          %v2351 = vmul.f32 %v2202, 0.00390625
          %v2352 = vmul.f32 %v2204, 0.00390625
          %v2353 = vmul.f32 %v2206, 0.00390625
          %v2354 = vmul.f32 %v2208, 0.00390625
          %v2355 = vmul.f32 %v2210, 0.00390625
          %v2356 = vmul.f32 %v2212, 0.00390625
          %v2357 = vmul.f32 %v2214, 0.00390625
          %v2358 = vmul.f32 %v2216, 0.00390625
          %v2359 = vmul.f32 %v2218, 0.00390625
          %v2360 = vmul.f32 %v2220, 0.00390625
          %v2361 = vmul.f32 %v2222, 0.00390625
          %v2362 = vmul.f32 %v2224, 0.00390625
          %v2363 = vmul.f32 %v2226, 0.00390625
          %v2364 = vmul.f32 %v2228, 0.00390625
          %v2365 = vmul.f32 %v2230, 0.00390625
          %v2366 = vmul.f32 %v2232, 0.00390625
          %v2367 = vmul.f32 %v2234, 0.00390625
          %v2368 = vmul.f32 %v2236, 0.00390625
          %v2369 = vmul.f32 %v2238, 0.00390625
          %v2370 = vmul.f32 %v2240, 0.00390625
          %v2371 = vmul.f32 %v2242, 0.00390625
          %v2372 = vmul.f32 %v2244, 0.00390625
          %v2373 = vld [vmem:[#allocation3] sm:$0xff]
          %v2374 = vld [vmem:[#allocation3 + $0x8] sm:$0xff]
          %v2375 = vld [vmem:[#allocation3 + $0x10] sm:$0xff]
          %v2376 = vld [vmem:[#allocation3 + $0x18] sm:$0xff]
          %v2377 = vld [vmem:[#allocation3 + $0x20] sm:$0xff]
          %v2378 = vld [vmem:[#allocation3 + $0x28] sm:$0xff]
          %v2379 = vld [vmem:[#allocation3 + $0x30] sm:$0xff]
          %v2380 = vld [vmem:[#allocation3 + $0x38] sm:$0xff]
          %v2381 = vld [vmem:[#allocation3 + $0x40] sm:$0xff]
          %v2382 = vld [vmem:[#allocation3 + $0x48] sm:$0xff]
          %v2383 = vld [vmem:[#allocation3 + $0x50] sm:$0xff]
          %v2384 = vld [vmem:[#allocation3 + $0x58] sm:$0xff]
          %v2385 = vld [vmem:[#allocation3 + $0x60] sm:$0xff]
          %v2386 = vld [vmem:[#allocation3 + $0x68] sm:$0xff]
          %v2387 = vld [vmem:[#allocation3 + $0x70] sm:$0xff]
          %v2388 = vld [vmem:[#allocation3 + $0x78] sm:$0xff]
          %v2389 = vld [vmem:[#allocation3 + $0x80] sm:$0xff]
          %v2390 = vld [vmem:[#allocation3 + $0x88] sm:$0xff]
          %v2391 = vld [vmem:[#allocation3 + $0x90] sm:$0xff]
          %v2392 = vld [vmem:[#allocation3 + $0x98] sm:$0xff]
          %v2393 = vld [vmem:[#allocation3 + $0xa0] sm:$0xff]
          %v2394 = vld [vmem:[#allocation3 + $0xa8] sm:$0xff]
          %v2395 = vld [vmem:[#allocation3 + $0xb0] sm:$0xff]
          %v2396 = vld [vmem:[#allocation3 + $0xb8] sm:$0xff]
          %v2397 = vld [vmem:[#allocation3 + $0xc0] sm:$0xff]
          %v2398 = vld [vmem:[#allocation3 + $0xc8] sm:$0xff]
          %v2399 = vld [vmem:[#allocation3 + $0xd0] sm:$0xff]
          %v2400 = vld [vmem:[#allocation3 + $0xd8] sm:$0xff]
          %v2401 = vld [vmem:[#allocation3 + $0xe0] sm:$0xff]
          %v2402 = vld [vmem:[#allocation3 + $0xe8] sm:$0xff]
          %v2403 = vld [vmem:[#allocation3 + $0xf0] sm:$0xff]
          %v2404 = vld [vmem:[#allocation3 + $0xf8] sm:$0xff]
          %v2405 = vld [vmem:[#allocation3 + $0x100] sm:$0xff]
          %v2406 = vld [vmem:[#allocation3 + $0x108] sm:$0xff]
          %v2407 = vld [vmem:[#allocation3 + $0x110] sm:$0xff]
          %v2408 = vld [vmem:[#allocation3 + $0x118] sm:$0xff]
          %v2409 = vld [vmem:[#allocation3 + $0x120] sm:$0xff]
          %v2410 = vld [vmem:[#allocation3 + $0x128] sm:$0xff]
          %v2411 = vld [vmem:[#allocation3 + $0x130] sm:$0xff]
          %v2412 = vld [vmem:[#allocation3 + $0x138] sm:$0xff]
          %v2413 = vld [vmem:[#allocation3 + $0x140] sm:$0xff]
          %v2414 = vld [vmem:[#allocation3 + $0x148] sm:$0xff]
          %v2415 = vld [vmem:[#allocation3 + $0x150] sm:$0xff]
          %v2416 = vld [vmem:[#allocation3 + $0x158] sm:$0xff]
          %v2417 = vld [vmem:[#allocation3 + $0x160] sm:$0xff]
          %v2418 = vld [vmem:[#allocation3 + $0x168] sm:$0xff]
          %v2419 = vld [vmem:[#allocation3 + $0x170] sm:$0xff]
          %v2420 = vld [vmem:[#allocation3 + $0x178] sm:$0xff]
          %v2421 = vld [vmem:[#allocation3 + $0x180] sm:$0xff]
          %v2422 = vld [vmem:[#allocation3 + $0x188] sm:$0xff]
          %v2423 = vld [vmem:[#allocation3 + $0x190] sm:$0xff]
          %v2424 = vld [vmem:[#allocation3 + $0x198] sm:$0xff]
          %v2425 = vld [vmem:[#allocation3 + $0x1a0] sm:$0xff]
          %v2426 = vld [vmem:[#allocation3 + $0x1a8] sm:$0xff]
          %v2427 = vld [vmem:[#allocation3 + $0x1b0] sm:$0xff]
          %v2428 = vld [vmem:[#allocation3 + $0x1b8] sm:$0xff]
          %v2429 = vld [vmem:[#allocation3 + $0x1c0] sm:$0xff]
          %v2430 = vld [vmem:[#allocation3 + $0x1c8] sm:$0xff]
          %v2431 = vld [vmem:[#allocation3 + $0x1d0] sm:$0xff]
          %v2432 = vld [vmem:[#allocation3 + $0x1d8] sm:$0xff]
          %v2433 = vld [vmem:[#allocation3 + $0x1e0] sm:$0xff]
          %v2434 = vld [vmem:[#allocation3 + $0x1e8] sm:$0xff]
          %v2435 = vld [vmem:[#allocation3 + $0x1f0] sm:$0xff]
          %v2436 = vld [vmem:[#allocation3 + $0x1f8] sm:$0xff]
          %v2437 = vld [vmem:[#allocation3 + $0x200] sm:$0xff]
          %v2438 = vld [vmem:[#allocation3 + $0x208] sm:$0xff]
          %v2439 = vld [vmem:[#allocation3 + $0x210] sm:$0xff]
          %v2440 = vld [vmem:[#allocation3 + $0x218] sm:$0xff]
          %v2441 = vld [vmem:[#allocation3 + $0x220] sm:$0xff]
          %v2442 = vld [vmem:[#allocation3 + $0x228] sm:$0xff]
          %v2443 = vld [vmem:[#allocation3 + $0x230] sm:$0xff]
          %v2444 = vld [vmem:[#allocation3 + $0x238] sm:$0xff]
          %v2445 = vld [vmem:[#allocation3 + $0x240] sm:$0xff]
          %v2446 = vld [vmem:[#allocation3 + $0x248] sm:$0xff]
          %v2447 = vld [vmem:[#allocation3 + $0x250] sm:$0xff]
          %v2448 = vld [vmem:[#allocation3 + $0x258] sm:$0xff]
          %v2449 = vld [vmem:[#allocation3 + $0x260] sm:$0xff]
          %v2450 = vld [vmem:[#allocation3 + $0x268] sm:$0xff]
          %v2451 = vld [vmem:[#allocation3 + $0x270] sm:$0xff]
          %v2452 = vld [vmem:[#allocation3 + $0x278] sm:$0xff]
          %v2453 = vld [vmem:[#allocation3 + $0x280] sm:$0xff]
          %v2454 = vld [vmem:[#allocation3 + $0x288] sm:$0xff]
          %v2455 = vld [vmem:[#allocation3 + $0x290] sm:$0xff]
          %v2456 = vld [vmem:[#allocation3 + $0x298] sm:$0xff]
          %v2457 = vld [vmem:[#allocation3 + $0x2a0] sm:$0xff]
          %v2458 = vld [vmem:[#allocation3 + $0x2a8] sm:$0xff]
          %v2459 = vld [vmem:[#allocation3 + $0x2b0] sm:$0xff]
          %v2460 = vld [vmem:[#allocation3 + $0x2b8] sm:$0xff]
          %v2461 = vld [vmem:[#allocation3 + $0x2c0] sm:$0xff]
          %v2462 = vld [vmem:[#allocation3 + $0x2c8] sm:$0xff]
          %v2463 = vld [vmem:[#allocation3 + $0x2d0] sm:$0xff]
          %v2464 = vld [vmem:[#allocation3 + $0x2d8] sm:$0xff]
          %v2465 = vld [vmem:[#allocation3 + $0x2e0] sm:$0xff]
          %v2466 = vld [vmem:[#allocation3 + $0x2e8] sm:$0xff]
          %v2467 = vld [vmem:[#allocation3 + $0x2f0] sm:$0xff]
          %v2468 = vld [vmem:[#allocation3 + $0x2f8] sm:$0xff]
          %v2469 = vld [vmem:[#allocation3 + $0x300] sm:$0xff]
          %v2470 = vld [vmem:[#allocation3 + $0x308] sm:$0xff]
          %v2471 = vld [vmem:[#allocation3 + $0x310] sm:$0xff]
          %v2472 = vld [vmem:[#allocation3 + $0x318] sm:$0xff]
          %v2473 = vld [vmem:[#allocation3 + $0x320] sm:$0xff]
          %v2474 = vld [vmem:[#allocation3 + $0x328] sm:$0xff]
          %v2475 = vld [vmem:[#allocation3 + $0x330] sm:$0xff]
          %v2476 = vld [vmem:[#allocation3 + $0x338] sm:$0xff]
          %v2477 = vld [vmem:[#allocation3 + $0x340] sm:$0xff]
          %v2478 = vld [vmem:[#allocation3 + $0x348] sm:$0xff]
          %v2479 = vld [vmem:[#allocation3 + $0x350] sm:$0xff]
          %v2480 = vld [vmem:[#allocation3 + $0x358] sm:$0xff]
          %v2481 = vld [vmem:[#allocation3 + $0x360] sm:$0xff]
          %v2482 = vld [vmem:[#allocation3 + $0x368] sm:$0xff]
          %v2483 = vld [vmem:[#allocation3 + $0x370] sm:$0xff]
          %v2484 = vld [vmem:[#allocation3 + $0x378] sm:$0xff]
          %v2485 = vld [vmem:[#allocation3 + $0x380] sm:$0xff]
          %v2486 = vld [vmem:[#allocation3 + $0x388] sm:$0xff]
          %v2487 = vld [vmem:[#allocation3 + $0x390] sm:$0xff]
          %v2488 = vld [vmem:[#allocation3 + $0x398] sm:$0xff]
          %v2489 = vld [vmem:[#allocation3 + $0x3a0] sm:$0xff]
          %v2490 = vld [vmem:[#allocation3 + $0x3a8] sm:$0xff]
          %v2491 = vld [vmem:[#allocation3 + $0x3b0] sm:$0xff]
          %v2492 = vld [vmem:[#allocation3 + $0x3b8] sm:$0xff]
          %v2493 = vld [vmem:[#allocation3 + $0x3c0] sm:$0xff]
          %v2494 = vld [vmem:[#allocation3 + $0x3c8] sm:$0xff]
          %v2495 = vld [vmem:[#allocation3 + $0x3d0] sm:$0xff]
          %v2496 = vld [vmem:[#allocation3 + $0x3d8] sm:$0xff]
          %v2497 = vld [vmem:[#allocation3 + $0x3e0] sm:$0xff]
          %v2498 = vld [vmem:[#allocation3 + $0x3e8] sm:$0xff]
          %v2499 = vld [vmem:[#allocation3 + $0x3f0] sm:$0xff]
          %v2500 = vld [vmem:[#allocation3 + $0x3f8] sm:$0xff]
          %2501 = vmax.xlane.f32.xlu0 %v2373
          %v2502 = vpop.xlane.xlu0 %2501
          %2503 = vmax.xlane.f32.xlu0 %v2374
          %v2504 = vpop.xlane.xlu0 %2503
          %2505 = vmax.xlane.f32.xlu0 %v2375
          %v2506 = vpop.xlane.xlu0 %2505
          %2507 = vmax.xlane.f32.xlu0 %v2376
          %v2508 = vpop.xlane.xlu0 %2507
          %2509 = vmax.xlane.f32.xlu0 %v2377
          %v2510 = vpop.xlane.xlu0 %2509
          %2511 = vmax.xlane.f32.xlu0 %v2378
          %v2512 = vpop.xlane.xlu0 %2511
          %2513 = vmax.xlane.f32.xlu0 %v2379
          %v2514 = vpop.xlane.xlu0 %2513
          %2515 = vmax.xlane.f32.xlu0 %v2380
          %v2516 = vpop.xlane.xlu0 %2515
          %2517 = vmax.xlane.f32.xlu0 %v2381
          %v2518 = vpop.xlane.xlu0 %2517
          %2519 = vmax.xlane.f32.xlu0 %v2382
          %v2520 = vpop.xlane.xlu0 %2519
          %2521 = vmax.xlane.f32.xlu0 %v2383
          %v2522 = vpop.xlane.xlu0 %2521
          %2523 = vmax.xlane.f32.xlu0 %v2384
          %v2524 = vpop.xlane.xlu0 %2523
          %2525 = vmax.xlane.f32.xlu0 %v2385
          %v2526 = vpop.xlane.xlu0 %2525
          %2527 = vmax.xlane.f32.xlu0 %v2386
          %v2528 = vpop.xlane.xlu0 %2527
          %2529 = vmax.xlane.f32.xlu0 %v2387
          %v2530 = vpop.xlane.xlu0 %2529
          %2531 = vmax.xlane.f32.xlu0 %v2388
          %v2532 = vpop.xlane.xlu0 %2531
          %2533 = vmax.xlane.f32.xlu0 %v2389
          %v2534 = vpop.xlane.xlu0 %2533
          %2535 = vmax.xlane.f32.xlu0 %v2390
          %v2536 = vpop.xlane.xlu0 %2535
          %2537 = vmax.xlane.f32.xlu0 %v2391
          %v2538 = vpop.xlane.xlu0 %2537
          %2539 = vmax.xlane.f32.xlu0 %v2392
          %v2540 = vpop.xlane.xlu0 %2539
          %2541 = vmax.xlane.f32.xlu0 %v2393
          %v2542 = vpop.xlane.xlu0 %2541
          %2543 = vmax.xlane.f32.xlu0 %v2394
          %v2544 = vpop.xlane.xlu0 %2543
          %2545 = vmax.xlane.f32.xlu0 %v2395
          %v2546 = vpop.xlane.xlu0 %2545
          %2547 = vmax.xlane.f32.xlu0 %v2396
          %v2548 = vpop.xlane.xlu0 %2547
          %2549 = vmax.xlane.f32.xlu0 %v2397
          %v2550 = vpop.xlane.xlu0 %2549
          %2551 = vmax.xlane.f32.xlu0 %v2398
          %v2552 = vpop.xlane.xlu0 %2551
          %2553 = vmax.xlane.f32.xlu0 %v2399
          %v2554 = vpop.xlane.xlu0 %2553
          %2555 = vmax.xlane.f32.xlu0 %v2400
          %v2556 = vpop.xlane.xlu0 %2555
          %2557 = vmax.xlane.f32.xlu0 %v2401
          %v2558 = vpop.xlane.xlu0 %2557
          %2559 = vmax.xlane.f32.xlu0 %v2402
          %v2560 = vpop.xlane.xlu0 %2559
          %2561 = vmax.xlane.f32.xlu0 %v2403
          %v2562 = vpop.xlane.xlu0 %2561
          %2563 = vmax.xlane.f32.xlu0 %v2404
          %v2564 = vpop.xlane.xlu0 %2563
          %2565 = vmax.xlane.f32.xlu0 %v2405
          %v2566 = vpop.xlane.xlu0 %2565
          %2567 = vmax.xlane.f32.xlu0 %v2406
          %v2568 = vpop.xlane.xlu0 %2567
          %2569 = vmax.xlane.f32.xlu0 %v2407
          %v2570 = vpop.xlane.xlu0 %2569
          %2571 = vmax.xlane.f32.xlu0 %v2408
          %v2572 = vpop.xlane.xlu0 %2571
          %2573 = vmax.xlane.f32.xlu0 %v2409
          %v2574 = vpop.xlane.xlu0 %2573
          %2575 = vmax.xlane.f32.xlu0 %v2410
          %v2576 = vpop.xlane.xlu0 %2575
          %2577 = vmax.xlane.f32.xlu0 %v2411
          %v2578 = vpop.xlane.xlu0 %2577
          %2579 = vmax.xlane.f32.xlu0 %v2412
          %v2580 = vpop.xlane.xlu0 %2579
          %2581 = vmax.xlane.f32.xlu0 %v2413
          %v2582 = vpop.xlane.xlu0 %2581
          %2583 = vmax.xlane.f32.xlu0 %v2414
          %v2584 = vpop.xlane.xlu0 %2583
          %2585 = vmax.xlane.f32.xlu0 %v2415
          %v2586 = vpop.xlane.xlu0 %2585
          %2587 = vmax.xlane.f32.xlu0 %v2416
          %v2588 = vpop.xlane.xlu0 %2587
          %2589 = vmax.xlane.f32.xlu0 %v2417
          %v2590 = vpop.xlane.xlu0 %2589
          %2591 = vmax.xlane.f32.xlu0 %v2418
          %v2592 = vpop.xlane.xlu0 %2591
          %2593 = vmax.xlane.f32.xlu0 %v2419
          %v2594 = vpop.xlane.xlu0 %2593
          %2595 = vmax.xlane.f32.xlu0 %v2420
          %v2596 = vpop.xlane.xlu0 %2595
          %2597 = vmax.xlane.f32.xlu0 %v2421
          %v2598 = vpop.xlane.xlu0 %2597
          %2599 = vmax.xlane.f32.xlu0 %v2422
          %v2600 = vpop.xlane.xlu0 %2599
          %2601 = vmax.xlane.f32.xlu0 %v2423
          %v2602 = vpop.xlane.xlu0 %2601
          %2603 = vmax.xlane.f32.xlu0 %v2424
          %v2604 = vpop.xlane.xlu0 %2603
          %2605 = vmax.xlane.f32.xlu0 %v2425
          %v2606 = vpop.xlane.xlu0 %2605
          %2607 = vmax.xlane.f32.xlu0 %v2426
          %v2608 = vpop.xlane.xlu0 %2607
          %2609 = vmax.xlane.f32.xlu0 %v2427
          %v2610 = vpop.xlane.xlu0 %2609
          %2611 = vmax.xlane.f32.xlu0 %v2428
          %v2612 = vpop.xlane.xlu0 %2611
          %2613 = vmax.xlane.f32.xlu0 %v2429
          %v2614 = vpop.xlane.xlu0 %2613
          %2615 = vmax.xlane.f32.xlu0 %v2430
          %v2616 = vpop.xlane.xlu0 %2615
          %2617 = vmax.xlane.f32.xlu0 %v2431
          %v2618 = vpop.xlane.xlu0 %2617
          %2619 = vmax.xlane.f32.xlu0 %v2432
          %v2620 = vpop.xlane.xlu0 %2619
          %2621 = vmax.xlane.f32.xlu0 %v2433
          %v2622 = vpop.xlane.xlu0 %2621
          %2623 = vmax.xlane.f32.xlu0 %v2434
          %v2624 = vpop.xlane.xlu0 %2623
          %2625 = vmax.xlane.f32.xlu0 %v2435
          %v2626 = vpop.xlane.xlu0 %2625
          %2627 = vmax.xlane.f32.xlu0 %v2436
          %v2628 = vpop.xlane.xlu0 %2627
          %2629 = vmax.xlane.f32.xlu0 %v2437
          %v2630 = vpop.xlane.xlu0 %2629
          %2631 = vmax.xlane.f32.xlu0 %v2438
          %v2632 = vpop.xlane.xlu0 %2631
          %2633 = vmax.xlane.f32.xlu0 %v2439
          %v2634 = vpop.xlane.xlu0 %2633
          %2635 = vmax.xlane.f32.xlu0 %v2440
          %v2636 = vpop.xlane.xlu0 %2635
          %2637 = vmax.xlane.f32.xlu0 %v2441
          %v2638 = vpop.xlane.xlu0 %2637
          %2639 = vmax.xlane.f32.xlu0 %v2442
          %v2640 = vpop.xlane.xlu0 %2639
          %2641 = vmax.xlane.f32.xlu0 %v2443
          %v2642 = vpop.xlane.xlu0 %2641
          %2643 = vmax.xlane.f32.xlu0 %v2444
          %v2644 = vpop.xlane.xlu0 %2643
          %2645 = vmax.xlane.f32.xlu0 %v2445
          %v2646 = vpop.xlane.xlu0 %2645
          %2647 = vmax.xlane.f32.xlu0 %v2446
          %v2648 = vpop.xlane.xlu0 %2647
          %2649 = vmax.xlane.f32.xlu0 %v2447
          %v2650 = vpop.xlane.xlu0 %2649
          %2651 = vmax.xlane.f32.xlu0 %v2448
          %v2652 = vpop.xlane.xlu0 %2651
          %2653 = vmax.xlane.f32.xlu0 %v2449
          %v2654 = vpop.xlane.xlu0 %2653
          %2655 = vmax.xlane.f32.xlu0 %v2450
          %v2656 = vpop.xlane.xlu0 %2655
          %2657 = vmax.xlane.f32.xlu0 %v2451
          %v2658 = vpop.xlane.xlu0 %2657
          %2659 = vmax.xlane.f32.xlu0 %v2452
          %v2660 = vpop.xlane.xlu0 %2659
          %2661 = vmax.xlane.f32.xlu0 %v2453
          %v2662 = vpop.xlane.xlu0 %2661
          %2663 = vmax.xlane.f32.xlu0 %v2454
          %v2664 = vpop.xlane.xlu0 %2663
          %2665 = vmax.xlane.f32.xlu0 %v2455
          %v2666 = vpop.xlane.xlu0 %2665
          %2667 = vmax.xlane.f32.xlu0 %v2456
          %v2668 = vpop.xlane.xlu0 %2667
          %2669 = vmax.xlane.f32.xlu0 %v2457
          %v2670 = vpop.xlane.xlu0 %2669
          %2671 = vmax.xlane.f32.xlu0 %v2458
          %v2672 = vpop.xlane.xlu0 %2671
          %2673 = vmax.xlane.f32.xlu0 %v2459
          %v2674 = vpop.xlane.xlu0 %2673
          %2675 = vmax.xlane.f32.xlu0 %v2460
          %v2676 = vpop.xlane.xlu0 %2675
          %2677 = vmax.xlane.f32.xlu0 %v2461
          %v2678 = vpop.xlane.xlu0 %2677
          %2679 = vmax.xlane.f32.xlu0 %v2462
          %v2680 = vpop.xlane.xlu0 %2679
          %2681 = vmax.xlane.f32.xlu0 %v2463
          %v2682 = vpop.xlane.xlu0 %2681
          %2683 = vmax.xlane.f32.xlu0 %v2464
          %v2684 = vpop.xlane.xlu0 %2683
          %2685 = vmax.xlane.f32.xlu0 %v2465
          %v2686 = vpop.xlane.xlu0 %2685
          %2687 = vmax.xlane.f32.xlu0 %v2466
          %v2688 = vpop.xlane.xlu0 %2687
          %2689 = vmax.xlane.f32.xlu0 %v2467
          %v2690 = vpop.xlane.xlu0 %2689
          %2691 = vmax.xlane.f32.xlu0 %v2468
          %v2692 = vpop.xlane.xlu0 %2691
          %2693 = vmax.xlane.f32.xlu0 %v2469
          %v2694 = vpop.xlane.xlu0 %2693
          %2695 = vmax.xlane.f32.xlu0 %v2470
          %v2696 = vpop.xlane.xlu0 %2695
          %2697 = vmax.xlane.f32.xlu0 %v2471
          %v2698 = vpop.xlane.xlu0 %2697
          %2699 = vmax.xlane.f32.xlu0 %v2472
          %v2700 = vpop.xlane.xlu0 %2699
          %2701 = vmax.xlane.f32.xlu0 %v2473
          %v2702 = vpop.xlane.xlu0 %2701
          %2703 = vmax.xlane.f32.xlu0 %v2474
          %v2704 = vpop.xlane.xlu0 %2703
          %2705 = vmax.xlane.f32.xlu0 %v2475
          %v2706 = vpop.xlane.xlu0 %2705
          %2707 = vmax.xlane.f32.xlu0 %v2476
          %v2708 = vpop.xlane.xlu0 %2707
          %2709 = vmax.xlane.f32.xlu0 %v2477
          %v2710 = vpop.xlane.xlu0 %2709
          %2711 = vmax.xlane.f32.xlu0 %v2478
          %v2712 = vpop.xlane.xlu0 %2711
          %2713 = vmax.xlane.f32.xlu0 %v2479
          %v2714 = vpop.xlane.xlu0 %2713
          %2715 = vmax.xlane.f32.xlu0 %v2480
          %v2716 = vpop.xlane.xlu0 %2715
          %2717 = vmax.xlane.f32.xlu0 %v2481
          %v2718 = vpop.xlane.xlu0 %2717
          %2719 = vmax.xlane.f32.xlu0 %v2482
          %v2720 = vpop.xlane.xlu0 %2719
          %2721 = vmax.xlane.f32.xlu0 %v2483
          %v2722 = vpop.xlane.xlu0 %2721
          %2723 = vmax.xlane.f32.xlu0 %v2484
          %v2724 = vpop.xlane.xlu0 %2723
          %2725 = vmax.xlane.f32.xlu0 %v2485
          %v2726 = vpop.xlane.xlu0 %2725
          %2727 = vmax.xlane.f32.xlu0 %v2486
          %v2728 = vpop.xlane.xlu0 %2727
          %2729 = vmax.xlane.f32.xlu0 %v2487
          %v2730 = vpop.xlane.xlu0 %2729
          %2731 = vmax.xlane.f32.xlu0 %v2488
          %v2732 = vpop.xlane.xlu0 %2731
          %2733 = vmax.xlane.f32.xlu0 %v2489
          %v2734 = vpop.xlane.xlu0 %2733
          %2735 = vmax.xlane.f32.xlu0 %v2490
          %v2736 = vpop.xlane.xlu0 %2735
          %2737 = vmax.xlane.f32.xlu0 %v2491
          %v2738 = vpop.xlane.xlu0 %2737
          %2739 = vmax.xlane.f32.xlu0 %v2492
          %v2740 = vpop.xlane.xlu0 %2739
          %2741 = vmax.xlane.f32.xlu0 %v2493
          %v2742 = vpop.xlane.xlu0 %2741
          %2743 = vmax.xlane.f32.xlu0 %v2494
          %v2744 = vpop.xlane.xlu0 %2743
          %2745 = vmax.xlane.f32.xlu0 %v2495
          %v2746 = vpop.xlane.xlu0 %2745
          %2747 = vmax.xlane.f32.xlu0 %v2496
          %v2748 = vpop.xlane.xlu0 %2747
          %2749 = vmax.xlane.f32.xlu0 %v2497
          %v2750 = vpop.xlane.xlu0 %2749
          %2751 = vmax.xlane.f32.xlu0 %v2498
          %v2752 = vpop.xlane.xlu0 %2751
          %2753 = vmax.xlane.f32.xlu0 %v2499
          %v2754 = vpop.xlane.xlu0 %2753
          %2755 = vmax.xlane.f32.xlu0 %v2500
          %v2756 = vpop.xlane.xlu0 %2755
          %v2757 = vpack.c.bf16 %v2246, %v2245
          %v2758 = vpack.c.bf16 %v2248, %v2247
          %v2759 = vpack.c.bf16 %v2250, %v2249
          %v2760 = vpack.c.bf16 %v2252, %v2251
          %v2761 = vpack.c.bf16 %v2254, %v2253
          %v2762 = vpack.c.bf16 %v2256, %v2255
          %v2763 = vpack.c.bf16 %v2258, %v2257
          %v2764 = vpack.c.bf16 %v2260, %v2259
          %v2765 = vpack.c.bf16 %v2262, %v2261
          %v2766 = vpack.c.bf16 %v2264, %v2263
          %v2767 = vpack.c.bf16 %v2266, %v2265
          %v2768 = vpack.c.bf16 %v2268, %v2267
          %v2769 = vpack.c.bf16 %v2270, %v2269
          %v2770 = vpack.c.bf16 %v2272, %v2271
          %v2771 = vpack.c.bf16 %v2274, %v2273
          %v2772 = vpack.c.bf16 %v2276, %v2275
          %v2773 = vpack.c.bf16 %v2278, %v2277
          %v2774 = vpack.c.bf16 %v2280, %v2279
          %v2775 = vpack.c.bf16 %v2282, %v2281
          %v2776 = vpack.c.bf16 %v2284, %v2283
          %v2777 = vpack.c.bf16 %v2286, %v2285
          %v2778 = vpack.c.bf16 %v2288, %v2287
          %v2779 = vpack.c.bf16 %v2290, %v2289
          %v2780 = vpack.c.bf16 %v2292, %v2291
          %v2781 = vpack.c.bf16 %v2294, %v2293
          %v2782 = vpack.c.bf16 %v2296, %v2295
          %v2783 = vpack.c.bf16 %v2298, %v2297
          %v2784 = vpack.c.bf16 %v2300, %v2299
          %v2785 = vpack.c.bf16 %v2302, %v2301
          %v2786 = vpack.c.bf16 %v2304, %v2303
          %v2787 = vpack.c.bf16 %v2306, %v2305
          %v2788 = vpack.c.bf16 %v2308, %v2307
          %v2789 = vpack.c.bf16 %v2310, %v2309
          %v2790 = vpack.c.bf16 %v2312, %v2311
          %v2791 = vpack.c.bf16 %v2314, %v2313
          %v2792 = vpack.c.bf16 %v2316, %v2315
          %v2793 = vpack.c.bf16 %v2318, %v2317
          %v2794 = vpack.c.bf16 %v2320, %v2319
          %v2795 = vpack.c.bf16 %v2322, %v2321
          %v2796 = vpack.c.bf16 %v2324, %v2323
          %v2797 = vpack.c.bf16 %v2326, %v2325
          %v2798 = vpack.c.bf16 %v2328, %v2327
          %v2799 = vpack.c.bf16 %v2330, %v2329
          %v2800 = vpack.c.bf16 %v2332, %v2331
          %v2801 = vpack.c.bf16 %v2334, %v2333
          %v2802 = vpack.c.bf16 %v2336, %v2335
          %v2803 = vpack.c.bf16 %v2338, %v2337
          %v2804 = vpack.c.bf16 %v2340, %v2339
          %v2805 = vpack.c.bf16 %v2342, %v2341
          %v2806 = vpack.c.bf16 %v2344, %v2343
          %v2807 = vpack.c.bf16 %v2346, %v2345
          %v2808 = vpack.c.bf16 %v2348, %v2347
          %v2809 = vpack.c.bf16 %v2350, %v2349
          %v2810 = vpack.c.bf16 %v2352, %v2351
          %v2811 = vpack.c.bf16 %v2354, %v2353
          %v2812 = vpack.c.bf16 %v2356, %v2355
          %v2813 = vpack.c.bf16 %v2358, %v2357
          %v2814 = vpack.c.bf16 %v2360, %v2359
          %v2815 = vpack.c.bf16 %v2362, %v2361
          %v2816 = vpack.c.bf16 %v2364, %v2363
          %v2817 = vpack.c.bf16 %v2366, %v2365
          %v2818 = vpack.c.bf16 %v2368, %v2367
          %v2819 = vpack.c.bf16 %v2370, %v2369
          %v2820 = vpack.c.bf16 %v2372, %v2371
          %v2821 = vld [vmem:[#allocation4] sm:$0xff]
          %v2822 = vld [vmem:[#allocation4 + $0x8] sm:$0xff]
          %v2823 = vld [vmem:[#allocation4 + $0x10] sm:$0xff]
          %v2824 = vld [vmem:[#allocation4 + $0x18] sm:$0xff]
          %v2825 = vld [vmem:[#allocation4 + $0x20] sm:$0xff]
          %v2826 = vld [vmem:[#allocation4 + $0x28] sm:$0xff]
          %v2827 = vld [vmem:[#allocation4 + $0x30] sm:$0xff]
          %v2828 = vld [vmem:[#allocation4 + $0x38] sm:$0xff]
          %v2829 = vld [vmem:[#allocation4 + $0x40] sm:$0xff]
          %v2830 = vld [vmem:[#allocation4 + $0x48] sm:$0xff]
          %v2831 = vld [vmem:[#allocation4 + $0x50] sm:$0xff]
          %v2832 = vld [vmem:[#allocation4 + $0x58] sm:$0xff]
          %v2833 = vld [vmem:[#allocation4 + $0x60] sm:$0xff]
          %v2834 = vld [vmem:[#allocation4 + $0x68] sm:$0xff]
          %v2835 = vld [vmem:[#allocation4 + $0x70] sm:$0xff]
          %v2836 = vld [vmem:[#allocation4 + $0x78] sm:$0xff]
          %v2837 = vld [vmem:[#allocation4 + $0x80] sm:$0xff]
          %v2838 = vld [vmem:[#allocation4 + $0x88] sm:$0xff]
          %v2839 = vld [vmem:[#allocation4 + $0x90] sm:$0xff]
          %v2840 = vld [vmem:[#allocation4 + $0x98] sm:$0xff]
          %v2841 = vld [vmem:[#allocation4 + $0xa0] sm:$0xff]
          %v2842 = vld [vmem:[#allocation4 + $0xa8] sm:$0xff]
          %v2843 = vld [vmem:[#allocation4 + $0xb0] sm:$0xff]
          %v2844 = vld [vmem:[#allocation4 + $0xb8] sm:$0xff]
          %v2845 = vld [vmem:[#allocation4 + $0xc0] sm:$0xff]
          %v2846 = vld [vmem:[#allocation4 + $0xc8] sm:$0xff]
          %v2847 = vld [vmem:[#allocation4 + $0xd0] sm:$0xff]
          %v2848 = vld [vmem:[#allocation4 + $0xd8] sm:$0xff]
          %v2849 = vld [vmem:[#allocation4 + $0xe0] sm:$0xff]
          %v2850 = vld [vmem:[#allocation4 + $0xe8] sm:$0xff]
          %v2851 = vld [vmem:[#allocation4 + $0xf0] sm:$0xff]
          %v2852 = vld [vmem:[#allocation4 + $0xf8] sm:$0xff]
          %v2853 = vld [vmem:[#allocation4 + $0x100] sm:$0xff]
          %v2854 = vld [vmem:[#allocation4 + $0x108] sm:$0xff]
          %v2855 = vld [vmem:[#allocation4 + $0x110] sm:$0xff]
          %v2856 = vld [vmem:[#allocation4 + $0x118] sm:$0xff]
          %v2857 = vld [vmem:[#allocation4 + $0x120] sm:$0xff]
          %v2858 = vld [vmem:[#allocation4 + $0x128] sm:$0xff]
          %v2859 = vld [vmem:[#allocation4 + $0x130] sm:$0xff]
          %v2860 = vld [vmem:[#allocation4 + $0x138] sm:$0xff]
          %v2861 = vld [vmem:[#allocation4 + $0x140] sm:$0xff]
          %v2862 = vld [vmem:[#allocation4 + $0x148] sm:$0xff]
          %v2863 = vld [vmem:[#allocation4 + $0x150] sm:$0xff]
          %v2864 = vld [vmem:[#allocation4 + $0x158] sm:$0xff]
          %v2865 = vld [vmem:[#allocation4 + $0x160] sm:$0xff]
          %v2866 = vld [vmem:[#allocation4 + $0x168] sm:$0xff]
          %v2867 = vld [vmem:[#allocation4 + $0x170] sm:$0xff]
          %v2868 = vld [vmem:[#allocation4 + $0x178] sm:$0xff]
          %v2869 = vld [vmem:[#allocation4 + $0x180] sm:$0xff]
          %v2870 = vld [vmem:[#allocation4 + $0x188] sm:$0xff]
          %v2871 = vld [vmem:[#allocation4 + $0x190] sm:$0xff]
          %v2872 = vld [vmem:[#allocation4 + $0x198] sm:$0xff]
          %v2873 = vld [vmem:[#allocation4 + $0x1a0] sm:$0xff]
          %v2874 = vld [vmem:[#allocation4 + $0x1a8] sm:$0xff]
          %v2875 = vld [vmem:[#allocation4 + $0x1b0] sm:$0xff]
          %v2876 = vld [vmem:[#allocation4 + $0x1b8] sm:$0xff]
          %v2877 = vld [vmem:[#allocation4 + $0x1c0] sm:$0xff]
          %v2878 = vld [vmem:[#allocation4 + $0x1c8] sm:$0xff]
          %v2879 = vld [vmem:[#allocation4 + $0x1d0] sm:$0xff]
          %v2880 = vld [vmem:[#allocation4 + $0x1d8] sm:$0xff]
          %v2881 = vld [vmem:[#allocation4 + $0x1e0] sm:$0xff]
          %v2882 = vld [vmem:[#allocation4 + $0x1e8] sm:$0xff]
          %v2883 = vld [vmem:[#allocation4 + $0x1f0] sm:$0xff]
          %v2884 = vld [vmem:[#allocation4 + $0x1f8] sm:$0xff]
          %v2885 = vld [vmem:[#allocation4 + $0x200] sm:$0xff]
          %v2886 = vld [vmem:[#allocation4 + $0x208] sm:$0xff]
          %v2887 = vld [vmem:[#allocation4 + $0x210] sm:$0xff]
          %v2888 = vld [vmem:[#allocation4 + $0x218] sm:$0xff]
          %v2889 = vld [vmem:[#allocation4 + $0x220] sm:$0xff]
          %v2890 = vld [vmem:[#allocation4 + $0x228] sm:$0xff]
          %v2891 = vld [vmem:[#allocation4 + $0x230] sm:$0xff]
          %v2892 = vld [vmem:[#allocation4 + $0x238] sm:$0xff]
          %v2893 = vld [vmem:[#allocation4 + $0x240] sm:$0xff]
          %v2894 = vld [vmem:[#allocation4 + $0x248] sm:$0xff]
          %v2895 = vld [vmem:[#allocation4 + $0x250] sm:$0xff]
          %v2896 = vld [vmem:[#allocation4 + $0x258] sm:$0xff]
          %v2897 = vld [vmem:[#allocation4 + $0x260] sm:$0xff]
          %v2898 = vld [vmem:[#allocation4 + $0x268] sm:$0xff]
          %v2899 = vld [vmem:[#allocation4 + $0x270] sm:$0xff]
          %v2900 = vld [vmem:[#allocation4 + $0x278] sm:$0xff]
          %v2901 = vld [vmem:[#allocation4 + $0x280] sm:$0xff]
          %v2902 = vld [vmem:[#allocation4 + $0x288] sm:$0xff]
          %v2903 = vld [vmem:[#allocation4 + $0x290] sm:$0xff]
          %v2904 = vld [vmem:[#allocation4 + $0x298] sm:$0xff]
          %v2905 = vld [vmem:[#allocation4 + $0x2a0] sm:$0xff]
          %v2906 = vld [vmem:[#allocation4 + $0x2a8] sm:$0xff]
          %v2907 = vld [vmem:[#allocation4 + $0x2b0] sm:$0xff]
          %v2908 = vld [vmem:[#allocation4 + $0x2b8] sm:$0xff]
          %v2909 = vld [vmem:[#allocation4 + $0x2c0] sm:$0xff]
          %v2910 = vld [vmem:[#allocation4 + $0x2c8] sm:$0xff]
          %v2911 = vld [vmem:[#allocation4 + $0x2d0] sm:$0xff]
          %v2912 = vld [vmem:[#allocation4 + $0x2d8] sm:$0xff]
          %v2913 = vld [vmem:[#allocation4 + $0x2e0] sm:$0xff]
          %v2914 = vld [vmem:[#allocation4 + $0x2e8] sm:$0xff]
          %v2915 = vld [vmem:[#allocation4 + $0x2f0] sm:$0xff]
          %v2916 = vld [vmem:[#allocation4 + $0x2f8] sm:$0xff]
          %v2917 = vld [vmem:[#allocation4 + $0x300] sm:$0xff]
          %v2918 = vld [vmem:[#allocation4 + $0x308] sm:$0xff]
          %v2919 = vld [vmem:[#allocation4 + $0x310] sm:$0xff]
          %v2920 = vld [vmem:[#allocation4 + $0x318] sm:$0xff]
          %v2921 = vld [vmem:[#allocation4 + $0x320] sm:$0xff]
          %v2922 = vld [vmem:[#allocation4 + $0x328] sm:$0xff]
          %v2923 = vld [vmem:[#allocation4 + $0x330] sm:$0xff]
          %v2924 = vld [vmem:[#allocation4 + $0x338] sm:$0xff]
          %v2925 = vld [vmem:[#allocation4 + $0x340] sm:$0xff]
          %v2926 = vld [vmem:[#allocation4 + $0x348] sm:$0xff]
          %v2927 = vld [vmem:[#allocation4 + $0x350] sm:$0xff]
          %v2928 = vld [vmem:[#allocation4 + $0x358] sm:$0xff]
          %v2929 = vld [vmem:[#allocation4 + $0x360] sm:$0xff]
          %v2930 = vld [vmem:[#allocation4 + $0x368] sm:$0xff]
          %v2931 = vld [vmem:[#allocation4 + $0x370] sm:$0xff]
          %v2932 = vld [vmem:[#allocation4 + $0x378] sm:$0xff]
          %v2933 = vld [vmem:[#allocation4 + $0x380] sm:$0xff]
          %v2934 = vld [vmem:[#allocation4 + $0x388] sm:$0xff]
          %v2935 = vld [vmem:[#allocation4 + $0x390] sm:$0xff]
          %v2936 = vld [vmem:[#allocation4 + $0x398] sm:$0xff]
          %v2937 = vld [vmem:[#allocation4 + $0x3a0] sm:$0xff]
          %v2938 = vld [vmem:[#allocation4 + $0x3a8] sm:$0xff]
          %v2939 = vld [vmem:[#allocation4 + $0x3b0] sm:$0xff]
          %v2940 = vld [vmem:[#allocation4 + $0x3b8] sm:$0xff]
          %v2941 = vld [vmem:[#allocation4 + $0x3c0] sm:$0xff]
          %v2942 = vld [vmem:[#allocation4 + $0x3c8] sm:$0xff]
          %v2943 = vld [vmem:[#allocation4 + $0x3d0] sm:$0xff]
          %v2944 = vld [vmem:[#allocation4 + $0x3d8] sm:$0xff]
          %v2945 = vld [vmem:[#allocation4 + $0x3e0] sm:$0xff]
          %v2946 = vld [vmem:[#allocation4 + $0x3e8] sm:$0xff]
          %v2947 = vld [vmem:[#allocation4 + $0x3f0] sm:$0xff]
          %v2948 = vld [vmem:[#allocation4 + $0x3f8] sm:$0xff]
          %v2949 = vpack.c.bf16 %v2504, %v2502
          %v2950 = vpack.c.bf16 %v2508, %v2506
          %v2951 = vpack.c.bf16 %v2512, %v2510
          %v2952 = vpack.c.bf16 %v2516, %v2514
          %v2953 = vpack.c.bf16 %v2520, %v2518
          %v2954 = vpack.c.bf16 %v2524, %v2522
          %v2955 = vpack.c.bf16 %v2528, %v2526
          %v2956 = vpack.c.bf16 %v2532, %v2530
          %v2957 = vpack.c.bf16 %v2536, %v2534
          %v2958 = vpack.c.bf16 %v2540, %v2538
          %v2959 = vpack.c.bf16 %v2544, %v2542
          %v2960 = vpack.c.bf16 %v2548, %v2546
          %v2961 = vpack.c.bf16 %v2552, %v2550
          %v2962 = vpack.c.bf16 %v2556, %v2554
          %v2963 = vpack.c.bf16 %v2560, %v2558
          %v2964 = vpack.c.bf16 %v2564, %v2562
          %v2965 = vpack.c.bf16 %v2568, %v2566
          %v2966 = vpack.c.bf16 %v2572, %v2570
          %v2967 = vpack.c.bf16 %v2576, %v2574
          %v2968 = vpack.c.bf16 %v2580, %v2578
          %v2969 = vpack.c.bf16 %v2584, %v2582
          %v2970 = vpack.c.bf16 %v2588, %v2586
          %v2971 = vpack.c.bf16 %v2592, %v2590
          %v2972 = vpack.c.bf16 %v2596, %v2594
          %v2973 = vpack.c.bf16 %v2600, %v2598
          %v2974 = vpack.c.bf16 %v2604, %v2602
          %v2975 = vpack.c.bf16 %v2608, %v2606
          %v2976 = vpack.c.bf16 %v2612, %v2610
          %v2977 = vpack.c.bf16 %v2616, %v2614
          %v2978 = vpack.c.bf16 %v2620, %v2618
          %v2979 = vpack.c.bf16 %v2624, %v2622
          %v2980 = vpack.c.bf16 %v2628, %v2626
          %v2981 = vpack.c.bf16 %v2632, %v2630
          %v2982 = vpack.c.bf16 %v2636, %v2634
          %v2983 = vpack.c.bf16 %v2640, %v2638
          %v2984 = vpack.c.bf16 %v2644, %v2642
          %v2985 = vpack.c.bf16 %v2648, %v2646
          %v2986 = vpack.c.bf16 %v2652, %v2650
          %v2987 = vpack.c.bf16 %v2656, %v2654
          %v2988 = vpack.c.bf16 %v2660, %v2658
          %v2989 = vpack.c.bf16 %v2664, %v2662
          %v2990 = vpack.c.bf16 %v2668, %v2666
          %v2991 = vpack.c.bf16 %v2672, %v2670
          %v2992 = vpack.c.bf16 %v2676, %v2674
          %v2993 = vpack.c.bf16 %v2680, %v2678
          %v2994 = vpack.c.bf16 %v2684, %v2682
          %v2995 = vpack.c.bf16 %v2688, %v2686
          %v2996 = vpack.c.bf16 %v2692, %v2690
          %v2997 = vpack.c.bf16 %v2696, %v2694
          %v2998 = vpack.c.bf16 %v2700, %v2698
          %v2999 = vpack.c.bf16 %v2704, %v2702
          %v3000 = vpack.c.bf16 %v2708, %v2706
          %v3001 = vpack.c.bf16 %v2712, %v2710
          %v3002 = vpack.c.bf16 %v2716, %v2714
          %v3003 = vpack.c.bf16 %v2720, %v2718
          %v3004 = vpack.c.bf16 %v2724, %v2722
          %v3005 = vpack.c.bf16 %v2728, %v2726
          %v3006 = vpack.c.bf16 %v2732, %v2730
          %v3007 = vpack.c.bf16 %v2736, %v2734
          %v3008 = vpack.c.bf16 %v2740, %v2738
          %v3009 = vpack.c.bf16 %v2744, %v2742
          %v3010 = vpack.c.bf16 %v2748, %v2746
          %v3011 = vpack.c.bf16 %v2752, %v2750
          %v3012 = vpack.c.bf16 %v2756, %v2754
          %v3013 = vld [vmem:[#allocation5] sm:$0xff]
          %v3014 = vld [vmem:[#allocation5 + $0x8] sm:$0xff]
          %v3015 = vld [vmem:[#allocation5 + $0x10] sm:$0xff]
          %v3016 = vld [vmem:[#allocation5 + $0x18] sm:$0xff]
          %v3017 = vld [vmem:[#allocation5 + $0x20] sm:$0xff]
          %v3018 = vld [vmem:[#allocation5 + $0x28] sm:$0xff]
          %v3019 = vld [vmem:[#allocation5 + $0x30] sm:$0xff]
          %v3020 = vld [vmem:[#allocation5 + $0x38] sm:$0xff]
          %v3021 = vld [vmem:[#allocation5 + $0x40] sm:$0xff]
          %v3022 = vld [vmem:[#allocation5 + $0x48] sm:$0xff]
          %v3023 = vld [vmem:[#allocation5 + $0x50] sm:$0xff]
          %v3024 = vld [vmem:[#allocation5 + $0x58] sm:$0xff]
          %v3025 = vld [vmem:[#allocation5 + $0x60] sm:$0xff]
          %v3026 = vld [vmem:[#allocation5 + $0x68] sm:$0xff]
          %v3027 = vld [vmem:[#allocation5 + $0x70] sm:$0xff]
          %v3028 = vld [vmem:[#allocation5 + $0x78] sm:$0xff]
          %v3029 = vld [vmem:[#allocation5 + $0x80] sm:$0xff]
          %v3030 = vld [vmem:[#allocation5 + $0x88] sm:$0xff]
          %v3031 = vld [vmem:[#allocation5 + $0x90] sm:$0xff]
          %v3032 = vld [vmem:[#allocation5 + $0x98] sm:$0xff]
          %v3033 = vld [vmem:[#allocation5 + $0xa0] sm:$0xff]
          %v3034 = vld [vmem:[#allocation5 + $0xa8] sm:$0xff]
          %v3035 = vld [vmem:[#allocation5 + $0xb0] sm:$0xff]
          %v3036 = vld [vmem:[#allocation5 + $0xb8] sm:$0xff]
          %v3037 = vld [vmem:[#allocation5 + $0xc0] sm:$0xff]
          %v3038 = vld [vmem:[#allocation5 + $0xc8] sm:$0xff]
          %v3039 = vld [vmem:[#allocation5 + $0xd0] sm:$0xff]
          %v3040 = vld [vmem:[#allocation5 + $0xd8] sm:$0xff]
          %v3041 = vld [vmem:[#allocation5 + $0xe0] sm:$0xff]
          %v3042 = vld [vmem:[#allocation5 + $0xe8] sm:$0xff]
          %v3043 = vld [vmem:[#allocation5 + $0xf0] sm:$0xff]
          %v3044 = vld [vmem:[#allocation5 + $0xf8] sm:$0xff]
          %v3045 = vld [vmem:[#allocation5 + $0x100] sm:$0xff]
          %v3046 = vld [vmem:[#allocation5 + $0x108] sm:$0xff]
          %v3047 = vld [vmem:[#allocation5 + $0x110] sm:$0xff]
          %v3048 = vld [vmem:[#allocation5 + $0x118] sm:$0xff]
          %v3049 = vld [vmem:[#allocation5 + $0x120] sm:$0xff]
          %v3050 = vld [vmem:[#allocation5 + $0x128] sm:$0xff]
          %v3051 = vld [vmem:[#allocation5 + $0x130] sm:$0xff]
          %v3052 = vld [vmem:[#allocation5 + $0x138] sm:$0xff]
          %v3053 = vld [vmem:[#allocation5 + $0x140] sm:$0xff]
          %v3054 = vld [vmem:[#allocation5 + $0x148] sm:$0xff]
          %v3055 = vld [vmem:[#allocation5 + $0x150] sm:$0xff]
          %v3056 = vld [vmem:[#allocation5 + $0x158] sm:$0xff]
          %v3057 = vld [vmem:[#allocation5 + $0x160] sm:$0xff]
          %v3058 = vld [vmem:[#allocation5 + $0x168] sm:$0xff]
          %v3059 = vld [vmem:[#allocation5 + $0x170] sm:$0xff]
          %v3060 = vld [vmem:[#allocation5 + $0x178] sm:$0xff]
          %v3061 = vld [vmem:[#allocation5 + $0x180] sm:$0xff]
          %v3062 = vld [vmem:[#allocation5 + $0x188] sm:$0xff]
          %v3063 = vld [vmem:[#allocation5 + $0x190] sm:$0xff]
          %v3064 = vld [vmem:[#allocation5 + $0x198] sm:$0xff]
          %v3065 = vld [vmem:[#allocation5 + $0x1a0] sm:$0xff]
          %v3066 = vld [vmem:[#allocation5 + $0x1a8] sm:$0xff]
          %v3067 = vld [vmem:[#allocation5 + $0x1b0] sm:$0xff]
          %v3068 = vld [vmem:[#allocation5 + $0x1b8] sm:$0xff]
          %v3069 = vld [vmem:[#allocation5 + $0x1c0] sm:$0xff]
          %v3070 = vld [vmem:[#allocation5 + $0x1c8] sm:$0xff]
          %v3071 = vld [vmem:[#allocation5 + $0x1d0] sm:$0xff]
          %v3072 = vld [vmem:[#allocation5 + $0x1d8] sm:$0xff]
          %v3073 = vld [vmem:[#allocation5 + $0x1e0] sm:$0xff]
          %v3074 = vld [vmem:[#allocation5 + $0x1e8] sm:$0xff]
          %v3075 = vld [vmem:[#allocation5 + $0x1f0] sm:$0xff]
          %v3076 = vld [vmem:[#allocation5 + $0x1f8] sm:$0xff]
          %v3077 = vld [vmem:[#allocation5 + $0x200] sm:$0xff]
          %v3078 = vld [vmem:[#allocation5 + $0x208] sm:$0xff]
          %v3079 = vld [vmem:[#allocation5 + $0x210] sm:$0xff]
          %v3080 = vld [vmem:[#allocation5 + $0x218] sm:$0xff]
          %v3081 = vld [vmem:[#allocation5 + $0x220] sm:$0xff]
          %v3082 = vld [vmem:[#allocation5 + $0x228] sm:$0xff]
          %v3083 = vld [vmem:[#allocation5 + $0x230] sm:$0xff]
          %v3084 = vld [vmem:[#allocation5 + $0x238] sm:$0xff]
          %v3085 = vld [vmem:[#allocation5 + $0x240] sm:$0xff]
          %v3086 = vld [vmem:[#allocation5 + $0x248] sm:$0xff]
          %v3087 = vld [vmem:[#allocation5 + $0x250] sm:$0xff]
          %v3088 = vld [vmem:[#allocation5 + $0x258] sm:$0xff]
          %v3089 = vld [vmem:[#allocation5 + $0x260] sm:$0xff]
          %v3090 = vld [vmem:[#allocation5 + $0x268] sm:$0xff]
          %v3091 = vld [vmem:[#allocation5 + $0x270] sm:$0xff]
          %v3092 = vld [vmem:[#allocation5 + $0x278] sm:$0xff]
          %v3093 = vld [vmem:[#allocation5 + $0x280] sm:$0xff]
          %v3094 = vld [vmem:[#allocation5 + $0x288] sm:$0xff]
          %v3095 = vld [vmem:[#allocation5 + $0x290] sm:$0xff]
          %v3096 = vld [vmem:[#allocation5 + $0x298] sm:$0xff]
          %v3097 = vld [vmem:[#allocation5 + $0x2a0] sm:$0xff]
          %v3098 = vld [vmem:[#allocation5 + $0x2a8] sm:$0xff]
          %v3099 = vld [vmem:[#allocation5 + $0x2b0] sm:$0xff]
          %v3100 = vld [vmem:[#allocation5 + $0x2b8] sm:$0xff]
          %v3101 = vld [vmem:[#allocation5 + $0x2c0] sm:$0xff]
          %v3102 = vld [vmem:[#allocation5 + $0x2c8] sm:$0xff]
          %v3103 = vld [vmem:[#allocation5 + $0x2d0] sm:$0xff]
          %v3104 = vld [vmem:[#allocation5 + $0x2d8] sm:$0xff]
          %v3105 = vld [vmem:[#allocation5 + $0x2e0] sm:$0xff]
          %v3106 = vld [vmem:[#allocation5 + $0x2e8] sm:$0xff]
          %v3107 = vld [vmem:[#allocation5 + $0x2f0] sm:$0xff]
          %v3108 = vld [vmem:[#allocation5 + $0x2f8] sm:$0xff]
          %v3109 = vld [vmem:[#allocation5 + $0x300] sm:$0xff]
          %v3110 = vld [vmem:[#allocation5 + $0x308] sm:$0xff]
          %v3111 = vld [vmem:[#allocation5 + $0x310] sm:$0xff]
          %v3112 = vld [vmem:[#allocation5 + $0x318] sm:$0xff]
          %v3113 = vld [vmem:[#allocation5 + $0x320] sm:$0xff]
          %v3114 = vld [vmem:[#allocation5 + $0x328] sm:$0xff]
          %v3115 = vld [vmem:[#allocation5 + $0x330] sm:$0xff]
          %v3116 = vld [vmem:[#allocation5 + $0x338] sm:$0xff]
          %v3117 = vld [vmem:[#allocation5 + $0x340] sm:$0xff]
          %v3118 = vld [vmem:[#allocation5 + $0x348] sm:$0xff]
          %v3119 = vld [vmem:[#allocation5 + $0x350] sm:$0xff]
          %v3120 = vld [vmem:[#allocation5 + $0x358] sm:$0xff]
          %v3121 = vld [vmem:[#allocation5 + $0x360] sm:$0xff]
          %v3122 = vld [vmem:[#allocation5 + $0x368] sm:$0xff]
          %v3123 = vld [vmem:[#allocation5 + $0x370] sm:$0xff]
          %v3124 = vld [vmem:[#allocation5 + $0x378] sm:$0xff]
          %v3125 = vld [vmem:[#allocation5 + $0x380] sm:$0xff]
          %v3126 = vld [vmem:[#allocation5 + $0x388] sm:$0xff]
          %v3127 = vld [vmem:[#allocation5 + $0x390] sm:$0xff]
          %v3128 = vld [vmem:[#allocation5 + $0x398] sm:$0xff]
          %v3129 = vld [vmem:[#allocation5 + $0x3a0] sm:$0xff]
          %v3130 = vld [vmem:[#allocation5 + $0x3a8] sm:$0xff]
          %v3131 = vld [vmem:[#allocation5 + $0x3b0] sm:$0xff]
          %v3132 = vld [vmem:[#allocation5 + $0x3b8] sm:$0xff]
          %v3133 = vld [vmem:[#allocation5 + $0x3c0] sm:$0xff]
          %v3134 = vld [vmem:[#allocation5 + $0x3c8] sm:$0xff]
          %v3135 = vld [vmem:[#allocation5 + $0x3d0] sm:$0xff]
          %v3136 = vld [vmem:[#allocation5 + $0x3d8] sm:$0xff]
          %v3137 = vld [vmem:[#allocation5 + $0x3e0] sm:$0xff]
          %v3138 = vld [vmem:[#allocation5 + $0x3e8] sm:$0xff]
          %v3139 = vld [vmem:[#allocation5 + $0x3f0] sm:$0xff]
          %v3140 = vld [vmem:[#allocation5 + $0x3f8] sm:$0xff]
          %v3205 = vunpack.c.l.b16 %v2949
          %v3206 = vunpack.c.h.b16 %v2949
          %v3207 = vunpack.c.l.b16 %v2950
          %v3208 = vunpack.c.h.b16 %v2950
          %v3209 = vunpack.c.l.b16 %v2951
          %v3210 = vunpack.c.h.b16 %v2951
          %v3211 = vunpack.c.l.b16 %v2952
          %v3212 = vunpack.c.h.b16 %v2952
          %v3213 = vunpack.c.l.b16 %v2953
          %v3214 = vunpack.c.h.b16 %v2953
          %v3215 = vunpack.c.l.b16 %v2954
          %v3216 = vunpack.c.h.b16 %v2954
          %v3217 = vunpack.c.l.b16 %v2955
          %v3218 = vunpack.c.h.b16 %v2955
          %v3219 = vunpack.c.l.b16 %v2956
          %v3220 = vunpack.c.h.b16 %v2956
          %v3221 = vunpack.c.l.b16 %v2957
          %v3222 = vunpack.c.h.b16 %v2957
          %v3223 = vunpack.c.l.b16 %v2958
          %v3224 = vunpack.c.h.b16 %v2958
          %v3225 = vunpack.c.l.b16 %v2959
          %v3226 = vunpack.c.h.b16 %v2959
          %v3227 = vunpack.c.l.b16 %v2960
          %v3228 = vunpack.c.h.b16 %v2960
          %v3229 = vunpack.c.l.b16 %v2961
          %v3230 = vunpack.c.h.b16 %v2961
          %v3231 = vunpack.c.l.b16 %v2962
          %v3232 = vunpack.c.h.b16 %v2962
          %v3233 = vunpack.c.l.b16 %v2963
          %v3234 = vunpack.c.h.b16 %v2963
          %v3235 = vunpack.c.l.b16 %v2964
          %v3236 = vunpack.c.h.b16 %v2964
          %v3237 = vunpack.c.l.b16 %v2965
          %v3238 = vunpack.c.h.b16 %v2965
          %v3239 = vunpack.c.l.b16 %v2966
          %v3240 = vunpack.c.h.b16 %v2966
          %v3241 = vunpack.c.l.b16 %v2967
          %v3242 = vunpack.c.h.b16 %v2967
          %v3243 = vunpack.c.l.b16 %v2968
          %v3244 = vunpack.c.h.b16 %v2968
          %v3245 = vunpack.c.l.b16 %v2969
          %v3246 = vunpack.c.h.b16 %v2969
          %v3247 = vunpack.c.l.b16 %v2970
          %v3248 = vunpack.c.h.b16 %v2970
          %v3249 = vunpack.c.l.b16 %v2971
          %v3250 = vunpack.c.h.b16 %v2971
          %v3251 = vunpack.c.l.b16 %v2972
          %v3252 = vunpack.c.h.b16 %v2972
          %v3253 = vunpack.c.l.b16 %v2973
          %v3254 = vunpack.c.h.b16 %v2973
          %v3255 = vunpack.c.l.b16 %v2974
          %v3256 = vunpack.c.h.b16 %v2974
          %v3257 = vunpack.c.l.b16 %v2975
          %v3258 = vunpack.c.h.b16 %v2975
          %v3259 = vunpack.c.l.b16 %v2976
          %v3260 = vunpack.c.h.b16 %v2976
          %v3261 = vunpack.c.l.b16 %v2977
          %v3262 = vunpack.c.h.b16 %v2977
          %v3263 = vunpack.c.l.b16 %v2978
          %v3264 = vunpack.c.h.b16 %v2978
          %v3265 = vunpack.c.l.b16 %v2979
          %v3266 = vunpack.c.h.b16 %v2979
          %v3267 = vunpack.c.l.b16 %v2980
          %v3268 = vunpack.c.h.b16 %v2980
          %v3269 = vunpack.c.l.b16 %v2981
          %v3270 = vunpack.c.h.b16 %v2981
          %v3271 = vunpack.c.l.b16 %v2982
          %v3272 = vunpack.c.h.b16 %v2982
          %v3273 = vunpack.c.l.b16 %v2983
          %v3274 = vunpack.c.h.b16 %v2983
          %v3275 = vunpack.c.l.b16 %v2984
          %v3276 = vunpack.c.h.b16 %v2984
          %v3277 = vunpack.c.l.b16 %v2985
          %v3278 = vunpack.c.h.b16 %v2985
          %v3279 = vunpack.c.l.b16 %v2986
          %v3280 = vunpack.c.h.b16 %v2986
          %v3281 = vunpack.c.l.b16 %v2987
          %v3282 = vunpack.c.h.b16 %v2987
          %v3283 = vunpack.c.l.b16 %v2988
          %v3284 = vunpack.c.h.b16 %v2988
          %v3285 = vunpack.c.l.b16 %v2989
          %v3286 = vunpack.c.h.b16 %v2989
          %v3287 = vunpack.c.l.b16 %v2990
          %v3288 = vunpack.c.h.b16 %v2990
          %v3289 = vunpack.c.l.b16 %v2991
          %v3290 = vunpack.c.h.b16 %v2991
          %v3291 = vunpack.c.l.b16 %v2992
          %v3292 = vunpack.c.h.b16 %v2992
          %v3293 = vunpack.c.l.b16 %v2993
          %v3294 = vunpack.c.h.b16 %v2993
          %v3295 = vunpack.c.l.b16 %v2994
          %v3296 = vunpack.c.h.b16 %v2994
          %v3297 = vunpack.c.l.b16 %v2995
          %v3298 = vunpack.c.h.b16 %v2995
          %v3299 = vunpack.c.l.b16 %v2996
          %v3300 = vunpack.c.h.b16 %v2996
          %v3301 = vunpack.c.l.b16 %v2997
          %v3302 = vunpack.c.h.b16 %v2997
          %v3303 = vunpack.c.l.b16 %v2998
          %v3304 = vunpack.c.h.b16 %v2998
          %v3305 = vunpack.c.l.b16 %v2999
          %v3306 = vunpack.c.h.b16 %v2999
          %v3307 = vunpack.c.l.b16 %v3000
          %v3308 = vunpack.c.h.b16 %v3000
          %v3309 = vunpack.c.l.b16 %v3001
          %v3310 = vunpack.c.h.b16 %v3001
          %v3311 = vunpack.c.l.b16 %v3002
          %v3312 = vunpack.c.h.b16 %v3002
          %v3313 = vunpack.c.l.b16 %v3003
          %v3314 = vunpack.c.h.b16 %v3003
          %v3315 = vunpack.c.l.b16 %v3004
          %v3316 = vunpack.c.h.b16 %v3004
          %v3317 = vunpack.c.l.b16 %v3005
          %v3318 = vunpack.c.h.b16 %v3005
          %v3319 = vunpack.c.l.b16 %v3006
          %v3320 = vunpack.c.h.b16 %v3006
          %v3321 = vunpack.c.l.b16 %v3007
          %v3322 = vunpack.c.h.b16 %v3007
          %v3323 = vunpack.c.l.b16 %v3008
          %v3324 = vunpack.c.h.b16 %v3008
          %v3325 = vunpack.c.l.b16 %v3009
          %v3326 = vunpack.c.h.b16 %v3009
          %v3327 = vunpack.c.l.b16 %v3010
          %v3328 = vunpack.c.h.b16 %v3010
          %v3329 = vunpack.c.l.b16 %v3011
          %v3330 = vunpack.c.h.b16 %v3011
          %v3331 = vunpack.c.l.b16 %v3012
          %v3332 = vunpack.c.h.b16 %v3012
          %v3333 = vlaneseq
          %v3334 = vand.u32 %v3333, 127
          %v3335 = vlaneseq
          %v3336 = vshrl.u32 %v3335, 7
          %v3337 = vsub.s32 %v3334, %v3336
          %v3338 = vrot.slane %v3205, %v3337
          %v3339 = vadd.s32 %v3334, 4294967288
          %v3340 = vlaneseq
          %v3341 = vshrl.u32 %v3340, 7
          %v3342 = vsub.s32 %v3339, %v3341
          %v3343 = vrot.slane %v3206, %v3342
          %vm3344 = vcmask 130112
          %v3345 = vsel %vm3344, %v3343, %v3338
          %v3346 = vadd.s32 %v3334, 4294967280
          %v3347 = vlaneseq
          %v3348 = vshrl.u32 %v3347, 7
          %v3349 = vsub.s32 %v3346, %v3348
          %v3350 = vrot.slane %v3207, %v3349
          %vm3351 = vcmask 195712
          %v3352 = vsel %vm3351, %v3350, %v3345
          %v3353 = vadd.s32 %v3334, 4294967272
          %v3354 = vlaneseq
          %v3355 = vshrl.u32 %v3354, 7
          %v3356 = vsub.s32 %v3353, %v3355
          %v3357 = vrot.slane %v3208, %v3356
          %vm3358 = vcmask 261312
          %v3359 = vsel %vm3358, %v3357, %v3352
          %v3360 = vadd.s32 %v3334, 4294967264
          %v3361 = vlaneseq
          %v3362 = vshrl.u32 %v3361, 7
          %v3363 = vsub.s32 %v3360, %v3362
          %v3364 = vrot.slane %v3209, %v3363
          %vm3365 = vcmask 326912
          %v3366 = vsel %vm3365, %v3364, %v3359
          %v3367 = vadd.s32 %v3334, 4294967256
          %v3368 = vlaneseq
          %v3369 = vshrl.u32 %v3368, 7
          %v3370 = vsub.s32 %v3367, %v3369
          %v3371 = vrot.slane %v3210, %v3370
          %vm3372 = vcmask 392512
          %v3373 = vsel %vm3372, %v3371, %v3366
          %v3374 = vadd.s32 %v3334, 4294967248
          %v3375 = vlaneseq
          %v3376 = vshrl.u32 %v3375, 7
          %v3377 = vsub.s32 %v3374, %v3376
          %v3378 = vrot.slane %v3211, %v3377
          %vm3379 = vcmask 458112
          %v3380 = vsel %vm3379, %v3378, %v3373
          %v3381 = vadd.s32 %v3334, 4294967240
          %v3382 = vlaneseq
          %v3383 = vshrl.u32 %v3382, 7
          %v3384 = vsub.s32 %v3381, %v3383
          %v3385 = vrot.slane %v3212, %v3384
          %vm3386 = vcmask 523712
          %v3387 = vsel %vm3386, %v3385, %v3380
          %v3388 = vadd.s32 %v3334, 4294967232
          %v3389 = vlaneseq
          %v3390 = vshrl.u32 %v3389, 7
          %v3391 = vsub.s32 %v3388, %v3390
          %v3392 = vrot.slane %v3213, %v3391
          %vm3393 = vcmask 589312
          %v3394 = vsel %vm3393, %v3392, %v3387
          %v3395 = vadd.s32 %v3334, 4294967224
          %v3396 = vlaneseq
          %v3397 = vshrl.u32 %v3396, 7
          %v3398 = vsub.s32 %v3395, %v3397
          %v3399 = vrot.slane %v3214, %v3398
          %vm3400 = vcmask 654912
          %v3401 = vsel %vm3400, %v3399, %v3394
          %v3402 = vadd.s32 %v3334, 4294967216
          %v3403 = vlaneseq
          %v3404 = vshrl.u32 %v3403, 7
          %v3405 = vsub.s32 %v3402, %v3404
          %v3406 = vrot.slane %v3215, %v3405
          %vm3407 = vcmask 720512
          %v3408 = vsel %vm3407, %v3406, %v3401
          %v3409 = vadd.s32 %v3334, 4294967208
          %v3410 = vlaneseq
          %v3411 = vshrl.u32 %v3410, 7
          %v3412 = vsub.s32 %v3409, %v3411
          %v3413 = vrot.slane %v3216, %v3412
          %vm3414 = vcmask 786112
          %v3415 = vsel %vm3414, %v3413, %v3408
          %v3416 = vadd.s32 %v3334, 4294967200
          %v3417 = vlaneseq
          %v3418 = vshrl.u32 %v3417, 7
          %v3419 = vsub.s32 %v3416, %v3418
          %v3420 = vrot.slane %v3217, %v3419
          %vm3421 = vcmask 851712
          %v3422 = vsel %vm3421, %v3420, %v3415
          %v3423 = vadd.s32 %v3334, 4294967192
          %v3424 = vlaneseq
          %v3425 = vshrl.u32 %v3424, 7
          %v3426 = vsub.s32 %v3423, %v3425
          %v3427 = vrot.slane %v3218, %v3426
          %vm3428 = vcmask 917312
          %v3429 = vsel %vm3428, %v3427, %v3422
          %v3430 = vadd.s32 %v3334, 4294967184
          %v3431 = vlaneseq
          %v3432 = vshrl.u32 %v3431, 7
          %v3433 = vsub.s32 %v3430, %v3432
          %v3434 = vrot.slane %v3219, %v3433
          %vm3435 = vcmask 982912
          %v3436 = vsel %vm3435, %v3434, %v3429
          %v3437 = vadd.s32 %v3334, 4294967176
          %v3438 = vlaneseq
          %v3439 = vshrl.u32 %v3438, 7
          %v3440 = vsub.s32 %v3437, %v3439
          %v3441 = vrot.slane %v3220, %v3440
          %vm3442 = vcmask 1048512
          %v3443 = vsel %vm3442, %v3441, %v3436
          %v3444 = vlaneseq
          %v3445 = vshrl.u32 %v3444, 7
          %v3446 = vsub.s32 %v3334, %v3445
          %v3447 = vrot.slane %v3221, %v3446
          %v3448 = vlaneseq
          %v3449 = vshrl.u32 %v3448, 7
          %v3450 = vsub.s32 %v3339, %v3449
          %v3451 = vrot.slane %v3222, %v3450
          %v3452 = vsel %vm3344, %v3451, %v3447
          %v3453 = vlaneseq
          %v3454 = vshrl.u32 %v3453, 7
          %v3455 = vsub.s32 %v3346, %v3454
          %v3456 = vrot.slane %v3223, %v3455
          %v3457 = vsel %vm3351, %v3456, %v3452
          %v3458 = vlaneseq
          %v3459 = vshrl.u32 %v3458, 7
          %v3460 = vsub.s32 %v3353, %v3459
          %v3461 = vrot.slane %v3224, %v3460
          %v3462 = vsel %vm3358, %v3461, %v3457
          %v3463 = vlaneseq
          %v3464 = vshrl.u32 %v3463, 7
          %v3465 = vsub.s32 %v3360, %v3464
          %v3466 = vrot.slane %v3225, %v3465
          %v3467 = vsel %vm3365, %v3466, %v3462
          %v3468 = vlaneseq
          %v3469 = vshrl.u32 %v3468, 7
          %v3470 = vsub.s32 %v3367, %v3469
          %v3471 = vrot.slane %v3226, %v3470
          %v3472 = vsel %vm3372, %v3471, %v3467
          %v3473 = vlaneseq
          %v3474 = vshrl.u32 %v3473, 7
          %v3475 = vsub.s32 %v3374, %v3474
          %v3476 = vrot.slane %v3227, %v3475
          %v3477 = vsel %vm3379, %v3476, %v3472
          %v3478 = vlaneseq
          %v3479 = vshrl.u32 %v3478, 7
          %v3480 = vsub.s32 %v3381, %v3479
          %v3481 = vrot.slane %v3228, %v3480
          %v3482 = vsel %vm3386, %v3481, %v3477
          %v3483 = vlaneseq
          %v3484 = vshrl.u32 %v3483, 7
          %v3485 = vsub.s32 %v3388, %v3484
          %v3486 = vrot.slane %v3229, %v3485
          %v3487 = vsel %vm3393, %v3486, %v3482
          %v3488 = vlaneseq
          %v3489 = vshrl.u32 %v3488, 7
          %v3490 = vsub.s32 %v3395, %v3489
          %v3491 = vrot.slane %v3230, %v3490
          %v3492 = vsel %vm3400, %v3491, %v3487
          %v3493 = vlaneseq
          %v3494 = vshrl.u32 %v3493, 7
          %v3495 = vsub.s32 %v3402, %v3494
          %v3496 = vrot.slane %v3231, %v3495
          %v3497 = vsel %vm3407, %v3496, %v3492
          %v3498 = vlaneseq
          %v3499 = vshrl.u32 %v3498, 7
          %v3500 = vsub.s32 %v3409, %v3499
          %v3501 = vrot.slane %v3232, %v3500
          %v3502 = vsel %vm3414, %v3501, %v3497
          %v3503 = vlaneseq
          %v3504 = vshrl.u32 %v3503, 7
          %v3505 = vsub.s32 %v3416, %v3504
          %v3506 = vrot.slane %v3233, %v3505
          %v3507 = vsel %vm3421, %v3506, %v3502
          %v3508 = vlaneseq
          %v3509 = vshrl.u32 %v3508, 7
          %v3510 = vsub.s32 %v3423, %v3509
          %v3511 = vrot.slane %v3234, %v3510
          %v3512 = vsel %vm3428, %v3511, %v3507
          %v3513 = vlaneseq
          %v3514 = vshrl.u32 %v3513, 7
          %v3515 = vsub.s32 %v3430, %v3514
          %v3516 = vrot.slane %v3235, %v3515
          %v3517 = vsel %vm3435, %v3516, %v3512
          %v3518 = vlaneseq
          %v3519 = vshrl.u32 %v3518, 7
          %v3520 = vsub.s32 %v3437, %v3519
          %v3521 = vrot.slane %v3236, %v3520
          %v3522 = vsel %vm3442, %v3521, %v3517
          %v3523 = vlaneseq
          %v3524 = vshrl.u32 %v3523, 7
          %v3525 = vsub.s32 %v3334, %v3524
          %v3526 = vrot.slane %v3237, %v3525
          %v3527 = vlaneseq
          %v3528 = vshrl.u32 %v3527, 7
          %v3529 = vsub.s32 %v3339, %v3528
          %v3530 = vrot.slane %v3238, %v3529
          %v3531 = vsel %vm3344, %v3530, %v3526
          %v3532 = vlaneseq
          %v3533 = vshrl.u32 %v3532, 7
          %v3534 = vsub.s32 %v3346, %v3533
          %v3535 = vrot.slane %v3239, %v3534
          %v3536 = vsel %vm3351, %v3535, %v3531
          %v3537 = vlaneseq
          %v3538 = vshrl.u32 %v3537, 7
          %v3539 = vsub.s32 %v3353, %v3538
          %v3540 = vrot.slane %v3240, %v3539
          %v3541 = vsel %vm3358, %v3540, %v3536
          %v3542 = vlaneseq
          %v3543 = vshrl.u32 %v3542, 7
          %v3544 = vsub.s32 %v3360, %v3543
          %v3545 = vrot.slane %v3241, %v3544
          %v3546 = vsel %vm3365, %v3545, %v3541
          %v3547 = vlaneseq
          %v3548 = vshrl.u32 %v3547, 7
          %v3549 = vsub.s32 %v3367, %v3548
          %v3550 = vrot.slane %v3242, %v3549
          %v3551 = vsel %vm3372, %v3550, %v3546
          %v3552 = vlaneseq
          %v3553 = vshrl.u32 %v3552, 7
          %v3554 = vsub.s32 %v3374, %v3553
          %v3555 = vrot.slane %v3243, %v3554
          %v3556 = vsel %vm3379, %v3555, %v3551
          %v3557 = vlaneseq
          %v3558 = vshrl.u32 %v3557, 7
          %v3559 = vsub.s32 %v3381, %v3558
          %v3560 = vrot.slane %v3244, %v3559
          %v3561 = vsel %vm3386, %v3560, %v3556
          %v3562 = vlaneseq
          %v3563 = vshrl.u32 %v3562, 7
          %v3564 = vsub.s32 %v3388, %v3563
          %v3565 = vrot.slane %v3245, %v3564
          %v3566 = vsel %vm3393, %v3565, %v3561
          %v3567 = vlaneseq
          %v3568 = vshrl.u32 %v3567, 7
          %v3569 = vsub.s32 %v3395, %v3568
          %v3570 = vrot.slane %v3246, %v3569
          %v3571 = vsel %vm3400, %v3570, %v3566
          %v3572 = vlaneseq
          %v3573 = vshrl.u32 %v3572, 7
          %v3574 = vsub.s32 %v3402, %v3573
          %v3575 = vrot.slane %v3247, %v3574
          %v3576 = vsel %vm3407, %v3575, %v3571
          %v3577 = vlaneseq
          %v3578 = vshrl.u32 %v3577, 7
          %v3579 = vsub.s32 %v3409, %v3578
          %v3580 = vrot.slane %v3248, %v3579
          %v3581 = vsel %vm3414, %v3580, %v3576
          %v3582 = vlaneseq
          %v3583 = vshrl.u32 %v3582, 7
          %v3584 = vsub.s32 %v3416, %v3583
          %v3585 = vrot.slane %v3249, %v3584
          %v3586 = vsel %vm3421, %v3585, %v3581
          %v3587 = vlaneseq
          %v3588 = vshrl.u32 %v3587, 7
          %v3589 = vsub.s32 %v3423, %v3588
          %v3590 = vrot.slane %v3250, %v3589
          %v3591 = vsel %vm3428, %v3590, %v3586
          %v3592 = vlaneseq
          %v3593 = vshrl.u32 %v3592, 7
          %v3594 = vsub.s32 %v3430, %v3593
          %v3595 = vrot.slane %v3251, %v3594
          %v3596 = vsel %vm3435, %v3595, %v3591
          %v3597 = vlaneseq
          %v3598 = vshrl.u32 %v3597, 7
          %v3599 = vsub.s32 %v3437, %v3598
          %v3600 = vrot.slane %v3252, %v3599
          %v3601 = vsel %vm3442, %v3600, %v3596
          %v3602 = vlaneseq
          %v3603 = vshrl.u32 %v3602, 7
          %v3604 = vsub.s32 %v3334, %v3603
          %v3605 = vrot.slane %v3253, %v3604
          %v3606 = vlaneseq
          %v3607 = vshrl.u32 %v3606, 7
          %v3608 = vsub.s32 %v3339, %v3607
          %v3609 = vrot.slane %v3254, %v3608
          %v3610 = vsel %vm3344, %v3609, %v3605
          %v3611 = vlaneseq
          %v3612 = vshrl.u32 %v3611, 7
          %v3613 = vsub.s32 %v3346, %v3612
          %v3614 = vrot.slane %v3255, %v3613
          %v3615 = vsel %vm3351, %v3614, %v3610
          %v3616 = vlaneseq
          %v3617 = vshrl.u32 %v3616, 7
          %v3618 = vsub.s32 %v3353, %v3617
          %v3619 = vrot.slane %v3256, %v3618
          %v3620 = vsel %vm3358, %v3619, %v3615
          %v3621 = vlaneseq
          %v3622 = vshrl.u32 %v3621, 7
          %v3623 = vsub.s32 %v3360, %v3622
          %v3624 = vrot.slane %v3257, %v3623
          %v3625 = vsel %vm3365, %v3624, %v3620
          %v3626 = vlaneseq
          %v3627 = vshrl.u32 %v3626, 7
          %v3628 = vsub.s32 %v3367, %v3627
          %v3629 = vrot.slane %v3258, %v3628
          %v3630 = vsel %vm3372, %v3629, %v3625
          %v3631 = vlaneseq
          %v3632 = vshrl.u32 %v3631, 7
          %v3633 = vsub.s32 %v3374, %v3632
          %v3634 = vrot.slane %v3259, %v3633
          %v3635 = vsel %vm3379, %v3634, %v3630
          %v3636 = vlaneseq
          %v3637 = vshrl.u32 %v3636, 7
          %v3638 = vsub.s32 %v3381, %v3637
          %v3639 = vrot.slane %v3260, %v3638
          %v3640 = vsel %vm3386, %v3639, %v3635
          %v3641 = vlaneseq
          %v3642 = vshrl.u32 %v3641, 7
          %v3643 = vsub.s32 %v3388, %v3642
          %v3644 = vrot.slane %v3261, %v3643
          %v3645 = vsel %vm3393, %v3644, %v3640
          %v3646 = vlaneseq
          %v3647 = vshrl.u32 %v3646, 7
          %v3648 = vsub.s32 %v3395, %v3647
          %v3649 = vrot.slane %v3262, %v3648
          %v3650 = vsel %vm3400, %v3649, %v3645
          %v3651 = vlaneseq
          %v3652 = vshrl.u32 %v3651, 7
          %v3653 = vsub.s32 %v3402, %v3652
          %v3654 = vrot.slane %v3263, %v3653
          %v3655 = vsel %vm3407, %v3654, %v3650
          %v3656 = vlaneseq
          %v3657 = vshrl.u32 %v3656, 7
          %v3658 = vsub.s32 %v3409, %v3657
          %v3659 = vrot.slane %v3264, %v3658
          %v3660 = vsel %vm3414, %v3659, %v3655
          %v3661 = vlaneseq
          %v3662 = vshrl.u32 %v3661, 7
          %v3663 = vsub.s32 %v3416, %v3662
          %v3664 = vrot.slane %v3265, %v3663
          %v3665 = vsel %vm3421, %v3664, %v3660
          %v3666 = vlaneseq
          %v3667 = vshrl.u32 %v3666, 7
          %v3668 = vsub.s32 %v3423, %v3667
          %v3669 = vrot.slane %v3266, %v3668
          %v3670 = vsel %vm3428, %v3669, %v3665
          %v3671 = vlaneseq
          %v3672 = vshrl.u32 %v3671, 7
          %v3673 = vsub.s32 %v3430, %v3672
          %v3674 = vrot.slane %v3267, %v3673
          %v3675 = vsel %vm3435, %v3674, %v3670
          %v3676 = vlaneseq
          %v3677 = vshrl.u32 %v3676, 7
          %v3678 = vsub.s32 %v3437, %v3677
          %v3679 = vrot.slane %v3268, %v3678
          %v3680 = vsel %vm3442, %v3679, %v3675
          %v3681 = vlaneseq
          %v3682 = vshrl.u32 %v3681, 7
          %v3683 = vsub.s32 %v3334, %v3682
          %v3684 = vrot.slane %v3269, %v3683
          %v3685 = vlaneseq
          %v3686 = vshrl.u32 %v3685, 7
          %v3687 = vsub.s32 %v3339, %v3686
          %v3688 = vrot.slane %v3270, %v3687
          %v3689 = vsel %vm3344, %v3688, %v3684
          %v3690 = vlaneseq
          %v3691 = vshrl.u32 %v3690, 7
          %v3692 = vsub.s32 %v3346, %v3691
          %v3693 = vrot.slane %v3271, %v3692
          %v3694 = vsel %vm3351, %v3693, %v3689
          %v3695 = vlaneseq
          %v3696 = vshrl.u32 %v3695, 7
          %v3697 = vsub.s32 %v3353, %v3696
          %v3698 = vrot.slane %v3272, %v3697
          %v3699 = vsel %vm3358, %v3698, %v3694
          %v3700 = vlaneseq
          %v3701 = vshrl.u32 %v3700, 7
          %v3702 = vsub.s32 %v3360, %v3701
          %v3703 = vrot.slane %v3273, %v3702
          %v3704 = vsel %vm3365, %v3703, %v3699
          %v3705 = vlaneseq
          %v3706 = vshrl.u32 %v3705, 7
          %v3707 = vsub.s32 %v3367, %v3706
          %v3708 = vrot.slane %v3274, %v3707
          %v3709 = vsel %vm3372, %v3708, %v3704
          %v3710 = vlaneseq
          %v3711 = vshrl.u32 %v3710, 7
          %v3712 = vsub.s32 %v3374, %v3711
          %v3713 = vrot.slane %v3275, %v3712
          %v3714 = vsel %vm3379, %v3713, %v3709
          %v3715 = vlaneseq
          %v3716 = vshrl.u32 %v3715, 7
          %v3717 = vsub.s32 %v3381, %v3716
          %v3718 = vrot.slane %v3276, %v3717
          %v3719 = vsel %vm3386, %v3718, %v3714
          %v3720 = vlaneseq
          %v3721 = vshrl.u32 %v3720, 7
          %v3722 = vsub.s32 %v3388, %v3721
          %v3723 = vrot.slane %v3277, %v3722
          %v3724 = vsel %vm3393, %v3723, %v3719
          %v3725 = vlaneseq
          %v3726 = vshrl.u32 %v3725, 7
          %v3727 = vsub.s32 %v3395, %v3726
          %v3728 = vrot.slane %v3278, %v3727
          %v3729 = vsel %vm3400, %v3728, %v3724
          %v3730 = vlaneseq
          %v3731 = vshrl.u32 %v3730, 7
          %v3732 = vsub.s32 %v3402, %v3731
          %v3733 = vrot.slane %v3279, %v3732
          %v3734 = vsel %vm3407, %v3733, %v3729
          %v3735 = vlaneseq
          %v3736 = vshrl.u32 %v3735, 7
          %v3737 = vsub.s32 %v3409, %v3736
          %v3738 = vrot.slane %v3280, %v3737
          %v3739 = vsel %vm3414, %v3738, %v3734
          %v3740 = vlaneseq
          %v3741 = vshrl.u32 %v3740, 7
          %v3742 = vsub.s32 %v3416, %v3741
          %v3743 = vrot.slane %v3281, %v3742
          %v3744 = vsel %vm3421, %v3743, %v3739
          %v3745 = vlaneseq
          %v3746 = vshrl.u32 %v3745, 7
          %v3747 = vsub.s32 %v3423, %v3746
          %v3748 = vrot.slane %v3282, %v3747
          %v3749 = vsel %vm3428, %v3748, %v3744
          %v3750 = vlaneseq
          %v3751 = vshrl.u32 %v3750, 7
          %v3752 = vsub.s32 %v3430, %v3751
          %v3753 = vrot.slane %v3283, %v3752
          %v3754 = vsel %vm3435, %v3753, %v3749
          %v3755 = vlaneseq
          %v3756 = vshrl.u32 %v3755, 7
          %v3757 = vsub.s32 %v3437, %v3756
          %v3758 = vrot.slane %v3284, %v3757
          %v3759 = vsel %vm3442, %v3758, %v3754
          %v3760 = vlaneseq
          %v3761 = vshrl.u32 %v3760, 7
          %v3762 = vsub.s32 %v3334, %v3761
          %v3763 = vrot.slane %v3285, %v3762
          %v3764 = vlaneseq
          %v3765 = vshrl.u32 %v3764, 7
          %v3766 = vsub.s32 %v3339, %v3765
          %v3767 = vrot.slane %v3286, %v3766
          %v3768 = vsel %vm3344, %v3767, %v3763
          %v3769 = vlaneseq
          %v3770 = vshrl.u32 %v3769, 7
          %v3771 = vsub.s32 %v3346, %v3770
          %v3772 = vrot.slane %v3287, %v3771
          %v3773 = vsel %vm3351, %v3772, %v3768
          %v3774 = vlaneseq
          %v3775 = vshrl.u32 %v3774, 7
          %v3776 = vsub.s32 %v3353, %v3775
          %v3777 = vrot.slane %v3288, %v3776
          %v3778 = vsel %vm3358, %v3777, %v3773
          %v3779 = vlaneseq
          %v3780 = vshrl.u32 %v3779, 7
          %v3781 = vsub.s32 %v3360, %v3780
          %v3782 = vrot.slane %v3289, %v3781
          %v3783 = vsel %vm3365, %v3782, %v3778
          %v3784 = vlaneseq
          %v3785 = vshrl.u32 %v3784, 7
          %v3786 = vsub.s32 %v3367, %v3785
          %v3787 = vrot.slane %v3290, %v3786
          %v3788 = vsel %vm3372, %v3787, %v3783
          %v3789 = vlaneseq
          %v3790 = vshrl.u32 %v3789, 7
          %v3791 = vsub.s32 %v3374, %v3790
          %v3792 = vrot.slane %v3291, %v3791
          %v3793 = vsel %vm3379, %v3792, %v3788
          %v3794 = vlaneseq
          %v3795 = vshrl.u32 %v3794, 7
          %v3796 = vsub.s32 %v3381, %v3795
          %v3797 = vrot.slane %v3292, %v3796
          %v3798 = vsel %vm3386, %v3797, %v3793
          %v3799 = vlaneseq
          %v3800 = vshrl.u32 %v3799, 7
          %v3801 = vsub.s32 %v3388, %v3800
          %v3802 = vrot.slane %v3293, %v3801
          %v3803 = vsel %vm3393, %v3802, %v3798
          %v3804 = vlaneseq
          %v3805 = vshrl.u32 %v3804, 7
          %v3806 = vsub.s32 %v3395, %v3805
          %v3807 = vrot.slane %v3294, %v3806
          %v3808 = vsel %vm3400, %v3807, %v3803
          %v3809 = vlaneseq
          %v3810 = vshrl.u32 %v3809, 7
          %v3811 = vsub.s32 %v3402, %v3810
          %v3812 = vrot.slane %v3295, %v3811
          %v3813 = vsel %vm3407, %v3812, %v3808
          %v3814 = vlaneseq
          %v3815 = vshrl.u32 %v3814, 7
          %v3816 = vsub.s32 %v3409, %v3815
          %v3817 = vrot.slane %v3296, %v3816
          %v3818 = vsel %vm3414, %v3817, %v3813
          %v3819 = vlaneseq
          %v3820 = vshrl.u32 %v3819, 7
          %v3821 = vsub.s32 %v3416, %v3820
          %v3822 = vrot.slane %v3297, %v3821
          %v3823 = vsel %vm3421, %v3822, %v3818
          %v3824 = vlaneseq
          %v3825 = vshrl.u32 %v3824, 7
          %v3826 = vsub.s32 %v3423, %v3825
          %v3827 = vrot.slane %v3298, %v3826
          %v3828 = vsel %vm3428, %v3827, %v3823
          %v3829 = vlaneseq
          %v3830 = vshrl.u32 %v3829, 7
          %v3831 = vsub.s32 %v3430, %v3830
          %v3832 = vrot.slane %v3299, %v3831
          %v3833 = vsel %vm3435, %v3832, %v3828
          %v3834 = vlaneseq
          %v3835 = vshrl.u32 %v3834, 7
          %v3836 = vsub.s32 %v3437, %v3835
          %v3837 = vrot.slane %v3300, %v3836
          %v3838 = vsel %vm3442, %v3837, %v3833
          %v3839 = vlaneseq
          %v3840 = vshrl.u32 %v3839, 7
          %v3841 = vsub.s32 %v3334, %v3840
          %v3842 = vrot.slane %v3301, %v3841
          %v3843 = vlaneseq
          %v3844 = vshrl.u32 %v3843, 7
          %v3845 = vsub.s32 %v3339, %v3844
          %v3846 = vrot.slane %v3302, %v3845
          %v3847 = vsel %vm3344, %v3846, %v3842
          %v3848 = vlaneseq
          %v3849 = vshrl.u32 %v3848, 7
          %v3850 = vsub.s32 %v3346, %v3849
          %v3851 = vrot.slane %v3303, %v3850
          %v3852 = vsel %vm3351, %v3851, %v3847
          %v3853 = vlaneseq
          %v3854 = vshrl.u32 %v3853, 7
          %v3855 = vsub.s32 %v3353, %v3854
          %v3856 = vrot.slane %v3304, %v3855
          %v3857 = vsel %vm3358, %v3856, %v3852
          %v3858 = vlaneseq
          %v3859 = vshrl.u32 %v3858, 7
          %v3860 = vsub.s32 %v3360, %v3859
          %v3861 = vrot.slane %v3305, %v3860
          %v3862 = vsel %vm3365, %v3861, %v3857
          %v3863 = vlaneseq
          %v3864 = vshrl.u32 %v3863, 7
          %v3865 = vsub.s32 %v3367, %v3864
          %v3866 = vrot.slane %v3306, %v3865
          %v3867 = vsel %vm3372, %v3866, %v3862
          %v3868 = vlaneseq
          %v3869 = vshrl.u32 %v3868, 7
          %v3870 = vsub.s32 %v3374, %v3869
          %v3871 = vrot.slane %v3307, %v3870
          %v3872 = vsel %vm3379, %v3871, %v3867
          %v3873 = vlaneseq
          %v3874 = vshrl.u32 %v3873, 7
          %v3875 = vsub.s32 %v3381, %v3874
          %v3876 = vrot.slane %v3308, %v3875
          %v3877 = vsel %vm3386, %v3876, %v3872
          %v3878 = vlaneseq
          %v3879 = vshrl.u32 %v3878, 7
          %v3880 = vsub.s32 %v3388, %v3879
          %v3881 = vrot.slane %v3309, %v3880
          %v3882 = vsel %vm3393, %v3881, %v3877
          %v3883 = vlaneseq
          %v3884 = vshrl.u32 %v3883, 7
          %v3885 = vsub.s32 %v3395, %v3884
          %v3886 = vrot.slane %v3310, %v3885
          %v3887 = vsel %vm3400, %v3886, %v3882
          %v3888 = vlaneseq
          %v3889 = vshrl.u32 %v3888, 7
          %v3890 = vsub.s32 %v3402, %v3889
          %v3891 = vrot.slane %v3311, %v3890
          %v3892 = vsel %vm3407, %v3891, %v3887
          %v3893 = vlaneseq
          %v3894 = vshrl.u32 %v3893, 7
          %v3895 = vsub.s32 %v3409, %v3894
          %v3896 = vrot.slane %v3312, %v3895
          %v3897 = vsel %vm3414, %v3896, %v3892
          %v3898 = vlaneseq
          %v3899 = vshrl.u32 %v3898, 7
          %v3900 = vsub.s32 %v3416, %v3899
          %v3901 = vrot.slane %v3313, %v3900
          %v3902 = vsel %vm3421, %v3901, %v3897
          %v3903 = vlaneseq
          %v3904 = vshrl.u32 %v3903, 7
          %v3905 = vsub.s32 %v3423, %v3904
          %v3906 = vrot.slane %v3314, %v3905
          %v3907 = vsel %vm3428, %v3906, %v3902
          %v3908 = vlaneseq
          %v3909 = vshrl.u32 %v3908, 7
          %v3910 = vsub.s32 %v3430, %v3909
          %v3911 = vrot.slane %v3315, %v3910
          %v3912 = vsel %vm3435, %v3911, %v3907
          %v3913 = vlaneseq
          %v3914 = vshrl.u32 %v3913, 7
          %v3915 = vsub.s32 %v3437, %v3914
          %v3916 = vrot.slane %v3316, %v3915
          %v3917 = vsel %vm3442, %v3916, %v3912
          %v3918 = vlaneseq
          %v3919 = vshrl.u32 %v3918, 7
          %v3920 = vsub.s32 %v3334, %v3919
          %v3921 = vrot.slane %v3317, %v3920
          %v3922 = vlaneseq
          %v3923 = vshrl.u32 %v3922, 7
          %v3924 = vsub.s32 %v3339, %v3923
          %v3925 = vrot.slane %v3318, %v3924
          %v3926 = vsel %vm3344, %v3925, %v3921
          %v3927 = vlaneseq
          %v3928 = vshrl.u32 %v3927, 7
          %v3929 = vsub.s32 %v3346, %v3928
          %v3930 = vrot.slane %v3319, %v3929
          %v3931 = vsel %vm3351, %v3930, %v3926
          %v3932 = vlaneseq
          %v3933 = vshrl.u32 %v3932, 7
          %v3934 = vsub.s32 %v3353, %v3933
          %v3935 = vrot.slane %v3320, %v3934
          %v3936 = vsel %vm3358, %v3935, %v3931
          %v3937 = vlaneseq
          %v3938 = vshrl.u32 %v3937, 7
          %v3939 = vsub.s32 %v3360, %v3938
          %v3940 = vrot.slane %v3321, %v3939
          %v3941 = vsel %vm3365, %v3940, %v3936
          %v3942 = vlaneseq
          %v3943 = vshrl.u32 %v3942, 7
          %v3944 = vsub.s32 %v3367, %v3943
          %v3945 = vrot.slane %v3322, %v3944
          %v3946 = vsel %vm3372, %v3945, %v3941
          %v3947 = vlaneseq
          %v3948 = vshrl.u32 %v3947, 7
          %v3949 = vsub.s32 %v3374, %v3948
          %v3950 = vrot.slane %v3323, %v3949
          %v3951 = vsel %vm3379, %v3950, %v3946
          %v3952 = vlaneseq
          %v3953 = vshrl.u32 %v3952, 7
          %v3954 = vsub.s32 %v3381, %v3953
          %v3955 = vrot.slane %v3324, %v3954
          %v3956 = vsel %vm3386, %v3955, %v3951
          %v3957 = vlaneseq
          %v3958 = vshrl.u32 %v3957, 7
          %v3959 = vsub.s32 %v3388, %v3958
          %v3960 = vrot.slane %v3325, %v3959
          %v3961 = vsel %vm3393, %v3960, %v3956
          %v3962 = vlaneseq
          %v3963 = vshrl.u32 %v3962, 7
          %v3964 = vsub.s32 %v3395, %v3963
          %v3965 = vrot.slane %v3326, %v3964
          %v3966 = vsel %vm3400, %v3965, %v3961
          %v3967 = vlaneseq
          %v3968 = vshrl.u32 %v3967, 7
          %v3969 = vsub.s32 %v3402, %v3968
          %v3970 = vrot.slane %v3327, %v3969
          %v3971 = vsel %vm3407, %v3970, %v3966
          %v3972 = vlaneseq
          %v3973 = vshrl.u32 %v3972, 7
          %v3974 = vsub.s32 %v3409, %v3973
          %v3975 = vrot.slane %v3328, %v3974
          %v3976 = vsel %vm3414, %v3975, %v3971
          %v3977 = vlaneseq
          %v3978 = vshrl.u32 %v3977, 7
          %v3979 = vsub.s32 %v3416, %v3978
          %v3980 = vrot.slane %v3329, %v3979
          %v3981 = vsel %vm3421, %v3980, %v3976
          %v3982 = vlaneseq
          %v3983 = vshrl.u32 %v3982, 7
          %v3984 = vsub.s32 %v3423, %v3983
          %v3985 = vrot.slane %v3330, %v3984
          %v3986 = vsel %vm3428, %v3985, %v3981
          %v3987 = vlaneseq
          %v3988 = vshrl.u32 %v3987, 7
          %v3989 = vsub.s32 %v3430, %v3988
          %v3990 = vrot.slane %v3331, %v3989
          %v3991 = vsel %vm3435, %v3990, %v3986
          %v3992 = vlaneseq
          %v3993 = vshrl.u32 %v3992, 7
          %v3994 = vsub.s32 %v3437, %v3993
          %v3995 = vrot.slane %v3332, %v3994
          %v3996 = vsel %vm3442, %v3995, %v3991
          %vm3997 = vcmask 1041409
          %v3998 = vsel %vm3997, %v3759, %v3443
          %v3999 = vsel %vm3997, %v3838, %v3522
          %v4000 = vsel %vm3997, %v3917, %v3601
          %v4001 = vsel %vm3997, %v3996, %v3680
          %v4002 = vpack.c.b16 %v3998, %v3998
          %v4003 = vpack.c.b16 %v3999, %v3999
          %v4004 = vpack.c.b16 %v4000, %v4000
          %v4005 = vpack.c.b16 %v4001, %v4001
          %4010 = vmatprep.subr.bf16.mxu0 %v3014
          %4011 = vmatpush1.bf16.msra.mxu0 %v3013
          %4012 = vmatprep.subr.bf16.mxu0 %v3018
          %4013 = vmatpush1.bf16.msra.mxu0 %v3017
          %4014 = vmatprep.subr.bf16.mxu0 %v3022
          %4015 = vmatpush1.bf16.msra.mxu0 %v3021
          %4016 = vmatprep.subr.bf16.mxu0 %v3026
          %4017 = vmatpush1.bf16.msra.mxu0 %v3025
          %4018 = vmatprep.subr.bf16.mxu0 %v3030
          %4019 = vmatpush1.bf16.msra.mxu0 %v3029
          %4020 = vmatprep.subr.bf16.mxu0 %v3034
          %4021 = vmatpush1.bf16.msra.mxu0 %v3033
          %4022 = vmatprep.subr.bf16.mxu0 %v3038
          %4023 = vmatpush1.bf16.msra.mxu0 %v3037
          %4024 = vmatprep.subr.bf16.mxu0 %v3042
          %4025 = vmatpush1.bf16.msra.mxu0 %v3041
          %4026 = vmatprep.subr.bf16.mxu0 %v3046
          %4027 = vmatpush1.bf16.msra.mxu0 %v3045
          %4028 = vmatprep.subr.bf16.mxu0 %v3050
          %4029 = vmatpush1.bf16.msra.mxu0 %v3049
          %4030 = vmatprep.subr.bf16.mxu0 %v3054
          %4031 = vmatpush1.bf16.msra.mxu0 %v3053
          %4032 = vmatprep.subr.bf16.mxu0 %v3058
          %4033 = vmatpush1.bf16.msra.mxu0 %v3057
          %4034 = vmatprep.subr.bf16.mxu0 %v3062
          %4035 = vmatpush1.bf16.msra.mxu0 %v3061
          %4036 = vmatprep.subr.bf16.mxu0 %v3066
          %4037 = vmatpush1.bf16.msra.mxu0 %v3065
          %4038 = vmatprep.subr.bf16.mxu0 %v3070
          %4039 = vmatpush1.bf16.msra.mxu0 %v3069
          %4040 = vmatprep.subr.bf16.mxu0 %v3074
          %4041 = vmatpush1.bf16.msra.mxu0 %v3073
          %4042 = vmatprep.mubr.bf16.mxu0 %v4003
          %4043 = vmatmul.mubr.bf16.gmra.mrb[0].mxu0 %v4002
          %v4044 = vpop.f32.mrb[0].mxu0
          %v4045 = vadd.f32 0.0, %v4044
          %v4046 = vpop.f32.mrb[0].mxu0
          %v4047 = vadd.f32 0.0, %v4046
          %v4048 = vpop.f32.mrb[0].mxu0
          %v4049 = vpop.f32.mrb[0].mxu0
          %4050 = vdwg.mxu0
          %4051 = vmatprep.subr.bf16.mxu0 %v3078
          %4052 = vmatpush1.bf16.msra.mxu0 %v3077
          %4053 = vmatprep.subr.bf16.mxu0 %v3082
          %4054 = vmatpush1.bf16.msra.mxu0 %v3081
          %4055 = vmatprep.subr.bf16.mxu0 %v3086
          %4056 = vmatpush1.bf16.msra.mxu0 %v3085
          %4057 = vmatprep.subr.bf16.mxu0 %v3090
          %4058 = vmatpush1.bf16.msra.mxu0 %v3089
          %4059 = vmatprep.subr.bf16.mxu0 %v3094
          %4060 = vmatpush1.bf16.msra.mxu0 %v3093
          %4061 = vmatprep.subr.bf16.mxu0 %v3098
          %4062 = vmatpush1.bf16.msra.mxu0 %v3097
          %4063 = vmatprep.subr.bf16.mxu0 %v3102
          %4064 = vmatpush1.bf16.msra.mxu0 %v3101
          %4065 = vmatprep.subr.bf16.mxu0 %v3106
          %4066 = vmatpush1.bf16.msra.mxu0 %v3105
          %4067 = vmatprep.subr.bf16.mxu0 %v3110
          %4068 = vmatpush1.bf16.msra.mxu0 %v3109
          %4069 = vmatprep.subr.bf16.mxu0 %v3114
          %4070 = vmatpush1.bf16.msra.mxu0 %v3113
          %4071 = vmatprep.subr.bf16.mxu0 %v3118
          %4072 = vmatpush1.bf16.msra.mxu0 %v3117
          %4073 = vmatprep.subr.bf16.mxu0 %v3122
          %4074 = vmatpush1.bf16.msra.mxu0 %v3121
          %4075 = vmatprep.subr.bf16.mxu0 %v3126
          %4076 = vmatpush1.bf16.msra.mxu0 %v3125
          %4077 = vmatprep.subr.bf16.mxu0 %v3130
          %4078 = vmatpush1.bf16.msra.mxu0 %v3129
          %4079 = vmatprep.subr.bf16.mxu0 %v3134
          %4080 = vmatpush1.bf16.msra.mxu0 %v3133
          %4081 = vmatprep.subr.bf16.mxu0 %v3138
          %4082 = vmatpush1.bf16.msra.mxu0 %v3137
          %4083 = vmatprep.mubr.bf16.mxu0 %v4005
          %4084 = vmatmul.mubr.bf16.gmra.mrb[0].mxu0 %v4004
          %v4085 = vpop.f32.mrb[0].mxu0
          %v4086 = vadd.f32 %v4045, %v4085
          %v4087 = vpop.f32.mrb[0].mxu0
          %v4088 = vadd.f32 %v4047, %v4087
          %v4089 = vpop.f32.mrb[0].mxu0
          %v4090 = vpop.f32.mrb[0].mxu0
          %4091 = vdwg.mxu0
          %4092 = vmatprep.subr.bf16.mxu0 %v3016
          %4093 = vmatpush1.bf16.msra.mxu0 %v3015
          %4094 = vmatprep.subr.bf16.mxu0 %v3020
          %4095 = vmatpush1.bf16.msra.mxu0 %v3019
          %4096 = vmatprep.subr.bf16.mxu0 %v3024
          %4097 = vmatpush1.bf16.msra.mxu0 %v3023
          %4098 = vmatprep.subr.bf16.mxu0 %v3028
          %4099 = vmatpush1.bf16.msra.mxu0 %v3027
          %4100 = vmatprep.subr.bf16.mxu0 %v3032
          %4101 = vmatpush1.bf16.msra.mxu0 %v3031
          %4102 = vmatprep.subr.bf16.mxu0 %v3036
          %4103 = vmatpush1.bf16.msra.mxu0 %v3035
          %4104 = vmatprep.subr.bf16.mxu0 %v3040
          %4105 = vmatpush1.bf16.msra.mxu0 %v3039
          %4106 = vmatprep.subr.bf16.mxu0 %v3044
          %4107 = vmatpush1.bf16.msra.mxu0 %v3043
          %4108 = vmatprep.subr.bf16.mxu0 %v3048
          %4109 = vmatpush1.bf16.msra.mxu0 %v3047
          %4110 = vmatprep.subr.bf16.mxu0 %v3052
          %4111 = vmatpush1.bf16.msra.mxu0 %v3051
          %4112 = vmatprep.subr.bf16.mxu0 %v3056
          %4113 = vmatpush1.bf16.msra.mxu0 %v3055
          %4114 = vmatprep.subr.bf16.mxu0 %v3060
          %4115 = vmatpush1.bf16.msra.mxu0 %v3059
          %4116 = vmatprep.subr.bf16.mxu0 %v3064
          %4117 = vmatpush1.bf16.msra.mxu0 %v3063
          %4118 = vmatprep.subr.bf16.mxu0 %v3068
          %4119 = vmatpush1.bf16.msra.mxu0 %v3067
          %4120 = vmatprep.subr.bf16.mxu0 %v3072
          %4121 = vmatpush1.bf16.msra.mxu0 %v3071
          %4122 = vmatprep.subr.bf16.mxu0 %v3076
          %4123 = vmatpush1.bf16.msra.mxu0 %v3075
          %4124 = vmatprep.mubr.bf16.mxu0 %v4003
          %4125 = vmatmul.mubr.bf16.gmra.mrb[0].mxu0 %v4002
          %v4126 = vpop.f32.mrb[0].mxu0
          %v4127 = vadd.f32 0.0, %v4126
          %v4128 = vpop.f32.mrb[0].mxu0
          %v4129 = vadd.f32 0.0, %v4128
          %v4130 = vpop.f32.mrb[0].mxu0
          %v4131 = vpop.f32.mrb[0].mxu0
          %4132 = vdwg.mxu0
          %4133 = vmatprep.subr.bf16.mxu0 %v3080
          %4134 = vmatpush1.bf16.msra.mxu0 %v3079
          %4135 = vmatprep.subr.bf16.mxu0 %v3084
          %4136 = vmatpush1.bf16.msra.mxu0 %v3083
          %4137 = vmatprep.subr.bf16.mxu0 %v3088
          %4138 = vmatpush1.bf16.msra.mxu0 %v3087
          %4139 = vmatprep.subr.bf16.mxu0 %v3092
          %4140 = vmatpush1.bf16.msra.mxu0 %v3091
          %4141 = vmatprep.subr.bf16.mxu0 %v3096
          %4142 = vmatpush1.bf16.msra.mxu0 %v3095
          %4143 = vmatprep.subr.bf16.mxu0 %v3100
          %4144 = vmatpush1.bf16.msra.mxu0 %v3099
          %4145 = vmatprep.subr.bf16.mxu0 %v3104
          %4146 = vmatpush1.bf16.msra.mxu0 %v3103
          %4147 = vmatprep.subr.bf16.mxu0 %v3108
          %4148 = vmatpush1.bf16.msra.mxu0 %v3107
          %4149 = vmatprep.subr.bf16.mxu0 %v3112
          %4150 = vmatpush1.bf16.msra.mxu0 %v3111
          %4151 = vmatprep.subr.bf16.mxu0 %v3116
          %4152 = vmatpush1.bf16.msra.mxu0 %v3115
          %4153 = vmatprep.subr.bf16.mxu0 %v3120
          %4154 = vmatpush1.bf16.msra.mxu0 %v3119
          %4155 = vmatprep.subr.bf16.mxu0 %v3124
          %4156 = vmatpush1.bf16.msra.mxu0 %v3123
          %4157 = vmatprep.subr.bf16.mxu0 %v3128
          %4158 = vmatpush1.bf16.msra.mxu0 %v3127
          %4159 = vmatprep.subr.bf16.mxu0 %v3132
          %4160 = vmatpush1.bf16.msra.mxu0 %v3131
          %4161 = vmatprep.subr.bf16.mxu0 %v3136
          %4162 = vmatpush1.bf16.msra.mxu0 %v3135
          %4163 = vmatprep.subr.bf16.mxu0 %v3140
          %4164 = vmatpush1.bf16.msra.mxu0 %v3139
          %4165 = vmatprep.mubr.bf16.mxu0 %v4005
          %4166 = vmatmul.mubr.bf16.gmra.mrb[0].mxu0 %v4004
          %v4167 = vpop.f32.mrb[0].mxu0
          %v4168 = vadd.f32 %v4127, %v4167
          %v4169 = vpop.f32.mrb[0].mxu0
          %v4170 = vadd.f32 %v4129, %v4169
          %v4171 = vpop.f32.mrb[0].mxu0
          %v4172 = vpop.f32.mrb[0].mxu0
          %4173 = vdwg.mxu0
          %v4238 = vunpack.c.l.b16 %v2757
          %v4239 = vunpack.c.h.b16 %v2757
          %v4240 = vunpack.c.l.b16 %v2758
          %v4241 = vunpack.c.h.b16 %v2758
          %v4242 = vunpack.c.l.b16 %v2759
          %v4243 = vunpack.c.h.b16 %v2759
          %v4244 = vunpack.c.l.b16 %v2760
          %v4245 = vunpack.c.h.b16 %v2760
          %v4246 = vunpack.c.l.b16 %v2761
          %v4247 = vunpack.c.h.b16 %v2761
          %v4248 = vunpack.c.l.b16 %v2762
          %v4249 = vunpack.c.h.b16 %v2762
          %v4250 = vunpack.c.l.b16 %v2763
          %v4251 = vunpack.c.h.b16 %v2763
          %v4252 = vunpack.c.l.b16 %v2764
          %v4253 = vunpack.c.h.b16 %v2764
          %v4254 = vunpack.c.l.b16 %v2765
          %v4255 = vunpack.c.h.b16 %v2765
          %v4256 = vunpack.c.l.b16 %v2766
          %v4257 = vunpack.c.h.b16 %v2766
          %v4258 = vunpack.c.l.b16 %v2767
          %v4259 = vunpack.c.h.b16 %v2767
          %v4260 = vunpack.c.l.b16 %v2768
          %v4261 = vunpack.c.h.b16 %v2768
          %v4262 = vunpack.c.l.b16 %v2769
          %v4263 = vunpack.c.h.b16 %v2769
          %v4264 = vunpack.c.l.b16 %v2770
          %v4265 = vunpack.c.h.b16 %v2770
          %v4266 = vunpack.c.l.b16 %v2771
          %v4267 = vunpack.c.h.b16 %v2771
          %v4268 = vunpack.c.l.b16 %v2772
          %v4269 = vunpack.c.h.b16 %v2772
          %v4270 = vunpack.c.l.b16 %v2773
          %v4271 = vunpack.c.h.b16 %v2773
          %v4272 = vunpack.c.l.b16 %v2774
          %v4273 = vunpack.c.h.b16 %v2774
          %v4274 = vunpack.c.l.b16 %v2775
          %v4275 = vunpack.c.h.b16 %v2775
          %v4276 = vunpack.c.l.b16 %v2776
          %v4277 = vunpack.c.h.b16 %v2776
          %v4278 = vunpack.c.l.b16 %v2777
          %v4279 = vunpack.c.h.b16 %v2777
          %v4280 = vunpack.c.l.b16 %v2778
          %v4281 = vunpack.c.h.b16 %v2778
          %v4282 = vunpack.c.l.b16 %v2779
          %v4283 = vunpack.c.h.b16 %v2779
          %v4284 = vunpack.c.l.b16 %v2780
          %v4285 = vunpack.c.h.b16 %v2780
          %v4286 = vunpack.c.l.b16 %v2781
          %v4287 = vunpack.c.h.b16 %v2781
          %v4288 = vunpack.c.l.b16 %v2782
          %v4289 = vunpack.c.h.b16 %v2782
          %v4290 = vunpack.c.l.b16 %v2783
          %v4291 = vunpack.c.h.b16 %v2783
          %v4292 = vunpack.c.l.b16 %v2784
          %v4293 = vunpack.c.h.b16 %v2784
          %v4294 = vunpack.c.l.b16 %v2785
          %v4295 = vunpack.c.h.b16 %v2785
          %v4296 = vunpack.c.l.b16 %v2786
          %v4297 = vunpack.c.h.b16 %v2786
          %v4298 = vunpack.c.l.b16 %v2787
          %v4299 = vunpack.c.h.b16 %v2787
          %v4300 = vunpack.c.l.b16 %v2788
          %v4301 = vunpack.c.h.b16 %v2788
          %v4302 = vunpack.c.l.b16 %v2789
          %v4303 = vunpack.c.h.b16 %v2789
          %v4304 = vunpack.c.l.b16 %v2790
          %v4305 = vunpack.c.h.b16 %v2790
          %v4306 = vunpack.c.l.b16 %v2791
          %v4307 = vunpack.c.h.b16 %v2791
          %v4308 = vunpack.c.l.b16 %v2792
          %v4309 = vunpack.c.h.b16 %v2792
          %v4310 = vunpack.c.l.b16 %v2793
          %v4311 = vunpack.c.h.b16 %v2793
          %v4312 = vunpack.c.l.b16 %v2794
          %v4313 = vunpack.c.h.b16 %v2794
          %v4314 = vunpack.c.l.b16 %v2795
          %v4315 = vunpack.c.h.b16 %v2795
          %v4316 = vunpack.c.l.b16 %v2796
          %v4317 = vunpack.c.h.b16 %v2796
          %v4318 = vunpack.c.l.b16 %v2797
          %v4319 = vunpack.c.h.b16 %v2797
          %v4320 = vunpack.c.l.b16 %v2798
          %v4321 = vunpack.c.h.b16 %v2798
          %v4322 = vunpack.c.l.b16 %v2799
          %v4323 = vunpack.c.h.b16 %v2799
          %v4324 = vunpack.c.l.b16 %v2800
          %v4325 = vunpack.c.h.b16 %v2800
          %v4326 = vunpack.c.l.b16 %v2801
          %v4327 = vunpack.c.h.b16 %v2801
          %v4328 = vunpack.c.l.b16 %v2802
          %v4329 = vunpack.c.h.b16 %v2802
          %v4330 = vunpack.c.l.b16 %v2803
          %v4331 = vunpack.c.h.b16 %v2803
          %v4332 = vunpack.c.l.b16 %v2804
          %v4333 = vunpack.c.h.b16 %v2804
          %v4334 = vunpack.c.l.b16 %v2805
          %v4335 = vunpack.c.h.b16 %v2805
          %v4336 = vunpack.c.l.b16 %v2806
          %v4337 = vunpack.c.h.b16 %v2806
          %v4338 = vunpack.c.l.b16 %v2807
          %v4339 = vunpack.c.h.b16 %v2807
          %v4340 = vunpack.c.l.b16 %v2808
          %v4341 = vunpack.c.h.b16 %v2808
          %v4342 = vunpack.c.l.b16 %v2809
          %v4343 = vunpack.c.h.b16 %v2809
          %v4344 = vunpack.c.l.b16 %v2810
          %v4345 = vunpack.c.h.b16 %v2810
          %v4346 = vunpack.c.l.b16 %v2811
          %v4347 = vunpack.c.h.b16 %v2811
          %v4348 = vunpack.c.l.b16 %v2812
          %v4349 = vunpack.c.h.b16 %v2812
          %v4350 = vunpack.c.l.b16 %v2813
          %v4351 = vunpack.c.h.b16 %v2813
          %v4352 = vunpack.c.l.b16 %v2814
          %v4353 = vunpack.c.h.b16 %v2814
          %v4354 = vunpack.c.l.b16 %v2815
          %v4355 = vunpack.c.h.b16 %v2815
          %v4356 = vunpack.c.l.b16 %v2816
          %v4357 = vunpack.c.h.b16 %v2816
          %v4358 = vunpack.c.l.b16 %v2817
          %v4359 = vunpack.c.h.b16 %v2817
          %v4360 = vunpack.c.l.b16 %v2818
          %v4361 = vunpack.c.h.b16 %v2818
          %v4362 = vunpack.c.l.b16 %v2819
          %v4363 = vunpack.c.h.b16 %v2819
          %v4364 = vunpack.c.l.b16 %v2820
          %v4365 = vunpack.c.h.b16 %v2820
          %v4366 = vlaneseq
          %v4367 = vshrl.u32 %v4366, 7
          %v4368 = vsub.s32 %v3334, %v4367
          %v4369 = vrot.slane %v4238, %v4368
          %v4370 = vlaneseq
          %v4371 = vshrl.u32 %v4370, 7
          %v4372 = vsub.s32 %v3339, %v4371
          %v4373 = vrot.slane %v4239, %v4372
          %v4374 = vsel %vm3344, %v4373, %v4369
          %v4375 = vlaneseq
          %v4376 = vshrl.u32 %v4375, 7
          %v4377 = vsub.s32 %v3346, %v4376
          %v4378 = vrot.slane %v4240, %v4377
          %v4379 = vsel %vm3351, %v4378, %v4374
          %v4380 = vlaneseq
          %v4381 = vshrl.u32 %v4380, 7
          %v4382 = vsub.s32 %v3353, %v4381
          %v4383 = vrot.slane %v4241, %v4382
          %v4384 = vsel %vm3358, %v4383, %v4379
          %v4385 = vlaneseq
          %v4386 = vshrl.u32 %v4385, 7
          %v4387 = vsub.s32 %v3360, %v4386
          %v4388 = vrot.slane %v4242, %v4387
          %v4389 = vsel %vm3365, %v4388, %v4384
          %v4390 = vlaneseq
          %v4391 = vshrl.u32 %v4390, 7
          %v4392 = vsub.s32 %v3367, %v4391
          %v4393 = vrot.slane %v4243, %v4392
          %v4394 = vsel %vm3372, %v4393, %v4389
          %v4395 = vlaneseq
          %v4396 = vshrl.u32 %v4395, 7
          %v4397 = vsub.s32 %v3374, %v4396
          %v4398 = vrot.slane %v4244, %v4397
          %v4399 = vsel %vm3379, %v4398, %v4394
          %v4400 = vlaneseq
          %v4401 = vshrl.u32 %v4400, 7
          %v4402 = vsub.s32 %v3381, %v4401
          %v4403 = vrot.slane %v4245, %v4402
          %v4404 = vsel %vm3386, %v4403, %v4399
          %v4405 = vlaneseq
          %v4406 = vshrl.u32 %v4405, 7
          %v4407 = vsub.s32 %v3388, %v4406
          %v4408 = vrot.slane %v4246, %v4407
          %v4409 = vsel %vm3393, %v4408, %v4404
          %v4410 = vlaneseq
          %v4411 = vshrl.u32 %v4410, 7
          %v4412 = vsub.s32 %v3395, %v4411
          %v4413 = vrot.slane %v4247, %v4412
          %v4414 = vsel %vm3400, %v4413, %v4409
          %v4415 = vlaneseq
          %v4416 = vshrl.u32 %v4415, 7
          %v4417 = vsub.s32 %v3402, %v4416
          %v4418 = vrot.slane %v4248, %v4417
          %v4419 = vsel %vm3407, %v4418, %v4414
          %v4420 = vlaneseq
          %v4421 = vshrl.u32 %v4420, 7
          %v4422 = vsub.s32 %v3409, %v4421
          %v4423 = vrot.slane %v4249, %v4422
          %v4424 = vsel %vm3414, %v4423, %v4419
          %v4425 = vlaneseq
          %v4426 = vshrl.u32 %v4425, 7
          %v4427 = vsub.s32 %v3416, %v4426
          %v4428 = vrot.slane %v4250, %v4427
          %v4429 = vsel %vm3421, %v4428, %v4424
          %v4430 = vlaneseq
          %v4431 = vshrl.u32 %v4430, 7
          %v4432 = vsub.s32 %v3423, %v4431
          %v4433 = vrot.slane %v4251, %v4432
          %v4434 = vsel %vm3428, %v4433, %v4429
          %v4435 = vlaneseq
          %v4436 = vshrl.u32 %v4435, 7
          %v4437 = vsub.s32 %v3430, %v4436
          %v4438 = vrot.slane %v4252, %v4437
          %v4439 = vsel %vm3435, %v4438, %v4434
          %v4440 = vlaneseq
          %v4441 = vshrl.u32 %v4440, 7
          %v4442 = vsub.s32 %v3437, %v4441
          %v4443 = vrot.slane %v4253, %v4442
          %v4444 = vsel %vm3442, %v4443, %v4439
          %v4445 = vlaneseq
          %v4446 = vshrl.u32 %v4445, 7
          %v4447 = vsub.s32 %v3334, %v4446
          %v4448 = vrot.slane %v4254, %v4447
          %v4449 = vlaneseq
          %v4450 = vshrl.u32 %v4449, 7
          %v4451 = vsub.s32 %v3339, %v4450
          %v4452 = vrot.slane %v4255, %v4451
          %v4453 = vsel %vm3344, %v4452, %v4448
          %v4454 = vlaneseq
          %v4455 = vshrl.u32 %v4454, 7
          %v4456 = vsub.s32 %v3346, %v4455
          %v4457 = vrot.slane %v4256, %v4456
          %v4458 = vsel %vm3351, %v4457, %v4453
          %v4459 = vlaneseq
          %v4460 = vshrl.u32 %v4459, 7
          %v4461 = vsub.s32 %v3353, %v4460
          %v4462 = vrot.slane %v4257, %v4461
          %v4463 = vsel %vm3358, %v4462, %v4458
          %v4464 = vlaneseq
          %v4465 = vshrl.u32 %v4464, 7
          %v4466 = vsub.s32 %v3360, %v4465
          %v4467 = vrot.slane %v4258, %v4466
          %v4468 = vsel %vm3365, %v4467, %v4463
          %v4469 = vlaneseq
          %v4470 = vshrl.u32 %v4469, 7
          %v4471 = vsub.s32 %v3367, %v4470
          %v4472 = vrot.slane %v4259, %v4471
          %v4473 = vsel %vm3372, %v4472, %v4468
          %v4474 = vlaneseq
          %v4475 = vshrl.u32 %v4474, 7
          %v4476 = vsub.s32 %v3374, %v4475
          %v4477 = vrot.slane %v4260, %v4476
          %v4478 = vsel %vm3379, %v4477, %v4473
          %v4479 = vlaneseq
          %v4480 = vshrl.u32 %v4479, 7
          %v4481 = vsub.s32 %v3381, %v4480
          %v4482 = vrot.slane %v4261, %v4481
          %v4483 = vsel %vm3386, %v4482, %v4478
          %v4484 = vlaneseq
          %v4485 = vshrl.u32 %v4484, 7
          %v4486 = vsub.s32 %v3388, %v4485
          %v4487 = vrot.slane %v4262, %v4486
          %v4488 = vsel %vm3393, %v4487, %v4483
          %v4489 = vlaneseq
          %v4490 = vshrl.u32 %v4489, 7
          %v4491 = vsub.s32 %v3395, %v4490
          %v4492 = vrot.slane %v4263, %v4491
          %v4493 = vsel %vm3400, %v4492, %v4488
          %v4494 = vlaneseq
          %v4495 = vshrl.u32 %v4494, 7
          %v4496 = vsub.s32 %v3402, %v4495
          %v4497 = vrot.slane %v4264, %v4496
          %v4498 = vsel %vm3407, %v4497, %v4493
          %v4499 = vlaneseq
          %v4500 = vshrl.u32 %v4499, 7
          %v4501 = vsub.s32 %v3409, %v4500
          %v4502 = vrot.slane %v4265, %v4501
          %v4503 = vsel %vm3414, %v4502, %v4498
          %v4504 = vlaneseq
          %v4505 = vshrl.u32 %v4504, 7
          %v4506 = vsub.s32 %v3416, %v4505
          %v4507 = vrot.slane %v4266, %v4506
          %v4508 = vsel %vm3421, %v4507, %v4503
          %v4509 = vlaneseq
          %v4510 = vshrl.u32 %v4509, 7
          %v4511 = vsub.s32 %v3423, %v4510
          %v4512 = vrot.slane %v4267, %v4511
          %v4513 = vsel %vm3428, %v4512, %v4508
          %v4514 = vlaneseq
          %v4515 = vshrl.u32 %v4514, 7
          %v4516 = vsub.s32 %v3430, %v4515
          %v4517 = vrot.slane %v4268, %v4516
          %v4518 = vsel %vm3435, %v4517, %v4513
          %v4519 = vlaneseq
          %v4520 = vshrl.u32 %v4519, 7
          %v4521 = vsub.s32 %v3437, %v4520
          %v4522 = vrot.slane %v4269, %v4521
          %v4523 = vsel %vm3442, %v4522, %v4518
          %v4524 = vlaneseq
          %v4525 = vshrl.u32 %v4524, 7
          %v4526 = vsub.s32 %v3334, %v4525
          %v4527 = vrot.slane %v4270, %v4526
          %v4528 = vlaneseq
          %v4529 = vshrl.u32 %v4528, 7
          %v4530 = vsub.s32 %v3339, %v4529
          %v4531 = vrot.slane %v4271, %v4530
          %v4532 = vsel %vm3344, %v4531, %v4527
          %v4533 = vlaneseq
          %v4534 = vshrl.u32 %v4533, 7
          %v4535 = vsub.s32 %v3346, %v4534
          %v4536 = vrot.slane %v4272, %v4535
          %v4537 = vsel %vm3351, %v4536, %v4532
          %v4538 = vlaneseq
          %v4539 = vshrl.u32 %v4538, 7
          %v4540 = vsub.s32 %v3353, %v4539
          %v4541 = vrot.slane %v4273, %v4540
          %v4542 = vsel %vm3358, %v4541, %v4537
          %v4543 = vlaneseq
          %v4544 = vshrl.u32 %v4543, 7
          %v4545 = vsub.s32 %v3360, %v4544
          %v4546 = vrot.slane %v4274, %v4545
          %v4547 = vsel %vm3365, %v4546, %v4542
          %v4548 = vlaneseq
          %v4549 = vshrl.u32 %v4548, 7
          %v4550 = vsub.s32 %v3367, %v4549
          %v4551 = vrot.slane %v4275, %v4550
          %v4552 = vsel %vm3372, %v4551, %v4547
          %v4553 = vlaneseq
          %v4554 = vshrl.u32 %v4553, 7
          %v4555 = vsub.s32 %v3374, %v4554
          %v4556 = vrot.slane %v4276, %v4555
          %v4557 = vsel %vm3379, %v4556, %v4552
          %v4558 = vlaneseq
          %v4559 = vshrl.u32 %v4558, 7
          %v4560 = vsub.s32 %v3381, %v4559
          %v4561 = vrot.slane %v4277, %v4560
          %v4562 = vsel %vm3386, %v4561, %v4557
          %v4563 = vlaneseq
          %v4564 = vshrl.u32 %v4563, 7
          %v4565 = vsub.s32 %v3388, %v4564
          %v4566 = vrot.slane %v4278, %v4565
          %v4567 = vsel %vm3393, %v4566, %v4562
          %v4568 = vlaneseq
          %v4569 = vshrl.u32 %v4568, 7
          %v4570 = vsub.s32 %v3395, %v4569
          %v4571 = vrot.slane %v4279, %v4570
          %v4572 = vsel %vm3400, %v4571, %v4567
          %v4573 = vlaneseq
          %v4574 = vshrl.u32 %v4573, 7
          %v4575 = vsub.s32 %v3402, %v4574
          %v4576 = vrot.slane %v4280, %v4575
          %v4577 = vsel %vm3407, %v4576, %v4572
          %v4578 = vlaneseq
          %v4579 = vshrl.u32 %v4578, 7
          %v4580 = vsub.s32 %v3409, %v4579
          %v4581 = vrot.slane %v4281, %v4580
          %v4582 = vsel %vm3414, %v4581, %v4577
          %v4583 = vlaneseq
          %v4584 = vshrl.u32 %v4583, 7
          %v4585 = vsub.s32 %v3416, %v4584
          %v4586 = vrot.slane %v4282, %v4585
          %v4587 = vsel %vm3421, %v4586, %v4582
          %v4588 = vlaneseq
          %v4589 = vshrl.u32 %v4588, 7
          %v4590 = vsub.s32 %v3423, %v4589
          %v4591 = vrot.slane %v4283, %v4590
          %v4592 = vsel %vm3428, %v4591, %v4587
          %v4593 = vlaneseq
          %v4594 = vshrl.u32 %v4593, 7
          %v4595 = vsub.s32 %v3430, %v4594
          %v4596 = vrot.slane %v4284, %v4595
          %v4597 = vsel %vm3435, %v4596, %v4592
          %v4598 = vlaneseq
          %v4599 = vshrl.u32 %v4598, 7
          %v4600 = vsub.s32 %v3437, %v4599
          %v4601 = vrot.slane %v4285, %v4600
          %v4602 = vsel %vm3442, %v4601, %v4597
          %v4603 = vlaneseq
          %v4604 = vshrl.u32 %v4603, 7
          %v4605 = vsub.s32 %v3334, %v4604
          %v4606 = vrot.slane %v4286, %v4605
          %v4607 = vlaneseq
          %v4608 = vshrl.u32 %v4607, 7
          %v4609 = vsub.s32 %v3339, %v4608
          %v4610 = vrot.slane %v4287, %v4609
          %v4611 = vsel %vm3344, %v4610, %v4606
          %v4612 = vlaneseq
          %v4613 = vshrl.u32 %v4612, 7
          %v4614 = vsub.s32 %v3346, %v4613
          %v4615 = vrot.slane %v4288, %v4614
          %v4616 = vsel %vm3351, %v4615, %v4611
          %v4617 = vlaneseq
          %v4618 = vshrl.u32 %v4617, 7
          %v4619 = vsub.s32 %v3353, %v4618
          %v4620 = vrot.slane %v4289, %v4619
          %v4621 = vsel %vm3358, %v4620, %v4616
          %v4622 = vlaneseq
          %v4623 = vshrl.u32 %v4622, 7
          %v4624 = vsub.s32 %v3360, %v4623
          %v4625 = vrot.slane %v4290, %v4624
          %v4626 = vsel %vm3365, %v4625, %v4621
          %v4627 = vlaneseq
          %v4628 = vshrl.u32 %v4627, 7
          %v4629 = vsub.s32 %v3367, %v4628
          %v4630 = vrot.slane %v4291, %v4629
          %v4631 = vsel %vm3372, %v4630, %v4626
          %v4632 = vlaneseq
          %v4633 = vshrl.u32 %v4632, 7
          %v4634 = vsub.s32 %v3374, %v4633
          %v4635 = vrot.slane %v4292, %v4634
          %v4636 = vsel %vm3379, %v4635, %v4631
          %v4637 = vlaneseq
          %v4638 = vshrl.u32 %v4637, 7
          %v4639 = vsub.s32 %v3381, %v4638
          %v4640 = vrot.slane %v4293, %v4639
          %v4641 = vsel %vm3386, %v4640, %v4636
          %v4642 = vlaneseq
          %v4643 = vshrl.u32 %v4642, 7
          %v4644 = vsub.s32 %v3388, %v4643
          %v4645 = vrot.slane %v4294, %v4644
          %v4646 = vsel %vm3393, %v4645, %v4641
          %v4647 = vlaneseq
          %v4648 = vshrl.u32 %v4647, 7
          %v4649 = vsub.s32 %v3395, %v4648
          %v4650 = vrot.slane %v4295, %v4649
          %v4651 = vsel %vm3400, %v4650, %v4646
          %v4652 = vlaneseq
          %v4653 = vshrl.u32 %v4652, 7
          %v4654 = vsub.s32 %v3402, %v4653
          %v4655 = vrot.slane %v4296, %v4654
          %v4656 = vsel %vm3407, %v4655, %v4651
          %v4657 = vlaneseq
          %v4658 = vshrl.u32 %v4657, 7
          %v4659 = vsub.s32 %v3409, %v4658
          %v4660 = vrot.slane %v4297, %v4659
          %v4661 = vsel %vm3414, %v4660, %v4656
          %v4662 = vlaneseq
          %v4663 = vshrl.u32 %v4662, 7
          %v4664 = vsub.s32 %v3416, %v4663
          %v4665 = vrot.slane %v4298, %v4664
          %v4666 = vsel %vm3421, %v4665, %v4661
          %v4667 = vlaneseq
          %v4668 = vshrl.u32 %v4667, 7
          %v4669 = vsub.s32 %v3423, %v4668
          %v4670 = vrot.slane %v4299, %v4669
          %v4671 = vsel %vm3428, %v4670, %v4666
          %v4672 = vlaneseq
          %v4673 = vshrl.u32 %v4672, 7
          %v4674 = vsub.s32 %v3430, %v4673
          %v4675 = vrot.slane %v4300, %v4674
          %v4676 = vsel %vm3435, %v4675, %v4671
          %v4677 = vlaneseq
          %v4678 = vshrl.u32 %v4677, 7
          %v4679 = vsub.s32 %v3437, %v4678
          %v4680 = vrot.slane %v4301, %v4679
          %v4681 = vsel %vm3442, %v4680, %v4676
          %v4682 = vlaneseq
          %v4683 = vshrl.u32 %v4682, 7
          %v4684 = vsub.s32 %v3334, %v4683
          %v4685 = vrot.slane %v4302, %v4684
          %v4686 = vlaneseq
          %v4687 = vshrl.u32 %v4686, 7
          %v4688 = vsub.s32 %v3339, %v4687
          %v4689 = vrot.slane %v4303, %v4688
          %v4690 = vsel %vm3344, %v4689, %v4685
          %v4691 = vlaneseq
          %v4692 = vshrl.u32 %v4691, 7
          %v4693 = vsub.s32 %v3346, %v4692
          %v4694 = vrot.slane %v4304, %v4693
          %v4695 = vsel %vm3351, %v4694, %v4690
          %v4696 = vlaneseq
          %v4697 = vshrl.u32 %v4696, 7
          %v4698 = vsub.s32 %v3353, %v4697
          %v4699 = vrot.slane %v4305, %v4698
          %v4700 = vsel %vm3358, %v4699, %v4695
          %v4701 = vlaneseq
          %v4702 = vshrl.u32 %v4701, 7
          %v4703 = vsub.s32 %v3360, %v4702
          %v4704 = vrot.slane %v4306, %v4703
          %v4705 = vsel %vm3365, %v4704, %v4700
          %v4706 = vlaneseq
          %v4707 = vshrl.u32 %v4706, 7
          %v4708 = vsub.s32 %v3367, %v4707
          %v4709 = vrot.slane %v4307, %v4708
          %v4710 = vsel %vm3372, %v4709, %v4705
          %v4711 = vlaneseq
          %v4712 = vshrl.u32 %v4711, 7
          %v4713 = vsub.s32 %v3374, %v4712
          %v4714 = vrot.slane %v4308, %v4713
          %v4715 = vsel %vm3379, %v4714, %v4710
          %v4716 = vlaneseq
          %v4717 = vshrl.u32 %v4716, 7
          %v4718 = vsub.s32 %v3381, %v4717
          %v4719 = vrot.slane %v4309, %v4718
          %v4720 = vsel %vm3386, %v4719, %v4715
          %v4721 = vlaneseq
          %v4722 = vshrl.u32 %v4721, 7
          %v4723 = vsub.s32 %v3388, %v4722
          %v4724 = vrot.slane %v4310, %v4723
          %v4725 = vsel %vm3393, %v4724, %v4720
          %v4726 = vlaneseq
          %v4727 = vshrl.u32 %v4726, 7
          %v4728 = vsub.s32 %v3395, %v4727
          %v4729 = vrot.slane %v4311, %v4728
          %v4730 = vsel %vm3400, %v4729, %v4725
          %v4731 = vlaneseq
          %v4732 = vshrl.u32 %v4731, 7
          %v4733 = vsub.s32 %v3402, %v4732
          %v4734 = vrot.slane %v4312, %v4733
          %v4735 = vsel %vm3407, %v4734, %v4730
          %v4736 = vlaneseq
          %v4737 = vshrl.u32 %v4736, 7
          %v4738 = vsub.s32 %v3409, %v4737
          %v4739 = vrot.slane %v4313, %v4738
          %v4740 = vsel %vm3414, %v4739, %v4735
          %v4741 = vlaneseq
          %v4742 = vshrl.u32 %v4741, 7
          %v4743 = vsub.s32 %v3416, %v4742
          %v4744 = vrot.slane %v4314, %v4743
          %v4745 = vsel %vm3421, %v4744, %v4740
          %v4746 = vlaneseq
          %v4747 = vshrl.u32 %v4746, 7
          %v4748 = vsub.s32 %v3423, %v4747
          %v4749 = vrot.slane %v4315, %v4748
          %v4750 = vsel %vm3428, %v4749, %v4745
          %v4751 = vlaneseq
          %v4752 = vshrl.u32 %v4751, 7
          %v4753 = vsub.s32 %v3430, %v4752
          %v4754 = vrot.slane %v4316, %v4753
          %v4755 = vsel %vm3435, %v4754, %v4750
          %v4756 = vlaneseq
          %v4757 = vshrl.u32 %v4756, 7
          %v4758 = vsub.s32 %v3437, %v4757
          %v4759 = vrot.slane %v4317, %v4758
          %v4760 = vsel %vm3442, %v4759, %v4755
          %v4761 = vlaneseq
          %v4762 = vshrl.u32 %v4761, 7
          %v4763 = vsub.s32 %v3334, %v4762
          %v4764 = vrot.slane %v4318, %v4763
          %v4765 = vlaneseq
          %v4766 = vshrl.u32 %v4765, 7
          %v4767 = vsub.s32 %v3339, %v4766
          %v4768 = vrot.slane %v4319, %v4767
          %v4769 = vsel %vm3344, %v4768, %v4764
          %v4770 = vlaneseq
          %v4771 = vshrl.u32 %v4770, 7
          %v4772 = vsub.s32 %v3346, %v4771
          %v4773 = vrot.slane %v4320, %v4772
          %v4774 = vsel %vm3351, %v4773, %v4769
          %v4775 = vlaneseq
          %v4776 = vshrl.u32 %v4775, 7
          %v4777 = vsub.s32 %v3353, %v4776
          %v4778 = vrot.slane %v4321, %v4777
          %v4779 = vsel %vm3358, %v4778, %v4774
          %v4780 = vlaneseq
          %v4781 = vshrl.u32 %v4780, 7
          %v4782 = vsub.s32 %v3360, %v4781
          %v4783 = vrot.slane %v4322, %v4782
          %v4784 = vsel %vm3365, %v4783, %v4779
          %v4785 = vlaneseq
          %v4786 = vshrl.u32 %v4785, 7
          %v4787 = vsub.s32 %v3367, %v4786
          %v4788 = vrot.slane %v4323, %v4787
          %v4789 = vsel %vm3372, %v4788, %v4784
          %v4790 = vlaneseq
          %v4791 = vshrl.u32 %v4790, 7
          %v4792 = vsub.s32 %v3374, %v4791
          %v4793 = vrot.slane %v4324, %v4792
          %v4794 = vsel %vm3379, %v4793, %v4789
          %v4795 = vlaneseq
          %v4796 = vshrl.u32 %v4795, 7
          %v4797 = vsub.s32 %v3381, %v4796
          %v4798 = vrot.slane %v4325, %v4797
          %v4799 = vsel %vm3386, %v4798, %v4794
          %v4800 = vlaneseq
          %v4801 = vshrl.u32 %v4800, 7
          %v4802 = vsub.s32 %v3388, %v4801
          %v4803 = vrot.slane %v4326, %v4802
          %v4804 = vsel %vm3393, %v4803, %v4799
          %v4805 = vlaneseq
          %v4806 = vshrl.u32 %v4805, 7
          %v4807 = vsub.s32 %v3395, %v4806
          %v4808 = vrot.slane %v4327, %v4807
          %v4809 = vsel %vm3400, %v4808, %v4804
          %v4810 = vlaneseq
          %v4811 = vshrl.u32 %v4810, 7
          %v4812 = vsub.s32 %v3402, %v4811
          %v4813 = vrot.slane %v4328, %v4812
          %v4814 = vsel %vm3407, %v4813, %v4809
          %v4815 = vlaneseq
          %v4816 = vshrl.u32 %v4815, 7
          %v4817 = vsub.s32 %v3409, %v4816
          %v4818 = vrot.slane %v4329, %v4817
          %v4819 = vsel %vm3414, %v4818, %v4814
          %v4820 = vlaneseq
          %v4821 = vshrl.u32 %v4820, 7
          %v4822 = vsub.s32 %v3416, %v4821
          %v4823 = vrot.slane %v4330, %v4822
          %v4824 = vsel %vm3421, %v4823, %v4819
          %v4825 = vlaneseq
          %v4826 = vshrl.u32 %v4825, 7
          %v4827 = vsub.s32 %v3423, %v4826
          %v4828 = vrot.slane %v4331, %v4827
          %v4829 = vsel %vm3428, %v4828, %v4824
          %v4830 = vlaneseq
          %v4831 = vshrl.u32 %v4830, 7
          %v4832 = vsub.s32 %v3430, %v4831
          %v4833 = vrot.slane %v4332, %v4832
          %v4834 = vsel %vm3435, %v4833, %v4829
          %v4835 = vlaneseq
          %v4836 = vshrl.u32 %v4835, 7
          %v4837 = vsub.s32 %v3437, %v4836
          %v4838 = vrot.slane %v4333, %v4837
          %v4839 = vsel %vm3442, %v4838, %v4834
          %v4840 = vlaneseq
          %v4841 = vshrl.u32 %v4840, 7
          %v4842 = vsub.s32 %v3334, %v4841
          %v4843 = vrot.slane %v4334, %v4842
          %v4844 = vlaneseq
          %v4845 = vshrl.u32 %v4844, 7
          %v4846 = vsub.s32 %v3339, %v4845
          %v4847 = vrot.slane %v4335, %v4846
          %v4848 = vsel %vm3344, %v4847, %v4843
          %v4849 = vlaneseq
          %v4850 = vshrl.u32 %v4849, 7
          %v4851 = vsub.s32 %v3346, %v4850
          %v4852 = vrot.slane %v4336, %v4851
          %v4853 = vsel %vm3351, %v4852, %v4848
          %v4854 = vlaneseq
          %v4855 = vshrl.u32 %v4854, 7
          %v4856 = vsub.s32 %v3353, %v4855
          %v4857 = vrot.slane %v4337, %v4856
          %v4858 = vsel %vm3358, %v4857, %v4853
          %v4859 = vlaneseq
          %v4860 = vshrl.u32 %v4859, 7
          %v4861 = vsub.s32 %v3360, %v4860
          %v4862 = vrot.slane %v4338, %v4861
          %v4863 = vsel %vm3365, %v4862, %v4858
          %v4864 = vlaneseq
          %v4865 = vshrl.u32 %v4864, 7
          %v4866 = vsub.s32 %v3367, %v4865
          %v4867 = vrot.slane %v4339, %v4866
          %v4868 = vsel %vm3372, %v4867, %v4863
          %v4869 = vlaneseq
          %v4870 = vshrl.u32 %v4869, 7
          %v4871 = vsub.s32 %v3374, %v4870
          %v4872 = vrot.slane %v4340, %v4871
          %v4873 = vsel %vm3379, %v4872, %v4868
          %v4874 = vlaneseq
          %v4875 = vshrl.u32 %v4874, 7
          %v4876 = vsub.s32 %v3381, %v4875
          %v4877 = vrot.slane %v4341, %v4876
          %v4878 = vsel %vm3386, %v4877, %v4873
          %v4879 = vlaneseq
          %v4880 = vshrl.u32 %v4879, 7
          %v4881 = vsub.s32 %v3388, %v4880
          %v4882 = vrot.slane %v4342, %v4881
          %v4883 = vsel %vm3393, %v4882, %v4878
          %v4884 = vlaneseq
          %v4885 = vshrl.u32 %v4884, 7
          %v4886 = vsub.s32 %v3395, %v4885
          %v4887 = vrot.slane %v4343, %v4886
          %v4888 = vsel %vm3400, %v4887, %v4883
          %v4889 = vlaneseq
          %v4890 = vshrl.u32 %v4889, 7
          %v4891 = vsub.s32 %v3402, %v4890
          %v4892 = vrot.slane %v4344, %v4891
          %v4893 = vsel %vm3407, %v4892, %v4888
          %v4894 = vlaneseq
          %v4895 = vshrl.u32 %v4894, 7
          %v4896 = vsub.s32 %v3409, %v4895
          %v4897 = vrot.slane %v4345, %v4896
          %v4898 = vsel %vm3414, %v4897, %v4893
          %v4899 = vlaneseq
          %v4900 = vshrl.u32 %v4899, 7
          %v4901 = vsub.s32 %v3416, %v4900
          %v4902 = vrot.slane %v4346, %v4901
          %v4903 = vsel %vm3421, %v4902, %v4898
          %v4904 = vlaneseq
          %v4905 = vshrl.u32 %v4904, 7
          %v4906 = vsub.s32 %v3423, %v4905
          %v4907 = vrot.slane %v4347, %v4906
          %v4908 = vsel %vm3428, %v4907, %v4903
          %v4909 = vlaneseq
          %v4910 = vshrl.u32 %v4909, 7
          %v4911 = vsub.s32 %v3430, %v4910
          %v4912 = vrot.slane %v4348, %v4911
          %v4913 = vsel %vm3435, %v4912, %v4908
          %v4914 = vlaneseq
          %v4915 = vshrl.u32 %v4914, 7
          %v4916 = vsub.s32 %v3437, %v4915
          %v4917 = vrot.slane %v4349, %v4916
          %v4918 = vsel %vm3442, %v4917, %v4913
          %v4919 = vlaneseq
          %v4920 = vshrl.u32 %v4919, 7
          %v4921 = vsub.s32 %v3334, %v4920
          %v4922 = vrot.slane %v4350, %v4921
          %v4923 = vlaneseq
          %v4924 = vshrl.u32 %v4923, 7
          %v4925 = vsub.s32 %v3339, %v4924
          %v4926 = vrot.slane %v4351, %v4925
          %v4927 = vsel %vm3344, %v4926, %v4922
          %v4928 = vlaneseq
          %v4929 = vshrl.u32 %v4928, 7
          %v4930 = vsub.s32 %v3346, %v4929
          %v4931 = vrot.slane %v4352, %v4930
          %v4932 = vsel %vm3351, %v4931, %v4927
          %v4933 = vlaneseq
          %v4934 = vshrl.u32 %v4933, 7
          %v4935 = vsub.s32 %v3353, %v4934
          %v4936 = vrot.slane %v4353, %v4935
          %v4937 = vsel %vm3358, %v4936, %v4932
          %v4938 = vlaneseq
          %v4939 = vshrl.u32 %v4938, 7
          %v4940 = vsub.s32 %v3360, %v4939
          %v4941 = vrot.slane %v4354, %v4940
          %v4942 = vsel %vm3365, %v4941, %v4937
          %v4943 = vlaneseq
          %v4944 = vshrl.u32 %v4943, 7
          %v4945 = vsub.s32 %v3367, %v4944
          %v4946 = vrot.slane %v4355, %v4945
          %v4947 = vsel %vm3372, %v4946, %v4942
          %v4948 = vlaneseq
          %v4949 = vshrl.u32 %v4948, 7
          %v4950 = vsub.s32 %v3374, %v4949
          %v4951 = vrot.slane %v4356, %v4950
          %v4952 = vsel %vm3379, %v4951, %v4947
          %v4953 = vlaneseq
          %v4954 = vshrl.u32 %v4953, 7
          %v4955 = vsub.s32 %v3381, %v4954
          %v4956 = vrot.slane %v4357, %v4955
          %v4957 = vsel %vm3386, %v4956, %v4952
          %v4958 = vlaneseq
          %v4959 = vshrl.u32 %v4958, 7
          %v4960 = vsub.s32 %v3388, %v4959
          %v4961 = vrot.slane %v4358, %v4960
          %v4962 = vsel %vm3393, %v4961, %v4957
          %v4963 = vlaneseq
          %v4964 = vshrl.u32 %v4963, 7
          %v4965 = vsub.s32 %v3395, %v4964
          %v4966 = vrot.slane %v4359, %v4965
          %v4967 = vsel %vm3400, %v4966, %v4962
          %v4968 = vlaneseq
          %v4969 = vshrl.u32 %v4968, 7
          %v4970 = vsub.s32 %v3402, %v4969
          %v4971 = vrot.slane %v4360, %v4970
          %v4972 = vsel %vm3407, %v4971, %v4967
          %v4973 = vlaneseq
          %v4974 = vshrl.u32 %v4973, 7
          %v4975 = vsub.s32 %v3409, %v4974
          %v4976 = vrot.slane %v4361, %v4975
          %v4977 = vsel %vm3414, %v4976, %v4972
          %v4978 = vlaneseq
          %v4979 = vshrl.u32 %v4978, 7
          %v4980 = vsub.s32 %v3416, %v4979
          %v4981 = vrot.slane %v4362, %v4980
          %v4982 = vsel %vm3421, %v4981, %v4977
          %v4983 = vlaneseq
          %v4984 = vshrl.u32 %v4983, 7
          %v4985 = vsub.s32 %v3423, %v4984
          %v4986 = vrot.slane %v4363, %v4985
          %v4987 = vsel %vm3428, %v4986, %v4982
          %v4988 = vlaneseq
          %v4989 = vshrl.u32 %v4988, 7
          %v4990 = vsub.s32 %v3430, %v4989
          %v4991 = vrot.slane %v4364, %v4990
          %v4992 = vsel %vm3435, %v4991, %v4987
          %v4993 = vlaneseq
          %v4994 = vshrl.u32 %v4993, 7
          %v4995 = vsub.s32 %v3437, %v4994
          %v4996 = vrot.slane %v4365, %v4995
          %v4997 = vsel %vm3442, %v4996, %v4992
          %v4998 = vsel %vm3997, %v4760, %v4444
          %v4999 = vsel %vm3997, %v4839, %v4523
          %v5000 = vsel %vm3997, %v4918, %v4602
          %v5001 = vsel %vm3997, %v4997, %v4681
          %v5002 = vpack.c.b16 %v4998, %v4998
          %v5003 = vpack.c.b16 %v4999, %v4999
          %v5004 = vpack.c.b16 %v5000, %v5000
          %v5005 = vpack.c.b16 %v5001, %v5001
          %5010 = vmatprep.subr.bf16.mxu0 %v2822
          %5011 = vmatpush1.bf16.msra.mxu0 %v2821
          %5012 = vmatprep.subr.bf16.mxu0 %v2826
          %5013 = vmatpush1.bf16.msra.mxu0 %v2825
          %5014 = vmatprep.subr.bf16.mxu0 %v2830
          %5015 = vmatpush1.bf16.msra.mxu0 %v2829
          %5016 = vmatprep.subr.bf16.mxu0 %v2834
          %5017 = vmatpush1.bf16.msra.mxu0 %v2833
          %5018 = vmatprep.subr.bf16.mxu0 %v2838
          %5019 = vmatpush1.bf16.msra.mxu0 %v2837
          %5020 = vmatprep.subr.bf16.mxu0 %v2842
          %5021 = vmatpush1.bf16.msra.mxu0 %v2841
          %5022 = vmatprep.subr.bf16.mxu0 %v2846
          %5023 = vmatpush1.bf16.msra.mxu0 %v2845
          %5024 = vmatprep.subr.bf16.mxu0 %v2850
          %5025 = vmatpush1.bf16.msra.mxu0 %v2849
          %5026 = vmatprep.subr.bf16.mxu0 %v2854
          %5027 = vmatpush1.bf16.msra.mxu0 %v2853
          %5028 = vmatprep.subr.bf16.mxu0 %v2858
          %5029 = vmatpush1.bf16.msra.mxu0 %v2857
          %5030 = vmatprep.subr.bf16.mxu0 %v2862
          %5031 = vmatpush1.bf16.msra.mxu0 %v2861
          %5032 = vmatprep.subr.bf16.mxu0 %v2866
          %5033 = vmatpush1.bf16.msra.mxu0 %v2865
          %5034 = vmatprep.subr.bf16.mxu0 %v2870
          %5035 = vmatpush1.bf16.msra.mxu0 %v2869
          %5036 = vmatprep.subr.bf16.mxu0 %v2874
          %5037 = vmatpush1.bf16.msra.mxu0 %v2873
          %5038 = vmatprep.subr.bf16.mxu0 %v2878
          %5039 = vmatpush1.bf16.msra.mxu0 %v2877
          %5040 = vmatprep.subr.bf16.mxu0 %v2882
          %5041 = vmatpush1.bf16.msra.mxu0 %v2881
          %5042 = vmatprep.mubr.bf16.mxu0 %v5003
          %5043 = vmatmul.mubr.bf16.gmra.mrb[0].mxu0 %v5002
          %v5044 = vpop.f32.mrb[0].mxu0
          %v5045 = vadd.f32 %v4086, %v5044
          %v5046 = vpop.f32.mrb[0].mxu0
          %v5047 = vadd.f32 %v4088, %v5046
          %v5048 = vpop.f32.mrb[0].mxu0
          %v5049 = vpop.f32.mrb[0].mxu0
          %5050 = vdwg.mxu0
          %5051 = vmatprep.subr.bf16.mxu0 %v2886
          %5052 = vmatpush1.bf16.msra.mxu0 %v2885
          %5053 = vmatprep.subr.bf16.mxu0 %v2890
          %5054 = vmatpush1.bf16.msra.mxu0 %v2889
          %5055 = vmatprep.subr.bf16.mxu0 %v2894
          %5056 = vmatpush1.bf16.msra.mxu0 %v2893
          %5057 = vmatprep.subr.bf16.mxu0 %v2898
          %5058 = vmatpush1.bf16.msra.mxu0 %v2897
          %5059 = vmatprep.subr.bf16.mxu0 %v2902
          %5060 = vmatpush1.bf16.msra.mxu0 %v2901
          %5061 = vmatprep.subr.bf16.mxu0 %v2906
          %5062 = vmatpush1.bf16.msra.mxu0 %v2905
          %5063 = vmatprep.subr.bf16.mxu0 %v2910
          %5064 = vmatpush1.bf16.msra.mxu0 %v2909
          %5065 = vmatprep.subr.bf16.mxu0 %v2914
          %5066 = vmatpush1.bf16.msra.mxu0 %v2913
          %5067 = vmatprep.subr.bf16.mxu0 %v2918
          %5068 = vmatpush1.bf16.msra.mxu0 %v2917
          %5069 = vmatprep.subr.bf16.mxu0 %v2922
          %5070 = vmatpush1.bf16.msra.mxu0 %v2921
          %5071 = vmatprep.subr.bf16.mxu0 %v2926
          %5072 = vmatpush1.bf16.msra.mxu0 %v2925
          %5073 = vmatprep.subr.bf16.mxu0 %v2930
          %5074 = vmatpush1.bf16.msra.mxu0 %v2929
          %5075 = vmatprep.subr.bf16.mxu0 %v2934
          %5076 = vmatpush1.bf16.msra.mxu0 %v2933
          %5077 = vmatprep.subr.bf16.mxu0 %v2938
          %5078 = vmatpush1.bf16.msra.mxu0 %v2937
          %5079 = vmatprep.subr.bf16.mxu0 %v2942
          %5080 = vmatpush1.bf16.msra.mxu0 %v2941
          %5081 = vmatprep.subr.bf16.mxu0 %v2946
          %5082 = vmatpush1.bf16.msra.mxu0 %v2945
          %5083 = vmatprep.mubr.bf16.mxu0 %v5005
          %5084 = vmatmul.mubr.bf16.gmra.mrb[0].mxu0 %v5004
          %v5085 = vpop.f32.mrb[0].mxu0
          %v5086 = vadd.f32 %v5045, %v5085
          %v5087 = vpop.f32.mrb[0].mxu0
          %v5088 = vadd.f32 %v5047, %v5087
          %v5089 = vpop.f32.mrb[0].mxu0
          %v5090 = vpop.f32.mrb[0].mxu0
          %5091 = vdwg.mxu0
          %5092 = vmatprep.subr.bf16.mxu0 %v2824
          %5093 = vmatpush1.bf16.msra.mxu0 %v2823
          %5094 = vmatprep.subr.bf16.mxu0 %v2828
          %5095 = vmatpush1.bf16.msra.mxu0 %v2827
          %5096 = vmatprep.subr.bf16.mxu0 %v2832
          %5097 = vmatpush1.bf16.msra.mxu0 %v2831
          %5098 = vmatprep.subr.bf16.mxu0 %v2836
          %5099 = vmatpush1.bf16.msra.mxu0 %v2835
          %5100 = vmatprep.subr.bf16.mxu0 %v2840
          %5101 = vmatpush1.bf16.msra.mxu0 %v2839
          %5102 = vmatprep.subr.bf16.mxu0 %v2844
          %5103 = vmatpush1.bf16.msra.mxu0 %v2843
          %5104 = vmatprep.subr.bf16.mxu0 %v2848
          %5105 = vmatpush1.bf16.msra.mxu0 %v2847
          %5106 = vmatprep.subr.bf16.mxu0 %v2852
          %5107 = vmatpush1.bf16.msra.mxu0 %v2851
          %5108 = vmatprep.subr.bf16.mxu0 %v2856
          %5109 = vmatpush1.bf16.msra.mxu0 %v2855
          %5110 = vmatprep.subr.bf16.mxu0 %v2860
          %5111 = vmatpush1.bf16.msra.mxu0 %v2859
          %5112 = vmatprep.subr.bf16.mxu0 %v2864
          %5113 = vmatpush1.bf16.msra.mxu0 %v2863
          %5114 = vmatprep.subr.bf16.mxu0 %v2868
          %5115 = vmatpush1.bf16.msra.mxu0 %v2867
          %5116 = vmatprep.subr.bf16.mxu0 %v2872
          %5117 = vmatpush1.bf16.msra.mxu0 %v2871
          %5118 = vmatprep.subr.bf16.mxu0 %v2876
          %5119 = vmatpush1.bf16.msra.mxu0 %v2875
          %5120 = vmatprep.subr.bf16.mxu0 %v2880
          %5121 = vmatpush1.bf16.msra.mxu0 %v2879
          %5122 = vmatprep.subr.bf16.mxu0 %v2884
          %5123 = vmatpush1.bf16.msra.mxu0 %v2883
          %5124 = vmatprep.mubr.bf16.mxu0 %v5003
          %5125 = vmatmul.mubr.bf16.gmra.mrb[0].mxu0 %v5002
          %v5126 = vpop.f32.mrb[0].mxu0
          %v5127 = vadd.f32 %v4168, %v5126
          %v5128 = vpop.f32.mrb[0].mxu0
          %v5129 = vadd.f32 %v4170, %v5128
          %v5130 = vpop.f32.mrb[0].mxu0
          %v5131 = vpop.f32.mrb[0].mxu0
          %5132 = vdwg.mxu0
          %5133 = vmatprep.subr.bf16.mxu0 %v2888
          %5134 = vmatpush1.bf16.msra.mxu0 %v2887
          %5135 = vmatprep.subr.bf16.mxu0 %v2892
          %5136 = vmatpush1.bf16.msra.mxu0 %v2891
          %5137 = vmatprep.subr.bf16.mxu0 %v2896
          %5138 = vmatpush1.bf16.msra.mxu0 %v2895
          %5139 = vmatprep.subr.bf16.mxu0 %v2900
          %5140 = vmatpush1.bf16.msra.mxu0 %v2899
          %5141 = vmatprep.subr.bf16.mxu0 %v2904
          %5142 = vmatpush1.bf16.msra.mxu0 %v2903
          %5143 = vmatprep.subr.bf16.mxu0 %v2908
          %5144 = vmatpush1.bf16.msra.mxu0 %v2907
          %5145 = vmatprep.subr.bf16.mxu0 %v2912
          %5146 = vmatpush1.bf16.msra.mxu0 %v2911
          %5147 = vmatprep.subr.bf16.mxu0 %v2916
          %5148 = vmatpush1.bf16.msra.mxu0 %v2915
          %5149 = vmatprep.subr.bf16.mxu0 %v2920
          %5150 = vmatpush1.bf16.msra.mxu0 %v2919
          %5151 = vmatprep.subr.bf16.mxu0 %v2924
          %5152 = vmatpush1.bf16.msra.mxu0 %v2923
          %5153 = vmatprep.subr.bf16.mxu0 %v2928
          %5154 = vmatpush1.bf16.msra.mxu0 %v2927
          %5155 = vmatprep.subr.bf16.mxu0 %v2932
          %5156 = vmatpush1.bf16.msra.mxu0 %v2931
          %5157 = vmatprep.subr.bf16.mxu0 %v2936
          %5158 = vmatpush1.bf16.msra.mxu0 %v2935
          %5159 = vmatprep.subr.bf16.mxu0 %v2940
          %5160 = vmatpush1.bf16.msra.mxu0 %v2939
          %5161 = vmatprep.subr.bf16.mxu0 %v2944
          %5162 = vmatpush1.bf16.msra.mxu0 %v2943
          %5163 = vmatprep.subr.bf16.mxu0 %v2948
          %5164 = vmatpush1.bf16.msra.mxu0 %v2947
          %5165 = vmatprep.mubr.bf16.mxu0 %v5005
          %5166 = vmatmul.mubr.bf16.gmra.mrb[0].mxu0 %v5004
          %v5167 = vpop.f32.mrb[0].mxu0
          %v5168 = vadd.f32 %v5127, %v5167
          %v5169 = vpop.f32.mrb[0].mxu0
          %v5170 = vadd.f32 %v5129, %v5169
          %v5171 = vpop.f32.mrb[0].mxu0
          %v5172 = vpop.f32.mrb[0].mxu0
          %5173 = vdwg.mxu0
          %v5174 = vld [vmem:[#allocation15] sm:$0xf]
          %v5176 = vlaneseq
          %v5177 = vshrl.u32 %v5176, 7
          %v5178 = vsub.s32 0, %v5177
          %v5179 = vrot.slane %v5174, %v5178
          %v5180 = vlaneseq
          %v5181 = vshrl.u32 %v5180, 7
          %v5182 = vsub.s32 1, %v5181
          %v5183 = vrot.slane %v5174, %v5182
          %v5184 = vlaneseq
          %v5185 = vshrl.u32 %v5184, 7
          %v5186 = vsub.s32 2, %v5185
          %v5187 = vrot.slane %v5174, %v5186
          %v5188 = vlaneseq
          %v5189 = vshrl.u32 %v5188, 7
          %v5190 = vsub.s32 3, %v5189
          %v5191 = vrot.slane %v5174, %v5190
          %v5196 = vadd.f32 %v5086, %v5179
          %v5197 = vadd.f32 %v5088, %v5183
          %v5198 = vadd.f32 %v5168, %v5187
          %v5199 = vadd.f32 %v5170, %v5191
          %v5200 = vmax.f32 %v5196, 0.0
          %v5201 = vmax.f32 %v5197, 0.0
          %v5202 = vmax.f32 %v5198, 0.0
          %v5203 = vmax.f32 %v5199, 0.0
          %v5204 = vpack.c.bf16 %v5200, %v5200
          %v5205 = vpack.c.bf16 %v5201, %v5201
          %v5206 = vpack.c.bf16 %v5202, %v5202
          %v5207 = vpack.c.bf16 %v5203, %v5203
          %v5208 = vld [vmem:[#allocation6] sm:$0xff]
          %v5209 = vld [vmem:[#allocation6 + $0x8] sm:$0xff]
          %v5210 = vld [vmem:[#allocation6 + $0x10] sm:$0xff]
          %v5211 = vld [vmem:[#allocation6 + $0x18] sm:$0xff]
          %v5212 = vld [vmem:[#allocation6 + $0x20] sm:$0xff]
          %v5213 = vld [vmem:[#allocation6 + $0x28] sm:$0xff]
          %v5214 = vld [vmem:[#allocation6 + $0x30] sm:$0xff]
          %v5215 = vld [vmem:[#allocation6 + $0x38] sm:$0xff]
          %v5216 = vld [vmem:[#allocation6 + $0x40] sm:$0xff]
          %v5217 = vld [vmem:[#allocation6 + $0x48] sm:$0xff]
          %v5218 = vld [vmem:[#allocation6 + $0x50] sm:$0xff]
          %v5219 = vld [vmem:[#allocation6 + $0x58] sm:$0xff]
          %v5220 = vld [vmem:[#allocation6 + $0x60] sm:$0xff]
          %v5221 = vld [vmem:[#allocation6 + $0x68] sm:$0xff]
          %v5222 = vld [vmem:[#allocation6 + $0x70] sm:$0xff]
          %v5223 = vld [vmem:[#allocation6 + $0x78] sm:$0xff]
          %v5224 = vld [vmem:[#allocation6 + $0x80] sm:$0xff]
          %v5225 = vld [vmem:[#allocation6 + $0x88] sm:$0xff]
          %v5226 = vld [vmem:[#allocation6 + $0x90] sm:$0xff]
          %v5227 = vld [vmem:[#allocation6 + $0x98] sm:$0xff]
          %v5228 = vld [vmem:[#allocation6 + $0xa0] sm:$0xff]
          %v5229 = vld [vmem:[#allocation6 + $0xa8] sm:$0xff]
          %v5230 = vld [vmem:[#allocation6 + $0xb0] sm:$0xff]
          %v5231 = vld [vmem:[#allocation6 + $0xb8] sm:$0xff]
          %v5232 = vld [vmem:[#allocation6 + $0xc0] sm:$0xff]
          %v5233 = vld [vmem:[#allocation6 + $0xc8] sm:$0xff]
          %v5234 = vld [vmem:[#allocation6 + $0xd0] sm:$0xff]
          %v5235 = vld [vmem:[#allocation6 + $0xd8] sm:$0xff]
          %v5236 = vld [vmem:[#allocation6 + $0xe0] sm:$0xff]
          %v5237 = vld [vmem:[#allocation6 + $0xe8] sm:$0xff]
          %v5238 = vld [vmem:[#allocation6 + $0xf0] sm:$0xff]
          %v5239 = vld [vmem:[#allocation6 + $0xf8] sm:$0xff]
          %v5240 = vld [vmem:[#allocation6 + $0x100] sm:$0xff]
          %v5241 = vld [vmem:[#allocation6 + $0x108] sm:$0xff]
          %v5242 = vld [vmem:[#allocation6 + $0x110] sm:$0xff]
          %v5243 = vld [vmem:[#allocation6 + $0x118] sm:$0xff]
          %v5244 = vld [vmem:[#allocation6 + $0x120] sm:$0xff]
          %v5245 = vld [vmem:[#allocation6 + $0x128] sm:$0xff]
          %v5246 = vld [vmem:[#allocation6 + $0x130] sm:$0xff]
          %v5247 = vld [vmem:[#allocation6 + $0x138] sm:$0xff]
          %v5248 = vld [vmem:[#allocation6 + $0x140] sm:$0xff]
          %v5249 = vld [vmem:[#allocation6 + $0x148] sm:$0xff]
          %v5250 = vld [vmem:[#allocation6 + $0x150] sm:$0xff]
          %v5251 = vld [vmem:[#allocation6 + $0x158] sm:$0xff]
          %v5252 = vld [vmem:[#allocation6 + $0x160] sm:$0xff]
          %v5253 = vld [vmem:[#allocation6 + $0x168] sm:$0xff]
          %v5254 = vld [vmem:[#allocation6 + $0x170] sm:$0xff]
          %v5255 = vld [vmem:[#allocation6 + $0x178] sm:$0xff]
          %v5256 = vld [vmem:[#allocation6 + $0x180] sm:$0xff]
          %v5257 = vld [vmem:[#allocation6 + $0x188] sm:$0xff]
          %v5258 = vld [vmem:[#allocation6 + $0x190] sm:$0xff]
          %v5259 = vld [vmem:[#allocation6 + $0x198] sm:$0xff]
          %v5260 = vld [vmem:[#allocation6 + $0x1a0] sm:$0xff]
          %v5261 = vld [vmem:[#allocation6 + $0x1a8] sm:$0xff]
          %v5262 = vld [vmem:[#allocation6 + $0x1b0] sm:$0xff]
          %v5263 = vld [vmem:[#allocation6 + $0x1b8] sm:$0xff]
          %v5264 = vld [vmem:[#allocation6 + $0x1c0] sm:$0xff]
          %v5265 = vld [vmem:[#allocation6 + $0x1c8] sm:$0xff]
          %v5266 = vld [vmem:[#allocation6 + $0x1d0] sm:$0xff]
          %v5267 = vld [vmem:[#allocation6 + $0x1d8] sm:$0xff]
          %v5268 = vld [vmem:[#allocation6 + $0x1e0] sm:$0xff]
          %v5269 = vld [vmem:[#allocation6 + $0x1e8] sm:$0xff]
          %v5270 = vld [vmem:[#allocation6 + $0x1f0] sm:$0xff]
          %v5271 = vld [vmem:[#allocation6 + $0x1f8] sm:$0xff]
          %v5272 = vld [vmem:[#allocation6 + $0x200] sm:$0xff]
          %v5273 = vld [vmem:[#allocation6 + $0x208] sm:$0xff]
          %v5274 = vld [vmem:[#allocation6 + $0x210] sm:$0xff]
          %v5275 = vld [vmem:[#allocation6 + $0x218] sm:$0xff]
          %v5276 = vld [vmem:[#allocation6 + $0x220] sm:$0xff]
          %v5277 = vld [vmem:[#allocation6 + $0x228] sm:$0xff]
          %v5278 = vld [vmem:[#allocation6 + $0x230] sm:$0xff]
          %v5279 = vld [vmem:[#allocation6 + $0x238] sm:$0xff]
          %v5280 = vld [vmem:[#allocation6 + $0x240] sm:$0xff]
          %v5281 = vld [vmem:[#allocation6 + $0x248] sm:$0xff]
          %v5282 = vld [vmem:[#allocation6 + $0x250] sm:$0xff]
          %v5283 = vld [vmem:[#allocation6 + $0x258] sm:$0xff]
          %v5284 = vld [vmem:[#allocation6 + $0x260] sm:$0xff]
          %v5285 = vld [vmem:[#allocation6 + $0x268] sm:$0xff]
          %v5286 = vld [vmem:[#allocation6 + $0x270] sm:$0xff]
          %v5287 = vld [vmem:[#allocation6 + $0x278] sm:$0xff]
          %v5288 = vld [vmem:[#allocation6 + $0x280] sm:$0xff]
          %v5289 = vld [vmem:[#allocation6 + $0x288] sm:$0xff]
          %v5290 = vld [vmem:[#allocation6 + $0x290] sm:$0xff]
          %v5291 = vld [vmem:[#allocation6 + $0x298] sm:$0xff]
          %v5292 = vld [vmem:[#allocation6 + $0x2a0] sm:$0xff]
          %v5293 = vld [vmem:[#allocation6 + $0x2a8] sm:$0xff]
          %v5294 = vld [vmem:[#allocation6 + $0x2b0] sm:$0xff]
          %v5295 = vld [vmem:[#allocation6 + $0x2b8] sm:$0xff]
          %v5296 = vld [vmem:[#allocation6 + $0x2c0] sm:$0xff]
          %v5297 = vld [vmem:[#allocation6 + $0x2c8] sm:$0xff]
          %v5298 = vld [vmem:[#allocation6 + $0x2d0] sm:$0xff]
          %v5299 = vld [vmem:[#allocation6 + $0x2d8] sm:$0xff]
          %v5300 = vld [vmem:[#allocation6 + $0x2e0] sm:$0xff]
          %v5301 = vld [vmem:[#allocation6 + $0x2e8] sm:$0xff]
          %v5302 = vld [vmem:[#allocation6 + $0x2f0] sm:$0xff]
          %v5303 = vld [vmem:[#allocation6 + $0x2f8] sm:$0xff]
          %v5304 = vld [vmem:[#allocation6 + $0x300] sm:$0xff]
          %v5305 = vld [vmem:[#allocation6 + $0x308] sm:$0xff]
          %v5306 = vld [vmem:[#allocation6 + $0x310] sm:$0xff]
          %v5307 = vld [vmem:[#allocation6 + $0x318] sm:$0xff]
          %v5308 = vld [vmem:[#allocation6 + $0x320] sm:$0xff]
          %v5309 = vld [vmem:[#allocation6 + $0x328] sm:$0xff]
          %v5310 = vld [vmem:[#allocation6 + $0x330] sm:$0xff]
          %v5311 = vld [vmem:[#allocation6 + $0x338] sm:$0xff]
          %v5312 = vld [vmem:[#allocation6 + $0x340] sm:$0xff]
          %v5313 = vld [vmem:[#allocation6 + $0x348] sm:$0xff]
          %v5314 = vld [vmem:[#allocation6 + $0x350] sm:$0xff]
          %v5315 = vld [vmem:[#allocation6 + $0x358] sm:$0xff]
          %v5316 = vld [vmem:[#allocation6 + $0x360] sm:$0xff]
          %v5317 = vld [vmem:[#allocation6 + $0x368] sm:$0xff]
          %v5318 = vld [vmem:[#allocation6 + $0x370] sm:$0xff]
          %v5319 = vld [vmem:[#allocation6 + $0x378] sm:$0xff]
          %v5320 = vld [vmem:[#allocation6 + $0x380] sm:$0xff]
          %v5321 = vld [vmem:[#allocation6 + $0x388] sm:$0xff]
          %v5322 = vld [vmem:[#allocation6 + $0x390] sm:$0xff]
          %v5323 = vld [vmem:[#allocation6 + $0x398] sm:$0xff]
          %v5324 = vld [vmem:[#allocation6 + $0x3a0] sm:$0xff]
          %v5325 = vld [vmem:[#allocation6 + $0x3a8] sm:$0xff]
          %v5326 = vld [vmem:[#allocation6 + $0x3b0] sm:$0xff]
          %v5327 = vld [vmem:[#allocation6 + $0x3b8] sm:$0xff]
          %v5328 = vld [vmem:[#allocation6 + $0x3c0] sm:$0xff]
          %v5329 = vld [vmem:[#allocation6 + $0x3c8] sm:$0xff]
          %v5330 = vld [vmem:[#allocation6 + $0x3d0] sm:$0xff]
          %v5331 = vld [vmem:[#allocation6 + $0x3d8] sm:$0xff]
          %v5332 = vld [vmem:[#allocation6 + $0x3e0] sm:$0xff]
          %v5333 = vld [vmem:[#allocation6 + $0x3e8] sm:$0xff]
          %v5334 = vld [vmem:[#allocation6 + $0x3f0] sm:$0xff]
          %v5335 = vld [vmem:[#allocation6 + $0x3f8] sm:$0xff]
          %v5336 = vld [vmem:[#allocation6 + $0x400] sm:$0xff]
          %v5337 = vld [vmem:[#allocation6 + $0x408] sm:$0xff]
          %v5338 = vld [vmem:[#allocation6 + $0x410] sm:$0xff]
          %v5339 = vld [vmem:[#allocation6 + $0x418] sm:$0xff]
          %v5340 = vld [vmem:[#allocation6 + $0x420] sm:$0xff]
          %v5341 = vld [vmem:[#allocation6 + $0x428] sm:$0xff]
          %v5342 = vld [vmem:[#allocation6 + $0x430] sm:$0xff]
          %v5343 = vld [vmem:[#allocation6 + $0x438] sm:$0xff]
          %v5344 = vld [vmem:[#allocation6 + $0x440] sm:$0xff]
          %v5345 = vld [vmem:[#allocation6 + $0x448] sm:$0xff]
          %v5346 = vld [vmem:[#allocation6 + $0x450] sm:$0xff]
          %v5347 = vld [vmem:[#allocation6 + $0x458] sm:$0xff]
          %v5348 = vld [vmem:[#allocation6 + $0x460] sm:$0xff]
          %v5349 = vld [vmem:[#allocation6 + $0x468] sm:$0xff]
          %v5350 = vld [vmem:[#allocation6 + $0x470] sm:$0xff]
          %v5351 = vld [vmem:[#allocation6 + $0x478] sm:$0xff]
          %v5352 = vld [vmem:[#allocation6 + $0x480] sm:$0xff]
          %v5353 = vld [vmem:[#allocation6 + $0x488] sm:$0xff]
          %v5354 = vld [vmem:[#allocation6 + $0x490] sm:$0xff]
          %v5355 = vld [vmem:[#allocation6 + $0x498] sm:$0xff]
          %v5356 = vld [vmem:[#allocation6 + $0x4a0] sm:$0xff]
          %v5357 = vld [vmem:[#allocation6 + $0x4a8] sm:$0xff]
          %v5358 = vld [vmem:[#allocation6 + $0x4b0] sm:$0xff]
          %v5359 = vld [vmem:[#allocation6 + $0x4b8] sm:$0xff]
          %v5360 = vld [vmem:[#allocation6 + $0x4c0] sm:$0xff]
          %v5361 = vld [vmem:[#allocation6 + $0x4c8] sm:$0xff]
          %v5362 = vld [vmem:[#allocation6 + $0x4d0] sm:$0xff]
          %v5363 = vld [vmem:[#allocation6 + $0x4d8] sm:$0xff]
          %v5364 = vld [vmem:[#allocation6 + $0x4e0] sm:$0xff]
          %v5365 = vld [vmem:[#allocation6 + $0x4e8] sm:$0xff]
          %v5366 = vld [vmem:[#allocation6 + $0x4f0] sm:$0xff]
          %v5367 = vld [vmem:[#allocation6 + $0x4f8] sm:$0xff]
          %v5368 = vld [vmem:[#allocation6 + $0x500] sm:$0xff]
          %v5369 = vld [vmem:[#allocation6 + $0x508] sm:$0xff]
          %v5370 = vld [vmem:[#allocation6 + $0x510] sm:$0xff]
          %v5371 = vld [vmem:[#allocation6 + $0x518] sm:$0xff]
          %v5372 = vld [vmem:[#allocation6 + $0x520] sm:$0xff]
          %v5373 = vld [vmem:[#allocation6 + $0x528] sm:$0xff]
          %v5374 = vld [vmem:[#allocation6 + $0x530] sm:$0xff]
          %v5375 = vld [vmem:[#allocation6 + $0x538] sm:$0xff]
          %v5376 = vld [vmem:[#allocation6 + $0x540] sm:$0xff]
          %v5377 = vld [vmem:[#allocation6 + $0x548] sm:$0xff]
          %v5378 = vld [vmem:[#allocation6 + $0x550] sm:$0xff]
          %v5379 = vld [vmem:[#allocation6 + $0x558] sm:$0xff]
          %v5380 = vld [vmem:[#allocation6 + $0x560] sm:$0xff]
          %v5381 = vld [vmem:[#allocation6 + $0x568] sm:$0xff]
          %v5382 = vld [vmem:[#allocation6 + $0x570] sm:$0xff]
          %v5383 = vld [vmem:[#allocation6 + $0x578] sm:$0xff]
          %v5384 = vld [vmem:[#allocation6 + $0x580] sm:$0xff]
          %v5385 = vld [vmem:[#allocation6 + $0x588] sm:$0xff]
          %v5386 = vld [vmem:[#allocation6 + $0x590] sm:$0xff]
          %v5387 = vld [vmem:[#allocation6 + $0x598] sm:$0xff]
          %v5388 = vld [vmem:[#allocation6 + $0x5a0] sm:$0xff]
          %v5389 = vld [vmem:[#allocation6 + $0x5a8] sm:$0xff]
          %v5390 = vld [vmem:[#allocation6 + $0x5b0] sm:$0xff]
          %v5391 = vld [vmem:[#allocation6 + $0x5b8] sm:$0xff]
          %v5392 = vld [vmem:[#allocation6 + $0x5c0] sm:$0xff]
          %v5393 = vld [vmem:[#allocation6 + $0x5c8] sm:$0xff]
          %v5394 = vld [vmem:[#allocation6 + $0x5d0] sm:$0xff]
          %v5395 = vld [vmem:[#allocation6 + $0x5d8] sm:$0xff]
          %v5396 = vld [vmem:[#allocation6 + $0x5e0] sm:$0xff]
          %v5397 = vld [vmem:[#allocation6 + $0x5e8] sm:$0xff]
          %v5398 = vld [vmem:[#allocation6 + $0x5f0] sm:$0xff]
          %v5399 = vld [vmem:[#allocation6 + $0x5f8] sm:$0xff]
          %v5400 = vld [vmem:[#allocation6 + $0x600] sm:$0xff]
          %v5401 = vld [vmem:[#allocation6 + $0x608] sm:$0xff]
          %v5402 = vld [vmem:[#allocation6 + $0x610] sm:$0xff]
          %v5403 = vld [vmem:[#allocation6 + $0x618] sm:$0xff]
          %v5404 = vld [vmem:[#allocation6 + $0x620] sm:$0xff]
          %v5405 = vld [vmem:[#allocation6 + $0x628] sm:$0xff]
          %v5406 = vld [vmem:[#allocation6 + $0x630] sm:$0xff]
          %v5407 = vld [vmem:[#allocation6 + $0x638] sm:$0xff]
          %v5408 = vld [vmem:[#allocation6 + $0x640] sm:$0xff]
          %v5409 = vld [vmem:[#allocation6 + $0x648] sm:$0xff]
          %v5410 = vld [vmem:[#allocation6 + $0x650] sm:$0xff]
          %v5411 = vld [vmem:[#allocation6 + $0x658] sm:$0xff]
          %v5412 = vld [vmem:[#allocation6 + $0x660] sm:$0xff]
          %v5413 = vld [vmem:[#allocation6 + $0x668] sm:$0xff]
          %v5414 = vld [vmem:[#allocation6 + $0x670] sm:$0xff]
          %v5415 = vld [vmem:[#allocation6 + $0x678] sm:$0xff]
          %v5416 = vld [vmem:[#allocation6 + $0x680] sm:$0xff]
          %v5417 = vld [vmem:[#allocation6 + $0x688] sm:$0xff]
          %v5418 = vld [vmem:[#allocation6 + $0x690] sm:$0xff]
          %v5419 = vld [vmem:[#allocation6 + $0x698] sm:$0xff]
          %v5420 = vld [vmem:[#allocation6 + $0x6a0] sm:$0xff]
          %v5421 = vld [vmem:[#allocation6 + $0x6a8] sm:$0xff]
          %v5422 = vld [vmem:[#allocation6 + $0x6b0] sm:$0xff]
          %v5423 = vld [vmem:[#allocation6 + $0x6b8] sm:$0xff]
          %v5424 = vld [vmem:[#allocation6 + $0x6c0] sm:$0xff]
          %v5425 = vld [vmem:[#allocation6 + $0x6c8] sm:$0xff]
          %v5426 = vld [vmem:[#allocation6 + $0x6d0] sm:$0xff]
          %v5427 = vld [vmem:[#allocation6 + $0x6d8] sm:$0xff]
          %v5428 = vld [vmem:[#allocation6 + $0x6e0] sm:$0xff]
          %v5429 = vld [vmem:[#allocation6 + $0x6e8] sm:$0xff]
          %v5430 = vld [vmem:[#allocation6 + $0x6f0] sm:$0xff]
          %v5431 = vld [vmem:[#allocation6 + $0x6f8] sm:$0xff]
          %v5432 = vld [vmem:[#allocation6 + $0x700] sm:$0xff]
          %v5433 = vld [vmem:[#allocation6 + $0x708] sm:$0xff]
          %v5434 = vld [vmem:[#allocation6 + $0x710] sm:$0xff]
          %v5435 = vld [vmem:[#allocation6 + $0x718] sm:$0xff]
          %v5436 = vld [vmem:[#allocation6 + $0x720] sm:$0xff]
          %v5437 = vld [vmem:[#allocation6 + $0x728] sm:$0xff]
          %v5438 = vld [vmem:[#allocation6 + $0x730] sm:$0xff]
          %v5439 = vld [vmem:[#allocation6 + $0x738] sm:$0xff]
          %v5440 = vld [vmem:[#allocation6 + $0x740] sm:$0xff]
          %v5441 = vld [vmem:[#allocation6 + $0x748] sm:$0xff]
          %v5442 = vld [vmem:[#allocation6 + $0x750] sm:$0xff]
          %v5443 = vld [vmem:[#allocation6 + $0x758] sm:$0xff]
          %v5444 = vld [vmem:[#allocation6 + $0x760] sm:$0xff]
          %v5445 = vld [vmem:[#allocation6 + $0x768] sm:$0xff]
          %v5446 = vld [vmem:[#allocation6 + $0x770] sm:$0xff]
          %v5447 = vld [vmem:[#allocation6 + $0x778] sm:$0xff]
          %v5448 = vld [vmem:[#allocation6 + $0x780] sm:$0xff]
          %v5449 = vld [vmem:[#allocation6 + $0x788] sm:$0xff]
          %v5450 = vld [vmem:[#allocation6 + $0x790] sm:$0xff]
          %v5451 = vld [vmem:[#allocation6 + $0x798] sm:$0xff]
          %v5452 = vld [vmem:[#allocation6 + $0x7a0] sm:$0xff]
          %v5453 = vld [vmem:[#allocation6 + $0x7a8] sm:$0xff]
          %v5454 = vld [vmem:[#allocation6 + $0x7b0] sm:$0xff]
          %v5455 = vld [vmem:[#allocation6 + $0x7b8] sm:$0xff]
          %v5456 = vld [vmem:[#allocation6 + $0x7c0] sm:$0xff]
          %v5457 = vld [vmem:[#allocation6 + $0x7c8] sm:$0xff]
          %v5458 = vld [vmem:[#allocation6 + $0x7d0] sm:$0xff]
          %v5459 = vld [vmem:[#allocation6 + $0x7d8] sm:$0xff]
          %v5460 = vld [vmem:[#allocation6 + $0x7e0] sm:$0xff]
          %v5461 = vld [vmem:[#allocation6 + $0x7e8] sm:$0xff]
          %v5462 = vld [vmem:[#allocation6 + $0x7f0] sm:$0xff]
          %v5463 = vld [vmem:[#allocation6 + $0x7f8] sm:$0xff]
          %v5464 = vld [vmem:[#allocation16] sm:$0xff]
          %v5466 = vlaneseq
          %v5467 = vshrl.u32 %v5466, 7
          %v5468 = vsub.s32 0, %v5467
          %v5469 = vrot.slane %v5464, %v5468
          %v5470 = vlaneseq
          %v5471 = vshrl.u32 %v5470, 7
          %v5472 = vsub.s32 1, %v5471
          %v5473 = vrot.slane %v5464, %v5472
          %v5474 = vlaneseq
          %v5475 = vshrl.u32 %v5474, 7
          %v5476 = vsub.s32 2, %v5475
          %v5477 = vrot.slane %v5464, %v5476
          %v5478 = vlaneseq
          %v5479 = vshrl.u32 %v5478, 7
          %v5480 = vsub.s32 3, %v5479
          %v5481 = vrot.slane %v5464, %v5480
          %v5482 = vlaneseq
          %v5483 = vshrl.u32 %v5482, 7
          %v5484 = vsub.s32 4, %v5483
          %v5485 = vrot.slane %v5464, %v5484
          %v5486 = vlaneseq
          %v5487 = vshrl.u32 %v5486, 7
          %v5488 = vsub.s32 5, %v5487
          %v5489 = vrot.slane %v5464, %v5488
          %v5490 = vlaneseq
          %v5491 = vshrl.u32 %v5490, 7
          %v5492 = vsub.s32 6, %v5491
          %v5493 = vrot.slane %v5464, %v5492
          %v5494 = vlaneseq
          %v5495 = vshrl.u32 %v5494, 7
          %v5496 = vsub.s32 7, %v5495
          %v5497 = vrot.slane %v5464, %v5496
          %5506 = vmatprep.subr.bf16.mxu0 %v5209
          %5507 = vmatpush1.bf16.msra.mxu0 %v5208
          %5508 = vmatprep.subr.bf16.mxu0 %v5217
          %5509 = vmatpush1.bf16.msra.mxu0 %v5216
          %5510 = vmatprep.subr.bf16.mxu0 %v5225
          %5511 = vmatpush1.bf16.msra.mxu0 %v5224
          %5512 = vmatprep.subr.bf16.mxu0 %v5233
          %5513 = vmatpush1.bf16.msra.mxu0 %v5232
          %5514 = vmatprep.subr.bf16.mxu0 %v5241
          %5515 = vmatpush1.bf16.msra.mxu0 %v5240
          %5516 = vmatprep.subr.bf16.mxu0 %v5249
          %5517 = vmatpush1.bf16.msra.mxu0 %v5248
          %5518 = vmatprep.subr.bf16.mxu0 %v5257
          %5519 = vmatpush1.bf16.msra.mxu0 %v5256
          %5520 = vmatprep.subr.bf16.mxu0 %v5265
          %5521 = vmatpush1.bf16.msra.mxu0 %v5264
          %5522 = vmatprep.subr.bf16.mxu0 %v5273
          %5523 = vmatpush1.bf16.msra.mxu0 %v5272
          %5524 = vmatprep.subr.bf16.mxu0 %v5281
          %5525 = vmatpush1.bf16.msra.mxu0 %v5280
          %5526 = vmatprep.subr.bf16.mxu0 %v5289
          %5527 = vmatpush1.bf16.msra.mxu0 %v5288
          %5528 = vmatprep.subr.bf16.mxu0 %v5297
          %5529 = vmatpush1.bf16.msra.mxu0 %v5296
          %5530 = vmatprep.subr.bf16.mxu0 %v5305
          %5531 = vmatpush1.bf16.msra.mxu0 %v5304
          %5532 = vmatprep.subr.bf16.mxu0 %v5313
          %5533 = vmatpush1.bf16.msra.mxu0 %v5312
          %5534 = vmatprep.subr.bf16.mxu0 %v5321
          %5535 = vmatpush1.bf16.msra.mxu0 %v5320
          %5536 = vmatprep.subr.bf16.mxu0 %v5329
          %5537 = vmatpush1.bf16.msra.mxu0 %v5328
          %5538 = vmatprep.mubr.bf16.mxu0 %v5205
          %5539 = vmatmul.mubr.bf16.gmra.mrb[0].mxu0 %v5204
          %v5540 = vpop.f32.mrb[0].mxu0
          %v5541 = vadd.f32 %v5469, %v5540
          %v5542 = vpop.f32.mrb[0].mxu0
          %v5543 = vadd.f32 %v5473, %v5542
          %v5544 = vpop.f32.mrb[0].mxu0
          %v5545 = vpop.f32.mrb[0].mxu0
          %5546 = vdwg.mxu0
          %5547 = vmatprep.subr.bf16.mxu0 %v5337
          %5548 = vmatpush1.bf16.msra.mxu0 %v5336
          %5549 = vmatprep.subr.bf16.mxu0 %v5345
          %5550 = vmatpush1.bf16.msra.mxu0 %v5344
          %5551 = vmatprep.subr.bf16.mxu0 %v5353
          %5552 = vmatpush1.bf16.msra.mxu0 %v5352
          %5553 = vmatprep.subr.bf16.mxu0 %v5361
          %5554 = vmatpush1.bf16.msra.mxu0 %v5360
          %5555 = vmatprep.subr.bf16.mxu0 %v5369
          %5556 = vmatpush1.bf16.msra.mxu0 %v5368
          %5557 = vmatprep.subr.bf16.mxu0 %v5377
          %5558 = vmatpush1.bf16.msra.mxu0 %v5376
          %5559 = vmatprep.subr.bf16.mxu0 %v5385
          %5560 = vmatpush1.bf16.msra.mxu0 %v5384
          %5561 = vmatprep.subr.bf16.mxu0 %v5393
          %5562 = vmatpush1.bf16.msra.mxu0 %v5392
          %5563 = vmatprep.subr.bf16.mxu0 %v5401
          %5564 = vmatpush1.bf16.msra.mxu0 %v5400
          %5565 = vmatprep.subr.bf16.mxu0 %v5409
          %5566 = vmatpush1.bf16.msra.mxu0 %v5408
          %5567 = vmatprep.subr.bf16.mxu0 %v5417
          %5568 = vmatpush1.bf16.msra.mxu0 %v5416
          %5569 = vmatprep.subr.bf16.mxu0 %v5425
          %5570 = vmatpush1.bf16.msra.mxu0 %v5424
          %5571 = vmatprep.subr.bf16.mxu0 %v5433
          %5572 = vmatpush1.bf16.msra.mxu0 %v5432
          %5573 = vmatprep.subr.bf16.mxu0 %v5441
          %5574 = vmatpush1.bf16.msra.mxu0 %v5440
          %5575 = vmatprep.subr.bf16.mxu0 %v5449
          %5576 = vmatpush1.bf16.msra.mxu0 %v5448
          %5577 = vmatprep.subr.bf16.mxu0 %v5457
          %5578 = vmatpush1.bf16.msra.mxu0 %v5456
          %5579 = vmatprep.mubr.bf16.mxu0 %v5207
          %5580 = vmatmul.mubr.bf16.gmra.mrb[0].mxu0 %v5206
          %v5581 = vpop.f32.mrb[0].mxu0
          %v5582 = vadd.f32 %v5541, %v5581
          %v5583 = vpop.f32.mrb[0].mxu0
          %v5584 = vadd.f32 %v5543, %v5583
          %v5585 = vpop.f32.mrb[0].mxu0
          %v5586 = vpop.f32.mrb[0].mxu0
          %5587 = vdwg.mxu0
          %5588 = vmatprep.subr.bf16.mxu0 %v5211
          %5589 = vmatpush1.bf16.msra.mxu0 %v5210
          %5590 = vmatprep.subr.bf16.mxu0 %v5219
          %5591 = vmatpush1.bf16.msra.mxu0 %v5218
          %5592 = vmatprep.subr.bf16.mxu0 %v5227
          %5593 = vmatpush1.bf16.msra.mxu0 %v5226
          %5594 = vmatprep.subr.bf16.mxu0 %v5235
          %5595 = vmatpush1.bf16.msra.mxu0 %v5234
          %5596 = vmatprep.subr.bf16.mxu0 %v5243
          %5597 = vmatpush1.bf16.msra.mxu0 %v5242
          %5598 = vmatprep.subr.bf16.mxu0 %v5251
          %5599 = vmatpush1.bf16.msra.mxu0 %v5250
          %5600 = vmatprep.subr.bf16.mxu0 %v5259
          %5601 = vmatpush1.bf16.msra.mxu0 %v5258
          %5602 = vmatprep.subr.bf16.mxu0 %v5267
          %5603 = vmatpush1.bf16.msra.mxu0 %v5266
          %5604 = vmatprep.subr.bf16.mxu0 %v5275
          %5605 = vmatpush1.bf16.msra.mxu0 %v5274
          %5606 = vmatprep.subr.bf16.mxu0 %v5283
          %5607 = vmatpush1.bf16.msra.mxu0 %v5282
          %5608 = vmatprep.subr.bf16.mxu0 %v5291
          %5609 = vmatpush1.bf16.msra.mxu0 %v5290
          %5610 = vmatprep.subr.bf16.mxu0 %v5299
          %5611 = vmatpush1.bf16.msra.mxu0 %v5298
          %5612 = vmatprep.subr.bf16.mxu0 %v5307
          %5613 = vmatpush1.bf16.msra.mxu0 %v5306
          %5614 = vmatprep.subr.bf16.mxu0 %v5315
          %5615 = vmatpush1.bf16.msra.mxu0 %v5314
          %5616 = vmatprep.subr.bf16.mxu0 %v5323
          %5617 = vmatpush1.bf16.msra.mxu0 %v5322
          %5618 = vmatprep.subr.bf16.mxu0 %v5331
          %5619 = vmatpush1.bf16.msra.mxu0 %v5330
          %5620 = vmatprep.mubr.bf16.mxu0 %v5205
          %5621 = vmatmul.mubr.bf16.gmra.mrb[0].mxu0 %v5204
          %v5622 = vpop.f32.mrb[0].mxu0
          %v5623 = vadd.f32 %v5477, %v5622
          %v5624 = vpop.f32.mrb[0].mxu0
          %v5625 = vadd.f32 %v5481, %v5624
          %v5626 = vpop.f32.mrb[0].mxu0
          %v5627 = vpop.f32.mrb[0].mxu0
          %5628 = vdwg.mxu0
          %5629 = vmatprep.subr.bf16.mxu0 %v5339
          %5630 = vmatpush1.bf16.msra.mxu0 %v5338
          %5631 = vmatprep.subr.bf16.mxu0 %v5347
          %5632 = vmatpush1.bf16.msra.mxu0 %v5346
          %5633 = vmatprep.subr.bf16.mxu0 %v5355
          %5634 = vmatpush1.bf16.msra.mxu0 %v5354
          %5635 = vmatprep.subr.bf16.mxu0 %v5363
          %5636 = vmatpush1.bf16.msra.mxu0 %v5362
          %5637 = vmatprep.subr.bf16.mxu0 %v5371
          %5638 = vmatpush1.bf16.msra.mxu0 %v5370
          %5639 = vmatprep.subr.bf16.mxu0 %v5379
          %5640 = vmatpush1.bf16.msra.mxu0 %v5378
          %5641 = vmatprep.subr.bf16.mxu0 %v5387
          %5642 = vmatpush1.bf16.msra.mxu0 %v5386
          %5643 = vmatprep.subr.bf16.mxu0 %v5395
          %5644 = vmatpush1.bf16.msra.mxu0 %v5394
          %5645 = vmatprep.subr.bf16.mxu0 %v5403
          %5646 = vmatpush1.bf16.msra.mxu0 %v5402
          %5647 = vmatprep.subr.bf16.mxu0 %v5411
          %5648 = vmatpush1.bf16.msra.mxu0 %v5410
          %5649 = vmatprep.subr.bf16.mxu0 %v5419
          %5650 = vmatpush1.bf16.msra.mxu0 %v5418
          %5651 = vmatprep.subr.bf16.mxu0 %v5427
          %5652 = vmatpush1.bf16.msra.mxu0 %v5426
          %5653 = vmatprep.subr.bf16.mxu0 %v5435
          %5654 = vmatpush1.bf16.msra.mxu0 %v5434
          %5655 = vmatprep.subr.bf16.mxu0 %v5443
          %5656 = vmatpush1.bf16.msra.mxu0 %v5442
          %5657 = vmatprep.subr.bf16.mxu0 %v5451
          %5658 = vmatpush1.bf16.msra.mxu0 %v5450
          %5659 = vmatprep.subr.bf16.mxu0 %v5459
          %5660 = vmatpush1.bf16.msra.mxu0 %v5458
          %5661 = vmatprep.mubr.bf16.mxu0 %v5207
          %5662 = vmatmul.mubr.bf16.gmra.mrb[0].mxu0 %v5206
          %v5663 = vpop.f32.mrb[0].mxu0
          %v5664 = vadd.f32 %v5623, %v5663
          %v5665 = vpop.f32.mrb[0].mxu0
          %v5666 = vadd.f32 %v5625, %v5665
          %v5667 = vpop.f32.mrb[0].mxu0
          %v5668 = vpop.f32.mrb[0].mxu0
          %5669 = vdwg.mxu0
          %5670 = vmatprep.subr.bf16.mxu0 %v5213
          %5671 = vmatpush1.bf16.msra.mxu0 %v5212
          %5672 = vmatprep.subr.bf16.mxu0 %v5221
          %5673 = vmatpush1.bf16.msra.mxu0 %v5220
          %5674 = vmatprep.subr.bf16.mxu0 %v5229
          %5675 = vmatpush1.bf16.msra.mxu0 %v5228
          %5676 = vmatprep.subr.bf16.mxu0 %v5237
          %5677 = vmatpush1.bf16.msra.mxu0 %v5236
          %5678 = vmatprep.subr.bf16.mxu0 %v5245
          %5679 = vmatpush1.bf16.msra.mxu0 %v5244
          %5680 = vmatprep.subr.bf16.mxu0 %v5253
          %5681 = vmatpush1.bf16.msra.mxu0 %v5252
          %5682 = vmatprep.subr.bf16.mxu0 %v5261
          %5683 = vmatpush1.bf16.msra.mxu0 %v5260
          %5684 = vmatprep.subr.bf16.mxu0 %v5269
          %5685 = vmatpush1.bf16.msra.mxu0 %v5268
          %5686 = vmatprep.subr.bf16.mxu0 %v5277
          %5687 = vmatpush1.bf16.msra.mxu0 %v5276
          %5688 = vmatprep.subr.bf16.mxu0 %v5285
          %5689 = vmatpush1.bf16.msra.mxu0 %v5284
          %5690 = vmatprep.subr.bf16.mxu0 %v5293
          %5691 = vmatpush1.bf16.msra.mxu0 %v5292
          %5692 = vmatprep.subr.bf16.mxu0 %v5301
          %5693 = vmatpush1.bf16.msra.mxu0 %v5300
          %5694 = vmatprep.subr.bf16.mxu0 %v5309
          %5695 = vmatpush1.bf16.msra.mxu0 %v5308
          %5696 = vmatprep.subr.bf16.mxu0 %v5317
          %5697 = vmatpush1.bf16.msra.mxu0 %v5316
          %5698 = vmatprep.subr.bf16.mxu0 %v5325
          %5699 = vmatpush1.bf16.msra.mxu0 %v5324
          %5700 = vmatprep.subr.bf16.mxu0 %v5333
          %5701 = vmatpush1.bf16.msra.mxu0 %v5332
          %5702 = vmatprep.mubr.bf16.mxu0 %v5205
          %5703 = vmatmul.mubr.bf16.gmra.mrb[0].mxu0 %v5204
          %v5704 = vpop.f32.mrb[0].mxu0
          %v5705 = vadd.f32 %v5485, %v5704
          %v5706 = vpop.f32.mrb[0].mxu0
          %v5707 = vadd.f32 %v5489, %v5706
          %v5708 = vpop.f32.mrb[0].mxu0
          %v5709 = vpop.f32.mrb[0].mxu0
          %5710 = vdwg.mxu0
          %5711 = vmatprep.subr.bf16.mxu0 %v5341
          %5712 = vmatpush1.bf16.msra.mxu0 %v5340
          %5713 = vmatprep.subr.bf16.mxu0 %v5349
          %5714 = vmatpush1.bf16.msra.mxu0 %v5348
          %5715 = vmatprep.subr.bf16.mxu0 %v5357
          %5716 = vmatpush1.bf16.msra.mxu0 %v5356
          %5717 = vmatprep.subr.bf16.mxu0 %v5365
          %5718 = vmatpush1.bf16.msra.mxu0 %v5364
          %5719 = vmatprep.subr.bf16.mxu0 %v5373
          %5720 = vmatpush1.bf16.msra.mxu0 %v5372
          %5721 = vmatprep.subr.bf16.mxu0 %v5381
          %5722 = vmatpush1.bf16.msra.mxu0 %v5380
          %5723 = vmatprep.subr.bf16.mxu0 %v5389
          %5724 = vmatpush1.bf16.msra.mxu0 %v5388
          %5725 = vmatprep.subr.bf16.mxu0 %v5397
          %5726 = vmatpush1.bf16.msra.mxu0 %v5396
          %5727 = vmatprep.subr.bf16.mxu0 %v5405
          %5728 = vmatpush1.bf16.msra.mxu0 %v5404
          %5729 = vmatprep.subr.bf16.mxu0 %v5413
          %5730 = vmatpush1.bf16.msra.mxu0 %v5412
          %5731 = vmatprep.subr.bf16.mxu0 %v5421
          %5732 = vmatpush1.bf16.msra.mxu0 %v5420
          %5733 = vmatprep.subr.bf16.mxu0 %v5429
          %5734 = vmatpush1.bf16.msra.mxu0 %v5428
          %5735 = vmatprep.subr.bf16.mxu0 %v5437
          %5736 = vmatpush1.bf16.msra.mxu0 %v5436
          %5737 = vmatprep.subr.bf16.mxu0 %v5445
          %5738 = vmatpush1.bf16.msra.mxu0 %v5444
          %5739 = vmatprep.subr.bf16.mxu0 %v5453
          %5740 = vmatpush1.bf16.msra.mxu0 %v5452
          %5741 = vmatprep.subr.bf16.mxu0 %v5461
          %5742 = vmatpush1.bf16.msra.mxu0 %v5460
          %5743 = vmatprep.mubr.bf16.mxu0 %v5207
          %5744 = vmatmul.mubr.bf16.gmra.mrb[0].mxu0 %v5206
          %v5745 = vpop.f32.mrb[0].mxu0
          %v5746 = vadd.f32 %v5705, %v5745
          %v5747 = vpop.f32.mrb[0].mxu0
          %v5748 = vadd.f32 %v5707, %v5747
          %v5749 = vpop.f32.mrb[0].mxu0
          %v5750 = vpop.f32.mrb[0].mxu0
          %5751 = vdwg.mxu0
          %5752 = vmatprep.subr.bf16.mxu0 %v5215
          %5753 = vmatpush1.bf16.msra.mxu0 %v5214
          %5754 = vmatprep.subr.bf16.mxu0 %v5223
          %5755 = vmatpush1.bf16.msra.mxu0 %v5222
          %5756 = vmatprep.subr.bf16.mxu0 %v5231
          %5757 = vmatpush1.bf16.msra.mxu0 %v5230
          %5758 = vmatprep.subr.bf16.mxu0 %v5239
          %5759 = vmatpush1.bf16.msra.mxu0 %v5238
          %5760 = vmatprep.subr.bf16.mxu0 %v5247
          %5761 = vmatpush1.bf16.msra.mxu0 %v5246
          %5762 = vmatprep.subr.bf16.mxu0 %v5255
          %5763 = vmatpush1.bf16.msra.mxu0 %v5254
          %5764 = vmatprep.subr.bf16.mxu0 %v5263
          %5765 = vmatpush1.bf16.msra.mxu0 %v5262
          %5766 = vmatprep.subr.bf16.mxu0 %v5271
          %5767 = vmatpush1.bf16.msra.mxu0 %v5270
          %5768 = vmatprep.subr.bf16.mxu0 %v5279
          %5769 = vmatpush1.bf16.msra.mxu0 %v5278
          %5770 = vmatprep.subr.bf16.mxu0 %v5287
          %5771 = vmatpush1.bf16.msra.mxu0 %v5286
          %5772 = vmatprep.subr.bf16.mxu0 %v5295
          %5773 = vmatpush1.bf16.msra.mxu0 %v5294
          %5774 = vmatprep.subr.bf16.mxu0 %v5303
          %5775 = vmatpush1.bf16.msra.mxu0 %v5302
          %5776 = vmatprep.subr.bf16.mxu0 %v5311
          %5777 = vmatpush1.bf16.msra.mxu0 %v5310
          %5778 = vmatprep.subr.bf16.mxu0 %v5319
          %5779 = vmatpush1.bf16.msra.mxu0 %v5318
          %5780 = vmatprep.subr.bf16.mxu0 %v5327
          %5781 = vmatpush1.bf16.msra.mxu0 %v5326
          %5782 = vmatprep.subr.bf16.mxu0 %v5335
          %5783 = vmatpush1.bf16.msra.mxu0 %v5334
          %5784 = vmatprep.mubr.bf16.mxu0 %v5205
          %5785 = vmatmul.mubr.bf16.gmra.mrb[0].mxu0 %v5204
          %v5786 = vpop.f32.mrb[0].mxu0
          %v5787 = vadd.f32 %v5493, %v5786
          %v5788 = vpop.f32.mrb[0].mxu0
          %v5789 = vadd.f32 %v5497, %v5788
          %v5790 = vpop.f32.mrb[0].mxu0
          %v5791 = vpop.f32.mrb[0].mxu0
          %5792 = vdwg.mxu0
          %5793 = vmatprep.subr.bf16.mxu0 %v5343
          %5794 = vmatpush1.bf16.msra.mxu0 %v5342
          %5795 = vmatprep.subr.bf16.mxu0 %v5351
          %5796 = vmatpush1.bf16.msra.mxu0 %v5350
          %5797 = vmatprep.subr.bf16.mxu0 %v5359
          %5798 = vmatpush1.bf16.msra.mxu0 %v5358
          %5799 = vmatprep.subr.bf16.mxu0 %v5367
          %5800 = vmatpush1.bf16.msra.mxu0 %v5366
          %5801 = vmatprep.subr.bf16.mxu0 %v5375
          %5802 = vmatpush1.bf16.msra.mxu0 %v5374
          %5803 = vmatprep.subr.bf16.mxu0 %v5383
          %5804 = vmatpush1.bf16.msra.mxu0 %v5382
          %5805 = vmatprep.subr.bf16.mxu0 %v5391
          %5806 = vmatpush1.bf16.msra.mxu0 %v5390
          %5807 = vmatprep.subr.bf16.mxu0 %v5399
          %5808 = vmatpush1.bf16.msra.mxu0 %v5398
          %5809 = vmatprep.subr.bf16.mxu0 %v5407
          %5810 = vmatpush1.bf16.msra.mxu0 %v5406
          %5811 = vmatprep.subr.bf16.mxu0 %v5415
          %5812 = vmatpush1.bf16.msra.mxu0 %v5414
          %5813 = vmatprep.subr.bf16.mxu0 %v5423
          %5814 = vmatpush1.bf16.msra.mxu0 %v5422
          %5815 = vmatprep.subr.bf16.mxu0 %v5431
          %5816 = vmatpush1.bf16.msra.mxu0 %v5430
          %5817 = vmatprep.subr.bf16.mxu0 %v5439
          %5818 = vmatpush1.bf16.msra.mxu0 %v5438
          %5819 = vmatprep.subr.bf16.mxu0 %v5447
          %5820 = vmatpush1.bf16.msra.mxu0 %v5446
          %5821 = vmatprep.subr.bf16.mxu0 %v5455
          %5822 = vmatpush1.bf16.msra.mxu0 %v5454
          %5823 = vmatprep.subr.bf16.mxu0 %v5463
          %5824 = vmatpush1.bf16.msra.mxu0 %v5462
          %5825 = vmatprep.mubr.bf16.mxu0 %v5207
          %5826 = vmatmul.mubr.bf16.gmra.mrb[0].mxu0 %v5206
          %v5827 = vpop.f32.mrb[0].mxu0
          %v5828 = vadd.f32 %v5787, %v5827
          %v5829 = vpop.f32.mrb[0].mxu0
          %v5830 = vadd.f32 %v5789, %v5829
          %v5831 = vpop.f32.mrb[0].mxu0
          %v5832 = vpop.f32.mrb[0].mxu0
          %5833 = vdwg.mxu0
          %v5834 = vmax.f32 %v5582, 0.0
          %v5835 = vmax.f32 %v5584, 0.0
          %v5836 = vmax.f32 %v5664, 0.0
          %v5837 = vmax.f32 %v5666, 0.0
          %v5838 = vmax.f32 %v5746, 0.0
          %v5839 = vmax.f32 %v5748, 0.0
          %v5840 = vmax.f32 %v5828, 0.0
          %v5841 = vmax.f32 %v5830, 0.0
          %v5842 = vpack.c.bf16 %v5834, %v5834
          %v5843 = vpack.c.bf16 %v5835, %v5835
          %v5844 = vpack.c.bf16 %v5836, %v5836
          %v5845 = vpack.c.bf16 %v5837, %v5837
          %v5846 = vpack.c.bf16 %v5838, %v5838
          %v5847 = vpack.c.bf16 %v5839, %v5839
          %v5848 = vpack.c.bf16 %v5840, %v5840
          %v5849 = vpack.c.bf16 %v5841, %v5841
          %v5850 = vld [vmem:[#allocation7] sm:$0xff]
          %v5851 = vld [vmem:[#allocation7 + $0x8] sm:$0xff]
          %v5852 = vld [vmem:[#allocation7 + $0x10] sm:$0xff]
          %v5853 = vld [vmem:[#allocation7 + $0x18] sm:$0xff]
          %v5854 = vld [vmem:[#allocation7 + $0x20] sm:$0xff]
          %v5855 = vld [vmem:[#allocation7 + $0x28] sm:$0xff]
          %v5856 = vld [vmem:[#allocation7 + $0x30] sm:$0xff]
          %v5857 = vld [vmem:[#allocation7 + $0x38] sm:$0xff]
          %v5858 = vld [vmem:[#allocation7 + $0x40] sm:$0xff]
          %v5859 = vld [vmem:[#allocation7 + $0x48] sm:$0xff]
          %v5860 = vld [vmem:[#allocation7 + $0x50] sm:$0xff]
          %v5861 = vld [vmem:[#allocation7 + $0x58] sm:$0xff]
          %v5862 = vld [vmem:[#allocation7 + $0x60] sm:$0xff]
          %v5863 = vld [vmem:[#allocation7 + $0x68] sm:$0xff]
          %v5864 = vld [vmem:[#allocation7 + $0x70] sm:$0xff]
          %v5865 = vld [vmem:[#allocation7 + $0x78] sm:$0xff]
          %v5866 = vld [vmem:[#allocation7 + $0x80] sm:$0xff]
          %v5867 = vld [vmem:[#allocation7 + $0x88] sm:$0xff]
          %v5868 = vld [vmem:[#allocation7 + $0x90] sm:$0xff]
          %v5869 = vld [vmem:[#allocation7 + $0x98] sm:$0xff]
          %v5870 = vld [vmem:[#allocation7 + $0xa0] sm:$0xff]
          %v5871 = vld [vmem:[#allocation7 + $0xa8] sm:$0xff]
          %v5872 = vld [vmem:[#allocation7 + $0xb0] sm:$0xff]
          %v5873 = vld [vmem:[#allocation7 + $0xb8] sm:$0xff]
          %v5874 = vld [vmem:[#allocation7 + $0xc0] sm:$0xff]
          %v5875 = vld [vmem:[#allocation7 + $0xc8] sm:$0xff]
          %v5876 = vld [vmem:[#allocation7 + $0xd0] sm:$0xff]
          %v5877 = vld [vmem:[#allocation7 + $0xd8] sm:$0xff]
          %v5878 = vld [vmem:[#allocation7 + $0xe0] sm:$0xff]
          %v5879 = vld [vmem:[#allocation7 + $0xe8] sm:$0xff]
          %v5880 = vld [vmem:[#allocation7 + $0xf0] sm:$0xff]
          %v5881 = vld [vmem:[#allocation7 + $0xf8] sm:$0xff]
          %v5882 = vld [vmem:[#allocation7 + $0x100] sm:$0xff]
          %v5883 = vld [vmem:[#allocation7 + $0x108] sm:$0xff]
          %v5884 = vld [vmem:[#allocation7 + $0x110] sm:$0xff]
          %v5885 = vld [vmem:[#allocation7 + $0x118] sm:$0xff]
          %v5886 = vld [vmem:[#allocation7 + $0x120] sm:$0xff]
          %v5887 = vld [vmem:[#allocation7 + $0x128] sm:$0xff]
          %v5888 = vld [vmem:[#allocation7 + $0x130] sm:$0xff]
          %v5889 = vld [vmem:[#allocation7 + $0x138] sm:$0xff]
          %v5890 = vld [vmem:[#allocation7 + $0x140] sm:$0xff]
          %v5891 = vld [vmem:[#allocation7 + $0x148] sm:$0xff]
          %v5892 = vld [vmem:[#allocation7 + $0x150] sm:$0xff]
          %v5893 = vld [vmem:[#allocation7 + $0x158] sm:$0xff]
          %v5894 = vld [vmem:[#allocation7 + $0x160] sm:$0xff]
          %v5895 = vld [vmem:[#allocation7 + $0x168] sm:$0xff]
          %v5896 = vld [vmem:[#allocation7 + $0x170] sm:$0xff]
          %v5897 = vld [vmem:[#allocation7 + $0x178] sm:$0xff]
          %v5898 = vld [vmem:[#allocation7 + $0x180] sm:$0xff]
          %v5899 = vld [vmem:[#allocation7 + $0x188] sm:$0xff]
          %v5900 = vld [vmem:[#allocation7 + $0x190] sm:$0xff]
          %v5901 = vld [vmem:[#allocation7 + $0x198] sm:$0xff]
          %v5902 = vld [vmem:[#allocation7 + $0x1a0] sm:$0xff]
          %v5903 = vld [vmem:[#allocation7 + $0x1a8] sm:$0xff]
          %v5904 = vld [vmem:[#allocation7 + $0x1b0] sm:$0xff]
          %v5905 = vld [vmem:[#allocation7 + $0x1b8] sm:$0xff]
          %v5906 = vld [vmem:[#allocation7 + $0x1c0] sm:$0xff]
          %v5907 = vld [vmem:[#allocation7 + $0x1c8] sm:$0xff]
          %v5908 = vld [vmem:[#allocation7 + $0x1d0] sm:$0xff]
          %v5909 = vld [vmem:[#allocation7 + $0x1d8] sm:$0xff]
          %v5910 = vld [vmem:[#allocation7 + $0x1e0] sm:$0xff]
          %v5911 = vld [vmem:[#allocation7 + $0x1e8] sm:$0xff]
          %v5912 = vld [vmem:[#allocation7 + $0x1f0] sm:$0xff]
          %v5913 = vld [vmem:[#allocation7 + $0x1f8] sm:$0xff]
          %v5914 = vld [vmem:[#allocation7 + $0x200] sm:$0xff]
          %v5915 = vld [vmem:[#allocation7 + $0x208] sm:$0xff]
          %v5916 = vld [vmem:[#allocation7 + $0x210] sm:$0xff]
          %v5917 = vld [vmem:[#allocation7 + $0x218] sm:$0xff]
          %v5918 = vld [vmem:[#allocation7 + $0x220] sm:$0xff]
          %v5919 = vld [vmem:[#allocation7 + $0x228] sm:$0xff]
          %v5920 = vld [vmem:[#allocation7 + $0x230] sm:$0xff]
          %v5921 = vld [vmem:[#allocation7 + $0x238] sm:$0xff]
          %v5922 = vld [vmem:[#allocation7 + $0x240] sm:$0xff]
          %v5923 = vld [vmem:[#allocation7 + $0x248] sm:$0xff]
          %v5924 = vld [vmem:[#allocation7 + $0x250] sm:$0xff]
          %v5925 = vld [vmem:[#allocation7 + $0x258] sm:$0xff]
          %v5926 = vld [vmem:[#allocation7 + $0x260] sm:$0xff]
          %v5927 = vld [vmem:[#allocation7 + $0x268] sm:$0xff]
          %v5928 = vld [vmem:[#allocation7 + $0x270] sm:$0xff]
          %v5929 = vld [vmem:[#allocation7 + $0x278] sm:$0xff]
          %v5930 = vld [vmem:[#allocation7 + $0x280] sm:$0xff]
          %v5931 = vld [vmem:[#allocation7 + $0x288] sm:$0xff]
          %v5932 = vld [vmem:[#allocation7 + $0x290] sm:$0xff]
          %v5933 = vld [vmem:[#allocation7 + $0x298] sm:$0xff]
          %v5934 = vld [vmem:[#allocation7 + $0x2a0] sm:$0xff]
          %v5935 = vld [vmem:[#allocation7 + $0x2a8] sm:$0xff]
          %v5936 = vld [vmem:[#allocation7 + $0x2b0] sm:$0xff]
          %v5937 = vld [vmem:[#allocation7 + $0x2b8] sm:$0xff]
          %v5938 = vld [vmem:[#allocation7 + $0x2c0] sm:$0xff]
          %v5939 = vld [vmem:[#allocation7 + $0x2c8] sm:$0xff]
          %v5940 = vld [vmem:[#allocation7 + $0x2d0] sm:$0xff]
          %v5941 = vld [vmem:[#allocation7 + $0x2d8] sm:$0xff]
          %v5942 = vld [vmem:[#allocation7 + $0x2e0] sm:$0xff]
          %v5943 = vld [vmem:[#allocation7 + $0x2e8] sm:$0xff]
          %v5944 = vld [vmem:[#allocation7 + $0x2f0] sm:$0xff]
          %v5945 = vld [vmem:[#allocation7 + $0x2f8] sm:$0xff]
          %v5946 = vld [vmem:[#allocation7 + $0x300] sm:$0xff]
          %v5947 = vld [vmem:[#allocation7 + $0x308] sm:$0xff]
          %v5948 = vld [vmem:[#allocation7 + $0x310] sm:$0xff]
          %v5949 = vld [vmem:[#allocation7 + $0x318] sm:$0xff]
          %v5950 = vld [vmem:[#allocation7 + $0x320] sm:$0xff]
          %v5951 = vld [vmem:[#allocation7 + $0x328] sm:$0xff]
          %v5952 = vld [vmem:[#allocation7 + $0x330] sm:$0xff]
          %v5953 = vld [vmem:[#allocation7 + $0x338] sm:$0xff]
          %v5954 = vld [vmem:[#allocation7 + $0x340] sm:$0xff]
          %v5955 = vld [vmem:[#allocation7 + $0x348] sm:$0xff]
          %v5956 = vld [vmem:[#allocation7 + $0x350] sm:$0xff]
          %v5957 = vld [vmem:[#allocation7 + $0x358] sm:$0xff]
          %v5958 = vld [vmem:[#allocation7 + $0x360] sm:$0xff]
          %v5959 = vld [vmem:[#allocation7 + $0x368] sm:$0xff]
          %v5960 = vld [vmem:[#allocation7 + $0x370] sm:$0xff]
          %v5961 = vld [vmem:[#allocation7 + $0x378] sm:$0xff]
          %v5962 = vld [vmem:[#allocation7 + $0x380] sm:$0xff]
          %v5963 = vld [vmem:[#allocation7 + $0x388] sm:$0xff]
          %v5964 = vld [vmem:[#allocation7 + $0x390] sm:$0xff]
          %v5965 = vld [vmem:[#allocation7 + $0x398] sm:$0xff]
          %v5966 = vld [vmem:[#allocation7 + $0x3a0] sm:$0xff]
          %v5967 = vld [vmem:[#allocation7 + $0x3a8] sm:$0xff]
          %v5968 = vld [vmem:[#allocation7 + $0x3b0] sm:$0xff]
          %v5969 = vld [vmem:[#allocation7 + $0x3b8] sm:$0xff]
          %v5970 = vld [vmem:[#allocation7 + $0x3c0] sm:$0xff]
          %v5971 = vld [vmem:[#allocation7 + $0x3c8] sm:$0xff]
          %v5972 = vld [vmem:[#allocation7 + $0x3d0] sm:$0xff]
          %v5973 = vld [vmem:[#allocation7 + $0x3d8] sm:$0xff]
          %v5974 = vld [vmem:[#allocation7 + $0x3e0] sm:$0xff]
          %v5975 = vld [vmem:[#allocation7 + $0x3e8] sm:$0xff]
          %v5976 = vld [vmem:[#allocation7 + $0x3f0] sm:$0xff]
          %v5977 = vld [vmem:[#allocation7 + $0x3f8] sm:$0xff]
          %v5978 = vld [vmem:[#allocation7 + $0x400] sm:$0xff]
          %v5979 = vld [vmem:[#allocation7 + $0x408] sm:$0xff]
          %v5980 = vld [vmem:[#allocation7 + $0x410] sm:$0xff]
          %v5981 = vld [vmem:[#allocation7 + $0x418] sm:$0xff]
          %v5982 = vld [vmem:[#allocation7 + $0x420] sm:$0xff]
          %v5983 = vld [vmem:[#allocation7 + $0x428] sm:$0xff]
          %v5984 = vld [vmem:[#allocation7 + $0x430] sm:$0xff]
          %v5985 = vld [vmem:[#allocation7 + $0x438] sm:$0xff]
          %v5986 = vld [vmem:[#allocation7 + $0x440] sm:$0xff]
          %v5987 = vld [vmem:[#allocation7 + $0x448] sm:$0xff]
          %v5988 = vld [vmem:[#allocation7 + $0x450] sm:$0xff]
          %v5989 = vld [vmem:[#allocation7 + $0x458] sm:$0xff]
          %v5990 = vld [vmem:[#allocation7 + $0x460] sm:$0xff]
          %v5991 = vld [vmem:[#allocation7 + $0x468] sm:$0xff]
          %v5992 = vld [vmem:[#allocation7 + $0x470] sm:$0xff]
          %v5993 = vld [vmem:[#allocation7 + $0x478] sm:$0xff]
          %v5994 = vld [vmem:[#allocation7 + $0x480] sm:$0xff]
          %v5995 = vld [vmem:[#allocation7 + $0x488] sm:$0xff]
          %v5996 = vld [vmem:[#allocation7 + $0x490] sm:$0xff]
          %v5997 = vld [vmem:[#allocation7 + $0x498] sm:$0xff]
          %v5998 = vld [vmem:[#allocation7 + $0x4a0] sm:$0xff]
          %v5999 = vld [vmem:[#allocation7 + $0x4a8] sm:$0xff]
          %v6000 = vld [vmem:[#allocation7 + $0x4b0] sm:$0xff]
          %v6001 = vld [vmem:[#allocation7 + $0x4b8] sm:$0xff]
          %v6002 = vld [vmem:[#allocation7 + $0x4c0] sm:$0xff]
          %v6003 = vld [vmem:[#allocation7 + $0x4c8] sm:$0xff]
          %v6004 = vld [vmem:[#allocation7 + $0x4d0] sm:$0xff]
          %v6005 = vld [vmem:[#allocation7 + $0x4d8] sm:$0xff]
          %v6006 = vld [vmem:[#allocation7 + $0x4e0] sm:$0xff]
          %v6007 = vld [vmem:[#allocation7 + $0x4e8] sm:$0xff]
          %v6008 = vld [vmem:[#allocation7 + $0x4f0] sm:$0xff]
          %v6009 = vld [vmem:[#allocation7 + $0x4f8] sm:$0xff]
          %v6010 = vld [vmem:[#allocation7 + $0x500] sm:$0xff]
          %v6011 = vld [vmem:[#allocation7 + $0x508] sm:$0xff]
          %v6012 = vld [vmem:[#allocation7 + $0x510] sm:$0xff]
          %v6013 = vld [vmem:[#allocation7 + $0x518] sm:$0xff]
          %v6014 = vld [vmem:[#allocation7 + $0x520] sm:$0xff]
          %v6015 = vld [vmem:[#allocation7 + $0x528] sm:$0xff]
          %v6016 = vld [vmem:[#allocation7 + $0x530] sm:$0xff]
          %v6017 = vld [vmem:[#allocation7 + $0x538] sm:$0xff]
          %v6018 = vld [vmem:[#allocation7 + $0x540] sm:$0xff]
          %v6019 = vld [vmem:[#allocation7 + $0x548] sm:$0xff]
          %v6020 = vld [vmem:[#allocation7 + $0x550] sm:$0xff]
          %v6021 = vld [vmem:[#allocation7 + $0x558] sm:$0xff]
          %v6022 = vld [vmem:[#allocation7 + $0x560] sm:$0xff]
          %v6023 = vld [vmem:[#allocation7 + $0x568] sm:$0xff]
          %v6024 = vld [vmem:[#allocation7 + $0x570] sm:$0xff]
          %v6025 = vld [vmem:[#allocation7 + $0x578] sm:$0xff]
          %v6026 = vld [vmem:[#allocation7 + $0x580] sm:$0xff]
          %v6027 = vld [vmem:[#allocation7 + $0x588] sm:$0xff]
          %v6028 = vld [vmem:[#allocation7 + $0x590] sm:$0xff]
          %v6029 = vld [vmem:[#allocation7 + $0x598] sm:$0xff]
          %v6030 = vld [vmem:[#allocation7 + $0x5a0] sm:$0xff]
          %v6031 = vld [vmem:[#allocation7 + $0x5a8] sm:$0xff]
          %v6032 = vld [vmem:[#allocation7 + $0x5b0] sm:$0xff]
          %v6033 = vld [vmem:[#allocation7 + $0x5b8] sm:$0xff]
          %v6034 = vld [vmem:[#allocation7 + $0x5c0] sm:$0xff]
          %v6035 = vld [vmem:[#allocation7 + $0x5c8] sm:$0xff]
          %v6036 = vld [vmem:[#allocation7 + $0x5d0] sm:$0xff]
          %v6037 = vld [vmem:[#allocation7 + $0x5d8] sm:$0xff]
          %v6038 = vld [vmem:[#allocation7 + $0x5e0] sm:$0xff]
          %v6039 = vld [vmem:[#allocation7 + $0x5e8] sm:$0xff]
          %v6040 = vld [vmem:[#allocation7 + $0x5f0] sm:$0xff]
          %v6041 = vld [vmem:[#allocation7 + $0x5f8] sm:$0xff]
          %v6042 = vld [vmem:[#allocation7 + $0x600] sm:$0xff]
          %v6043 = vld [vmem:[#allocation7 + $0x608] sm:$0xff]
          %v6044 = vld [vmem:[#allocation7 + $0x610] sm:$0xff]
          %v6045 = vld [vmem:[#allocation7 + $0x618] sm:$0xff]
          %v6046 = vld [vmem:[#allocation7 + $0x620] sm:$0xff]
          %v6047 = vld [vmem:[#allocation7 + $0x628] sm:$0xff]
          %v6048 = vld [vmem:[#allocation7 + $0x630] sm:$0xff]
          %v6049 = vld [vmem:[#allocation7 + $0x638] sm:$0xff]
          %v6050 = vld [vmem:[#allocation7 + $0x640] sm:$0xff]
          %v6051 = vld [vmem:[#allocation7 + $0x648] sm:$0xff]
          %v6052 = vld [vmem:[#allocation7 + $0x650] sm:$0xff]
          %v6053 = vld [vmem:[#allocation7 + $0x658] sm:$0xff]
          %v6054 = vld [vmem:[#allocation7 + $0x660] sm:$0xff]
          %v6055 = vld [vmem:[#allocation7 + $0x668] sm:$0xff]
          %v6056 = vld [vmem:[#allocation7 + $0x670] sm:$0xff]
          %v6057 = vld [vmem:[#allocation7 + $0x678] sm:$0xff]
          %v6058 = vld [vmem:[#allocation7 + $0x680] sm:$0xff]
          %v6059 = vld [vmem:[#allocation7 + $0x688] sm:$0xff]
          %v6060 = vld [vmem:[#allocation7 + $0x690] sm:$0xff]
          %v6061 = vld [vmem:[#allocation7 + $0x698] sm:$0xff]
          %v6062 = vld [vmem:[#allocation7 + $0x6a0] sm:$0xff]
          %v6063 = vld [vmem:[#allocation7 + $0x6a8] sm:$0xff]
          %v6064 = vld [vmem:[#allocation7 + $0x6b0] sm:$0xff]
          %v6065 = vld [vmem:[#allocation7 + $0x6b8] sm:$0xff]
          %v6066 = vld [vmem:[#allocation7 + $0x6c0] sm:$0xff]
          %v6067 = vld [vmem:[#allocation7 + $0x6c8] sm:$0xff]
          %v6068 = vld [vmem:[#allocation7 + $0x6d0] sm:$0xff]
          %v6069 = vld [vmem:[#allocation7 + $0x6d8] sm:$0xff]
          %v6070 = vld [vmem:[#allocation7 + $0x6e0] sm:$0xff]
          %v6071 = vld [vmem:[#allocation7 + $0x6e8] sm:$0xff]
          %v6072 = vld [vmem:[#allocation7 + $0x6f0] sm:$0xff]
          %v6073 = vld [vmem:[#allocation7 + $0x6f8] sm:$0xff]
          %v6074 = vld [vmem:[#allocation7 + $0x700] sm:$0xff]
          %v6075 = vld [vmem:[#allocation7 + $0x708] sm:$0xff]
          %v6076 = vld [vmem:[#allocation7 + $0x710] sm:$0xff]
          %v6077 = vld [vmem:[#allocation7 + $0x718] sm:$0xff]
          %v6078 = vld [vmem:[#allocation7 + $0x720] sm:$0xff]
          %v6079 = vld [vmem:[#allocation7 + $0x728] sm:$0xff]
          %v6080 = vld [vmem:[#allocation7 + $0x730] sm:$0xff]
          %v6081 = vld [vmem:[#allocation7 + $0x738] sm:$0xff]
          %v6082 = vld [vmem:[#allocation7 + $0x740] sm:$0xff]
          %v6083 = vld [vmem:[#allocation7 + $0x748] sm:$0xff]
          %v6084 = vld [vmem:[#allocation7 + $0x750] sm:$0xff]
          %v6085 = vld [vmem:[#allocation7 + $0x758] sm:$0xff]
          %v6086 = vld [vmem:[#allocation7 + $0x760] sm:$0xff]
          %v6087 = vld [vmem:[#allocation7 + $0x768] sm:$0xff]
          %v6088 = vld [vmem:[#allocation7 + $0x770] sm:$0xff]
          %v6089 = vld [vmem:[#allocation7 + $0x778] sm:$0xff]
          %v6090 = vld [vmem:[#allocation7 + $0x780] sm:$0xff]
          %v6091 = vld [vmem:[#allocation7 + $0x788] sm:$0xff]
          %v6092 = vld [vmem:[#allocation7 + $0x790] sm:$0xff]
          %v6093 = vld [vmem:[#allocation7 + $0x798] sm:$0xff]
          %v6094 = vld [vmem:[#allocation7 + $0x7a0] sm:$0xff]
          %v6095 = vld [vmem:[#allocation7 + $0x7a8] sm:$0xff]
          %v6096 = vld [vmem:[#allocation7 + $0x7b0] sm:$0xff]
          %v6097 = vld [vmem:[#allocation7 + $0x7b8] sm:$0xff]
          %v6098 = vld [vmem:[#allocation7 + $0x7c0] sm:$0xff]
          %v6099 = vld [vmem:[#allocation7 + $0x7c8] sm:$0xff]
          %v6100 = vld [vmem:[#allocation7 + $0x7d0] sm:$0xff]
          %v6101 = vld [vmem:[#allocation7 + $0x7d8] sm:$0xff]
          %v6102 = vld [vmem:[#allocation7 + $0x7e0] sm:$0xff]
          %v6103 = vld [vmem:[#allocation7 + $0x7e8] sm:$0xff]
          %v6104 = vld [vmem:[#allocation7 + $0x7f0] sm:$0xff]
          %v6105 = vld [vmem:[#allocation7 + $0x7f8] sm:$0xff]
          %v6106 = vld [vmem:[#allocation7 + $0x800] sm:$0xff]
          %v6107 = vld [vmem:[#allocation7 + $0x808] sm:$0xff]
          %v6108 = vld [vmem:[#allocation7 + $0x810] sm:$0xff]
          %v6109 = vld [vmem:[#allocation7 + $0x818] sm:$0xff]
          %v6110 = vld [vmem:[#allocation7 + $0x820] sm:$0xff]
          %v6111 = vld [vmem:[#allocation7 + $0x828] sm:$0xff]
          %v6112 = vld [vmem:[#allocation7 + $0x830] sm:$0xff]
          %v6113 = vld [vmem:[#allocation7 + $0x838] sm:$0xff]
          %v6114 = vld [vmem:[#allocation7 + $0x840] sm:$0xff]
          %v6115 = vld [vmem:[#allocation7 + $0x848] sm:$0xff]
          %v6116 = vld [vmem:[#allocation7 + $0x850] sm:$0xff]
          %v6117 = vld [vmem:[#allocation7 + $0x858] sm:$0xff]
          %v6118 = vld [vmem:[#allocation7 + $0x860] sm:$0xff]
          %v6119 = vld [vmem:[#allocation7 + $0x868] sm:$0xff]
          %v6120 = vld [vmem:[#allocation7 + $0x870] sm:$0xff]
          %v6121 = vld [vmem:[#allocation7 + $0x878] sm:$0xff]
          %v6122 = vld [vmem:[#allocation7 + $0x880] sm:$0xff]
          %v6123 = vld [vmem:[#allocation7 + $0x888] sm:$0xff]
          %v6124 = vld [vmem:[#allocation7 + $0x890] sm:$0xff]
          %v6125 = vld [vmem:[#allocation7 + $0x898] sm:$0xff]
          %v6126 = vld [vmem:[#allocation7 + $0x8a0] sm:$0xff]
          %v6127 = vld [vmem:[#allocation7 + $0x8a8] sm:$0xff]
          %v6128 = vld [vmem:[#allocation7 + $0x8b0] sm:$0xff]
          %v6129 = vld [vmem:[#allocation7 + $0x8b8] sm:$0xff]
          %v6130 = vld [vmem:[#allocation7 + $0x8c0] sm:$0xff]
          %v6131 = vld [vmem:[#allocation7 + $0x8c8] sm:$0xff]
          %v6132 = vld [vmem:[#allocation7 + $0x8d0] sm:$0xff]
          %v6133 = vld [vmem:[#allocation7 + $0x8d8] sm:$0xff]
          %v6134 = vld [vmem:[#allocation7 + $0x8e0] sm:$0xff]
          %v6135 = vld [vmem:[#allocation7 + $0x8e8] sm:$0xff]
          %v6136 = vld [vmem:[#allocation7 + $0x8f0] sm:$0xff]
          %v6137 = vld [vmem:[#allocation7 + $0x8f8] sm:$0xff]
          %v6138 = vld [vmem:[#allocation7 + $0x900] sm:$0xff]
          %v6139 = vld [vmem:[#allocation7 + $0x908] sm:$0xff]
          %v6140 = vld [vmem:[#allocation7 + $0x910] sm:$0xff]
          %v6141 = vld [vmem:[#allocation7 + $0x918] sm:$0xff]
          %v6142 = vld [vmem:[#allocation7 + $0x920] sm:$0xff]
          %v6143 = vld [vmem:[#allocation7 + $0x928] sm:$0xff]
          %v6144 = vld [vmem:[#allocation7 + $0x930] sm:$0xff]
          %v6145 = vld [vmem:[#allocation7 + $0x938] sm:$0xff]
          %v6146 = vld [vmem:[#allocation7 + $0x940] sm:$0xff]
          %v6147 = vld [vmem:[#allocation7 + $0x948] sm:$0xff]
          %v6148 = vld [vmem:[#allocation7 + $0x950] sm:$0xff]
          %v6149 = vld [vmem:[#allocation7 + $0x958] sm:$0xff]
          %v6150 = vld [vmem:[#allocation7 + $0x960] sm:$0xff]
          %v6151 = vld [vmem:[#allocation7 + $0x968] sm:$0xff]
          %v6152 = vld [vmem:[#allocation7 + $0x970] sm:$0xff]
          %v6153 = vld [vmem:[#allocation7 + $0x978] sm:$0xff]
          %v6154 = vld [vmem:[#allocation7 + $0x980] sm:$0xff]
          %v6155 = vld [vmem:[#allocation7 + $0x988] sm:$0xff]
          %v6156 = vld [vmem:[#allocation7 + $0x990] sm:$0xff]
          %v6157 = vld [vmem:[#allocation7 + $0x998] sm:$0xff]
          %v6158 = vld [vmem:[#allocation7 + $0x9a0] sm:$0xff]
          %v6159 = vld [vmem:[#allocation7 + $0x9a8] sm:$0xff]
          %v6160 = vld [vmem:[#allocation7 + $0x9b0] sm:$0xff]
          %v6161 = vld [vmem:[#allocation7 + $0x9b8] sm:$0xff]
          %v6162 = vld [vmem:[#allocation7 + $0x9c0] sm:$0xff]
          %v6163 = vld [vmem:[#allocation7 + $0x9c8] sm:$0xff]
          %v6164 = vld [vmem:[#allocation7 + $0x9d0] sm:$0xff]
          %v6165 = vld [vmem:[#allocation7 + $0x9d8] sm:$0xff]
          %v6166 = vld [vmem:[#allocation7 + $0x9e0] sm:$0xff]
          %v6167 = vld [vmem:[#allocation7 + $0x9e8] sm:$0xff]
          %v6168 = vld [vmem:[#allocation7 + $0x9f0] sm:$0xff]
          %v6169 = vld [vmem:[#allocation7 + $0x9f8] sm:$0xff]
          %v6170 = vld [vmem:[#allocation7 + $0xa00] sm:$0xff]
          %v6171 = vld [vmem:[#allocation7 + $0xa08] sm:$0xff]
          %v6172 = vld [vmem:[#allocation7 + $0xa10] sm:$0xff]
          %v6173 = vld [vmem:[#allocation7 + $0xa18] sm:$0xff]
          %v6174 = vld [vmem:[#allocation7 + $0xa20] sm:$0xff]
          %v6175 = vld [vmem:[#allocation7 + $0xa28] sm:$0xff]
          %v6176 = vld [vmem:[#allocation7 + $0xa30] sm:$0xff]
          %v6177 = vld [vmem:[#allocation7 + $0xa38] sm:$0xff]
          %v6178 = vld [vmem:[#allocation7 + $0xa40] sm:$0xff]
          %v6179 = vld [vmem:[#allocation7 + $0xa48] sm:$0xff]
          %v6180 = vld [vmem:[#allocation7 + $0xa50] sm:$0xff]
          %v6181 = vld [vmem:[#allocation7 + $0xa58] sm:$0xff]
          %v6182 = vld [vmem:[#allocation7 + $0xa60] sm:$0xff]
          %v6183 = vld [vmem:[#allocation7 + $0xa68] sm:$0xff]
          %v6184 = vld [vmem:[#allocation7 + $0xa70] sm:$0xff]
          %v6185 = vld [vmem:[#allocation7 + $0xa78] sm:$0xff]
          %v6186 = vld [vmem:[#allocation7 + $0xa80] sm:$0xff]
          %v6187 = vld [vmem:[#allocation7 + $0xa88] sm:$0xff]
          %v6188 = vld [vmem:[#allocation7 + $0xa90] sm:$0xff]
          %v6189 = vld [vmem:[#allocation7 + $0xa98] sm:$0xff]
          %v6190 = vld [vmem:[#allocation7 + $0xaa0] sm:$0xff]
          %v6191 = vld [vmem:[#allocation7 + $0xaa8] sm:$0xff]
          %v6192 = vld [vmem:[#allocation7 + $0xab0] sm:$0xff]
          %v6193 = vld [vmem:[#allocation7 + $0xab8] sm:$0xff]
          %v6194 = vld [vmem:[#allocation7 + $0xac0] sm:$0xff]
          %v6195 = vld [vmem:[#allocation7 + $0xac8] sm:$0xff]
          %v6196 = vld [vmem:[#allocation7 + $0xad0] sm:$0xff]
          %v6197 = vld [vmem:[#allocation7 + $0xad8] sm:$0xff]
          %v6198 = vld [vmem:[#allocation7 + $0xae0] sm:$0xff]
          %v6199 = vld [vmem:[#allocation7 + $0xae8] sm:$0xff]
          %v6200 = vld [vmem:[#allocation7 + $0xaf0] sm:$0xff]
          %v6201 = vld [vmem:[#allocation7 + $0xaf8] sm:$0xff]
          %v6202 = vld [vmem:[#allocation7 + $0xb00] sm:$0xff]
          %v6203 = vld [vmem:[#allocation7 + $0xb08] sm:$0xff]
          %v6204 = vld [vmem:[#allocation7 + $0xb10] sm:$0xff]
          %v6205 = vld [vmem:[#allocation7 + $0xb18] sm:$0xff]
          %v6206 = vld [vmem:[#allocation7 + $0xb20] sm:$0xff]
          %v6207 = vld [vmem:[#allocation7 + $0xb28] sm:$0xff]
          %v6208 = vld [vmem:[#allocation7 + $0xb30] sm:$0xff]
          %v6209 = vld [vmem:[#allocation7 + $0xb38] sm:$0xff]
          %v6210 = vld [vmem:[#allocation7 + $0xb40] sm:$0xff]
          %v6211 = vld [vmem:[#allocation7 + $0xb48] sm:$0xff]
          %v6212 = vld [vmem:[#allocation7 + $0xb50] sm:$0xff]
          %v6213 = vld [vmem:[#allocation7 + $0xb58] sm:$0xff]
          %v6214 = vld [vmem:[#allocation7 + $0xb60] sm:$0xff]
          %v6215 = vld [vmem:[#allocation7 + $0xb68] sm:$0xff]
          %v6216 = vld [vmem:[#allocation7 + $0xb70] sm:$0xff]
          %v6217 = vld [vmem:[#allocation7 + $0xb78] sm:$0xff]
          %v6218 = vld [vmem:[#allocation7 + $0xb80] sm:$0xff]
          %v6219 = vld [vmem:[#allocation7 + $0xb88] sm:$0xff]
          %v6220 = vld [vmem:[#allocation7 + $0xb90] sm:$0xff]
          %v6221 = vld [vmem:[#allocation7 + $0xb98] sm:$0xff]
          %v6222 = vld [vmem:[#allocation7 + $0xba0] sm:$0xff]
          %v6223 = vld [vmem:[#allocation7 + $0xba8] sm:$0xff]
          %v6224 = vld [vmem:[#allocation7 + $0xbb0] sm:$0xff]
          %v6225 = vld [vmem:[#allocation7 + $0xbb8] sm:$0xff]
          %v6226 = vld [vmem:[#allocation7 + $0xbc0] sm:$0xff]
          %v6227 = vld [vmem:[#allocation7 + $0xbc8] sm:$0xff]
          %v6228 = vld [vmem:[#allocation7 + $0xbd0] sm:$0xff]
          %v6229 = vld [vmem:[#allocation7 + $0xbd8] sm:$0xff]
          %v6230 = vld [vmem:[#allocation7 + $0xbe0] sm:$0xff]
          %v6231 = vld [vmem:[#allocation7 + $0xbe8] sm:$0xff]
          %v6232 = vld [vmem:[#allocation7 + $0xbf0] sm:$0xff]
          %v6233 = vld [vmem:[#allocation7 + $0xbf8] sm:$0xff]
          %v6234 = vld [vmem:[#allocation7 + $0xc00] sm:$0xff]
          %v6235 = vld [vmem:[#allocation7 + $0xc08] sm:$0xff]
          %v6236 = vld [vmem:[#allocation7 + $0xc10] sm:$0xff]
          %v6237 = vld [vmem:[#allocation7 + $0xc18] sm:$0xff]
          %v6238 = vld [vmem:[#allocation7 + $0xc20] sm:$0xff]
          %v6239 = vld [vmem:[#allocation7 + $0xc28] sm:$0xff]
          %v6240 = vld [vmem:[#allocation7 + $0xc30] sm:$0xff]
          %v6241 = vld [vmem:[#allocation7 + $0xc38] sm:$0xff]
          %v6242 = vld [vmem:[#allocation7 + $0xc40] sm:$0xff]
          %v6243 = vld [vmem:[#allocation7 + $0xc48] sm:$0xff]
          %v6244 = vld [vmem:[#allocation7 + $0xc50] sm:$0xff]
          %v6245 = vld [vmem:[#allocation7 + $0xc58] sm:$0xff]
          %v6246 = vld [vmem:[#allocation7 + $0xc60] sm:$0xff]
          %v6247 = vld [vmem:[#allocation7 + $0xc68] sm:$0xff]
          %v6248 = vld [vmem:[#allocation7 + $0xc70] sm:$0xff]
          %v6249 = vld [vmem:[#allocation7 + $0xc78] sm:$0xff]
          %v6250 = vld [vmem:[#allocation7 + $0xc80] sm:$0xff]
          %v6251 = vld [vmem:[#allocation7 + $0xc88] sm:$0xff]
          %v6252 = vld [vmem:[#allocation7 + $0xc90] sm:$0xff]
          %v6253 = vld [vmem:[#allocation7 + $0xc98] sm:$0xff]
          %v6254 = vld [vmem:[#allocation7 + $0xca0] sm:$0xff]
          %v6255 = vld [vmem:[#allocation7 + $0xca8] sm:$0xff]
          %v6256 = vld [vmem:[#allocation7 + $0xcb0] sm:$0xff]
          %v6257 = vld [vmem:[#allocation7 + $0xcb8] sm:$0xff]
          %v6258 = vld [vmem:[#allocation7 + $0xcc0] sm:$0xff]
          %v6259 = vld [vmem:[#allocation7 + $0xcc8] sm:$0xff]
          %v6260 = vld [vmem:[#allocation7 + $0xcd0] sm:$0xff]
          %v6261 = vld [vmem:[#allocation7 + $0xcd8] sm:$0xff]
          %v6262 = vld [vmem:[#allocation7 + $0xce0] sm:$0xff]
          %v6263 = vld [vmem:[#allocation7 + $0xce8] sm:$0xff]
          %v6264 = vld [vmem:[#allocation7 + $0xcf0] sm:$0xff]
          %v6265 = vld [vmem:[#allocation7 + $0xcf8] sm:$0xff]
          %v6266 = vld [vmem:[#allocation7 + $0xd00] sm:$0xff]
          %v6267 = vld [vmem:[#allocation7 + $0xd08] sm:$0xff]
          %v6268 = vld [vmem:[#allocation7 + $0xd10] sm:$0xff]
          %v6269 = vld [vmem:[#allocation7 + $0xd18] sm:$0xff]
          %v6270 = vld [vmem:[#allocation7 + $0xd20] sm:$0xff]
          %v6271 = vld [vmem:[#allocation7 + $0xd28] sm:$0xff]
          %v6272 = vld [vmem:[#allocation7 + $0xd30] sm:$0xff]
          %v6273 = vld [vmem:[#allocation7 + $0xd38] sm:$0xff]
          %v6274 = vld [vmem:[#allocation7 + $0xd40] sm:$0xff]
          %v6275 = vld [vmem:[#allocation7 + $0xd48] sm:$0xff]
          %v6276 = vld [vmem:[#allocation7 + $0xd50] sm:$0xff]
          %v6277 = vld [vmem:[#allocation7 + $0xd58] sm:$0xff]
          %v6278 = vld [vmem:[#allocation7 + $0xd60] sm:$0xff]
          %v6279 = vld [vmem:[#allocation7 + $0xd68] sm:$0xff]
          %v6280 = vld [vmem:[#allocation7 + $0xd70] sm:$0xff]
          %v6281 = vld [vmem:[#allocation7 + $0xd78] sm:$0xff]
          %v6282 = vld [vmem:[#allocation7 + $0xd80] sm:$0xff]
          %v6283 = vld [vmem:[#allocation7 + $0xd88] sm:$0xff]
          %v6284 = vld [vmem:[#allocation7 + $0xd90] sm:$0xff]
          %v6285 = vld [vmem:[#allocation7 + $0xd98] sm:$0xff]
          %v6286 = vld [vmem:[#allocation7 + $0xda0] sm:$0xff]
          %v6287 = vld [vmem:[#allocation7 + $0xda8] sm:$0xff]
          %v6288 = vld [vmem:[#allocation7 + $0xdb0] sm:$0xff]
          %v6289 = vld [vmem:[#allocation7 + $0xdb8] sm:$0xff]
          %v6290 = vld [vmem:[#allocation7 + $0xdc0] sm:$0xff]
          %v6291 = vld [vmem:[#allocation7 + $0xdc8] sm:$0xff]
          %v6292 = vld [vmem:[#allocation7 + $0xdd0] sm:$0xff]
          %v6293 = vld [vmem:[#allocation7 + $0xdd8] sm:$0xff]
          %v6294 = vld [vmem:[#allocation7 + $0xde0] sm:$0xff]
          %v6295 = vld [vmem:[#allocation7 + $0xde8] sm:$0xff]
          %v6296 = vld [vmem:[#allocation7 + $0xdf0] sm:$0xff]
          %v6297 = vld [vmem:[#allocation7 + $0xdf8] sm:$0xff]
          %v6298 = vld [vmem:[#allocation7 + $0xe00] sm:$0xff]
          %v6299 = vld [vmem:[#allocation7 + $0xe08] sm:$0xff]
          %v6300 = vld [vmem:[#allocation7 + $0xe10] sm:$0xff]
          %v6301 = vld [vmem:[#allocation7 + $0xe18] sm:$0xff]
          %v6302 = vld [vmem:[#allocation7 + $0xe20] sm:$0xff]
          %v6303 = vld [vmem:[#allocation7 + $0xe28] sm:$0xff]
          %v6304 = vld [vmem:[#allocation7 + $0xe30] sm:$0xff]
          %v6305 = vld [vmem:[#allocation7 + $0xe38] sm:$0xff]
          %v6306 = vld [vmem:[#allocation7 + $0xe40] sm:$0xff]
          %v6307 = vld [vmem:[#allocation7 + $0xe48] sm:$0xff]
          %v6308 = vld [vmem:[#allocation7 + $0xe50] sm:$0xff]
          %v6309 = vld [vmem:[#allocation7 + $0xe58] sm:$0xff]
          %v6310 = vld [vmem:[#allocation7 + $0xe60] sm:$0xff]
          %v6311 = vld [vmem:[#allocation7 + $0xe68] sm:$0xff]
          %v6312 = vld [vmem:[#allocation7 + $0xe70] sm:$0xff]
          %v6313 = vld [vmem:[#allocation7 + $0xe78] sm:$0xff]
          %v6314 = vld [vmem:[#allocation7 + $0xe80] sm:$0xff]
          %v6315 = vld [vmem:[#allocation7 + $0xe88] sm:$0xff]
          %v6316 = vld [vmem:[#allocation7 + $0xe90] sm:$0xff]
          %v6317 = vld [vmem:[#allocation7 + $0xe98] sm:$0xff]
          %v6318 = vld [vmem:[#allocation7 + $0xea0] sm:$0xff]
          %v6319 = vld [vmem:[#allocation7 + $0xea8] sm:$0xff]
          %v6320 = vld [vmem:[#allocation7 + $0xeb0] sm:$0xff]
          %v6321 = vld [vmem:[#allocation7 + $0xeb8] sm:$0xff]
          %v6322 = vld [vmem:[#allocation7 + $0xec0] sm:$0xff]
          %v6323 = vld [vmem:[#allocation7 + $0xec8] sm:$0xff]
          %v6324 = vld [vmem:[#allocation7 + $0xed0] sm:$0xff]
          %v6325 = vld [vmem:[#allocation7 + $0xed8] sm:$0xff]
          %v6326 = vld [vmem:[#allocation7 + $0xee0] sm:$0xff]
          %v6327 = vld [vmem:[#allocation7 + $0xee8] sm:$0xff]
          %v6328 = vld [vmem:[#allocation7 + $0xef0] sm:$0xff]
          %v6329 = vld [vmem:[#allocation7 + $0xef8] sm:$0xff]
          %v6330 = vld [vmem:[#allocation7 + $0xf00] sm:$0xff]
          %v6331 = vld [vmem:[#allocation7 + $0xf08] sm:$0xff]
          %v6332 = vld [vmem:[#allocation7 + $0xf10] sm:$0xff]
          %v6333 = vld [vmem:[#allocation7 + $0xf18] sm:$0xff]
          %v6334 = vld [vmem:[#allocation7 + $0xf20] sm:$0xff]
          %v6335 = vld [vmem:[#allocation7 + $0xf28] sm:$0xff]
          %v6336 = vld [vmem:[#allocation7 + $0xf30] sm:$0xff]
          %v6337 = vld [vmem:[#allocation7 + $0xf38] sm:$0xff]
          %v6338 = vld [vmem:[#allocation7 + $0xf40] sm:$0xff]
          %v6339 = vld [vmem:[#allocation7 + $0xf48] sm:$0xff]
          %v6340 = vld [vmem:[#allocation7 + $0xf50] sm:$0xff]
          %v6341 = vld [vmem:[#allocation7 + $0xf58] sm:$0xff]
          %v6342 = vld [vmem:[#allocation7 + $0xf60] sm:$0xff]
          %v6343 = vld [vmem:[#allocation7 + $0xf68] sm:$0xff]
          %v6344 = vld [vmem:[#allocation7 + $0xf70] sm:$0xff]
          %v6345 = vld [vmem:[#allocation7 + $0xf78] sm:$0xff]
          %v6346 = vld [vmem:[#allocation7 + $0xf80] sm:$0xff]
          %v6347 = vld [vmem:[#allocation7 + $0xf88] sm:$0xff]
          %v6348 = vld [vmem:[#allocation7 + $0xf90] sm:$0xff]
          %v6349 = vld [vmem:[#allocation7 + $0xf98] sm:$0xff]
          %v6350 = vld [vmem:[#allocation7 + $0xfa0] sm:$0xff]
          %v6351 = vld [vmem:[#allocation7 + $0xfa8] sm:$0xff]
          %v6352 = vld [vmem:[#allocation7 + $0xfb0] sm:$0xff]
          %v6353 = vld [vmem:[#allocation7 + $0xfb8] sm:$0xff]
          %v6354 = vld [vmem:[#allocation7 + $0xfc0] sm:$0xff]
          %v6355 = vld [vmem:[#allocation7 + $0xfc8] sm:$0xff]
          %v6356 = vld [vmem:[#allocation7 + $0xfd0] sm:$0xff]
          %v6357 = vld [vmem:[#allocation7 + $0xfd8] sm:$0xff]
          %v6358 = vld [vmem:[#allocation7 + $0xfe0] sm:$0xff]
          %v6359 = vld [vmem:[#allocation7 + $0xfe8] sm:$0xff]
          %v6360 = vld [vmem:[#allocation7 + $0xff0] sm:$0xff]
          %v6361 = vld [vmem:[#allocation7 + $0xff8] sm:$0xff]
          %v6362 = vld [vmem:[#allocation18] sm:$0xff]
          %v6364 = vlaneseq
          %v6365 = vshrl.u32 %v6364, 7
          %v6366 = vsub.s32 0, %v6365
          %v6367 = vrot.slane %v6362, %v6366
          %v6368 = vlaneseq
          %v6369 = vshrl.u32 %v6368, 7
          %v6370 = vsub.s32 1, %v6369
          %v6371 = vrot.slane %v6362, %v6370
          %v6372 = vlaneseq
          %v6373 = vshrl.u32 %v6372, 7
          %v6374 = vsub.s32 2, %v6373
          %v6375 = vrot.slane %v6362, %v6374
          %v6376 = vlaneseq
          %v6377 = vshrl.u32 %v6376, 7
          %v6378 = vsub.s32 3, %v6377
          %v6379 = vrot.slane %v6362, %v6378
          %v6380 = vlaneseq
          %v6381 = vshrl.u32 %v6380, 7
          %v6382 = vsub.s32 4, %v6381
          %v6383 = vrot.slane %v6362, %v6382
          %v6384 = vlaneseq
          %v6385 = vshrl.u32 %v6384, 7
          %v6386 = vsub.s32 5, %v6385
          %v6387 = vrot.slane %v6362, %v6386
          %v6388 = vlaneseq
          %v6389 = vshrl.u32 %v6388, 7
          %v6390 = vsub.s32 6, %v6389
          %v6391 = vrot.slane %v6362, %v6390
          %v6392 = vlaneseq
          %v6393 = vshrl.u32 %v6392, 7
          %v6394 = vsub.s32 7, %v6393
          %v6395 = vrot.slane %v6362, %v6394
          %6404 = vmatprep.subr.bf16.mxu0 %v5851
          %6405 = vmatpush1.bf16.msra.mxu0 %v5850
          %6406 = vmatprep.subr.bf16.mxu0 %v5859
          %6407 = vmatpush1.bf16.msra.mxu0 %v5858
          %6408 = vmatprep.subr.bf16.mxu0 %v5867
          %6409 = vmatpush1.bf16.msra.mxu0 %v5866
          %6410 = vmatprep.subr.bf16.mxu0 %v5875
          %6411 = vmatpush1.bf16.msra.mxu0 %v5874
          %6412 = vmatprep.subr.bf16.mxu0 %v5883
          %6413 = vmatpush1.bf16.msra.mxu0 %v5882
          %6414 = vmatprep.subr.bf16.mxu0 %v5891
          %6415 = vmatpush1.bf16.msra.mxu0 %v5890
          %6416 = vmatprep.subr.bf16.mxu0 %v5899
          %6417 = vmatpush1.bf16.msra.mxu0 %v5898
          %6418 = vmatprep.subr.bf16.mxu0 %v5907
          %6419 = vmatpush1.bf16.msra.mxu0 %v5906
          %6420 = vmatprep.subr.bf16.mxu0 %v5915
          %6421 = vmatpush1.bf16.msra.mxu0 %v5914
          %6422 = vmatprep.subr.bf16.mxu0 %v5923
          %6423 = vmatpush1.bf16.msra.mxu0 %v5922
          %6424 = vmatprep.subr.bf16.mxu0 %v5931
          %6425 = vmatpush1.bf16.msra.mxu0 %v5930
          %6426 = vmatprep.subr.bf16.mxu0 %v5939
          %6427 = vmatpush1.bf16.msra.mxu0 %v5938
          %6428 = vmatprep.subr.bf16.mxu0 %v5947
          %6429 = vmatpush1.bf16.msra.mxu0 %v5946
          %6430 = vmatprep.subr.bf16.mxu0 %v5955
          %6431 = vmatpush1.bf16.msra.mxu0 %v5954
          %6432 = vmatprep.subr.bf16.mxu0 %v5963
          %6433 = vmatpush1.bf16.msra.mxu0 %v5962
          %6434 = vmatprep.subr.bf16.mxu0 %v5971
          %6435 = vmatpush1.bf16.msra.mxu0 %v5970
          %6436 = vmatprep.mubr.bf16.mxu0 %v5843
          %6437 = vmatmul.mubr.bf16.gmra.mrb[0].mxu0 %v5842
          %v6438 = vpop.f32.mrb[0].mxu0
          %v6439 = vadd.f32 %v6367, %v6438
          %v6440 = vpop.f32.mrb[0].mxu0
          %v6441 = vadd.f32 %v6371, %v6440
          %v6442 = vpop.f32.mrb[0].mxu0
          %v6443 = vpop.f32.mrb[0].mxu0
          %6444 = vdwg.mxu0
          %6445 = vmatprep.subr.bf16.mxu0 %v5979
          %6446 = vmatpush1.bf16.msra.mxu0 %v5978
          %6447 = vmatprep.subr.bf16.mxu0 %v5987
          %6448 = vmatpush1.bf16.msra.mxu0 %v5986
          %6449 = vmatprep.subr.bf16.mxu0 %v5995
          %6450 = vmatpush1.bf16.msra.mxu0 %v5994
          %6451 = vmatprep.subr.bf16.mxu0 %v6003
          %6452 = vmatpush1.bf16.msra.mxu0 %v6002
          %6453 = vmatprep.subr.bf16.mxu0 %v6011
          %6454 = vmatpush1.bf16.msra.mxu0 %v6010
          %6455 = vmatprep.subr.bf16.mxu0 %v6019
          %6456 = vmatpush1.bf16.msra.mxu0 %v6018
          %6457 = vmatprep.subr.bf16.mxu0 %v6027
          %6458 = vmatpush1.bf16.msra.mxu0 %v6026
          %6459 = vmatprep.subr.bf16.mxu0 %v6035
          %6460 = vmatpush1.bf16.msra.mxu0 %v6034
          %6461 = vmatprep.subr.bf16.mxu0 %v6043
          %6462 = vmatpush1.bf16.msra.mxu0 %v6042
          %6463 = vmatprep.subr.bf16.mxu0 %v6051
          %6464 = vmatpush1.bf16.msra.mxu0 %v6050
          %6465 = vmatprep.subr.bf16.mxu0 %v6059
          %6466 = vmatpush1.bf16.msra.mxu0 %v6058
          %6467 = vmatprep.subr.bf16.mxu0 %v6067
          %6468 = vmatpush1.bf16.msra.mxu0 %v6066
          %6469 = vmatprep.subr.bf16.mxu0 %v6075
          %6470 = vmatpush1.bf16.msra.mxu0 %v6074
          %6471 = vmatprep.subr.bf16.mxu0 %v6083
          %6472 = vmatpush1.bf16.msra.mxu0 %v6082
          %6473 = vmatprep.subr.bf16.mxu0 %v6091
          %6474 = vmatpush1.bf16.msra.mxu0 %v6090
          %6475 = vmatprep.subr.bf16.mxu0 %v6099
          %6476 = vmatpush1.bf16.msra.mxu0 %v6098
          %6477 = vmatprep.mubr.bf16.mxu0 %v5845
          %6478 = vmatmul.mubr.bf16.gmra.mrb[0].mxu0 %v5844
          %v6479 = vpop.f32.mrb[0].mxu0
          %v6480 = vadd.f32 %v6439, %v6479
          %v6481 = vpop.f32.mrb[0].mxu0
          %v6482 = vadd.f32 %v6441, %v6481
          %v6483 = vpop.f32.mrb[0].mxu0
          %v6484 = vpop.f32.mrb[0].mxu0
          %6485 = vdwg.mxu0
          %6486 = vmatprep.subr.bf16.mxu0 %v6107
          %6487 = vmatpush1.bf16.msra.mxu0 %v6106
          %6488 = vmatprep.subr.bf16.mxu0 %v6115
          %6489 = vmatpush1.bf16.msra.mxu0 %v6114
          %6490 = vmatprep.subr.bf16.mxu0 %v6123
          %6491 = vmatpush1.bf16.msra.mxu0 %v6122
          %6492 = vmatprep.subr.bf16.mxu0 %v6131
          %6493 = vmatpush1.bf16.msra.mxu0 %v6130
          %6494 = vmatprep.subr.bf16.mxu0 %v6139
          %6495 = vmatpush1.bf16.msra.mxu0 %v6138
          %6496 = vmatprep.subr.bf16.mxu0 %v6147
          %6497 = vmatpush1.bf16.msra.mxu0 %v6146
          %6498 = vmatprep.subr.bf16.mxu0 %v6155
          %6499 = vmatpush1.bf16.msra.mxu0 %v6154
          %6500 = vmatprep.subr.bf16.mxu0 %v6163
          %6501 = vmatpush1.bf16.msra.mxu0 %v6162
          %6502 = vmatprep.subr.bf16.mxu0 %v6171
          %6503 = vmatpush1.bf16.msra.mxu0 %v6170
          %6504 = vmatprep.subr.bf16.mxu0 %v6179
          %6505 = vmatpush1.bf16.msra.mxu0 %v6178
          %6506 = vmatprep.subr.bf16.mxu0 %v6187
          %6507 = vmatpush1.bf16.msra.mxu0 %v6186
          %6508 = vmatprep.subr.bf16.mxu0 %v6195
          %6509 = vmatpush1.bf16.msra.mxu0 %v6194
          %6510 = vmatprep.subr.bf16.mxu0 %v6203
          %6511 = vmatpush1.bf16.msra.mxu0 %v6202
          %6512 = vmatprep.subr.bf16.mxu0 %v6211
          %6513 = vmatpush1.bf16.msra.mxu0 %v6210
          %6514 = vmatprep.subr.bf16.mxu0 %v6219
          %6515 = vmatpush1.bf16.msra.mxu0 %v6218
          %6516 = vmatprep.subr.bf16.mxu0 %v6227
          %6517 = vmatpush1.bf16.msra.mxu0 %v6226
          %6518 = vmatprep.mubr.bf16.mxu0 %v5847
          %6519 = vmatmul.mubr.bf16.gmra.mrb[0].mxu0 %v5846
          %v6520 = vpop.f32.mrb[0].mxu0
          %v6521 = vadd.f32 %v6480, %v6520
          %v6522 = vpop.f32.mrb[0].mxu0
          %v6523 = vadd.f32 %v6482, %v6522
          %v6524 = vpop.f32.mrb[0].mxu0
          %v6525 = vpop.f32.mrb[0].mxu0
          %6526 = vdwg.mxu0
          %6527 = vmatprep.subr.bf16.mxu0 %v6235
          %6528 = vmatpush1.bf16.msra.mxu0 %v6234
          %6529 = vmatprep.subr.bf16.mxu0 %v6243
          %6530 = vmatpush1.bf16.msra.mxu0 %v6242
          %6531 = vmatprep.subr.bf16.mxu0 %v6251
          %6532 = vmatpush1.bf16.msra.mxu0 %v6250
          %6533 = vmatprep.subr.bf16.mxu0 %v6259
          %6534 = vmatpush1.bf16.msra.mxu0 %v6258
          %6535 = vmatprep.subr.bf16.mxu0 %v6267
          %6536 = vmatpush1.bf16.msra.mxu0 %v6266
          %6537 = vmatprep.subr.bf16.mxu0 %v6275
          %6538 = vmatpush1.bf16.msra.mxu0 %v6274
          %6539 = vmatprep.subr.bf16.mxu0 %v6283
          %6540 = vmatpush1.bf16.msra.mxu0 %v6282
          %6541 = vmatprep.subr.bf16.mxu0 %v6291
          %6542 = vmatpush1.bf16.msra.mxu0 %v6290
          %6543 = vmatprep.subr.bf16.mxu0 %v6299
          %6544 = vmatpush1.bf16.msra.mxu0 %v6298
          %6545 = vmatprep.subr.bf16.mxu0 %v6307
          %6546 = vmatpush1.bf16.msra.mxu0 %v6306
          %6547 = vmatprep.subr.bf16.mxu0 %v6315
          %6548 = vmatpush1.bf16.msra.mxu0 %v6314
          %6549 = vmatprep.subr.bf16.mxu0 %v6323
          %6550 = vmatpush1.bf16.msra.mxu0 %v6322
          %6551 = vmatprep.subr.bf16.mxu0 %v6331
          %6552 = vmatpush1.bf16.msra.mxu0 %v6330
          %6553 = vmatprep.subr.bf16.mxu0 %v6339
          %6554 = vmatpush1.bf16.msra.mxu0 %v6338
          %6555 = vmatprep.subr.bf16.mxu0 %v6347
          %6556 = vmatpush1.bf16.msra.mxu0 %v6346
          %6557 = vmatprep.subr.bf16.mxu0 %v6355
          %6558 = vmatpush1.bf16.msra.mxu0 %v6354
          %6559 = vmatprep.mubr.bf16.mxu0 %v5849
          %6560 = vmatmul.mubr.bf16.gmra.mrb[0].mxu0 %v5848
          %v6561 = vpop.f32.mrb[0].mxu0
          %v6562 = vadd.f32 %v6521, %v6561
          %v6563 = vpop.f32.mrb[0].mxu0
          %v6564 = vadd.f32 %v6523, %v6563
          %v6565 = vpop.f32.mrb[0].mxu0
          %v6566 = vpop.f32.mrb[0].mxu0
          %6567 = vdwg.mxu0
          %6568 = vmatprep.subr.bf16.mxu0 %v5853
          %6569 = vmatpush1.bf16.msra.mxu0 %v5852
          %6570 = vmatprep.subr.bf16.mxu0 %v5861
          %6571 = vmatpush1.bf16.msra.mxu0 %v5860
          %6572 = vmatprep.subr.bf16.mxu0 %v5869
          %6573 = vmatpush1.bf16.msra.mxu0 %v5868
          %6574 = vmatprep.subr.bf16.mxu0 %v5877
          %6575 = vmatpush1.bf16.msra.mxu0 %v5876
          %6576 = vmatprep.subr.bf16.mxu0 %v5885
          %6577 = vmatpush1.bf16.msra.mxu0 %v5884
          %6578 = vmatprep.subr.bf16.mxu0 %v5893
          %6579 = vmatpush1.bf16.msra.mxu0 %v5892
          %6580 = vmatprep.subr.bf16.mxu0 %v5901
          %6581 = vmatpush1.bf16.msra.mxu0 %v5900
          %6582 = vmatprep.subr.bf16.mxu0 %v5909
          %6583 = vmatpush1.bf16.msra.mxu0 %v5908
          %6584 = vmatprep.subr.bf16.mxu0 %v5917
          %6585 = vmatpush1.bf16.msra.mxu0 %v5916
          %6586 = vmatprep.subr.bf16.mxu0 %v5925
          %6587 = vmatpush1.bf16.msra.mxu0 %v5924
          %6588 = vmatprep.subr.bf16.mxu0 %v5933
          %6589 = vmatpush1.bf16.msra.mxu0 %v5932
          %6590 = vmatprep.subr.bf16.mxu0 %v5941
          %6591 = vmatpush1.bf16.msra.mxu0 %v5940
          %6592 = vmatprep.subr.bf16.mxu0 %v5949
          %6593 = vmatpush1.bf16.msra.mxu0 %v5948
          %6594 = vmatprep.subr.bf16.mxu0 %v5957
          %6595 = vmatpush1.bf16.msra.mxu0 %v5956
          %6596 = vmatprep.subr.bf16.mxu0 %v5965
          %6597 = vmatpush1.bf16.msra.mxu0 %v5964
          %6598 = vmatprep.subr.bf16.mxu0 %v5973
          %6599 = vmatpush1.bf16.msra.mxu0 %v5972
          %6600 = vmatprep.mubr.bf16.mxu0 %v5843
          %6601 = vmatmul.mubr.bf16.gmra.mrb[0].mxu0 %v5842
          %v6602 = vpop.f32.mrb[0].mxu0
          %v6603 = vadd.f32 %v6375, %v6602
          %v6604 = vpop.f32.mrb[0].mxu0
          %v6605 = vadd.f32 %v6379, %v6604
          %v6606 = vpop.f32.mrb[0].mxu0
          %v6607 = vpop.f32.mrb[0].mxu0
          %6608 = vdwg.mxu0
          %6609 = vmatprep.subr.bf16.mxu0 %v5981
          %6610 = vmatpush1.bf16.msra.mxu0 %v5980
          %6611 = vmatprep.subr.bf16.mxu0 %v5989
          %6612 = vmatpush1.bf16.msra.mxu0 %v5988
          %6613 = vmatprep.subr.bf16.mxu0 %v5997
          %6614 = vmatpush1.bf16.msra.mxu0 %v5996
          %6615 = vmatprep.subr.bf16.mxu0 %v6005
          %6616 = vmatpush1.bf16.msra.mxu0 %v6004
          %6617 = vmatprep.subr.bf16.mxu0 %v6013
          %6618 = vmatpush1.bf16.msra.mxu0 %v6012
          %6619 = vmatprep.subr.bf16.mxu0 %v6021
          %6620 = vmatpush1.bf16.msra.mxu0 %v6020
          %6621 = vmatprep.subr.bf16.mxu0 %v6029
          %6622 = vmatpush1.bf16.msra.mxu0 %v6028
          %6623 = vmatprep.subr.bf16.mxu0 %v6037
          %6624 = vmatpush1.bf16.msra.mxu0 %v6036
          %6625 = vmatprep.subr.bf16.mxu0 %v6045
          %6626 = vmatpush1.bf16.msra.mxu0 %v6044
          %6627 = vmatprep.subr.bf16.mxu0 %v6053
          %6628 = vmatpush1.bf16.msra.mxu0 %v6052
          %6629 = vmatprep.subr.bf16.mxu0 %v6061
          %6630 = vmatpush1.bf16.msra.mxu0 %v6060
          %6631 = vmatprep.subr.bf16.mxu0 %v6069
          %6632 = vmatpush1.bf16.msra.mxu0 %v6068
          %6633 = vmatprep.subr.bf16.mxu0 %v6077
          %6634 = vmatpush1.bf16.msra.mxu0 %v6076
          %6635 = vmatprep.subr.bf16.mxu0 %v6085
          %6636 = vmatpush1.bf16.msra.mxu0 %v6084
          %6637 = vmatprep.subr.bf16.mxu0 %v6093
          %6638 = vmatpush1.bf16.msra.mxu0 %v6092
          %6639 = vmatprep.subr.bf16.mxu0 %v6101
          %6640 = vmatpush1.bf16.msra.mxu0 %v6100
          %6641 = vmatprep.mubr.bf16.mxu0 %v5845
          %6642 = vmatmul.mubr.bf16.gmra.mrb[0].mxu0 %v5844
          %v6643 = vpop.f32.mrb[0].mxu0
          %v6644 = vadd.f32 %v6603, %v6643
          %v6645 = vpop.f32.mrb[0].mxu0
          %v6646 = vadd.f32 %v6605, %v6645
          %v6647 = vpop.f32.mrb[0].mxu0
          %v6648 = vpop.f32.mrb[0].mxu0
          %6649 = vdwg.mxu0
          %6650 = vmatprep.subr.bf16.mxu0 %v6109
          %6651 = vmatpush1.bf16.msra.mxu0 %v6108
          %6652 = vmatprep.subr.bf16.mxu0 %v6117
          %6653 = vmatpush1.bf16.msra.mxu0 %v6116
          %6654 = vmatprep.subr.bf16.mxu0 %v6125
          %6655 = vmatpush1.bf16.msra.mxu0 %v6124
          %6656 = vmatprep.subr.bf16.mxu0 %v6133
          %6657 = vmatpush1.bf16.msra.mxu0 %v6132
          %6658 = vmatprep.subr.bf16.mxu0 %v6141
          %6659 = vmatpush1.bf16.msra.mxu0 %v6140
          %6660 = vmatprep.subr.bf16.mxu0 %v6149
          %6661 = vmatpush1.bf16.msra.mxu0 %v6148
          %6662 = vmatprep.subr.bf16.mxu0 %v6157
          %6663 = vmatpush1.bf16.msra.mxu0 %v6156
          %6664 = vmatprep.subr.bf16.mxu0 %v6165
          %6665 = vmatpush1.bf16.msra.mxu0 %v6164
          %6666 = vmatprep.subr.bf16.mxu0 %v6173
          %6667 = vmatpush1.bf16.msra.mxu0 %v6172
          %6668 = vmatprep.subr.bf16.mxu0 %v6181
          %6669 = vmatpush1.bf16.msra.mxu0 %v6180
          %6670 = vmatprep.subr.bf16.mxu0 %v6189
          %6671 = vmatpush1.bf16.msra.mxu0 %v6188
          %6672 = vmatprep.subr.bf16.mxu0 %v6197
          %6673 = vmatpush1.bf16.msra.mxu0 %v6196
          %6674 = vmatprep.subr.bf16.mxu0 %v6205
          %6675 = vmatpush1.bf16.msra.mxu0 %v6204
          %6676 = vmatprep.subr.bf16.mxu0 %v6213
          %6677 = vmatpush1.bf16.msra.mxu0 %v6212
          %6678 = vmatprep.subr.bf16.mxu0 %v6221
          %6679 = vmatpush1.bf16.msra.mxu0 %v6220
          %6680 = vmatprep.subr.bf16.mxu0 %v6229
          %6681 = vmatpush1.bf16.msra.mxu0 %v6228
          %6682 = vmatprep.mubr.bf16.mxu0 %v5847
          %6683 = vmatmul.mubr.bf16.gmra.mrb[0].mxu0 %v5846
          %v6684 = vpop.f32.mrb[0].mxu0
          %v6685 = vadd.f32 %v6644, %v6684
          %v6686 = vpop.f32.mrb[0].mxu0
          %v6687 = vadd.f32 %v6646, %v6686
          %v6688 = vpop.f32.mrb[0].mxu0
          %v6689 = vpop.f32.mrb[0].mxu0
          %6690 = vdwg.mxu0
          %6691 = vmatprep.subr.bf16.mxu0 %v6237
          %6692 = vmatpush1.bf16.msra.mxu0 %v6236
          %6693 = vmatprep.subr.bf16.mxu0 %v6245
          %6694 = vmatpush1.bf16.msra.mxu0 %v6244
          %6695 = vmatprep.subr.bf16.mxu0 %v6253
          %6696 = vmatpush1.bf16.msra.mxu0 %v6252
          %6697 = vmatprep.subr.bf16.mxu0 %v6261
          %6698 = vmatpush1.bf16.msra.mxu0 %v6260
          %6699 = vmatprep.subr.bf16.mxu0 %v6269
          %6700 = vmatpush1.bf16.msra.mxu0 %v6268
          %6701 = vmatprep.subr.bf16.mxu0 %v6277
          %6702 = vmatpush1.bf16.msra.mxu0 %v6276
          %6703 = vmatprep.subr.bf16.mxu0 %v6285
          %6704 = vmatpush1.bf16.msra.mxu0 %v6284
          %6705 = vmatprep.subr.bf16.mxu0 %v6293
          %6706 = vmatpush1.bf16.msra.mxu0 %v6292
          %6707 = vmatprep.subr.bf16.mxu0 %v6301
          %6708 = vmatpush1.bf16.msra.mxu0 %v6300
          %6709 = vmatprep.subr.bf16.mxu0 %v6309
          %6710 = vmatpush1.bf16.msra.mxu0 %v6308
          %6711 = vmatprep.subr.bf16.mxu0 %v6317
          %6712 = vmatpush1.bf16.msra.mxu0 %v6316
          %6713 = vmatprep.subr.bf16.mxu0 %v6325
          %6714 = vmatpush1.bf16.msra.mxu0 %v6324
          %6715 = vmatprep.subr.bf16.mxu0 %v6333
          %6716 = vmatpush1.bf16.msra.mxu0 %v6332
          %6717 = vmatprep.subr.bf16.mxu0 %v6341
          %6718 = vmatpush1.bf16.msra.mxu0 %v6340
          %6719 = vmatprep.subr.bf16.mxu0 %v6349
          %6720 = vmatpush1.bf16.msra.mxu0 %v6348
          %6721 = vmatprep.subr.bf16.mxu0 %v6357
          %6722 = vmatpush1.bf16.msra.mxu0 %v6356
          %6723 = vmatprep.mubr.bf16.mxu0 %v5849
          %6724 = vmatmul.mubr.bf16.gmra.mrb[0].mxu0 %v5848
          %v6725 = vpop.f32.mrb[0].mxu0
          %v6726 = vadd.f32 %v6685, %v6725
          %v6727 = vpop.f32.mrb[0].mxu0
          %v6728 = vadd.f32 %v6687, %v6727
          %v6729 = vpop.f32.mrb[0].mxu0
          %v6730 = vpop.f32.mrb[0].mxu0
          %6731 = vdwg.mxu0
          %6732 = vmatprep.subr.bf16.mxu0 %v5855
          %6733 = vmatpush1.bf16.msra.mxu0 %v5854
          %6734 = vmatprep.subr.bf16.mxu0 %v5863
          %6735 = vmatpush1.bf16.msra.mxu0 %v5862
          %6736 = vmatprep.subr.bf16.mxu0 %v5871
          %6737 = vmatpush1.bf16.msra.mxu0 %v5870
          %6738 = vmatprep.subr.bf16.mxu0 %v5879
          %6739 = vmatpush1.bf16.msra.mxu0 %v5878
          %6740 = vmatprep.subr.bf16.mxu0 %v5887
          %6741 = vmatpush1.bf16.msra.mxu0 %v5886
          %6742 = vmatprep.subr.bf16.mxu0 %v5895
          %6743 = vmatpush1.bf16.msra.mxu0 %v5894
          %6744 = vmatprep.subr.bf16.mxu0 %v5903
          %6745 = vmatpush1.bf16.msra.mxu0 %v5902
          %6746 = vmatprep.subr.bf16.mxu0 %v5911
          %6747 = vmatpush1.bf16.msra.mxu0 %v5910
          %6748 = vmatprep.subr.bf16.mxu0 %v5919
          %6749 = vmatpush1.bf16.msra.mxu0 %v5918
          %6750 = vmatprep.subr.bf16.mxu0 %v5927
          %6751 = vmatpush1.bf16.msra.mxu0 %v5926
          %6752 = vmatprep.subr.bf16.mxu0 %v5935
          %6753 = vmatpush1.bf16.msra.mxu0 %v5934
          %6754 = vmatprep.subr.bf16.mxu0 %v5943
          %6755 = vmatpush1.bf16.msra.mxu0 %v5942
          %6756 = vmatprep.subr.bf16.mxu0 %v5951
          %6757 = vmatpush1.bf16.msra.mxu0 %v5950
          %6758 = vmatprep.subr.bf16.mxu0 %v5959
          %6759 = vmatpush1.bf16.msra.mxu0 %v5958
          %6760 = vmatprep.subr.bf16.mxu0 %v5967
          %6761 = vmatpush1.bf16.msra.mxu0 %v5966
          %6762 = vmatprep.subr.bf16.mxu0 %v5975
          %6763 = vmatpush1.bf16.msra.mxu0 %v5974
          %6764 = vmatprep.mubr.bf16.mxu0 %v5843
          %6765 = vmatmul.mubr.bf16.gmra.mrb[0].mxu0 %v5842
          %v6766 = vpop.f32.mrb[0].mxu0
          %v6767 = vadd.f32 %v6383, %v6766
          %v6768 = vpop.f32.mrb[0].mxu0
          %v6769 = vadd.f32 %v6387, %v6768
          %v6770 = vpop.f32.mrb[0].mxu0
          %v6771 = vpop.f32.mrb[0].mxu0
          %6772 = vdwg.mxu0
          %6773 = vmatprep.subr.bf16.mxu0 %v5983
          %6774 = vmatpush1.bf16.msra.mxu0 %v5982
          %6775 = vmatprep.subr.bf16.mxu0 %v5991
          %6776 = vmatpush1.bf16.msra.mxu0 %v5990
          %6777 = vmatprep.subr.bf16.mxu0 %v5999
          %6778 = vmatpush1.bf16.msra.mxu0 %v5998
          %6779 = vmatprep.subr.bf16.mxu0 %v6007
          %6780 = vmatpush1.bf16.msra.mxu0 %v6006
          %6781 = vmatprep.subr.bf16.mxu0 %v6015
          %6782 = vmatpush1.bf16.msra.mxu0 %v6014
          %6783 = vmatprep.subr.bf16.mxu0 %v6023
          %6784 = vmatpush1.bf16.msra.mxu0 %v6022
          %6785 = vmatprep.subr.bf16.mxu0 %v6031
          %6786 = vmatpush1.bf16.msra.mxu0 %v6030
          %6787 = vmatprep.subr.bf16.mxu0 %v6039
          %6788 = vmatpush1.bf16.msra.mxu0 %v6038
          %6789 = vmatprep.subr.bf16.mxu0 %v6047
          %6790 = vmatpush1.bf16.msra.mxu0 %v6046
          %6791 = vmatprep.subr.bf16.mxu0 %v6055
          %6792 = vmatpush1.bf16.msra.mxu0 %v6054
          %6793 = vmatprep.subr.bf16.mxu0 %v6063
          %6794 = vmatpush1.bf16.msra.mxu0 %v6062
          %6795 = vmatprep.subr.bf16.mxu0 %v6071
          %6796 = vmatpush1.bf16.msra.mxu0 %v6070
          %6797 = vmatprep.subr.bf16.mxu0 %v6079
          %6798 = vmatpush1.bf16.msra.mxu0 %v6078
          %6799 = vmatprep.subr.bf16.mxu0 %v6087
          %6800 = vmatpush1.bf16.msra.mxu0 %v6086
          %6801 = vmatprep.subr.bf16.mxu0 %v6095
          %6802 = vmatpush1.bf16.msra.mxu0 %v6094
          %6803 = vmatprep.subr.bf16.mxu0 %v6103
          %6804 = vmatpush1.bf16.msra.mxu0 %v6102
          %6805 = vmatprep.mubr.bf16.mxu0 %v5845
          %6806 = vmatmul.mubr.bf16.gmra.mrb[0].mxu0 %v5844
          %v6807 = vpop.f32.mrb[0].mxu0
          %v6808 = vadd.f32 %v6767, %v6807
          %v6809 = vpop.f32.mrb[0].mxu0
          %v6810 = vadd.f32 %v6769, %v6809
          %v6811 = vpop.f32.mrb[0].mxu0
          %v6812 = vpop.f32.mrb[0].mxu0
          %6813 = vdwg.mxu0
          %6814 = vmatprep.subr.bf16.mxu0 %v6111
          %6815 = vmatpush1.bf16.msra.mxu0 %v6110
          %6816 = vmatprep.subr.bf16.mxu0 %v6119
          %6817 = vmatpush1.bf16.msra.mxu0 %v6118
          %6818 = vmatprep.subr.bf16.mxu0 %v6127
          %6819 = vmatpush1.bf16.msra.mxu0 %v6126
          %6820 = vmatprep.subr.bf16.mxu0 %v6135
          %6821 = vmatpush1.bf16.msra.mxu0 %v6134
          %6822 = vmatprep.subr.bf16.mxu0 %v6143
          %6823 = vmatpush1.bf16.msra.mxu0 %v6142
          %6824 = vmatprep.subr.bf16.mxu0 %v6151
          %6825 = vmatpush1.bf16.msra.mxu0 %v6150
          %6826 = vmatprep.subr.bf16.mxu0 %v6159
          %6827 = vmatpush1.bf16.msra.mxu0 %v6158
          %6828 = vmatprep.subr.bf16.mxu0 %v6167
          %6829 = vmatpush1.bf16.msra.mxu0 %v6166
          %6830 = vmatprep.subr.bf16.mxu0 %v6175
          %6831 = vmatpush1.bf16.msra.mxu0 %v6174
          %6832 = vmatprep.subr.bf16.mxu0 %v6183
          %6833 = vmatpush1.bf16.msra.mxu0 %v6182
          %6834 = vmatprep.subr.bf16.mxu0 %v6191
          %6835 = vmatpush1.bf16.msra.mxu0 %v6190
          %6836 = vmatprep.subr.bf16.mxu0 %v6199
          %6837 = vmatpush1.bf16.msra.mxu0 %v6198
          %6838 = vmatprep.subr.bf16.mxu0 %v6207
          %6839 = vmatpush1.bf16.msra.mxu0 %v6206
          %6840 = vmatprep.subr.bf16.mxu0 %v6215
          %6841 = vmatpush1.bf16.msra.mxu0 %v6214
          %6842 = vmatprep.subr.bf16.mxu0 %v6223
          %6843 = vmatpush1.bf16.msra.mxu0 %v6222
          %6844 = vmatprep.subr.bf16.mxu0 %v6231
          %6845 = vmatpush1.bf16.msra.mxu0 %v6230
          %6846 = vmatprep.mubr.bf16.mxu0 %v5847
          %6847 = vmatmul.mubr.bf16.gmra.mrb[0].mxu0 %v5846
          %v6848 = vpop.f32.mrb[0].mxu0
          %v6849 = vadd.f32 %v6808, %v6848
          %v6850 = vpop.f32.mrb[0].mxu0
          %v6851 = vadd.f32 %v6810, %v6850
          %v6852 = vpop.f32.mrb[0].mxu0
          %v6853 = vpop.f32.mrb[0].mxu0
          %6854 = vdwg.mxu0
          %6855 = vmatprep.subr.bf16.mxu0 %v6239
          %6856 = vmatpush1.bf16.msra.mxu0 %v6238
          %6857 = vmatprep.subr.bf16.mxu0 %v6247
          %6858 = vmatpush1.bf16.msra.mxu0 %v6246
          %6859 = vmatprep.subr.bf16.mxu0 %v6255
          %6860 = vmatpush1.bf16.msra.mxu0 %v6254
          %6861 = vmatprep.subr.bf16.mxu0 %v6263
          %6862 = vmatpush1.bf16.msra.mxu0 %v6262
          %6863 = vmatprep.subr.bf16.mxu0 %v6271
          %6864 = vmatpush1.bf16.msra.mxu0 %v6270
          %6865 = vmatprep.subr.bf16.mxu0 %v6279
          %6866 = vmatpush1.bf16.msra.mxu0 %v6278
          %6867 = vmatprep.subr.bf16.mxu0 %v6287
          %6868 = vmatpush1.bf16.msra.mxu0 %v6286
          %6869 = vmatprep.subr.bf16.mxu0 %v6295
          %6870 = vmatpush1.bf16.msra.mxu0 %v6294
          %6871 = vmatprep.subr.bf16.mxu0 %v6303
          %6872 = vmatpush1.bf16.msra.mxu0 %v6302
          %6873 = vmatprep.subr.bf16.mxu0 %v6311
          %6874 = vmatpush1.bf16.msra.mxu0 %v6310
          %6875 = vmatprep.subr.bf16.mxu0 %v6319
          %6876 = vmatpush1.bf16.msra.mxu0 %v6318
          %6877 = vmatprep.subr.bf16.mxu0 %v6327
          %6878 = vmatpush1.bf16.msra.mxu0 %v6326
          %6879 = vmatprep.subr.bf16.mxu0 %v6335
          %6880 = vmatpush1.bf16.msra.mxu0 %v6334
          %6881 = vmatprep.subr.bf16.mxu0 %v6343
          %6882 = vmatpush1.bf16.msra.mxu0 %v6342
          %6883 = vmatprep.subr.bf16.mxu0 %v6351
          %6884 = vmatpush1.bf16.msra.mxu0 %v6350
          %6885 = vmatprep.subr.bf16.mxu0 %v6359
          %6886 = vmatpush1.bf16.msra.mxu0 %v6358
          %6887 = vmatprep.mubr.bf16.mxu0 %v5849
          %6888 = vmatmul.mubr.bf16.gmra.mrb[0].mxu0 %v5848
          %v6889 = vpop.f32.mrb[0].mxu0
          %v6890 = vadd.f32 %v6849, %v6889
          %v6891 = vpop.f32.mrb[0].mxu0
          %v6892 = vadd.f32 %v6851, %v6891
          %v6893 = vpop.f32.mrb[0].mxu0
          %v6894 = vpop.f32.mrb[0].mxu0
          %6895 = vdwg.mxu0
          %6896 = vmatprep.subr.bf16.mxu0 %v5857
          %6897 = vmatpush1.bf16.msra.mxu0 %v5856
          %6898 = vmatprep.subr.bf16.mxu0 %v5865
          %6899 = vmatpush1.bf16.msra.mxu0 %v5864
          %6900 = vmatprep.subr.bf16.mxu0 %v5873
          %6901 = vmatpush1.bf16.msra.mxu0 %v5872
          %6902 = vmatprep.subr.bf16.mxu0 %v5881
          %6903 = vmatpush1.bf16.msra.mxu0 %v5880
          %6904 = vmatprep.subr.bf16.mxu0 %v5889
          %6905 = vmatpush1.bf16.msra.mxu0 %v5888
          %6906 = vmatprep.subr.bf16.mxu0 %v5897
          %6907 = vmatpush1.bf16.msra.mxu0 %v5896
          %6908 = vmatprep.subr.bf16.mxu0 %v5905
          %6909 = vmatpush1.bf16.msra.mxu0 %v5904
          %6910 = vmatprep.subr.bf16.mxu0 %v5913
          %6911 = vmatpush1.bf16.msra.mxu0 %v5912
          %6912 = vmatprep.subr.bf16.mxu0 %v5921
          %6913 = vmatpush1.bf16.msra.mxu0 %v5920
          %6914 = vmatprep.subr.bf16.mxu0 %v5929
          %6915 = vmatpush1.bf16.msra.mxu0 %v5928
          %6916 = vmatprep.subr.bf16.mxu0 %v5937
          %6917 = vmatpush1.bf16.msra.mxu0 %v5936
          %6918 = vmatprep.subr.bf16.mxu0 %v5945
          %6919 = vmatpush1.bf16.msra.mxu0 %v5944
          %6920 = vmatprep.subr.bf16.mxu0 %v5953
          %6921 = vmatpush1.bf16.msra.mxu0 %v5952
          %6922 = vmatprep.subr.bf16.mxu0 %v5961
          %6923 = vmatpush1.bf16.msra.mxu0 %v5960
          %6924 = vmatprep.subr.bf16.mxu0 %v5969
          %6925 = vmatpush1.bf16.msra.mxu0 %v5968
          %6926 = vmatprep.subr.bf16.mxu0 %v5977
          %6927 = vmatpush1.bf16.msra.mxu0 %v5976
          %6928 = vmatprep.mubr.bf16.mxu0 %v5843
          %6929 = vmatmul.mubr.bf16.gmra.mrb[0].mxu0 %v5842
          %v6930 = vpop.f32.mrb[0].mxu0
          %v6931 = vadd.f32 %v6391, %v6930
          %v6932 = vpop.f32.mrb[0].mxu0
          %v6933 = vadd.f32 %v6395, %v6932
          %v6934 = vpop.f32.mrb[0].mxu0
          %v6935 = vpop.f32.mrb[0].mxu0
          %6936 = vdwg.mxu0
          %6937 = vmatprep.subr.bf16.mxu0 %v5985
          %6938 = vmatpush1.bf16.msra.mxu0 %v5984
          %6939 = vmatprep.subr.bf16.mxu0 %v5993
          %6940 = vmatpush1.bf16.msra.mxu0 %v5992
          %6941 = vmatprep.subr.bf16.mxu0 %v6001
          %6942 = vmatpush1.bf16.msra.mxu0 %v6000
          %6943 = vmatprep.subr.bf16.mxu0 %v6009
          %6944 = vmatpush1.bf16.msra.mxu0 %v6008
          %6945 = vmatprep.subr.bf16.mxu0 %v6017
          %6946 = vmatpush1.bf16.msra.mxu0 %v6016
          %6947 = vmatprep.subr.bf16.mxu0 %v6025
          %6948 = vmatpush1.bf16.msra.mxu0 %v6024
          %6949 = vmatprep.subr.bf16.mxu0 %v6033
          %6950 = vmatpush1.bf16.msra.mxu0 %v6032
          %6951 = vmatprep.subr.bf16.mxu0 %v6041
          %6952 = vmatpush1.bf16.msra.mxu0 %v6040
          %6953 = vmatprep.subr.bf16.mxu0 %v6049
          %6954 = vmatpush1.bf16.msra.mxu0 %v6048
          %6955 = vmatprep.subr.bf16.mxu0 %v6057
          %6956 = vmatpush1.bf16.msra.mxu0 %v6056
          %6957 = vmatprep.subr.bf16.mxu0 %v6065
          %6958 = vmatpush1.bf16.msra.mxu0 %v6064
          %6959 = vmatprep.subr.bf16.mxu0 %v6073
          %6960 = vmatpush1.bf16.msra.mxu0 %v6072
          %6961 = vmatprep.subr.bf16.mxu0 %v6081
          %6962 = vmatpush1.bf16.msra.mxu0 %v6080
          %6963 = vmatprep.subr.bf16.mxu0 %v6089
          %6964 = vmatpush1.bf16.msra.mxu0 %v6088
          %6965 = vmatprep.subr.bf16.mxu0 %v6097
          %6966 = vmatpush1.bf16.msra.mxu0 %v6096
          %6967 = vmatprep.subr.bf16.mxu0 %v6105
          %6968 = vmatpush1.bf16.msra.mxu0 %v6104
          %6969 = vmatprep.mubr.bf16.mxu0 %v5845
          %6970 = vmatmul.mubr.bf16.gmra.mrb[0].mxu0 %v5844
          %v6971 = vpop.f32.mrb[0].mxu0
          %v6972 = vadd.f32 %v6931, %v6971
          %v6973 = vpop.f32.mrb[0].mxu0
          %v6974 = vadd.f32 %v6933, %v6973
          %v6975 = vpop.f32.mrb[0].mxu0
          %v6976 = vpop.f32.mrb[0].mxu0
          %6977 = vdwg.mxu0
          %6978 = vmatprep.subr.bf16.mxu0 %v6113
          %6979 = vmatpush1.bf16.msra.mxu0 %v6112
          %6980 = vmatprep.subr.bf16.mxu0 %v6121
          %6981 = vmatpush1.bf16.msra.mxu0 %v6120
          %6982 = vmatprep.subr.bf16.mxu0 %v6129
          %6983 = vmatpush1.bf16.msra.mxu0 %v6128
          %6984 = vmatprep.subr.bf16.mxu0 %v6137
          %6985 = vmatpush1.bf16.msra.mxu0 %v6136
          %6986 = vmatprep.subr.bf16.mxu0 %v6145
          %6987 = vmatpush1.bf16.msra.mxu0 %v6144
          %6988 = vmatprep.subr.bf16.mxu0 %v6153
          %6989 = vmatpush1.bf16.msra.mxu0 %v6152
          %6990 = vmatprep.subr.bf16.mxu0 %v6161
          %6991 = vmatpush1.bf16.msra.mxu0 %v6160
          %6992 = vmatprep.subr.bf16.mxu0 %v6169
          %6993 = vmatpush1.bf16.msra.mxu0 %v6168
          %6994 = vmatprep.subr.bf16.mxu0 %v6177
          %6995 = vmatpush1.bf16.msra.mxu0 %v6176
          %6996 = vmatprep.subr.bf16.mxu0 %v6185
          %6997 = vmatpush1.bf16.msra.mxu0 %v6184
          %6998 = vmatprep.subr.bf16.mxu0 %v6193
          %6999 = vmatpush1.bf16.msra.mxu0 %v6192
          %7000 = vmatprep.subr.bf16.mxu0 %v6201
          %7001 = vmatpush1.bf16.msra.mxu0 %v6200
          %7002 = vmatprep.subr.bf16.mxu0 %v6209
          %7003 = vmatpush1.bf16.msra.mxu0 %v6208
          %7004 = vmatprep.subr.bf16.mxu0 %v6217
          %7005 = vmatpush1.bf16.msra.mxu0 %v6216
          %7006 = vmatprep.subr.bf16.mxu0 %v6225
          %7007 = vmatpush1.bf16.msra.mxu0 %v6224
          %7008 = vmatprep.subr.bf16.mxu0 %v6233
          %7009 = vmatpush1.bf16.msra.mxu0 %v6232
          %7010 = vmatprep.mubr.bf16.mxu0 %v5847
          %7011 = vmatmul.mubr.bf16.gmra.mrb[0].mxu0 %v5846
          %v7012 = vpop.f32.mrb[0].mxu0
          %v7013 = vadd.f32 %v6972, %v7012
          %v7014 = vpop.f32.mrb[0].mxu0
          %v7015 = vadd.f32 %v6974, %v7014
          %v7016 = vpop.f32.mrb[0].mxu0
          %v7017 = vpop.f32.mrb[0].mxu0
          %7018 = vdwg.mxu0
          %7019 = vmatprep.subr.bf16.mxu0 %v6241
          %7020 = vmatpush1.bf16.msra.mxu0 %v6240
          %7021 = vmatprep.subr.bf16.mxu0 %v6249
          %7022 = vmatpush1.bf16.msra.mxu0 %v6248
          %7023 = vmatprep.subr.bf16.mxu0 %v6257
          %7024 = vmatpush1.bf16.msra.mxu0 %v6256
          %7025 = vmatprep.subr.bf16.mxu0 %v6265
          %7026 = vmatpush1.bf16.msra.mxu0 %v6264
          %7027 = vmatprep.subr.bf16.mxu0 %v6273
          %7028 = vmatpush1.bf16.msra.mxu0 %v6272
          %7029 = vmatprep.subr.bf16.mxu0 %v6281
          %7030 = vmatpush1.bf16.msra.mxu0 %v6280
          %7031 = vmatprep.subr.bf16.mxu0 %v6289
          %7032 = vmatpush1.bf16.msra.mxu0 %v6288
          %7033 = vmatprep.subr.bf16.mxu0 %v6297
          %7034 = vmatpush1.bf16.msra.mxu0 %v6296
          %7035 = vmatprep.subr.bf16.mxu0 %v6305
          %7036 = vmatpush1.bf16.msra.mxu0 %v6304
          %7037 = vmatprep.subr.bf16.mxu0 %v6313
          %7038 = vmatpush1.bf16.msra.mxu0 %v6312
          %7039 = vmatprep.subr.bf16.mxu0 %v6321
          %7040 = vmatpush1.bf16.msra.mxu0 %v6320
          %7041 = vmatprep.subr.bf16.mxu0 %v6329
          %7042 = vmatpush1.bf16.msra.mxu0 %v6328
          %7043 = vmatprep.subr.bf16.mxu0 %v6337
          %7044 = vmatpush1.bf16.msra.mxu0 %v6336
          %7045 = vmatprep.subr.bf16.mxu0 %v6345
          %7046 = vmatpush1.bf16.msra.mxu0 %v6344
          %7047 = vmatprep.subr.bf16.mxu0 %v6353
          %7048 = vmatpush1.bf16.msra.mxu0 %v6352
          %7049 = vmatprep.subr.bf16.mxu0 %v6361
          %7050 = vmatpush1.bf16.msra.mxu0 %v6360
          %7051 = vmatprep.mubr.bf16.mxu0 %v5849
          %7052 = vmatmul.mubr.bf16.gmra.mrb[0].mxu0 %v5848
          %v7053 = vpop.f32.mrb[0].mxu0
          %v7054 = vadd.f32 %v7013, %v7053
          %v7055 = vpop.f32.mrb[0].mxu0
          %v7056 = vadd.f32 %v7015, %v7055
          %v7057 = vpop.f32.mrb[0].mxu0
          %v7058 = vpop.f32.mrb[0].mxu0
          %7059 = vdwg.mxu0
          %v7060 = vmax.f32 %v6562, 0.0
          %v7061 = vmax.f32 %v6564, 0.0
          %v7062 = vmax.f32 %v6726, 0.0
          %v7063 = vmax.f32 %v6728, 0.0
          %v7064 = vmax.f32 %v6890, 0.0
          %v7065 = vmax.f32 %v6892, 0.0
          %v7066 = vmax.f32 %v7054, 0.0
          %v7067 = vmax.f32 %v7056, 0.0
          %v7068 = vpack.c.bf16 %v7060, %v7060
          %v7069 = vpack.c.bf16 %v7061, %v7061
          %v7070 = vpack.c.bf16 %v7062, %v7062
          %v7071 = vpack.c.bf16 %v7063, %v7063
          %v7072 = vpack.c.bf16 %v7064, %v7064
          %v7073 = vpack.c.bf16 %v7065, %v7065
          %v7074 = vpack.c.bf16 %v7066, %v7066
          %v7075 = vpack.c.bf16 %v7067, %v7067
          %v7076 = vld [vmem:[#allocation8] sm:$0xff]
          %v7077 = vld [vmem:[#allocation8 + $0x8] sm:$0xff]
          %v7078 = vld [vmem:[#allocation8 + $0x10] sm:$0xff]
          %v7079 = vld [vmem:[#allocation8 + $0x18] sm:$0xff]
          %v7080 = vld [vmem:[#allocation8 + $0x20] sm:$0xff]
          %v7081 = vld [vmem:[#allocation8 + $0x28] sm:$0xff]
          %v7082 = vld [vmem:[#allocation8 + $0x30] sm:$0xff]
          %v7083 = vld [vmem:[#allocation8 + $0x38] sm:$0xff]
          %v7084 = vld [vmem:[#allocation8 + $0x40] sm:$0xff]
          %v7085 = vld [vmem:[#allocation8 + $0x48] sm:$0xff]
          %v7086 = vld [vmem:[#allocation8 + $0x50] sm:$0xff]
          %v7087 = vld [vmem:[#allocation8 + $0x58] sm:$0xff]
          %v7088 = vld [vmem:[#allocation8 + $0x60] sm:$0xff]
          %v7089 = vld [vmem:[#allocation8 + $0x68] sm:$0xff]
          %v7090 = vld [vmem:[#allocation8 + $0x70] sm:$0xff]
          %v7091 = vld [vmem:[#allocation8 + $0x78] sm:$0xff]
          %v7092 = vld [vmem:[#allocation8 + $0x80] sm:$0xff]
          %v7093 = vld [vmem:[#allocation8 + $0x88] sm:$0xff]
          %v7094 = vld [vmem:[#allocation8 + $0x90] sm:$0xff]
          %v7095 = vld [vmem:[#allocation8 + $0x98] sm:$0xff]
          %v7096 = vld [vmem:[#allocation8 + $0xa0] sm:$0xff]
          %v7097 = vld [vmem:[#allocation8 + $0xa8] sm:$0xff]
          %v7098 = vld [vmem:[#allocation8 + $0xb0] sm:$0xff]
          %v7099 = vld [vmem:[#allocation8 + $0xb8] sm:$0xff]
          %v7100 = vld [vmem:[#allocation8 + $0xc0] sm:$0xff]
          %v7101 = vld [vmem:[#allocation8 + $0xc8] sm:$0xff]
          %v7102 = vld [vmem:[#allocation8 + $0xd0] sm:$0xff]
          %v7103 = vld [vmem:[#allocation8 + $0xd8] sm:$0xff]
          %v7104 = vld [vmem:[#allocation8 + $0xe0] sm:$0xff]
          %v7105 = vld [vmem:[#allocation8 + $0xe8] sm:$0xff]
          %v7106 = vld [vmem:[#allocation8 + $0xf0] sm:$0xff]
          %v7107 = vld [vmem:[#allocation8 + $0xf8] sm:$0xff]
          %v7108 = vld [vmem:[#allocation8 + $0x100] sm:$0xff]
          %v7109 = vld [vmem:[#allocation8 + $0x108] sm:$0xff]
          %v7110 = vld [vmem:[#allocation8 + $0x110] sm:$0xff]
          %v7111 = vld [vmem:[#allocation8 + $0x118] sm:$0xff]
          %v7112 = vld [vmem:[#allocation8 + $0x120] sm:$0xff]
          %v7113 = vld [vmem:[#allocation8 + $0x128] sm:$0xff]
          %v7114 = vld [vmem:[#allocation8 + $0x130] sm:$0xff]
          %v7115 = vld [vmem:[#allocation8 + $0x138] sm:$0xff]
          %v7116 = vld [vmem:[#allocation8 + $0x140] sm:$0xff]
          %v7117 = vld [vmem:[#allocation8 + $0x148] sm:$0xff]
          %v7118 = vld [vmem:[#allocation8 + $0x150] sm:$0xff]
          %v7119 = vld [vmem:[#allocation8 + $0x158] sm:$0xff]
          %v7120 = vld [vmem:[#allocation8 + $0x160] sm:$0xff]
          %v7121 = vld [vmem:[#allocation8 + $0x168] sm:$0xff]
          %v7122 = vld [vmem:[#allocation8 + $0x170] sm:$0xff]
          %v7123 = vld [vmem:[#allocation8 + $0x178] sm:$0xff]
          %v7124 = vld [vmem:[#allocation8 + $0x180] sm:$0xff]
          %v7125 = vld [vmem:[#allocation8 + $0x188] sm:$0xff]
          %v7126 = vld [vmem:[#allocation8 + $0x190] sm:$0xff]
          %v7127 = vld [vmem:[#allocation8 + $0x198] sm:$0xff]
          %v7128 = vld [vmem:[#allocation8 + $0x1a0] sm:$0xff]
          %v7129 = vld [vmem:[#allocation8 + $0x1a8] sm:$0xff]
          %v7130 = vld [vmem:[#allocation8 + $0x1b0] sm:$0xff]
          %v7131 = vld [vmem:[#allocation8 + $0x1b8] sm:$0xff]
          %v7132 = vld [vmem:[#allocation8 + $0x1c0] sm:$0xff]
          %v7133 = vld [vmem:[#allocation8 + $0x1c8] sm:$0xff]
          %v7134 = vld [vmem:[#allocation8 + $0x1d0] sm:$0xff]
          %v7135 = vld [vmem:[#allocation8 + $0x1d8] sm:$0xff]
          %v7136 = vld [vmem:[#allocation8 + $0x1e0] sm:$0xff]
          %v7137 = vld [vmem:[#allocation8 + $0x1e8] sm:$0xff]
          %v7138 = vld [vmem:[#allocation8 + $0x1f0] sm:$0xff]
          %v7139 = vld [vmem:[#allocation8 + $0x1f8] sm:$0xff]
          %v7140 = vld [vmem:[#allocation8 + $0x200] sm:$0xff]
          %v7141 = vld [vmem:[#allocation8 + $0x208] sm:$0xff]
          %v7142 = vld [vmem:[#allocation8 + $0x210] sm:$0xff]
          %v7143 = vld [vmem:[#allocation8 + $0x218] sm:$0xff]
          %v7144 = vld [vmem:[#allocation8 + $0x220] sm:$0xff]
          %v7145 = vld [vmem:[#allocation8 + $0x228] sm:$0xff]
          %v7146 = vld [vmem:[#allocation8 + $0x230] sm:$0xff]
          %v7147 = vld [vmem:[#allocation8 + $0x238] sm:$0xff]
          %v7148 = vld [vmem:[#allocation8 + $0x240] sm:$0xff]
          %v7149 = vld [vmem:[#allocation8 + $0x248] sm:$0xff]
          %v7150 = vld [vmem:[#allocation8 + $0x250] sm:$0xff]
          %v7151 = vld [vmem:[#allocation8 + $0x258] sm:$0xff]
          %v7152 = vld [vmem:[#allocation8 + $0x260] sm:$0xff]
          %v7153 = vld [vmem:[#allocation8 + $0x268] sm:$0xff]
          %v7154 = vld [vmem:[#allocation8 + $0x270] sm:$0xff]
          %v7155 = vld [vmem:[#allocation8 + $0x278] sm:$0xff]
          %v7156 = vld [vmem:[#allocation8 + $0x280] sm:$0xff]
          %v7157 = vld [vmem:[#allocation8 + $0x288] sm:$0xff]
          %v7158 = vld [vmem:[#allocation8 + $0x290] sm:$0xff]
          %v7159 = vld [vmem:[#allocation8 + $0x298] sm:$0xff]
          %v7160 = vld [vmem:[#allocation8 + $0x2a0] sm:$0xff]
          %v7161 = vld [vmem:[#allocation8 + $0x2a8] sm:$0xff]
          %v7162 = vld [vmem:[#allocation8 + $0x2b0] sm:$0xff]
          %v7163 = vld [vmem:[#allocation8 + $0x2b8] sm:$0xff]
          %v7164 = vld [vmem:[#allocation8 + $0x2c0] sm:$0xff]
          %v7165 = vld [vmem:[#allocation8 + $0x2c8] sm:$0xff]
          %v7166 = vld [vmem:[#allocation8 + $0x2d0] sm:$0xff]
          %v7167 = vld [vmem:[#allocation8 + $0x2d8] sm:$0xff]
          %v7168 = vld [vmem:[#allocation8 + $0x2e0] sm:$0xff]
          %v7169 = vld [vmem:[#allocation8 + $0x2e8] sm:$0xff]
          %v7170 = vld [vmem:[#allocation8 + $0x2f0] sm:$0xff]
          %v7171 = vld [vmem:[#allocation8 + $0x2f8] sm:$0xff]
          %v7172 = vld [vmem:[#allocation8 + $0x300] sm:$0xff]
          %v7173 = vld [vmem:[#allocation8 + $0x308] sm:$0xff]
          %v7174 = vld [vmem:[#allocation8 + $0x310] sm:$0xff]
          %v7175 = vld [vmem:[#allocation8 + $0x318] sm:$0xff]
          %v7176 = vld [vmem:[#allocation8 + $0x320] sm:$0xff]
          %v7177 = vld [vmem:[#allocation8 + $0x328] sm:$0xff]
          %v7178 = vld [vmem:[#allocation8 + $0x330] sm:$0xff]
          %v7179 = vld [vmem:[#allocation8 + $0x338] sm:$0xff]
          %v7180 = vld [vmem:[#allocation8 + $0x340] sm:$0xff]
          %v7181 = vld [vmem:[#allocation8 + $0x348] sm:$0xff]
          %v7182 = vld [vmem:[#allocation8 + $0x350] sm:$0xff]
          %v7183 = vld [vmem:[#allocation8 + $0x358] sm:$0xff]
          %v7184 = vld [vmem:[#allocation8 + $0x360] sm:$0xff]
          %v7185 = vld [vmem:[#allocation8 + $0x368] sm:$0xff]
          %v7186 = vld [vmem:[#allocation8 + $0x370] sm:$0xff]
          %v7187 = vld [vmem:[#allocation8 + $0x378] sm:$0xff]
          %v7188 = vld [vmem:[#allocation8 + $0x380] sm:$0xff]
          %v7189 = vld [vmem:[#allocation8 + $0x388] sm:$0xff]
          %v7190 = vld [vmem:[#allocation8 + $0x390] sm:$0xff]
          %v7191 = vld [vmem:[#allocation8 + $0x398] sm:$0xff]
          %v7192 = vld [vmem:[#allocation8 + $0x3a0] sm:$0xff]
          %v7193 = vld [vmem:[#allocation8 + $0x3a8] sm:$0xff]
          %v7194 = vld [vmem:[#allocation8 + $0x3b0] sm:$0xff]
          %v7195 = vld [vmem:[#allocation8 + $0x3b8] sm:$0xff]
          %v7196 = vld [vmem:[#allocation8 + $0x3c0] sm:$0xff]
          %v7197 = vld [vmem:[#allocation8 + $0x3c8] sm:$0xff]
          %v7198 = vld [vmem:[#allocation8 + $0x3d0] sm:$0xff]
          %v7199 = vld [vmem:[#allocation8 + $0x3d8] sm:$0xff]
          %v7200 = vld [vmem:[#allocation8 + $0x3e0] sm:$0xff]
          %v7201 = vld [vmem:[#allocation8 + $0x3e8] sm:$0xff]
          %v7202 = vld [vmem:[#allocation8 + $0x3f0] sm:$0xff]
          %v7203 = vld [vmem:[#allocation8 + $0x3f8] sm:$0xff]
          %v7204 = vld [vmem:[#allocation8 + $0x400] sm:$0xff]
          %v7205 = vld [vmem:[#allocation8 + $0x408] sm:$0xff]
          %v7206 = vld [vmem:[#allocation8 + $0x410] sm:$0xff]
          %v7207 = vld [vmem:[#allocation8 + $0x418] sm:$0xff]
          %v7208 = vld [vmem:[#allocation8 + $0x420] sm:$0xff]
          %v7209 = vld [vmem:[#allocation8 + $0x428] sm:$0xff]
          %v7210 = vld [vmem:[#allocation8 + $0x430] sm:$0xff]
          %v7211 = vld [vmem:[#allocation8 + $0x438] sm:$0xff]
          %v7212 = vld [vmem:[#allocation8 + $0x440] sm:$0xff]
          %v7213 = vld [vmem:[#allocation8 + $0x448] sm:$0xff]
          %v7214 = vld [vmem:[#allocation8 + $0x450] sm:$0xff]
          %v7215 = vld [vmem:[#allocation8 + $0x458] sm:$0xff]
          %v7216 = vld [vmem:[#allocation8 + $0x460] sm:$0xff]
          %v7217 = vld [vmem:[#allocation8 + $0x468] sm:$0xff]
          %v7218 = vld [vmem:[#allocation8 + $0x470] sm:$0xff]
          %v7219 = vld [vmem:[#allocation8 + $0x478] sm:$0xff]
          %v7220 = vld [vmem:[#allocation8 + $0x480] sm:$0xff]
          %v7221 = vld [vmem:[#allocation8 + $0x488] sm:$0xff]
          %v7222 = vld [vmem:[#allocation8 + $0x490] sm:$0xff]
          %v7223 = vld [vmem:[#allocation8 + $0x498] sm:$0xff]
          %v7224 = vld [vmem:[#allocation8 + $0x4a0] sm:$0xff]
          %v7225 = vld [vmem:[#allocation8 + $0x4a8] sm:$0xff]
          %v7226 = vld [vmem:[#allocation8 + $0x4b0] sm:$0xff]
          %v7227 = vld [vmem:[#allocation8 + $0x4b8] sm:$0xff]
          %v7228 = vld [vmem:[#allocation8 + $0x4c0] sm:$0xff]
          %v7229 = vld [vmem:[#allocation8 + $0x4c8] sm:$0xff]
          %v7230 = vld [vmem:[#allocation8 + $0x4d0] sm:$0xff]
          %v7231 = vld [vmem:[#allocation8 + $0x4d8] sm:$0xff]
          %v7232 = vld [vmem:[#allocation8 + $0x4e0] sm:$0xff]
          %v7233 = vld [vmem:[#allocation8 + $0x4e8] sm:$0xff]
          %v7234 = vld [vmem:[#allocation8 + $0x4f0] sm:$0xff]
          %v7235 = vld [vmem:[#allocation8 + $0x4f8] sm:$0xff]
          %v7236 = vld [vmem:[#allocation8 + $0x500] sm:$0xff]
          %v7237 = vld [vmem:[#allocation8 + $0x508] sm:$0xff]
          %v7238 = vld [vmem:[#allocation8 + $0x510] sm:$0xff]
          %v7239 = vld [vmem:[#allocation8 + $0x518] sm:$0xff]
          %v7240 = vld [vmem:[#allocation8 + $0x520] sm:$0xff]
          %v7241 = vld [vmem:[#allocation8 + $0x528] sm:$0xff]
          %v7242 = vld [vmem:[#allocation8 + $0x530] sm:$0xff]
          %v7243 = vld [vmem:[#allocation8 + $0x538] sm:$0xff]
          %v7244 = vld [vmem:[#allocation8 + $0x540] sm:$0xff]
          %v7245 = vld [vmem:[#allocation8 + $0x548] sm:$0xff]
          %v7246 = vld [vmem:[#allocation8 + $0x550] sm:$0xff]
          %v7247 = vld [vmem:[#allocation8 + $0x558] sm:$0xff]
          %v7248 = vld [vmem:[#allocation8 + $0x560] sm:$0xff]
          %v7249 = vld [vmem:[#allocation8 + $0x568] sm:$0xff]
          %v7250 = vld [vmem:[#allocation8 + $0x570] sm:$0xff]
          %v7251 = vld [vmem:[#allocation8 + $0x578] sm:$0xff]
          %v7252 = vld [vmem:[#allocation8 + $0x580] sm:$0xff]
          %v7253 = vld [vmem:[#allocation8 + $0x588] sm:$0xff]
          %v7254 = vld [vmem:[#allocation8 + $0x590] sm:$0xff]
          %v7255 = vld [vmem:[#allocation8 + $0x598] sm:$0xff]
          %v7256 = vld [vmem:[#allocation8 + $0x5a0] sm:$0xff]
          %v7257 = vld [vmem:[#allocation8 + $0x5a8] sm:$0xff]
          %v7258 = vld [vmem:[#allocation8 + $0x5b0] sm:$0xff]
          %v7259 = vld [vmem:[#allocation8 + $0x5b8] sm:$0xff]
          %v7260 = vld [vmem:[#allocation8 + $0x5c0] sm:$0xff]
          %v7261 = vld [vmem:[#allocation8 + $0x5c8] sm:$0xff]
          %v7262 = vld [vmem:[#allocation8 + $0x5d0] sm:$0xff]
          %v7263 = vld [vmem:[#allocation8 + $0x5d8] sm:$0xff]
          %v7264 = vld [vmem:[#allocation8 + $0x5e0] sm:$0xff]
          %v7265 = vld [vmem:[#allocation8 + $0x5e8] sm:$0xff]
          %v7266 = vld [vmem:[#allocation8 + $0x5f0] sm:$0xff]
          %v7267 = vld [vmem:[#allocation8 + $0x5f8] sm:$0xff]
          %v7268 = vld [vmem:[#allocation8 + $0x600] sm:$0xff]
          %v7269 = vld [vmem:[#allocation8 + $0x608] sm:$0xff]
          %v7270 = vld [vmem:[#allocation8 + $0x610] sm:$0xff]
          %v7271 = vld [vmem:[#allocation8 + $0x618] sm:$0xff]
          %v7272 = vld [vmem:[#allocation8 + $0x620] sm:$0xff]
          %v7273 = vld [vmem:[#allocation8 + $0x628] sm:$0xff]
          %v7274 = vld [vmem:[#allocation8 + $0x630] sm:$0xff]
          %v7275 = vld [vmem:[#allocation8 + $0x638] sm:$0xff]
          %v7276 = vld [vmem:[#allocation8 + $0x640] sm:$0xff]
          %v7277 = vld [vmem:[#allocation8 + $0x648] sm:$0xff]
          %v7278 = vld [vmem:[#allocation8 + $0x650] sm:$0xff]
          %v7279 = vld [vmem:[#allocation8 + $0x658] sm:$0xff]
          %v7280 = vld [vmem:[#allocation8 + $0x660] sm:$0xff]
          %v7281 = vld [vmem:[#allocation8 + $0x668] sm:$0xff]
          %v7282 = vld [vmem:[#allocation8 + $0x670] sm:$0xff]
          %v7283 = vld [vmem:[#allocation8 + $0x678] sm:$0xff]
          %v7284 = vld [vmem:[#allocation8 + $0x680] sm:$0xff]
          %v7285 = vld [vmem:[#allocation8 + $0x688] sm:$0xff]
          %v7286 = vld [vmem:[#allocation8 + $0x690] sm:$0xff]
          %v7287 = vld [vmem:[#allocation8 + $0x698] sm:$0xff]
          %v7288 = vld [vmem:[#allocation8 + $0x6a0] sm:$0xff]
          %v7289 = vld [vmem:[#allocation8 + $0x6a8] sm:$0xff]
          %v7290 = vld [vmem:[#allocation8 + $0x6b0] sm:$0xff]
          %v7291 = vld [vmem:[#allocation8 + $0x6b8] sm:$0xff]
          %v7292 = vld [vmem:[#allocation8 + $0x6c0] sm:$0xff]
          %v7293 = vld [vmem:[#allocation8 + $0x6c8] sm:$0xff]
          %v7294 = vld [vmem:[#allocation8 + $0x6d0] sm:$0xff]
          %v7295 = vld [vmem:[#allocation8 + $0x6d8] sm:$0xff]
          %v7296 = vld [vmem:[#allocation8 + $0x6e0] sm:$0xff]
          %v7297 = vld [vmem:[#allocation8 + $0x6e8] sm:$0xff]
          %v7298 = vld [vmem:[#allocation8 + $0x6f0] sm:$0xff]
          %v7299 = vld [vmem:[#allocation8 + $0x6f8] sm:$0xff]
          %v7300 = vld [vmem:[#allocation8 + $0x700] sm:$0xff]
          %v7301 = vld [vmem:[#allocation8 + $0x708] sm:$0xff]
          %v7302 = vld [vmem:[#allocation8 + $0x710] sm:$0xff]
          %v7303 = vld [vmem:[#allocation8 + $0x718] sm:$0xff]
          %v7304 = vld [vmem:[#allocation8 + $0x720] sm:$0xff]
          %v7305 = vld [vmem:[#allocation8 + $0x728] sm:$0xff]
          %v7306 = vld [vmem:[#allocation8 + $0x730] sm:$0xff]
          %v7307 = vld [vmem:[#allocation8 + $0x738] sm:$0xff]
          %v7308 = vld [vmem:[#allocation8 + $0x740] sm:$0xff]
          %v7309 = vld [vmem:[#allocation8 + $0x748] sm:$0xff]
          %v7310 = vld [vmem:[#allocation8 + $0x750] sm:$0xff]
          %v7311 = vld [vmem:[#allocation8 + $0x758] sm:$0xff]
          %v7312 = vld [vmem:[#allocation8 + $0x760] sm:$0xff]
          %v7313 = vld [vmem:[#allocation8 + $0x768] sm:$0xff]
          %v7314 = vld [vmem:[#allocation8 + $0x770] sm:$0xff]
          %v7315 = vld [vmem:[#allocation8 + $0x778] sm:$0xff]
          %v7316 = vld [vmem:[#allocation8 + $0x780] sm:$0xff]
          %v7317 = vld [vmem:[#allocation8 + $0x788] sm:$0xff]
          %v7318 = vld [vmem:[#allocation8 + $0x790] sm:$0xff]
          %v7319 = vld [vmem:[#allocation8 + $0x798] sm:$0xff]
          %v7320 = vld [vmem:[#allocation8 + $0x7a0] sm:$0xff]
          %v7321 = vld [vmem:[#allocation8 + $0x7a8] sm:$0xff]
          %v7322 = vld [vmem:[#allocation8 + $0x7b0] sm:$0xff]
          %v7323 = vld [vmem:[#allocation8 + $0x7b8] sm:$0xff]
          %v7324 = vld [vmem:[#allocation8 + $0x7c0] sm:$0xff]
          %v7325 = vld [vmem:[#allocation8 + $0x7c8] sm:$0xff]
          %v7326 = vld [vmem:[#allocation8 + $0x7d0] sm:$0xff]
          %v7327 = vld [vmem:[#allocation8 + $0x7d8] sm:$0xff]
          %v7328 = vld [vmem:[#allocation8 + $0x7e0] sm:$0xff]
          %v7329 = vld [vmem:[#allocation8 + $0x7e8] sm:$0xff]
          %v7330 = vld [vmem:[#allocation8 + $0x7f0] sm:$0xff]
          %v7331 = vld [vmem:[#allocation8 + $0x7f8] sm:$0xff]
          %v7332 = vld [vmem:[#allocation8 + $0x800] sm:$0xff]
          %v7333 = vld [vmem:[#allocation8 + $0x808] sm:$0xff]
          %v7334 = vld [vmem:[#allocation8 + $0x810] sm:$0xff]
          %v7335 = vld [vmem:[#allocation8 + $0x818] sm:$0xff]
          %v7336 = vld [vmem:[#allocation8 + $0x820] sm:$0xff]
          %v7337 = vld [vmem:[#allocation8 + $0x828] sm:$0xff]
          %v7338 = vld [vmem:[#allocation8 + $0x830] sm:$0xff]
          %v7339 = vld [vmem:[#allocation8 + $0x838] sm:$0xff]
          %v7340 = vld [vmem:[#allocation8 + $0x840] sm:$0xff]
          %v7341 = vld [vmem:[#allocation8 + $0x848] sm:$0xff]
          %v7342 = vld [vmem:[#allocation8 + $0x850] sm:$0xff]
          %v7343 = vld [vmem:[#allocation8 + $0x858] sm:$0xff]
          %v7344 = vld [vmem:[#allocation8 + $0x860] sm:$0xff]
          %v7345 = vld [vmem:[#allocation8 + $0x868] sm:$0xff]
          %v7346 = vld [vmem:[#allocation8 + $0x870] sm:$0xff]
          %v7347 = vld [vmem:[#allocation8 + $0x878] sm:$0xff]
          %v7348 = vld [vmem:[#allocation8 + $0x880] sm:$0xff]
          %v7349 = vld [vmem:[#allocation8 + $0x888] sm:$0xff]
          %v7350 = vld [vmem:[#allocation8 + $0x890] sm:$0xff]
          %v7351 = vld [vmem:[#allocation8 + $0x898] sm:$0xff]
          %v7352 = vld [vmem:[#allocation8 + $0x8a0] sm:$0xff]
          %v7353 = vld [vmem:[#allocation8 + $0x8a8] sm:$0xff]
          %v7354 = vld [vmem:[#allocation8 + $0x8b0] sm:$0xff]
          %v7355 = vld [vmem:[#allocation8 + $0x8b8] sm:$0xff]
          %v7356 = vld [vmem:[#allocation8 + $0x8c0] sm:$0xff]
          %v7357 = vld [vmem:[#allocation8 + $0x8c8] sm:$0xff]
          %v7358 = vld [vmem:[#allocation8 + $0x8d0] sm:$0xff]
          %v7359 = vld [vmem:[#allocation8 + $0x8d8] sm:$0xff]
          %v7360 = vld [vmem:[#allocation8 + $0x8e0] sm:$0xff]
          %v7361 = vld [vmem:[#allocation8 + $0x8e8] sm:$0xff]
          %v7362 = vld [vmem:[#allocation8 + $0x8f0] sm:$0xff]
          %v7363 = vld [vmem:[#allocation8 + $0x8f8] sm:$0xff]
          %v7364 = vld [vmem:[#allocation8 + $0x900] sm:$0xff]
          %v7365 = vld [vmem:[#allocation8 + $0x908] sm:$0xff]
          %v7366 = vld [vmem:[#allocation8 + $0x910] sm:$0xff]
          %v7367 = vld [vmem:[#allocation8 + $0x918] sm:$0xff]
          %v7368 = vld [vmem:[#allocation8 + $0x920] sm:$0xff]
          %v7369 = vld [vmem:[#allocation8 + $0x928] sm:$0xff]
          %v7370 = vld [vmem:[#allocation8 + $0x930] sm:$0xff]
          %v7371 = vld [vmem:[#allocation8 + $0x938] sm:$0xff]
          %v7372 = vld [vmem:[#allocation8 + $0x940] sm:$0xff]
          %v7373 = vld [vmem:[#allocation8 + $0x948] sm:$0xff]
          %v7374 = vld [vmem:[#allocation8 + $0x950] sm:$0xff]
          %v7375 = vld [vmem:[#allocation8 + $0x958] sm:$0xff]
          %v7376 = vld [vmem:[#allocation8 + $0x960] sm:$0xff]
          %v7377 = vld [vmem:[#allocation8 + $0x968] sm:$0xff]
          %v7378 = vld [vmem:[#allocation8 + $0x970] sm:$0xff]
          %v7379 = vld [vmem:[#allocation8 + $0x978] sm:$0xff]
          %v7380 = vld [vmem:[#allocation8 + $0x980] sm:$0xff]
          %v7381 = vld [vmem:[#allocation8 + $0x988] sm:$0xff]
          %v7382 = vld [vmem:[#allocation8 + $0x990] sm:$0xff]
          %v7383 = vld [vmem:[#allocation8 + $0x998] sm:$0xff]
          %v7384 = vld [vmem:[#allocation8 + $0x9a0] sm:$0xff]
          %v7385 = vld [vmem:[#allocation8 + $0x9a8] sm:$0xff]
          %v7386 = vld [vmem:[#allocation8 + $0x9b0] sm:$0xff]
          %v7387 = vld [vmem:[#allocation8 + $0x9b8] sm:$0xff]
          %v7388 = vld [vmem:[#allocation8 + $0x9c0] sm:$0xff]
          %v7389 = vld [vmem:[#allocation8 + $0x9c8] sm:$0xff]
          %v7390 = vld [vmem:[#allocation8 + $0x9d0] sm:$0xff]
          %v7391 = vld [vmem:[#allocation8 + $0x9d8] sm:$0xff]
          %v7392 = vld [vmem:[#allocation8 + $0x9e0] sm:$0xff]
          %v7393 = vld [vmem:[#allocation8 + $0x9e8] sm:$0xff]
          %v7394 = vld [vmem:[#allocation8 + $0x9f0] sm:$0xff]
          %v7395 = vld [vmem:[#allocation8 + $0x9f8] sm:$0xff]
          %v7396 = vld [vmem:[#allocation8 + $0xa00] sm:$0xff]
          %v7397 = vld [vmem:[#allocation8 + $0xa08] sm:$0xff]
          %v7398 = vld [vmem:[#allocation8 + $0xa10] sm:$0xff]
          %v7399 = vld [vmem:[#allocation8 + $0xa18] sm:$0xff]
          %v7400 = vld [vmem:[#allocation8 + $0xa20] sm:$0xff]
          %v7401 = vld [vmem:[#allocation8 + $0xa28] sm:$0xff]
          %v7402 = vld [vmem:[#allocation8 + $0xa30] sm:$0xff]
          %v7403 = vld [vmem:[#allocation8 + $0xa38] sm:$0xff]
          %v7404 = vld [vmem:[#allocation8 + $0xa40] sm:$0xff]
          %v7405 = vld [vmem:[#allocation8 + $0xa48] sm:$0xff]
          %v7406 = vld [vmem:[#allocation8 + $0xa50] sm:$0xff]
          %v7407 = vld [vmem:[#allocation8 + $0xa58] sm:$0xff]
          %v7408 = vld [vmem:[#allocation8 + $0xa60] sm:$0xff]
          %v7409 = vld [vmem:[#allocation8 + $0xa68] sm:$0xff]
          %v7410 = vld [vmem:[#allocation8 + $0xa70] sm:$0xff]
          %v7411 = vld [vmem:[#allocation8 + $0xa78] sm:$0xff]
          %v7412 = vld [vmem:[#allocation8 + $0xa80] sm:$0xff]
          %v7413 = vld [vmem:[#allocation8 + $0xa88] sm:$0xff]
          %v7414 = vld [vmem:[#allocation8 + $0xa90] sm:$0xff]
          %v7415 = vld [vmem:[#allocation8 + $0xa98] sm:$0xff]
          %v7416 = vld [vmem:[#allocation8 + $0xaa0] sm:$0xff]
          %v7417 = vld [vmem:[#allocation8 + $0xaa8] sm:$0xff]
          %v7418 = vld [vmem:[#allocation8 + $0xab0] sm:$0xff]
          %v7419 = vld [vmem:[#allocation8 + $0xab8] sm:$0xff]
          %v7420 = vld [vmem:[#allocation8 + $0xac0] sm:$0xff]
          %v7421 = vld [vmem:[#allocation8 + $0xac8] sm:$0xff]
          %v7422 = vld [vmem:[#allocation8 + $0xad0] sm:$0xff]
          %v7423 = vld [vmem:[#allocation8 + $0xad8] sm:$0xff]
          %v7424 = vld [vmem:[#allocation8 + $0xae0] sm:$0xff]
          %v7425 = vld [vmem:[#allocation8 + $0xae8] sm:$0xff]
          %v7426 = vld [vmem:[#allocation8 + $0xaf0] sm:$0xff]
          %v7427 = vld [vmem:[#allocation8 + $0xaf8] sm:$0xff]
          %v7428 = vld [vmem:[#allocation8 + $0xb00] sm:$0xff]
          %v7429 = vld [vmem:[#allocation8 + $0xb08] sm:$0xff]
          %v7430 = vld [vmem:[#allocation8 + $0xb10] sm:$0xff]
          %v7431 = vld [vmem:[#allocation8 + $0xb18] sm:$0xff]
          %v7432 = vld [vmem:[#allocation8 + $0xb20] sm:$0xff]
          %v7433 = vld [vmem:[#allocation8 + $0xb28] sm:$0xff]
          %v7434 = vld [vmem:[#allocation8 + $0xb30] sm:$0xff]
          %v7435 = vld [vmem:[#allocation8 + $0xb38] sm:$0xff]
          %v7436 = vld [vmem:[#allocation8 + $0xb40] sm:$0xff]
          %v7437 = vld [vmem:[#allocation8 + $0xb48] sm:$0xff]
          %v7438 = vld [vmem:[#allocation8 + $0xb50] sm:$0xff]
          %v7439 = vld [vmem:[#allocation8 + $0xb58] sm:$0xff]
          %v7440 = vld [vmem:[#allocation8 + $0xb60] sm:$0xff]
          %v7441 = vld [vmem:[#allocation8 + $0xb68] sm:$0xff]
          %v7442 = vld [vmem:[#allocation8 + $0xb70] sm:$0xff]
          %v7443 = vld [vmem:[#allocation8 + $0xb78] sm:$0xff]
          %v7444 = vld [vmem:[#allocation8 + $0xb80] sm:$0xff]
          %v7445 = vld [vmem:[#allocation8 + $0xb88] sm:$0xff]
          %v7446 = vld [vmem:[#allocation8 + $0xb90] sm:$0xff]
          %v7447 = vld [vmem:[#allocation8 + $0xb98] sm:$0xff]
          %v7448 = vld [vmem:[#allocation8 + $0xba0] sm:$0xff]
          %v7449 = vld [vmem:[#allocation8 + $0xba8] sm:$0xff]
          %v7450 = vld [vmem:[#allocation8 + $0xbb0] sm:$0xff]
          %v7451 = vld [vmem:[#allocation8 + $0xbb8] sm:$0xff]
          %v7452 = vld [vmem:[#allocation8 + $0xbc0] sm:$0xff]
          %v7453 = vld [vmem:[#allocation8 + $0xbc8] sm:$0xff]
          %v7454 = vld [vmem:[#allocation8 + $0xbd0] sm:$0xff]
          %v7455 = vld [vmem:[#allocation8 + $0xbd8] sm:$0xff]
          %v7456 = vld [vmem:[#allocation8 + $0xbe0] sm:$0xff]
          %v7457 = vld [vmem:[#allocation8 + $0xbe8] sm:$0xff]
          %v7458 = vld [vmem:[#allocation8 + $0xbf0] sm:$0xff]
          %v7459 = vld [vmem:[#allocation8 + $0xbf8] sm:$0xff]
          %v7460 = vld [vmem:[#allocation8 + $0xc00] sm:$0xff]
          %v7461 = vld [vmem:[#allocation8 + $0xc08] sm:$0xff]
          %v7462 = vld [vmem:[#allocation8 + $0xc10] sm:$0xff]
          %v7463 = vld [vmem:[#allocation8 + $0xc18] sm:$0xff]
          %v7464 = vld [vmem:[#allocation8 + $0xc20] sm:$0xff]
          %v7465 = vld [vmem:[#allocation8 + $0xc28] sm:$0xff]
          %v7466 = vld [vmem:[#allocation8 + $0xc30] sm:$0xff]
          %v7467 = vld [vmem:[#allocation8 + $0xc38] sm:$0xff]
          %v7468 = vld [vmem:[#allocation8 + $0xc40] sm:$0xff]
          %v7469 = vld [vmem:[#allocation8 + $0xc48] sm:$0xff]
          %v7470 = vld [vmem:[#allocation8 + $0xc50] sm:$0xff]
          %v7471 = vld [vmem:[#allocation8 + $0xc58] sm:$0xff]
          %v7472 = vld [vmem:[#allocation8 + $0xc60] sm:$0xff]
          %v7473 = vld [vmem:[#allocation8 + $0xc68] sm:$0xff]
          %v7474 = vld [vmem:[#allocation8 + $0xc70] sm:$0xff]
          %v7475 = vld [vmem:[#allocation8 + $0xc78] sm:$0xff]
          %v7476 = vld [vmem:[#allocation8 + $0xc80] sm:$0xff]
          %v7477 = vld [vmem:[#allocation8 + $0xc88] sm:$0xff]
          %v7478 = vld [vmem:[#allocation8 + $0xc90] sm:$0xff]
          %v7479 = vld [vmem:[#allocation8 + $0xc98] sm:$0xff]
          %v7480 = vld [vmem:[#allocation8 + $0xca0] sm:$0xff]
          %v7481 = vld [vmem:[#allocation8 + $0xca8] sm:$0xff]
          %v7482 = vld [vmem:[#allocation8 + $0xcb0] sm:$0xff]
          %v7483 = vld [vmem:[#allocation8 + $0xcb8] sm:$0xff]
          %v7484 = vld [vmem:[#allocation8 + $0xcc0] sm:$0xff]
          %v7485 = vld [vmem:[#allocation8 + $0xcc8] sm:$0xff]
          %v7486 = vld [vmem:[#allocation8 + $0xcd0] sm:$0xff]
          %v7487 = vld [vmem:[#allocation8 + $0xcd8] sm:$0xff]
          %v7488 = vld [vmem:[#allocation8 + $0xce0] sm:$0xff]
          %v7489 = vld [vmem:[#allocation8 + $0xce8] sm:$0xff]
          %v7490 = vld [vmem:[#allocation8 + $0xcf0] sm:$0xff]
          %v7491 = vld [vmem:[#allocation8 + $0xcf8] sm:$0xff]
          %v7492 = vld [vmem:[#allocation8 + $0xd00] sm:$0xff]
          %v7493 = vld [vmem:[#allocation8 + $0xd08] sm:$0xff]
          %v7494 = vld [vmem:[#allocation8 + $0xd10] sm:$0xff]
          %v7495 = vld [vmem:[#allocation8 + $0xd18] sm:$0xff]
          %v7496 = vld [vmem:[#allocation8 + $0xd20] sm:$0xff]
          %v7497 = vld [vmem:[#allocation8 + $0xd28] sm:$0xff]
          %v7498 = vld [vmem:[#allocation8 + $0xd30] sm:$0xff]
          %v7499 = vld [vmem:[#allocation8 + $0xd38] sm:$0xff]
          %v7500 = vld [vmem:[#allocation8 + $0xd40] sm:$0xff]
          %v7501 = vld [vmem:[#allocation8 + $0xd48] sm:$0xff]
          %v7502 = vld [vmem:[#allocation8 + $0xd50] sm:$0xff]
          %v7503 = vld [vmem:[#allocation8 + $0xd58] sm:$0xff]
          %v7504 = vld [vmem:[#allocation8 + $0xd60] sm:$0xff]
          %v7505 = vld [vmem:[#allocation8 + $0xd68] sm:$0xff]
          %v7506 = vld [vmem:[#allocation8 + $0xd70] sm:$0xff]
          %v7507 = vld [vmem:[#allocation8 + $0xd78] sm:$0xff]
          %v7508 = vld [vmem:[#allocation8 + $0xd80] sm:$0xff]
          %v7509 = vld [vmem:[#allocation8 + $0xd88] sm:$0xff]
          %v7510 = vld [vmem:[#allocation8 + $0xd90] sm:$0xff]
          %v7511 = vld [vmem:[#allocation8 + $0xd98] sm:$0xff]
          %v7512 = vld [vmem:[#allocation8 + $0xda0] sm:$0xff]
          %v7513 = vld [vmem:[#allocation8 + $0xda8] sm:$0xff]
          %v7514 = vld [vmem:[#allocation8 + $0xdb0] sm:$0xff]
          %v7515 = vld [vmem:[#allocation8 + $0xdb8] sm:$0xff]
          %v7516 = vld [vmem:[#allocation8 + $0xdc0] sm:$0xff]
          %v7517 = vld [vmem:[#allocation8 + $0xdc8] sm:$0xff]
          %v7518 = vld [vmem:[#allocation8 + $0xdd0] sm:$0xff]
          %v7519 = vld [vmem:[#allocation8 + $0xdd8] sm:$0xff]
          %v7520 = vld [vmem:[#allocation8 + $0xde0] sm:$0xff]
          %v7521 = vld [vmem:[#allocation8 + $0xde8] sm:$0xff]
          %v7522 = vld [vmem:[#allocation8 + $0xdf0] sm:$0xff]
          %v7523 = vld [vmem:[#allocation8 + $0xdf8] sm:$0xff]
          %v7524 = vld [vmem:[#allocation8 + $0xe00] sm:$0xff]
          %v7525 = vld [vmem:[#allocation8 + $0xe08] sm:$0xff]
          %v7526 = vld [vmem:[#allocation8 + $0xe10] sm:$0xff]
          %v7527 = vld [vmem:[#allocation8 + $0xe18] sm:$0xff]
          %v7528 = vld [vmem:[#allocation8 + $0xe20] sm:$0xff]
          %v7529 = vld [vmem:[#allocation8 + $0xe28] sm:$0xff]
          %v7530 = vld [vmem:[#allocation8 + $0xe30] sm:$0xff]
          %v7531 = vld [vmem:[#allocation8 + $0xe38] sm:$0xff]
          %v7532 = vld [vmem:[#allocation8 + $0xe40] sm:$0xff]
          %v7533 = vld [vmem:[#allocation8 + $0xe48] sm:$0xff]
          %v7534 = vld [vmem:[#allocation8 + $0xe50] sm:$0xff]
          %v7535 = vld [vmem:[#allocation8 + $0xe58] sm:$0xff]
          %v7536 = vld [vmem:[#allocation8 + $0xe60] sm:$0xff]
          %v7537 = vld [vmem:[#allocation8 + $0xe68] sm:$0xff]
          %v7538 = vld [vmem:[#allocation8 + $0xe70] sm:$0xff]
          %v7539 = vld [vmem:[#allocation8 + $0xe78] sm:$0xff]
          %v7540 = vld [vmem:[#allocation8 + $0xe80] sm:$0xff]
          %v7541 = vld [vmem:[#allocation8 + $0xe88] sm:$0xff]
          %v7542 = vld [vmem:[#allocation8 + $0xe90] sm:$0xff]
          %v7543 = vld [vmem:[#allocation8 + $0xe98] sm:$0xff]
          %v7544 = vld [vmem:[#allocation8 + $0xea0] sm:$0xff]
          %v7545 = vld [vmem:[#allocation8 + $0xea8] sm:$0xff]
          %v7546 = vld [vmem:[#allocation8 + $0xeb0] sm:$0xff]
          %v7547 = vld [vmem:[#allocation8 + $0xeb8] sm:$0xff]
          %v7548 = vld [vmem:[#allocation8 + $0xec0] sm:$0xff]
          %v7549 = vld [vmem:[#allocation8 + $0xec8] sm:$0xff]
          %v7550 = vld [vmem:[#allocation8 + $0xed0] sm:$0xff]
          %v7551 = vld [vmem:[#allocation8 + $0xed8] sm:$0xff]
          %v7552 = vld [vmem:[#allocation8 + $0xee0] sm:$0xff]
          %v7553 = vld [vmem:[#allocation8 + $0xee8] sm:$0xff]
          %v7554 = vld [vmem:[#allocation8 + $0xef0] sm:$0xff]
          %v7555 = vld [vmem:[#allocation8 + $0xef8] sm:$0xff]
          %v7556 = vld [vmem:[#allocation8 + $0xf00] sm:$0xff]
          %v7557 = vld [vmem:[#allocation8 + $0xf08] sm:$0xff]
          %v7558 = vld [vmem:[#allocation8 + $0xf10] sm:$0xff]
          %v7559 = vld [vmem:[#allocation8 + $0xf18] sm:$0xff]
          %v7560 = vld [vmem:[#allocation8 + $0xf20] sm:$0xff]
          %v7561 = vld [vmem:[#allocation8 + $0xf28] sm:$0xff]
          %v7562 = vld [vmem:[#allocation8 + $0xf30] sm:$0xff]
          %v7563 = vld [vmem:[#allocation8 + $0xf38] sm:$0xff]
          %v7564 = vld [vmem:[#allocation8 + $0xf40] sm:$0xff]
          %v7565 = vld [vmem:[#allocation8 + $0xf48] sm:$0xff]
          %v7566 = vld [vmem:[#allocation8 + $0xf50] sm:$0xff]
          %v7567 = vld [vmem:[#allocation8 + $0xf58] sm:$0xff]
          %v7568 = vld [vmem:[#allocation8 + $0xf60] sm:$0xff]
          %v7569 = vld [vmem:[#allocation8 + $0xf68] sm:$0xff]
          %v7570 = vld [vmem:[#allocation8 + $0xf70] sm:$0xff]
          %v7571 = vld [vmem:[#allocation8 + $0xf78] sm:$0xff]
          %v7572 = vld [vmem:[#allocation8 + $0xf80] sm:$0xff]
          %v7573 = vld [vmem:[#allocation8 + $0xf88] sm:$0xff]
          %v7574 = vld [vmem:[#allocation8 + $0xf90] sm:$0xff]
          %v7575 = vld [vmem:[#allocation8 + $0xf98] sm:$0xff]
          %v7576 = vld [vmem:[#allocation8 + $0xfa0] sm:$0xff]
          %v7577 = vld [vmem:[#allocation8 + $0xfa8] sm:$0xff]
          %v7578 = vld [vmem:[#allocation8 + $0xfb0] sm:$0xff]
          %v7579 = vld [vmem:[#allocation8 + $0xfb8] sm:$0xff]
          %v7580 = vld [vmem:[#allocation8 + $0xfc0] sm:$0xff]
          %v7581 = vld [vmem:[#allocation8 + $0xfc8] sm:$0xff]
          %v7582 = vld [vmem:[#allocation8 + $0xfd0] sm:$0xff]
          %v7583 = vld [vmem:[#allocation8 + $0xfd8] sm:$0xff]
          %v7584 = vld [vmem:[#allocation8 + $0xfe0] sm:$0xff]
          %v7585 = vld [vmem:[#allocation8 + $0xfe8] sm:$0xff]
          %v7586 = vld [vmem:[#allocation8 + $0xff0] sm:$0xff]
          %v7587 = vld [vmem:[#allocation8 + $0xff8] sm:$0xff]
          %v7588 = vld [vmem:[#allocation19] sm:$0xff]
          %v7590 = vlaneseq
          %v7591 = vshrl.u32 %v7590, 7
          %v7592 = vsub.s32 0, %v7591
          %v7593 = vrot.slane %v7588, %v7592
          %v7594 = vlaneseq
          %v7595 = vshrl.u32 %v7594, 7
          %v7596 = vsub.s32 1, %v7595
          %v7597 = vrot.slane %v7588, %v7596
          %v7598 = vlaneseq
          %v7599 = vshrl.u32 %v7598, 7
          %v7600 = vsub.s32 2, %v7599
          %v7601 = vrot.slane %v7588, %v7600
          %v7602 = vlaneseq
          %v7603 = vshrl.u32 %v7602, 7
          %v7604 = vsub.s32 3, %v7603
          %v7605 = vrot.slane %v7588, %v7604
          %v7606 = vlaneseq
          %v7607 = vshrl.u32 %v7606, 7
          %v7608 = vsub.s32 4, %v7607
          %v7609 = vrot.slane %v7588, %v7608
          %v7610 = vlaneseq
          %v7611 = vshrl.u32 %v7610, 7
          %v7612 = vsub.s32 5, %v7611
          %v7613 = vrot.slane %v7588, %v7612
          %v7614 = vlaneseq
          %v7615 = vshrl.u32 %v7614, 7
          %v7616 = vsub.s32 6, %v7615
          %v7617 = vrot.slane %v7588, %v7616
          %v7618 = vlaneseq
          %v7619 = vshrl.u32 %v7618, 7
          %v7620 = vsub.s32 7, %v7619
          %v7621 = vrot.slane %v7588, %v7620
          %7630 = vmatprep.subr.bf16.mxu0 %v7077
          %7631 = vmatpush1.bf16.msra.mxu0 %v7076
          %7632 = vmatprep.subr.bf16.mxu0 %v7085
          %7633 = vmatpush1.bf16.msra.mxu0 %v7084
          %7634 = vmatprep.subr.bf16.mxu0 %v7093
          %7635 = vmatpush1.bf16.msra.mxu0 %v7092
          %7636 = vmatprep.subr.bf16.mxu0 %v7101
          %7637 = vmatpush1.bf16.msra.mxu0 %v7100
          %7638 = vmatprep.subr.bf16.mxu0 %v7109
          %7639 = vmatpush1.bf16.msra.mxu0 %v7108
          %7640 = vmatprep.subr.bf16.mxu0 %v7117
          %7641 = vmatpush1.bf16.msra.mxu0 %v7116
          %7642 = vmatprep.subr.bf16.mxu0 %v7125
          %7643 = vmatpush1.bf16.msra.mxu0 %v7124
          %7644 = vmatprep.subr.bf16.mxu0 %v7133
          %7645 = vmatpush1.bf16.msra.mxu0 %v7132
          %7646 = vmatprep.subr.bf16.mxu0 %v7141
          %7647 = vmatpush1.bf16.msra.mxu0 %v7140
          %7648 = vmatprep.subr.bf16.mxu0 %v7149
          %7649 = vmatpush1.bf16.msra.mxu0 %v7148
          %7650 = vmatprep.subr.bf16.mxu0 %v7157
          %7651 = vmatpush1.bf16.msra.mxu0 %v7156
          %7652 = vmatprep.subr.bf16.mxu0 %v7165
          %7653 = vmatpush1.bf16.msra.mxu0 %v7164
          %7654 = vmatprep.subr.bf16.mxu0 %v7173
          %7655 = vmatpush1.bf16.msra.mxu0 %v7172
          %7656 = vmatprep.subr.bf16.mxu0 %v7181
          %7657 = vmatpush1.bf16.msra.mxu0 %v7180
          %7658 = vmatprep.subr.bf16.mxu0 %v7189
          %7659 = vmatpush1.bf16.msra.mxu0 %v7188
          %7660 = vmatprep.subr.bf16.mxu0 %v7197
          %7661 = vmatpush1.bf16.msra.mxu0 %v7196
          %7662 = vmatprep.mubr.bf16.mxu0 %v7069
          %7663 = vmatmul.mubr.bf16.gmra.mrb[0].mxu0 %v7068
          %v7664 = vpop.f32.mrb[0].mxu0
          %v7665 = vadd.f32 %v7593, %v7664
          %v7666 = vpop.f32.mrb[0].mxu0
          %v7667 = vadd.f32 %v7597, %v7666
          %v7668 = vpop.f32.mrb[0].mxu0
          %v7669 = vpop.f32.mrb[0].mxu0
          %7670 = vdwg.mxu0
          %7671 = vmatprep.subr.bf16.mxu0 %v7205
          %7672 = vmatpush1.bf16.msra.mxu0 %v7204
          %7673 = vmatprep.subr.bf16.mxu0 %v7213
          %7674 = vmatpush1.bf16.msra.mxu0 %v7212
          %7675 = vmatprep.subr.bf16.mxu0 %v7221
          %7676 = vmatpush1.bf16.msra.mxu0 %v7220
          %7677 = vmatprep.subr.bf16.mxu0 %v7229
          %7678 = vmatpush1.bf16.msra.mxu0 %v7228
          %7679 = vmatprep.subr.bf16.mxu0 %v7237
          %7680 = vmatpush1.bf16.msra.mxu0 %v7236
          %7681 = vmatprep.subr.bf16.mxu0 %v7245
          %7682 = vmatpush1.bf16.msra.mxu0 %v7244
          %7683 = vmatprep.subr.bf16.mxu0 %v7253
          %7684 = vmatpush1.bf16.msra.mxu0 %v7252
          %7685 = vmatprep.subr.bf16.mxu0 %v7261
          %7686 = vmatpush1.bf16.msra.mxu0 %v7260
          %7687 = vmatprep.subr.bf16.mxu0 %v7269
          %7688 = vmatpush1.bf16.msra.mxu0 %v7268
          %7689 = vmatprep.subr.bf16.mxu0 %v7277
          %7690 = vmatpush1.bf16.msra.mxu0 %v7276
          %7691 = vmatprep.subr.bf16.mxu0 %v7285
          %7692 = vmatpush1.bf16.msra.mxu0 %v7284
          %7693 = vmatprep.subr.bf16.mxu0 %v7293
          %7694 = vmatpush1.bf16.msra.mxu0 %v7292
          %7695 = vmatprep.subr.bf16.mxu0 %v7301
          %7696 = vmatpush1.bf16.msra.mxu0 %v7300
          %7697 = vmatprep.subr.bf16.mxu0 %v7309
          %7698 = vmatpush1.bf16.msra.mxu0 %v7308
          %7699 = vmatprep.subr.bf16.mxu0 %v7317
          %7700 = vmatpush1.bf16.msra.mxu0 %v7316
          %7701 = vmatprep.subr.bf16.mxu0 %v7325
          %7702 = vmatpush1.bf16.msra.mxu0 %v7324
          %7703 = vmatprep.mubr.bf16.mxu0 %v7071
          %7704 = vmatmul.mubr.bf16.gmra.mrb[0].mxu0 %v7070
          %v7705 = vpop.f32.mrb[0].mxu0
          %v7706 = vadd.f32 %v7665, %v7705
          %v7707 = vpop.f32.mrb[0].mxu0
          %v7708 = vadd.f32 %v7667, %v7707
          %v7709 = vpop.f32.mrb[0].mxu0
          %v7710 = vpop.f32.mrb[0].mxu0
          %7711 = vdwg.mxu0
          %7712 = vmatprep.subr.bf16.mxu0 %v7333
          %7713 = vmatpush1.bf16.msra.mxu0 %v7332
          %7714 = vmatprep.subr.bf16.mxu0 %v7341
          %7715 = vmatpush1.bf16.msra.mxu0 %v7340
          %7716 = vmatprep.subr.bf16.mxu0 %v7349
          %7717 = vmatpush1.bf16.msra.mxu0 %v7348
          %7718 = vmatprep.subr.bf16.mxu0 %v7357
          %7719 = vmatpush1.bf16.msra.mxu0 %v7356
          %7720 = vmatprep.subr.bf16.mxu0 %v7365
          %7721 = vmatpush1.bf16.msra.mxu0 %v7364
          %7722 = vmatprep.subr.bf16.mxu0 %v7373
          %7723 = vmatpush1.bf16.msra.mxu0 %v7372
          %7724 = vmatprep.subr.bf16.mxu0 %v7381
          %7725 = vmatpush1.bf16.msra.mxu0 %v7380
          %7726 = vmatprep.subr.bf16.mxu0 %v7389
          %7727 = vmatpush1.bf16.msra.mxu0 %v7388
          %7728 = vmatprep.subr.bf16.mxu0 %v7397
          %7729 = vmatpush1.bf16.msra.mxu0 %v7396
          %7730 = vmatprep.subr.bf16.mxu0 %v7405
          %7731 = vmatpush1.bf16.msra.mxu0 %v7404
          %7732 = vmatprep.subr.bf16.mxu0 %v7413
          %7733 = vmatpush1.bf16.msra.mxu0 %v7412
          %7734 = vmatprep.subr.bf16.mxu0 %v7421
          %7735 = vmatpush1.bf16.msra.mxu0 %v7420
          %7736 = vmatprep.subr.bf16.mxu0 %v7429
          %7737 = vmatpush1.bf16.msra.mxu0 %v7428
          %7738 = vmatprep.subr.bf16.mxu0 %v7437
          %7739 = vmatpush1.bf16.msra.mxu0 %v7436
          %7740 = vmatprep.subr.bf16.mxu0 %v7445
          %7741 = vmatpush1.bf16.msra.mxu0 %v7444
          %7742 = vmatprep.subr.bf16.mxu0 %v7453
          %7743 = vmatpush1.bf16.msra.mxu0 %v7452
          %7744 = vmatprep.mubr.bf16.mxu0 %v7073
          %7745 = vmatmul.mubr.bf16.gmra.mrb[0].mxu0 %v7072
          %v7746 = vpop.f32.mrb[0].mxu0
          %v7747 = vadd.f32 %v7706, %v7746
          %v7748 = vpop.f32.mrb[0].mxu0
          %v7749 = vadd.f32 %v7708, %v7748
          %v7750 = vpop.f32.mrb[0].mxu0
          %v7751 = vpop.f32.mrb[0].mxu0
          %7752 = vdwg.mxu0
          %7753 = vmatprep.subr.bf16.mxu0 %v7461
          %7754 = vmatpush1.bf16.msra.mxu0 %v7460
          %7755 = vmatprep.subr.bf16.mxu0 %v7469
          %7756 = vmatpush1.bf16.msra.mxu0 %v7468
          %7757 = vmatprep.subr.bf16.mxu0 %v7477
          %7758 = vmatpush1.bf16.msra.mxu0 %v7476
          %7759 = vmatprep.subr.bf16.mxu0 %v7485
          %7760 = vmatpush1.bf16.msra.mxu0 %v7484
          %7761 = vmatprep.subr.bf16.mxu0 %v7493
          %7762 = vmatpush1.bf16.msra.mxu0 %v7492
          %7763 = vmatprep.subr.bf16.mxu0 %v7501
          %7764 = vmatpush1.bf16.msra.mxu0 %v7500
          %7765 = vmatprep.subr.bf16.mxu0 %v7509
          %7766 = vmatpush1.bf16.msra.mxu0 %v7508
          %7767 = vmatprep.subr.bf16.mxu0 %v7517
          %7768 = vmatpush1.bf16.msra.mxu0 %v7516
          %7769 = vmatprep.subr.bf16.mxu0 %v7525
          %7770 = vmatpush1.bf16.msra.mxu0 %v7524
          %7771 = vmatprep.subr.bf16.mxu0 %v7533
          %7772 = vmatpush1.bf16.msra.mxu0 %v7532
          %7773 = vmatprep.subr.bf16.mxu0 %v7541
          %7774 = vmatpush1.bf16.msra.mxu0 %v7540
          %7775 = vmatprep.subr.bf16.mxu0 %v7549
          %7776 = vmatpush1.bf16.msra.mxu0 %v7548
          %7777 = vmatprep.subr.bf16.mxu0 %v7557
          %7778 = vmatpush1.bf16.msra.mxu0 %v7556
          %7779 = vmatprep.subr.bf16.mxu0 %v7565
          %7780 = vmatpush1.bf16.msra.mxu0 %v7564
          %7781 = vmatprep.subr.bf16.mxu0 %v7573
          %7782 = vmatpush1.bf16.msra.mxu0 %v7572
          %7783 = vmatprep.subr.bf16.mxu0 %v7581
          %7784 = vmatpush1.bf16.msra.mxu0 %v7580
          %7785 = vmatprep.mubr.bf16.mxu0 %v7075
          %7786 = vmatmul.mubr.bf16.gmra.mrb[0].mxu0 %v7074
          %v7787 = vpop.f32.mrb[0].mxu0
          %v7788 = vadd.f32 %v7747, %v7787
          %v7789 = vpop.f32.mrb[0].mxu0
          %v7790 = vadd.f32 %v7749, %v7789
          %v7791 = vpop.f32.mrb[0].mxu0
          %v7792 = vpop.f32.mrb[0].mxu0
          %7793 = vdwg.mxu0
          %7794 = vmatprep.subr.bf16.mxu0 %v7079
          %7795 = vmatpush1.bf16.msra.mxu0 %v7078
          %7796 = vmatprep.subr.bf16.mxu0 %v7087
          %7797 = vmatpush1.bf16.msra.mxu0 %v7086
          %7798 = vmatprep.subr.bf16.mxu0 %v7095
          %7799 = vmatpush1.bf16.msra.mxu0 %v7094
          %7800 = vmatprep.subr.bf16.mxu0 %v7103
          %7801 = vmatpush1.bf16.msra.mxu0 %v7102
          %7802 = vmatprep.subr.bf16.mxu0 %v7111
          %7803 = vmatpush1.bf16.msra.mxu0 %v7110
          %7804 = vmatprep.subr.bf16.mxu0 %v7119
          %7805 = vmatpush1.bf16.msra.mxu0 %v7118
          %7806 = vmatprep.subr.bf16.mxu0 %v7127
          %7807 = vmatpush1.bf16.msra.mxu0 %v7126
          %7808 = vmatprep.subr.bf16.mxu0 %v7135
          %7809 = vmatpush1.bf16.msra.mxu0 %v7134
          %7810 = vmatprep.subr.bf16.mxu0 %v7143
          %7811 = vmatpush1.bf16.msra.mxu0 %v7142
          %7812 = vmatprep.subr.bf16.mxu0 %v7151
          %7813 = vmatpush1.bf16.msra.mxu0 %v7150
          %7814 = vmatprep.subr.bf16.mxu0 %v7159
          %7815 = vmatpush1.bf16.msra.mxu0 %v7158
          %7816 = vmatprep.subr.bf16.mxu0 %v7167
          %7817 = vmatpush1.bf16.msra.mxu0 %v7166
          %7818 = vmatprep.subr.bf16.mxu0 %v7175
          %7819 = vmatpush1.bf16.msra.mxu0 %v7174
          %7820 = vmatprep.subr.bf16.mxu0 %v7183
          %7821 = vmatpush1.bf16.msra.mxu0 %v7182
          %7822 = vmatprep.subr.bf16.mxu0 %v7191
          %7823 = vmatpush1.bf16.msra.mxu0 %v7190
          %7824 = vmatprep.subr.bf16.mxu0 %v7199
          %7825 = vmatpush1.bf16.msra.mxu0 %v7198
          %7826 = vmatprep.mubr.bf16.mxu0 %v7069
          %7827 = vmatmul.mubr.bf16.gmra.mrb[0].mxu0 %v7068
          %v7828 = vpop.f32.mrb[0].mxu0
          %v7829 = vadd.f32 %v7601, %v7828
          %v7830 = vpop.f32.mrb[0].mxu0
          %v7831 = vadd.f32 %v7605, %v7830
          %v7832 = vpop.f32.mrb[0].mxu0
          %v7833 = vpop.f32.mrb[0].mxu0
          %7834 = vdwg.mxu0
          %7835 = vmatprep.subr.bf16.mxu0 %v7207
          %7836 = vmatpush1.bf16.msra.mxu0 %v7206
          %7837 = vmatprep.subr.bf16.mxu0 %v7215
          %7838 = vmatpush1.bf16.msra.mxu0 %v7214
          %7839 = vmatprep.subr.bf16.mxu0 %v7223
          %7840 = vmatpush1.bf16.msra.mxu0 %v7222
          %7841 = vmatprep.subr.bf16.mxu0 %v7231
          %7842 = vmatpush1.bf16.msra.mxu0 %v7230
          %7843 = vmatprep.subr.bf16.mxu0 %v7239
          %7844 = vmatpush1.bf16.msra.mxu0 %v7238
          %7845 = vmatprep.subr.bf16.mxu0 %v7247
          %7846 = vmatpush1.bf16.msra.mxu0 %v7246
          %7847 = vmatprep.subr.bf16.mxu0 %v7255
          %7848 = vmatpush1.bf16.msra.mxu0 %v7254
          %7849 = vmatprep.subr.bf16.mxu0 %v7263
          %7850 = vmatpush1.bf16.msra.mxu0 %v7262
          %7851 = vmatprep.subr.bf16.mxu0 %v7271
          %7852 = vmatpush1.bf16.msra.mxu0 %v7270
          %7853 = vmatprep.subr.bf16.mxu0 %v7279
          %7854 = vmatpush1.bf16.msra.mxu0 %v7278
          %7855 = vmatprep.subr.bf16.mxu0 %v7287
          %7856 = vmatpush1.bf16.msra.mxu0 %v7286
          %7857 = vmatprep.subr.bf16.mxu0 %v7295
          %7858 = vmatpush1.bf16.msra.mxu0 %v7294
          %7859 = vmatprep.subr.bf16.mxu0 %v7303
          %7860 = vmatpush1.bf16.msra.mxu0 %v7302
          %7861 = vmatprep.subr.bf16.mxu0 %v7311
          %7862 = vmatpush1.bf16.msra.mxu0 %v7310
          %7863 = vmatprep.subr.bf16.mxu0 %v7319
          %7864 = vmatpush1.bf16.msra.mxu0 %v7318
          %7865 = vmatprep.subr.bf16.mxu0 %v7327
          %7866 = vmatpush1.bf16.msra.mxu0 %v7326
          %7867 = vmatprep.mubr.bf16.mxu0 %v7071
          %7868 = vmatmul.mubr.bf16.gmra.mrb[0].mxu0 %v7070
          %v7869 = vpop.f32.mrb[0].mxu0
          %v7870 = vadd.f32 %v7829, %v7869
          %v7871 = vpop.f32.mrb[0].mxu0
          %v7872 = vadd.f32 %v7831, %v7871
          %v7873 = vpop.f32.mrb[0].mxu0
          %v7874 = vpop.f32.mrb[0].mxu0
          %7875 = vdwg.mxu0
          %7876 = vmatprep.subr.bf16.mxu0 %v7335
          %7877 = vmatpush1.bf16.msra.mxu0 %v7334
          %7878 = vmatprep.subr.bf16.mxu0 %v7343
          %7879 = vmatpush1.bf16.msra.mxu0 %v7342
          %7880 = vmatprep.subr.bf16.mxu0 %v7351
          %7881 = vmatpush1.bf16.msra.mxu0 %v7350
          %7882 = vmatprep.subr.bf16.mxu0 %v7359
          %7883 = vmatpush1.bf16.msra.mxu0 %v7358
          %7884 = vmatprep.subr.bf16.mxu0 %v7367
          %7885 = vmatpush1.bf16.msra.mxu0 %v7366
          %7886 = vmatprep.subr.bf16.mxu0 %v7375
          %7887 = vmatpush1.bf16.msra.mxu0 %v7374
          %7888 = vmatprep.subr.bf16.mxu0 %v7383
          %7889 = vmatpush1.bf16.msra.mxu0 %v7382
          %7890 = vmatprep.subr.bf16.mxu0 %v7391
          %7891 = vmatpush1.bf16.msra.mxu0 %v7390
          %7892 = vmatprep.subr.bf16.mxu0 %v7399
          %7893 = vmatpush1.bf16.msra.mxu0 %v7398
          %7894 = vmatprep.subr.bf16.mxu0 %v7407
          %7895 = vmatpush1.bf16.msra.mxu0 %v7406
          %7896 = vmatprep.subr.bf16.mxu0 %v7415
          %7897 = vmatpush1.bf16.msra.mxu0 %v7414
          %7898 = vmatprep.subr.bf16.mxu0 %v7423
          %7899 = vmatpush1.bf16.msra.mxu0 %v7422
          %7900 = vmatprep.subr.bf16.mxu0 %v7431
          %7901 = vmatpush1.bf16.msra.mxu0 %v7430
          %7902 = vmatprep.subr.bf16.mxu0 %v7439
          %7903 = vmatpush1.bf16.msra.mxu0 %v7438
          %7904 = vmatprep.subr.bf16.mxu0 %v7447
          %7905 = vmatpush1.bf16.msra.mxu0 %v7446
          %7906 = vmatprep.subr.bf16.mxu0 %v7455
          %7907 = vmatpush1.bf16.msra.mxu0 %v7454
          %7908 = vmatprep.mubr.bf16.mxu0 %v7073
          %7909 = vmatmul.mubr.bf16.gmra.mrb[0].mxu0 %v7072
          %v7910 = vpop.f32.mrb[0].mxu0
          %v7911 = vadd.f32 %v7870, %v7910
          %v7912 = vpop.f32.mrb[0].mxu0
          %v7913 = vadd.f32 %v7872, %v7912
          %v7914 = vpop.f32.mrb[0].mxu0
          %v7915 = vpop.f32.mrb[0].mxu0
          %7916 = vdwg.mxu0
          %7917 = vmatprep.subr.bf16.mxu0 %v7463
          %7918 = vmatpush1.bf16.msra.mxu0 %v7462
          %7919 = vmatprep.subr.bf16.mxu0 %v7471
          %7920 = vmatpush1.bf16.msra.mxu0 %v7470
          %7921 = vmatprep.subr.bf16.mxu0 %v7479
          %7922 = vmatpush1.bf16.msra.mxu0 %v7478
          %7923 = vmatprep.subr.bf16.mxu0 %v7487
          %7924 = vmatpush1.bf16.msra.mxu0 %v7486
          %7925 = vmatprep.subr.bf16.mxu0 %v7495
          %7926 = vmatpush1.bf16.msra.mxu0 %v7494
          %7927 = vmatprep.subr.bf16.mxu0 %v7503
          %7928 = vmatpush1.bf16.msra.mxu0 %v7502
          %7929 = vmatprep.subr.bf16.mxu0 %v7511
          %7930 = vmatpush1.bf16.msra.mxu0 %v7510
          %7931 = vmatprep.subr.bf16.mxu0 %v7519
          %7932 = vmatpush1.bf16.msra.mxu0 %v7518
          %7933 = vmatprep.subr.bf16.mxu0 %v7527
          %7934 = vmatpush1.bf16.msra.mxu0 %v7526
          %7935 = vmatprep.subr.bf16.mxu0 %v7535
          %7936 = vmatpush1.bf16.msra.mxu0 %v7534
          %7937 = vmatprep.subr.bf16.mxu0 %v7543
          %7938 = vmatpush1.bf16.msra.mxu0 %v7542
          %7939 = vmatprep.subr.bf16.mxu0 %v7551
          %7940 = vmatpush1.bf16.msra.mxu0 %v7550
          %7941 = vmatprep.subr.bf16.mxu0 %v7559
          %7942 = vmatpush1.bf16.msra.mxu0 %v7558
          %7943 = vmatprep.subr.bf16.mxu0 %v7567
          %7944 = vmatpush1.bf16.msra.mxu0 %v7566
          %7945 = vmatprep.subr.bf16.mxu0 %v7575
          %7946 = vmatpush1.bf16.msra.mxu0 %v7574
          %7947 = vmatprep.subr.bf16.mxu0 %v7583
          %7948 = vmatpush1.bf16.msra.mxu0 %v7582
          %7949 = vmatprep.mubr.bf16.mxu0 %v7075
          %7950 = vmatmul.mubr.bf16.gmra.mrb[0].mxu0 %v7074
          %v7951 = vpop.f32.mrb[0].mxu0
          %v7952 = vadd.f32 %v7911, %v7951
          %v7953 = vpop.f32.mrb[0].mxu0
          %v7954 = vadd.f32 %v7913, %v7953
          %v7955 = vpop.f32.mrb[0].mxu0
          %v7956 = vpop.f32.mrb[0].mxu0
          %7957 = vdwg.mxu0
          %7958 = vmatprep.subr.bf16.mxu0 %v7081
          %7959 = vmatpush1.bf16.msra.mxu0 %v7080
          %7960 = vmatprep.subr.bf16.mxu0 %v7089
          %7961 = vmatpush1.bf16.msra.mxu0 %v7088
          %7962 = vmatprep.subr.bf16.mxu0 %v7097
          %7963 = vmatpush1.bf16.msra.mxu0 %v7096
          %7964 = vmatprep.subr.bf16.mxu0 %v7105
          %7965 = vmatpush1.bf16.msra.mxu0 %v7104
          %7966 = vmatprep.subr.bf16.mxu0 %v7113
          %7967 = vmatpush1.bf16.msra.mxu0 %v7112
          %7968 = vmatprep.subr.bf16.mxu0 %v7121
          %7969 = vmatpush1.bf16.msra.mxu0 %v7120
          %7970 = vmatprep.subr.bf16.mxu0 %v7129
          %7971 = vmatpush1.bf16.msra.mxu0 %v7128
          %7972 = vmatprep.subr.bf16.mxu0 %v7137
          %7973 = vmatpush1.bf16.msra.mxu0 %v7136
          %7974 = vmatprep.subr.bf16.mxu0 %v7145
          %7975 = vmatpush1.bf16.msra.mxu0 %v7144
          %7976 = vmatprep.subr.bf16.mxu0 %v7153
          %7977 = vmatpush1.bf16.msra.mxu0 %v7152
          %7978 = vmatprep.subr.bf16.mxu0 %v7161
          %7979 = vmatpush1.bf16.msra.mxu0 %v7160
          %7980 = vmatprep.subr.bf16.mxu0 %v7169
          %7981 = vmatpush1.bf16.msra.mxu0 %v7168
          %7982 = vmatprep.subr.bf16.mxu0 %v7177
          %7983 = vmatpush1.bf16.msra.mxu0 %v7176
          %7984 = vmatprep.subr.bf16.mxu0 %v7185
          %7985 = vmatpush1.bf16.msra.mxu0 %v7184
          %7986 = vmatprep.subr.bf16.mxu0 %v7193
          %7987 = vmatpush1.bf16.msra.mxu0 %v7192
          %7988 = vmatprep.subr.bf16.mxu0 %v7201
          %7989 = vmatpush1.bf16.msra.mxu0 %v7200
          %7990 = vmatprep.mubr.bf16.mxu0 %v7069
          %7991 = vmatmul.mubr.bf16.gmra.mrb[0].mxu0 %v7068
          %v7992 = vpop.f32.mrb[0].mxu0
          %v7993 = vadd.f32 %v7609, %v7992
          %v7994 = vpop.f32.mrb[0].mxu0
          %v7995 = vadd.f32 %v7613, %v7994
          %v7996 = vpop.f32.mrb[0].mxu0
          %v7997 = vpop.f32.mrb[0].mxu0
          %7998 = vdwg.mxu0
          %7999 = vmatprep.subr.bf16.mxu0 %v7209
          %8000 = vmatpush1.bf16.msra.mxu0 %v7208
          %8001 = vmatprep.subr.bf16.mxu0 %v7217
          %8002 = vmatpush1.bf16.msra.mxu0 %v7216
          %8003 = vmatprep.subr.bf16.mxu0 %v7225
          %8004 = vmatpush1.bf16.msra.mxu0 %v7224
          %8005 = vmatprep.subr.bf16.mxu0 %v7233
          %8006 = vmatpush1.bf16.msra.mxu0 %v7232
          %8007 = vmatprep.subr.bf16.mxu0 %v7241
          %8008 = vmatpush1.bf16.msra.mxu0 %v7240
          %8009 = vmatprep.subr.bf16.mxu0 %v7249
          %8010 = vmatpush1.bf16.msra.mxu0 %v7248
          %8011 = vmatprep.subr.bf16.mxu0 %v7257
          %8012 = vmatpush1.bf16.msra.mxu0 %v7256
          %8013 = vmatprep.subr.bf16.mxu0 %v7265
          %8014 = vmatpush1.bf16.msra.mxu0 %v7264
          %8015 = vmatprep.subr.bf16.mxu0 %v7273
          %8016 = vmatpush1.bf16.msra.mxu0 %v7272
          %8017 = vmatprep.subr.bf16.mxu0 %v7281
          %8018 = vmatpush1.bf16.msra.mxu0 %v7280
          %8019 = vmatprep.subr.bf16.mxu0 %v7289
          %8020 = vmatpush1.bf16.msra.mxu0 %v7288
          %8021 = vmatprep.subr.bf16.mxu0 %v7297
          %8022 = vmatpush1.bf16.msra.mxu0 %v7296
          %8023 = vmatprep.subr.bf16.mxu0 %v7305
          %8024 = vmatpush1.bf16.msra.mxu0 %v7304
          %8025 = vmatprep.subr.bf16.mxu0 %v7313
          %8026 = vmatpush1.bf16.msra.mxu0 %v7312
          %8027 = vmatprep.subr.bf16.mxu0 %v7321
          %8028 = vmatpush1.bf16.msra.mxu0 %v7320
          %8029 = vmatprep.subr.bf16.mxu0 %v7329
          %8030 = vmatpush1.bf16.msra.mxu0 %v7328
          %8031 = vmatprep.mubr.bf16.mxu0 %v7071
          %8032 = vmatmul.mubr.bf16.gmra.mrb[0].mxu0 %v7070
          %v8033 = vpop.f32.mrb[0].mxu0
          %v8034 = vadd.f32 %v7993, %v8033
          %v8035 = vpop.f32.mrb[0].mxu0
          %v8036 = vadd.f32 %v7995, %v8035
          %v8037 = vpop.f32.mrb[0].mxu0
          %v8038 = vpop.f32.mrb[0].mxu0
          %8039 = vdwg.mxu0
          %8040 = vmatprep.subr.bf16.mxu0 %v7337
          %8041 = vmatpush1.bf16.msra.mxu0 %v7336
          %8042 = vmatprep.subr.bf16.mxu0 %v7345
          %8043 = vmatpush1.bf16.msra.mxu0 %v7344
          %8044 = vmatprep.subr.bf16.mxu0 %v7353
          %8045 = vmatpush1.bf16.msra.mxu0 %v7352
          %8046 = vmatprep.subr.bf16.mxu0 %v7361
          %8047 = vmatpush1.bf16.msra.mxu0 %v7360
          %8048 = vmatprep.subr.bf16.mxu0 %v7369
          %8049 = vmatpush1.bf16.msra.mxu0 %v7368
          %8050 = vmatprep.subr.bf16.mxu0 %v7377
          %8051 = vmatpush1.bf16.msra.mxu0 %v7376
          %8052 = vmatprep.subr.bf16.mxu0 %v7385
          %8053 = vmatpush1.bf16.msra.mxu0 %v7384
          %8054 = vmatprep.subr.bf16.mxu0 %v7393
          %8055 = vmatpush1.bf16.msra.mxu0 %v7392
          %8056 = vmatprep.subr.bf16.mxu0 %v7401
          %8057 = vmatpush1.bf16.msra.mxu0 %v7400
          %8058 = vmatprep.subr.bf16.mxu0 %v7409
          %8059 = vmatpush1.bf16.msra.mxu0 %v7408
          %8060 = vmatprep.subr.bf16.mxu0 %v7417
          %8061 = vmatpush1.bf16.msra.mxu0 %v7416
          %8062 = vmatprep.subr.bf16.mxu0 %v7425
          %8063 = vmatpush1.bf16.msra.mxu0 %v7424
          %8064 = vmatprep.subr.bf16.mxu0 %v7433
          %8065 = vmatpush1.bf16.msra.mxu0 %v7432
          %8066 = vmatprep.subr.bf16.mxu0 %v7441
          %8067 = vmatpush1.bf16.msra.mxu0 %v7440
          %8068 = vmatprep.subr.bf16.mxu0 %v7449
          %8069 = vmatpush1.bf16.msra.mxu0 %v7448
          %8070 = vmatprep.subr.bf16.mxu0 %v7457
          %8071 = vmatpush1.bf16.msra.mxu0 %v7456
          %8072 = vmatprep.mubr.bf16.mxu0 %v7073
          %8073 = vmatmul.mubr.bf16.gmra.mrb[0].mxu0 %v7072
          %v8074 = vpop.f32.mrb[0].mxu0
          %v8075 = vadd.f32 %v8034, %v8074
          %v8076 = vpop.f32.mrb[0].mxu0
          %v8077 = vadd.f32 %v8036, %v8076
          %v8078 = vpop.f32.mrb[0].mxu0
          %v8079 = vpop.f32.mrb[0].mxu0
          %8080 = vdwg.mxu0
          %8081 = vmatprep.subr.bf16.mxu0 %v7465
          %8082 = vmatpush1.bf16.msra.mxu0 %v7464
          %8083 = vmatprep.subr.bf16.mxu0 %v7473
          %8084 = vmatpush1.bf16.msra.mxu0 %v7472
          %8085 = vmatprep.subr.bf16.mxu0 %v7481
          %8086 = vmatpush1.bf16.msra.mxu0 %v7480
          %8087 = vmatprep.subr.bf16.mxu0 %v7489
          %8088 = vmatpush1.bf16.msra.mxu0 %v7488
          %8089 = vmatprep.subr.bf16.mxu0 %v7497
          %8090 = vmatpush1.bf16.msra.mxu0 %v7496
          %8091 = vmatprep.subr.bf16.mxu0 %v7505
          %8092 = vmatpush1.bf16.msra.mxu0 %v7504
          %8093 = vmatprep.subr.bf16.mxu0 %v7513
          %8094 = vmatpush1.bf16.msra.mxu0 %v7512
          %8095 = vmatprep.subr.bf16.mxu0 %v7521
          %8096 = vmatpush1.bf16.msra.mxu0 %v7520
          %8097 = vmatprep.subr.bf16.mxu0 %v7529
          %8098 = vmatpush1.bf16.msra.mxu0 %v7528
          %8099 = vmatprep.subr.bf16.mxu0 %v7537
          %8100 = vmatpush1.bf16.msra.mxu0 %v7536
          %8101 = vmatprep.subr.bf16.mxu0 %v7545
          %8102 = vmatpush1.bf16.msra.mxu0 %v7544
          %8103 = vmatprep.subr.bf16.mxu0 %v7553
          %8104 = vmatpush1.bf16.msra.mxu0 %v7552
          %8105 = vmatprep.subr.bf16.mxu0 %v7561
          %8106 = vmatpush1.bf16.msra.mxu0 %v7560
          %8107 = vmatprep.subr.bf16.mxu0 %v7569
          %8108 = vmatpush1.bf16.msra.mxu0 %v7568
          %8109 = vmatprep.subr.bf16.mxu0 %v7577
          %8110 = vmatpush1.bf16.msra.mxu0 %v7576
          %8111 = vmatprep.subr.bf16.mxu0 %v7585
          %8112 = vmatpush1.bf16.msra.mxu0 %v7584
          %8113 = vmatprep.mubr.bf16.mxu0 %v7075
          %8114 = vmatmul.mubr.bf16.gmra.mrb[0].mxu0 %v7074
          %v8115 = vpop.f32.mrb[0].mxu0
          %v8116 = vadd.f32 %v8075, %v8115
          %v8117 = vpop.f32.mrb[0].mxu0
          %v8118 = vadd.f32 %v8077, %v8117
          %v8119 = vpop.f32.mrb[0].mxu0
          %v8120 = vpop.f32.mrb[0].mxu0
          %8121 = vdwg.mxu0
          %8122 = vmatprep.subr.bf16.mxu0 %v7083
          %8123 = vmatpush1.bf16.msra.mxu0 %v7082
          %8124 = vmatprep.subr.bf16.mxu0 %v7091
          %8125 = vmatpush1.bf16.msra.mxu0 %v7090
          %8126 = vmatprep.subr.bf16.mxu0 %v7099
          %8127 = vmatpush1.bf16.msra.mxu0 %v7098
          %8128 = vmatprep.subr.bf16.mxu0 %v7107
          %8129 = vmatpush1.bf16.msra.mxu0 %v7106
          %8130 = vmatprep.subr.bf16.mxu0 %v7115
          %8131 = vmatpush1.bf16.msra.mxu0 %v7114
          %8132 = vmatprep.subr.bf16.mxu0 %v7123
          %8133 = vmatpush1.bf16.msra.mxu0 %v7122
          %8134 = vmatprep.subr.bf16.mxu0 %v7131
          %8135 = vmatpush1.bf16.msra.mxu0 %v7130
          %8136 = vmatprep.subr.bf16.mxu0 %v7139
          %8137 = vmatpush1.bf16.msra.mxu0 %v7138
          %8138 = vmatprep.subr.bf16.mxu0 %v7147
          %8139 = vmatpush1.bf16.msra.mxu0 %v7146
          %8140 = vmatprep.subr.bf16.mxu0 %v7155
          %8141 = vmatpush1.bf16.msra.mxu0 %v7154
          %8142 = vmatprep.subr.bf16.mxu0 %v7163
          %8143 = vmatpush1.bf16.msra.mxu0 %v7162
          %8144 = vmatprep.subr.bf16.mxu0 %v7171
          %8145 = vmatpush1.bf16.msra.mxu0 %v7170
          %8146 = vmatprep.subr.bf16.mxu0 %v7179
          %8147 = vmatpush1.bf16.msra.mxu0 %v7178
          %8148 = vmatprep.subr.bf16.mxu0 %v7187
          %8149 = vmatpush1.bf16.msra.mxu0 %v7186
          %8150 = vmatprep.subr.bf16.mxu0 %v7195
          %8151 = vmatpush1.bf16.msra.mxu0 %v7194
          %8152 = vmatprep.subr.bf16.mxu0 %v7203
          %8153 = vmatpush1.bf16.msra.mxu0 %v7202
          %8154 = vmatprep.mubr.bf16.mxu0 %v7069
          %8155 = vmatmul.mubr.bf16.gmra.mrb[0].mxu0 %v7068
          %v8156 = vpop.f32.mrb[0].mxu0
          %v8157 = vadd.f32 %v7617, %v8156
          %v8158 = vpop.f32.mrb[0].mxu0
          %v8159 = vadd.f32 %v7621, %v8158
          %v8160 = vpop.f32.mrb[0].mxu0
          %v8161 = vpop.f32.mrb[0].mxu0
          %8162 = vdwg.mxu0
          %8163 = vmatprep.subr.bf16.mxu0 %v7211
          %8164 = vmatpush1.bf16.msra.mxu0 %v7210
          %8165 = vmatprep.subr.bf16.mxu0 %v7219
          %8166 = vmatpush1.bf16.msra.mxu0 %v7218
          %8167 = vmatprep.subr.bf16.mxu0 %v7227
          %8168 = vmatpush1.bf16.msra.mxu0 %v7226
          %8169 = vmatprep.subr.bf16.mxu0 %v7235
          %8170 = vmatpush1.bf16.msra.mxu0 %v7234
          %8171 = vmatprep.subr.bf16.mxu0 %v7243
          %8172 = vmatpush1.bf16.msra.mxu0 %v7242
          %8173 = vmatprep.subr.bf16.mxu0 %v7251
          %8174 = vmatpush1.bf16.msra.mxu0 %v7250
          %8175 = vmatprep.subr.bf16.mxu0 %v7259
          %8176 = vmatpush1.bf16.msra.mxu0 %v7258
          %8177 = vmatprep.subr.bf16.mxu0 %v7267
          %8178 = vmatpush1.bf16.msra.mxu0 %v7266
          %8179 = vmatprep.subr.bf16.mxu0 %v7275
          %8180 = vmatpush1.bf16.msra.mxu0 %v7274
          %8181 = vmatprep.subr.bf16.mxu0 %v7283
          %8182 = vmatpush1.bf16.msra.mxu0 %v7282
          %8183 = vmatprep.subr.bf16.mxu0 %v7291
          %8184 = vmatpush1.bf16.msra.mxu0 %v7290
          %8185 = vmatprep.subr.bf16.mxu0 %v7299
          %8186 = vmatpush1.bf16.msra.mxu0 %v7298
          %8187 = vmatprep.subr.bf16.mxu0 %v7307
          %8188 = vmatpush1.bf16.msra.mxu0 %v7306
          %8189 = vmatprep.subr.bf16.mxu0 %v7315
          %8190 = vmatpush1.bf16.msra.mxu0 %v7314
          %8191 = vmatprep.subr.bf16.mxu0 %v7323
          %8192 = vmatpush1.bf16.msra.mxu0 %v7322
          %8193 = vmatprep.subr.bf16.mxu0 %v7331
          %8194 = vmatpush1.bf16.msra.mxu0 %v7330
          %8195 = vmatprep.mubr.bf16.mxu0 %v7071
          %8196 = vmatmul.mubr.bf16.gmra.mrb[0].mxu0 %v7070
          %v8197 = vpop.f32.mrb[0].mxu0
          %v8198 = vadd.f32 %v8157, %v8197
          %v8199 = vpop.f32.mrb[0].mxu0
          %v8200 = vadd.f32 %v8159, %v8199
          %v8201 = vpop.f32.mrb[0].mxu0
          %v8202 = vpop.f32.mrb[0].mxu0
          %8203 = vdwg.mxu0
          %8204 = vmatprep.subr.bf16.mxu0 %v7339
          %8205 = vmatpush1.bf16.msra.mxu0 %v7338
          %8206 = vmatprep.subr.bf16.mxu0 %v7347
          %8207 = vmatpush1.bf16.msra.mxu0 %v7346
          %8208 = vmatprep.subr.bf16.mxu0 %v7355
          %8209 = vmatpush1.bf16.msra.mxu0 %v7354
          %8210 = vmatprep.subr.bf16.mxu0 %v7363
          %8211 = vmatpush1.bf16.msra.mxu0 %v7362
          %8212 = vmatprep.subr.bf16.mxu0 %v7371
          %8213 = vmatpush1.bf16.msra.mxu0 %v7370
          %8214 = vmatprep.subr.bf16.mxu0 %v7379
          %8215 = vmatpush1.bf16.msra.mxu0 %v7378
          %8216 = vmatprep.subr.bf16.mxu0 %v7387
          %8217 = vmatpush1.bf16.msra.mxu0 %v7386
          %8218 = vmatprep.subr.bf16.mxu0 %v7395
          %8219 = vmatpush1.bf16.msra.mxu0 %v7394
          %8220 = vmatprep.subr.bf16.mxu0 %v7403
          %8221 = vmatpush1.bf16.msra.mxu0 %v7402
          %8222 = vmatprep.subr.bf16.mxu0 %v7411
          %8223 = vmatpush1.bf16.msra.mxu0 %v7410
          %8224 = vmatprep.subr.bf16.mxu0 %v7419
          %8225 = vmatpush1.bf16.msra.mxu0 %v7418
          %8226 = vmatprep.subr.bf16.mxu0 %v7427
          %8227 = vmatpush1.bf16.msra.mxu0 %v7426
          %8228 = vmatprep.subr.bf16.mxu0 %v7435
          %8229 = vmatpush1.bf16.msra.mxu0 %v7434
          %8230 = vmatprep.subr.bf16.mxu0 %v7443
          %8231 = vmatpush1.bf16.msra.mxu0 %v7442
          %8232 = vmatprep.subr.bf16.mxu0 %v7451
          %8233 = vmatpush1.bf16.msra.mxu0 %v7450
          %8234 = vmatprep.subr.bf16.mxu0 %v7459
          %8235 = vmatpush1.bf16.msra.mxu0 %v7458
          %8236 = vmatprep.mubr.bf16.mxu0 %v7073
          %8237 = vmatmul.mubr.bf16.gmra.mrb[0].mxu0 %v7072
          %v8238 = vpop.f32.mrb[0].mxu0
          %v8239 = vadd.f32 %v8198, %v8238
          %v8240 = vpop.f32.mrb[0].mxu0
          %v8241 = vadd.f32 %v8200, %v8240
          %v8242 = vpop.f32.mrb[0].mxu0
          %v8243 = vpop.f32.mrb[0].mxu0
          %8244 = vdwg.mxu0
          %8245 = vmatprep.subr.bf16.mxu0 %v7467
          %8246 = vmatpush1.bf16.msra.mxu0 %v7466
          %8247 = vmatprep.subr.bf16.mxu0 %v7475
          %8248 = vmatpush1.bf16.msra.mxu0 %v7474
          %8249 = vmatprep.subr.bf16.mxu0 %v7483
          %8250 = vmatpush1.bf16.msra.mxu0 %v7482
          %8251 = vmatprep.subr.bf16.mxu0 %v7491
          %8252 = vmatpush1.bf16.msra.mxu0 %v7490
          %8253 = vmatprep.subr.bf16.mxu0 %v7499
          %8254 = vmatpush1.bf16.msra.mxu0 %v7498
          %8255 = vmatprep.subr.bf16.mxu0 %v7507
          %8256 = vmatpush1.bf16.msra.mxu0 %v7506
          %8257 = vmatprep.subr.bf16.mxu0 %v7515
          %8258 = vmatpush1.bf16.msra.mxu0 %v7514
          %8259 = vmatprep.subr.bf16.mxu0 %v7523
          %8260 = vmatpush1.bf16.msra.mxu0 %v7522
          %8261 = vmatprep.subr.bf16.mxu0 %v7531
          %8262 = vmatpush1.bf16.msra.mxu0 %v7530
          %8263 = vmatprep.subr.bf16.mxu0 %v7539
          %8264 = vmatpush1.bf16.msra.mxu0 %v7538
          %8265 = vmatprep.subr.bf16.mxu0 %v7547
          %8266 = vmatpush1.bf16.msra.mxu0 %v7546
          %8267 = vmatprep.subr.bf16.mxu0 %v7555
          %8268 = vmatpush1.bf16.msra.mxu0 %v7554
          %8269 = vmatprep.subr.bf16.mxu0 %v7563
          %8270 = vmatpush1.bf16.msra.mxu0 %v7562
          %8271 = vmatprep.subr.bf16.mxu0 %v7571
          %8272 = vmatpush1.bf16.msra.mxu0 %v7570
          %8273 = vmatprep.subr.bf16.mxu0 %v7579
          %8274 = vmatpush1.bf16.msra.mxu0 %v7578
          %8275 = vmatprep.subr.bf16.mxu0 %v7587
          %8276 = vmatpush1.bf16.msra.mxu0 %v7586
          %8277 = vmatprep.mubr.bf16.mxu0 %v7075
          %8278 = vmatmul.mubr.bf16.gmra.mrb[0].mxu0 %v7074
          %v8279 = vpop.f32.mrb[0].mxu0
          %v8280 = vadd.f32 %v8239, %v8279
          %v8281 = vpop.f32.mrb[0].mxu0
          %v8282 = vadd.f32 %v8241, %v8281
          %v8283 = vpop.f32.mrb[0].mxu0
          %v8284 = vpop.f32.mrb[0].mxu0
          %8285 = vdwg.mxu0
          %v8294 = vcombine.low %v7788, %v7790
          %v8295 = vcombine.low %v7952, %v7954
          %v8297 = vunpack.c.l.s4 1983009808
          %v8298 = vunpack.c.0.s8 %v8297
          %v8299 = vlaneseq
          %v8300 = vshrl.u32 %v8299, 7
          %v8301 = vsub.s32 %v8298, %v8300
          %v8302 = vrot.slane %v8294, %v8301
          %v8304 = vunpack.c.l.s4 1983009808
          %v8305 = vunpack.c.0.s8 %v8304
          %v8306 = vlaneseq
          %v8307 = vshrl.u32 %v8306, 7
          %v8308 = vsub.s32 %v8305, %v8307
          %v8309 = vrot.slane %v8295, %v8308
          %v8310 = vcombine.low %v8302, %v8309
          %v8311 = vcombine.low %v8116, %v8118
          %v8312 = vcombine.low %v8280, %v8282
          %v8314 = vunpack.c.l.s4 1983009808
          %v8315 = vunpack.c.0.s8 %v8314
          %v8316 = vlaneseq
          %v8317 = vshrl.u32 %v8316, 7
          %v8318 = vsub.s32 %v8315, %v8317
          %v8319 = vrot.slane %v8311, %v8318
          %v8321 = vunpack.c.l.s4 1983009808
          %v8322 = vunpack.c.0.s8 %v8321
          %v8323 = vlaneseq
          %v8324 = vshrl.u32 %v8323, 7
          %v8325 = vsub.s32 %v8322, %v8324
          %v8326 = vrot.slane %v8312, %v8325
          %v8327 = vcombine.low %v8319, %v8326
          %8330 = vst [vmem:[#allocation21] sm:$0xff] %v8310
          %8331 = vst [vmem:[#allocation21 + $0x8] sm:$0xff] %v8327
          %v8332 = vrot.slane %v7788, 1
          %v8333 = vrot.slane %v7790, 1
          %v8334 = vrot.slane %v7952, 1
          %v8335 = vrot.slane %v7954, 1
          %v8336 = vrot.slane %v8116, 1
          %v8337 = vrot.slane %v8118, 1
          %v8338 = vrot.slane %v8280, 1
          %v8339 = vrot.slane %v8282, 1
          %v8348 = vmul.f32 %v7788, %v8332
          %v8349 = vmul.f32 %v7790, %v8333
          %v8350 = vmul.f32 %v7952, %v8334
          %v8351 = vmul.f32 %v7954, %v8335
          %v8352 = vmul.f32 %v8116, %v8336
          %v8353 = vmul.f32 %v8118, %v8337
          %v8354 = vmul.f32 %v8280, %v8338
          %v8355 = vmul.f32 %v8282, %v8339
          %vm8356 = vcmask 1040384
          %v8357 = vsel %vm8356, %v8348, 0.0
          %v8358 = vsel %vm8356, %v8349, 0.0
          %v8359 = vadd.f32 %v8357, %v8358
          %v8360 = vsel %vm8356, %v8350, 0.0
          %v8361 = vadd.f32 %v8359, %v8360
          %v8362 = vsel %vm8356, %v8351, 0.0
          %v8363 = vadd.f32 %v8361, %v8362
          %v8364 = vsel %vm8356, %v8352, 0.0
          %v8365 = vadd.f32 %v8363, %v8364
          %v8366 = vsel %vm8356, %v8353, 0.0
          %v8367 = vadd.f32 %v8365, %v8366
          %v8368 = vsel %vm8356, %v8354, 0.0
          %v8369 = vadd.f32 %v8367, %v8368
          %v8370 = vsel %vm8356, %v8355, 0.0
          %v8371 = vadd.f32 %v8369, %v8370
          %8372 = vadd.xlane.f32.xlu0 %v8371
          %v8373 = vpop.xlane.xlu0 %8372
          %v8374 = vmul.f32 %v7788, %v7788
          %v8375 = vmul.f32 %v7790, %v7790
          %v8376 = vmul.f32 %v7952, %v7952
          %v8377 = vmul.f32 %v7954, %v7954
          %v8378 = vmul.f32 %v8116, %v8116
          %v8379 = vmul.f32 %v8118, %v8118
          %v8380 = vmul.f32 %v8280, %v8280
          %v8381 = vmul.f32 %v8282, %v8282
          %v8382 = vsel %vm8356, %v8374, 0.0
          %v8383 = vsel %vm8356, %v8375, 0.0
          %v8384 = vadd.f32 %v8382, %v8383
          %v8385 = vsel %vm8356, %v8376, 0.0
          %v8386 = vadd.f32 %v8384, %v8385
          %v8387 = vsel %vm8356, %v8377, 0.0
          %v8388 = vadd.f32 %v8386, %v8387
          %v8389 = vsel %vm8356, %v8378, 0.0
          %v8390 = vadd.f32 %v8388, %v8389
          %v8391 = vsel %vm8356, %v8379, 0.0
          %v8392 = vadd.f32 %v8390, %v8391
          %v8393 = vsel %vm8356, %v8380, 0.0
          %v8394 = vadd.f32 %v8392, %v8393
          %v8395 = vsel %vm8356, %v8381, 0.0
          %v8396 = vadd.f32 %v8394, %v8395
          %8397 = vadd.xlane.f32.xlu0 %v8396
          %v8398 = vpop.xlane.xlu0 %8397
          %v8399 = vsel %vm3997, %v8374, 0.0
          %v8400 = vsel %vm3997, %v8375, 0.0
          %v8401 = vadd.f32 %v8399, %v8400
          %v8402 = vsel %vm3997, %v8376, 0.0
          %v8403 = vadd.f32 %v8401, %v8402
          %v8404 = vsel %vm3997, %v8377, 0.0
          %v8405 = vadd.f32 %v8403, %v8404
          %v8406 = vsel %vm3997, %v8378, 0.0
          %v8407 = vadd.f32 %v8405, %v8406
          %v8408 = vsel %vm3997, %v8379, 0.0
          %v8409 = vadd.f32 %v8407, %v8408
          %v8410 = vsel %vm3997, %v8380, 0.0
          %v8411 = vadd.f32 %v8409, %v8410
          %v8412 = vsel %vm3997, %v8381, 0.0
          %v8413 = vadd.f32 %v8411, %v8412
          %8414 = vadd.xlane.f32.xlu0 %v8413
          %v8415 = vpop.xlane.xlu0 %8414
          %v8417 = vrot.slane %v8415, 1
          %v8419 = vmul.f32 %v8398, %v8417
          %v8420 = vrsqrt.pop %v8419
          %v8421 = vmin.f32 %v8420, 1e+08
          %v8422 = vmul.f32 %v8373, %v8421
          %vm8423 = vcmask 0
          %8424 = vst.msk [vmem:[#allocation22] sm:$0x1] %vm8423, %v8422
        $region76: #{tpu_custom_call.1} parent=43 // pred_fallthru
          _
        // Predicated region
        $region77: #{tpu_custom_call.1} parent=43 // pred_check
          %p8425 = pneg %p183
        $region78: #{tpu_custom_call.1} parent=43 // pred_check_branch
          %8427 = sbr.rel (%p8425) target = $region80
        $region79: #{tpu_custom_call.1} parent=43 // pred_region
          %s8429 = ssub.s32 256, 256
          %8430 = vsyncadd [#allocation12], %s8429
          %s8432 = sshll.u32 [#allocation21], 4
          %s8433 = int_to_ptr.vmem [resolvable:$true] %s8432
          %8435 = dma.vmem_to_hbm [thread:$0]  %s8433, 256, %s11, [#allocation12]
        $region80: #{tpu_custom_call.1} parent=43 // pred_fallthru
          _
        // Predicated region
        $region81: #{tpu_custom_call.1} parent=43 // pred_check
          %p8436 = pneg %p204
        $region82: #{tpu_custom_call.1} parent=43 // pred_check_branch
          %8438 = sbr.rel (%p8436) target = $region84
        $region83: #{tpu_custom_call.1} parent=43 // pred_region
          %s8440 = ssub.s32 16, 16
          %8441 = vsyncadd [#allocation23], %s8440
          %s8443 = sshll.u32 [#allocation22], 4
          %s8444 = int_to_ptr.vmem [resolvable:$true] %s8443
          %8446 = dma.vmem_to_hbm [thread:$0]  %s8444, 16, %s12, [#allocation23]
        $region84: #{tpu_custom_call.1} parent=43 // pred_fallthru
          _
        // Predicated region
        $region85: #{tpu_custom_call.1} parent=43 // pred_check
          %p8447 = pneg %p183
        $region86: #{tpu_custom_call.1} parent=43 // pred_check_branch
          %8449 = sbr.rel (%p8447) target = $region88
        $region87: #{tpu_custom_call.1} parent=43 // pred_region
          %8450 = dma.done [#allocation12], 256
        $region88: #{tpu_custom_call.1} parent=43 // pred_fallthru
          _
        // Predicated region
        $region89: #{tpu_custom_call.1} parent=43 // pred_check
          %p8451 = pneg %p204
        $region90: #{tpu_custom_call.1} parent=43 // pred_check_branch
          %8453 = sbr.rel (%p8451) target = $region92
        $region91: #{tpu_custom_call.1} parent=43 // pred_region
          %8454 = dma.done [#allocation23], 16
        $region92: #{tpu_custom_call.1} parent=43 // pred_fallthru
          _
      $region44: #{tpu_custom_call.1} parent=5 // pred_fallthru
        _
      %p8455 = scmp.le.s32.totalorder 2, %s29
      // Predicated region
      $region93: #{tpu_custom_call.1} parent=5 // pred_check
        %p8456 = pneg %p8455
      $region94: #{tpu_custom_call.1} parent=5 // pred_check_branch
        %8458 = sbr.rel (%p8456) target = $region96
      $region95: #{tpu_custom_call.1} parent=5 // pred_region
        %s8459 = ssub.s32 %s29, 2
      $region96: #{tpu_custom_call.1} parent=5 // pred_fallthru
        _
    $region6: #{tpu_custom_call.1} parent=1 // loop_footer
      %s33 = sadd.s32 1, %s29
    $region7: #{tpu_custom_call.1} parent=1 // loop_footer_branch
      %28 = sbr.rel target = $region3
    $region8: #{tpu_custom_call.1} parent=1 // loop_exit
      _
    %8460 = vsyncpa [#allocation11], 1
    %s8461 = scalar_lea.sflag [#allocation11], 1
    %8462 = vsyncpa %s8461, 1
    %8463 = vsyncpa [#allocation14], 1
    %s8464 = scalar_lea.sflag [#allocation14], 1
    %8465 = vsyncpa %s8464, 1
    %8466 = vsyncpa [#allocation17], 1
    %8467 = vsyncpa [#allocation20], 1
    %8468 = vsyncpa [#allocation12], 1
    %s8469 = scalar_lea.sflag [#allocation12], 1
    %8470 = vsyncpa %s8469, 1
    %8471 = vsyncpa [#allocation23], 1
  %8472 = vsyncmov [#allocation9]
  %s8473 = vpop.sfrf %8472
  %p8474 = scmp.eq.s32.totalorder %s8473, 0
  %p8475 = pneg %p8474
  %8477 = shalt.err (%p8475)
  %s8478 = scalar_lea.sflag [#allocation9], 1
  %8479 = vsyncmov %s8478
  %s8480 = vpop.sfrf %8479
  %p8481 = scmp.eq.s32.totalorder %s8480, 0
  %p8482 = pneg %p8481
  %8484 = shalt.err (%p8482)
  %s8485 = scalar_lea.sflag [#allocation9], 2
  %8486 = vsyncmov %s8485
  %s8487 = vpop.sfrf %8486
  %p8488 = scmp.eq.s32.totalorder %s8487, 0
  %p8489 = pneg %p8488
  %8491 = shalt.err (%p8489)
  %s8492 = scalar_lea.sflag [#allocation9], 3
  %8493 = vsyncmov %s8492
  %s8494 = vpop.sfrf %8493
  %p8495 = scmp.eq.s32.totalorder %s8494, 0
  %p8496 = pneg %p8495
  %8498 = shalt.err (%p8496)
  %s8499 = scalar_lea.sflag [#allocation9], 4
  %8500 = vsyncmov %s8499
  %s8501 = vpop.sfrf %8500
  %p8502 = scmp.eq.s32.totalorder %s8501, 0
  %p8503 = pneg %p8502
  %8505 = shalt.err (%p8503)

</llo_original>
